<compile_context>
chip_gen: v7x
topology: tpu7x:2x2x1
jax: 0.10.0
libtpu: 0.0.40
codegen_flags: <defaults>
</compile_context>

<pallas_src>
import functools

import jax
import jax.numpy as jnp
from jax.experimental import pallas as pl
from jax.experimental.pallas import tpu as pltpu

_EPS = 1e-5
_LANE = 128                       # channel padding target (TPU lane width)
_VMEM_LIMIT = 32 * 1024 * 1024    # scoped-VMEM limit (safe headroom on v7x 64 MiB)


def _round_up(x, m):
    return ((x + m - 1) // m) * m


def _pad_channels(c):
    return _round_up(c, _LANE)


# ----------------------------------------------------------------------------
# Pallas kernel bodies
# ----------------------------------------------------------------------------

def _mm_bn_act_kernel(a_ref, w_ref, shift_ref, o_ref, *, relu):
    """(tm,K)bf16 @ (K,coutp)bf16 -> f32, + folded-BN shift, optional ReLU."""
    acc = jnp.dot(a_ref[...], w_ref[...], preferred_element_type=jnp.float32)
    y = acc + shift_ref[...]
    if relu:
        y = jnp.maximum(y, 0.0)
    o_ref[...] = y.astype(o_ref.dtype)


def _mm_bn_res_act_kernel(a_ref, w_ref, shift_ref, r_ref, o_ref, *, relu):
    """Same as above with the bottleneck residual add fused into the epilogue."""
    acc = jnp.dot(a_ref[...], w_ref[...], preferred_element_type=jnp.float32)
    y = acc + shift_ref[...] + r_ref[...].astype(jnp.float32)
    if relu:
        y = jnp.maximum(y, 0.0)
    o_ref[...] = y.astype(o_ref.dtype)


def _direct_conv_kernel(x_ref, w_ref, shift_ref, o_ref, *, qmax, band, wq, relu):
    """Direct k x k conv on one row band (space-to-depth + flattened-row layout).

    x_ref:     (1, (band+qmax)*wq, Cp)  bf16   input slab (rows flattened over width)
    w_ref:     (qmax*qmax, Cp, Coutp)   bf16   per-tap weights (BN scale folded in)
    shift_ref: (1, Coutp)               f32
    o_ref:     (1, band*wq, Coutp)      bf16
    Each tap is one contiguous row-slab matmul accumulated in f32; wrap-around
    columns only affect output columns >= wo, which the wrapper crops.
    """
    # TODO(synk): on v7x, drive the MXU result buffer (MRB) explicitly so the f32
    # accumulator does not round-trip VMEM on every tap.
    nrows = band * wq
    coutp = o_ref.shape[-1]
    acc = jnp.zeros((nrows, coutp), jnp.float32)
    t = 0
    for qy in range(qmax):
        for qx in range(qmax):
            start = qy * wq + qx
            a = x_ref[0, start:start + nrows, :]
            acc = acc + jnp.dot(a, w_ref[t], preferred_element_type=jnp.float32)
            t += 1
    y = acc + shift_ref[...]
    if relu:
        y = jnp.maximum(y, 0.0)
    o_ref[0] = y.astype(o_ref.dtype)     # single contiguous lane-dense store


def _maxpool_kernel(x_ref, o_ref, *, taps, band, wq, c):
    """MaxPool2d(3, 2, 1) on one row band of the space-to-depth layout.

    taps: static (row_offset, channel_offset) pairs; channel offsets are multiples
    of 128 (free lane slices).
    """
    nrows = band * wq
    m = None
    for (roff, coff) in taps:
        a = x_ref[0, roff:roff + nrows, coff:coff + c]
        m = a if m is None else jnp.maximum(m, a)
    o_ref[0] = m.astype(o_ref.dtype)


# ----------------------------------------------------------------------------
# Space-to-depth + row-band layout (im2col replacement, no HBM blowup)
# ----------------------------------------------------------------------------

def _band_layout(x, kernel, stride, pad_value, target_rows=1024):
    """Prepare NHWC `x` for a k x k / stride-s window op with padding k//2.

    Steps (all one fused XLA pass): spatial zero/-big pad, space-to-depth by s
    (phases packed into channels), channel pad to a multiple of 128, duplication of
    the qmax-row halo per band, and flattening (rows, width) -> rows*wq.

    Returns (xb, meta) with xb shape (N*nbands, (band+qmax)*wq, cp) such that for
    band b, output pixel (i, j) (i < band, j < wo) and tap (ky, kx) = (s*qy+ry,
    s*qx+rx):
        xb[n*nbands+b, (i+qy)*wq + (j+qx), (ry*s+rx)*C : +C]
            == x_padded[n, s*(b*band+i) + ky, s*j + kx, :]
    """
    n, h, w, c = x.shape
    s, p = stride, kernel // 2
    ho = (h + 2 * p - kernel) // s + 1
    wo = (w + 2 * p - kernel) // s + 1
    qmax = -(-kernel // s)                       # ceil(k / s) taps per axis
    wq = _round_up(max(wo + qmax - 1, -(-(w + p) // s)), 8)
    band = max(1, min(ho, target_rows // wq))    # ~1K flattened rows per grid step
    nbands = -(-ho // band)
    hq = max(nbands * band + qmax, -(-(h + p) // s))   # +qmax safety rows per band
    hp, wp = s * hq, s * wq
    xp = jnp.pad(
        x,
        ((0, 0), (p, hp - h - p), (p, wp - w - p), (0, 0)),
        constant_values=pad_value)
    xd = xp.reshape(n, hq, s, wq, s, c).transpose(0, 1, 3, 2, 4, 5)
    cd = s * s * c
    xd = xd.reshape(n, hq, wq, cd)
    cp = _pad_channels(cd)
    if cp != cd:
        xd = jnp.pad(xd, ((0, 0), (0, 0), (0, 0), (0, cp - cd)))
    if nbands == 1:
        xb = xd[:, :band + qmax]
    else:
        xb = jnp.stack(
            [xd[:, b * band: b * band + band + qmax] for b in range(nbands)],
            axis=1)
    xb = xb.reshape(n * nbands, (band + qmax) * wq, cp)
    meta = dict(n=n, ho=ho, wo=wo, wq=wq, band=band, nbands=nbands,
                qmax=qmax, cp=cp)
    return xb, meta


def _make_tap_weights(w_hwio, stride, cp, coutp):
    """Per-tap (qy, qx) weights matching the space-to-depth channel layout.

    wt[qy*qmax+qx, (ry*s+rx)*cin + ci, co] = w_hwio[s*qy+ry, s*qx+rx, ci, co]
    (zero where s*q+r >= k or inside the channel padding).
    """
    k, _, cin, cout = w_hwio.shape
    s = stride
    qmax = -(-k // s)
    taps = []
    for qy in range(qmax):
        for qx in range(qmax):
            wt = jnp.zeros((s, s, cin, cout), w_hwio.dtype)
            for ry in range(s):
                for rx in range(s):
                    ky, kx = s * qy + ry, s * qx + rx
                    if ky < k and kx < k:
                        wt = wt.at[ry, rx].set(w_hwio[ky, kx])
            taps.append(wt.reshape(s * s * cin, cout))
    wt = jnp.stack(taps, axis=0)
    wt = jnp.pad(wt, ((0, 0), (0, cp - s * s * cin), (0, coutp - cout)))
    return wt.astype(jnp.bfloat16)


# ----------------------------------------------------------------------------
# Kernel wrappers
# ----------------------------------------------------------------------------

def _matmul_bn_act(a, w, shift, *, relu, res=None):
    """a:(M,K)bf16 @ w:(K,coutp)bf16 + shift (+ res) [+ReLU] -> (M,coutp) bf16."""
    m, k = a.shape
    coutp = w.shape[1]
    mp = m if m % 8 == 0 else _round_up(m, 8)
    if mp != m:
        a = jnp.pad(a, ((0, mp - m), (0, 0)))
        if res is not None:
            res = jnp.pad(res, ((0, mp - m), (0, 0)))
    # Pick tm among divisors of M (no XLA pad pass over the activation) with a
    # VMEM budget so wide layers stay well under the 32 MiB scoped limit.
    per_row_bytes = 4 * (k + 2 * coutp)
    tm = 8
    for t in (1024, 512, 256, 128, 64, 32, 16, 8):
        if mp % t == 0 and t * per_row_bytes <= (12 << 20):
            tm = t
            break
    in_specs = [
        pl.BlockSpec((tm, k), lambda i: (i, 0)),
        pl.BlockSpec((k, coutp), lambda i: (0, 0)),   # weight stays VMEM-resident
        pl.BlockSpec((1, coutp), lambda i: (0, 0)),   # shift stays VMEM-resident
    ]
    args = [a, w, shift]
    if res is None:
        kern = functools.partial(_mm_bn_act_kernel, relu=relu)
    else:
        in_specs.append(pl.BlockSpec((tm, coutp), lambda i: (i, 0)))
        args.append(res)
        kern = functools.partial(_mm_bn_res_act_kernel, relu=relu)
    out = pl.pallas_call(
        kern,
        out_shape=jax.ShapeDtypeStruct((mp, coutp), jnp.bfloat16),
        grid=(mp // tm,),
        in_specs=in_specs,
        out_specs=pl.BlockSpec((tm, coutp), lambda i: (i, 0)),
        compiler_params=pltpu.CompilerParams(
            dimension_semantics=("parallel",),
            vmem_limit_bytes=_VMEM_LIMIT),
    )(*args)
    return out if mp == m else out[:m]


def _fold_bn(p):
    """Fold inference BatchNorm (+ conv bias) into the conv weight / additive shift."""
    scale = p["gamma"] / jnp.sqrt(p["var"] + _EPS)
    shift = p["beta"] - p["mean"] * scale
    if p["b"] is not None:
        shift = shift + p["b"] * scale
    w = jnp.transpose(p["w"], (2, 3, 1, 0)) * scale          # OIHW -> HWIO, scaled
    return w, shift


def conv_bn_act(x, p, *, kernel, stride, relu, res=None):
    """Conv2d(k, stride, padding=k//2) + BatchNorm(inference) [+ residual] [+ ReLU].

    x, res: NHWC bf16; x channels may carry zero padding up to a multiple of 128
    (the raw unpadded input is fine too, e.g. for the stem).  The output channel
    axis is padded to a multiple of 128 (padded channels are exactly zero).
    """
    cout, cin = p["w"].shape[0], p["w"].shape[1]
    cin_x = x.shape[-1]
    coutp = _pad_channels(cout)
    w, shift = _fold_bn(p)
    shift = jnp.pad(shift, (0, coutp - cout)).reshape(1, coutp).astype(jnp.float32)

    if kernel == 1:
        if stride > 1:
            x = x[:, ::stride, ::stride, :]       # 1x1 stride-s conv = subsample
        n, ho, wo, _ = x.shape
        wm = jnp.pad(w[0, 0], ((0, cin_x - cin), (0, coutp - cout))).astype(jnp.bfloat16)
        a = x.reshape(n * ho * wo, cin_x)
        r = None if res is None else res.reshape(n * ho * wo, coutp)
        out = _matmul_bn_act(a, wm, shift, relu=relu, res=r)
        return out.reshape(n, ho, wo, coutp)

    assert res is None, "residual fusion is only used on the 1x1 (c3) conv"
    if cin_x != cin:                              # x carries zero-padded channels
        w = jnp.pad(w, ((0, 0), (0, 0), (0, cin_x - cin), (0, 0)))
    xb, m = _band_layout(x, kernel, stride, pad_value=0.0)
    band, wq, qmax, cp = m["band"], m["wq"], m["qmax"], m["cp"]
    w_taps = _make_tap_weights(w, stride, cp, coutp)
    ntaps = qmax * qmax
    nb = m["n"] * m["nbands"]
    kern = functools.partial(_direct_conv_kernel,
                             qmax=qmax, band=band, wq=wq, relu=relu)
    yb = pl.pallas_call(
        kern,
        out_shape=jax.ShapeDtypeStruct((nb, band * wq, coutp), jnp.bfloat16),
        grid=(nb,),
        in_specs=[
            pl.BlockSpec((1, (band + qmax) * wq, cp), lambda g: (g, 0, 0)),
            pl.BlockSpec((ntaps, cp, coutp), lambda g: (0, 0, 0)),   # resident
            pl.BlockSpec((1, coutp), lambda g: (0, 0)),              # resident
        ],
        out_specs=pl.BlockSpec((1, band * wq, coutp), lambda g: (g, 0, 0)),
        compiler_params=pltpu.CompilerParams(
            dimension_semantics=("parallel",),
            vmem_limit_bytes=_VMEM_LIMIT),
    )(xb, w_taps, shift)
    y = yb.reshape(m["n"], m["nbands"] * band, wq, coutp)
    return y[:, :m["ho"], :m["wo"], :]            # cheap XLA crop wq->wo


def maxpool_3x3_s2_p1(x):
    """MaxPool2d(kernel_size=3, stride=2, padding=1) on NHWC (channels % 128 == 0)."""
    c = x.shape[-1]
    xb, m = _band_layout(x, kernel=3, stride=2, pad_value=-3.0e38)
    band, wq, qmax = m["band"], m["wq"], m["qmax"]
    nb = m["n"] * m["nbands"]
    taps = []
    for qy in range(2):
        for ry in range(2):
            if 2 * qy + ry >= 3:
                continue
            for qx in range(2):
                for rx in range(2):
                    if 2 * qx + rx >= 3:
                        continue
                    taps.append((qy * wq + qx, (ry * 2 + rx) * c))
    kern = functools.partial(_maxpool_kernel, taps=tuple(taps), band=band, wq=wq, c=c)
    yb = pl.pallas_call(
        kern,
        out_shape=jax.ShapeDtypeStruct((nb, band * wq, c), x.dtype),
        grid=(nb,),
        in_specs=[pl.BlockSpec((1, (band + qmax) * wq, m["cp"]), lambda g: (g, 0, 0))],
        out_specs=pl.BlockSpec((1, band * wq, c), lambda g: (g, 0, 0)),
        compiler_params=pltpu.CompilerParams(
            dimension_semantics=("parallel",),
            vmem_limit_bytes=_VMEM_LIMIT),
    )(xb)
    y = yb.reshape(m["n"], m["nbands"] * band, wq, c)
    return y[:, :m["ho"], :m["wo"], :]


# ----------------------------------------------------------------------------
# Parameters (PyTorch-layout, synthetic BN running stats)
# ----------------------------------------------------------------------------

def init_conv_bn(key, cin, cout, k, bias):
    ks = jax.random.split(key, 6)
    fan_in = cin * k * k
    return dict(
        w=jax.random.normal(ks[0], (cout, cin, k, k), jnp.float32) / (fan_in ** 0.5),
        b=(0.1 * jax.random.normal(ks[1], (cout,), jnp.float32)) if bias else None,
        gamma=1.0 + 0.1 * jax.random.normal(ks[2], (cout,), jnp.float32),
        beta=0.1 * jax.random.normal(ks[3], (cout,), jnp.float32),
        mean=0.1 * jax.random.normal(ks[4], (cout,), jnp.float32),
        var=0.5 + 0.1 * jnp.abs(jax.random.normal(ks[5], (cout,), jnp.float32)),
    )


def init_bottleneck(key, in_f, out_f, reduction=4):
    red = out_f // reduction
    k1, k2, k3, k4 = jax.random.split(key, 4)
    p = dict(
        c1=init_conv_bn(k1, in_f, red, 1, False),
        c2=init_conv_bn(k2, red, red, 3, False),
        c3=init_conv_bn(k3, red, out_f, 1, False),
    )
    if in_f != out_f:
        p["sc"] = init_conv_bn(k4, in_f, out_f, 1, False)
    return p


def init_encoder(key, in_channels, stem_features, depths, widths):
    keys = jax.random.split(key, 1 + sum(depths))
    params = dict(stem=init_conv_bn(keys[0], in_channels, stem_features, 7, True))
    stage_cfg = [(stem_features, widths[0], depths[0])] + [
        (i, o, d) for (i, o), d in zip(zip(widths, widths[1:]), depths[1:])
    ]
    stages, ki = [], 1
    for in_f, out_f, depth in stage_cfg:
        blocks = [init_bottleneck(keys[ki], in_f, out_f)]
        ki += 1
        for _ in range(depth - 1):
            blocks.append(init_bottleneck(keys[ki], out_f, out_f))
            ki += 1
        stages.append(blocks)
    params["stages"] = stages
    return params


# ----------------------------------------------------------------------------
# Forward pass
# ----------------------------------------------------------------------------

def bottleneck_forward(x, p, stride):
    y = conv_bn_act(x, p["c1"], kernel=1, stride=stride, relu=True)
    y = conv_bn_act(y, p["c2"], kernel=3, stride=1, relu=True)
    if "sc" in p:
        # Per the spec, the shortcut ConvNormAct uses the default ReLU activation.
        res = conv_bn_act(x, p["sc"], kernel=1, stride=stride, relu=True)
    else:
        res = x
    # c3 conv + BN + residual add + the block's final ReLU, all fused in-kernel.
    return conv_bn_act(y, p["c3"], kernel=1, stride=1, relu=True, res=res)


def convnext_encoder_forward(params, x_nchw):
    x = jnp.transpose(x_nchw, (0, 2, 3, 1)).astype(jnp.bfloat16)   # NCHW -> NHWC
    # Stem: stride-2 7x7 conv via space-to-depth on the raw (unpadded) channels,
    # then 3x3/2 maxpool.
    # TODO(synk): fuse the maxpool into the stem conv epilogue to save one full
    # HBM pass over the largest activation.
    x = conv_bn_act(x, params["stem"], kernel=7, stride=2, relu=True)
    x = maxpool_3x3_s2_p1(x)
    for si, blocks in enumerate(params["stages"]):
        for bi, p in enumerate(blocks):
            stride = 2 if (si > 0 and bi == 0) else 1
            x = bottleneck_forward(x, p, stride)
    cout = params["stages"][-1][-1]["c3"]["w"].shape[0]
    x = x[..., :cout].astype(jnp.float32)
    return jnp.transpose(x, (0, 3, 1, 2))                          # NHWC -> NCHW


# ----------------------------------------------------------------------------
# Plain-JAX (f32) reference
# ----------------------------------------------------------------------------

def _ref_cna(x, p, *, kernel, stride, relu):
    w = jnp.transpose(p["w"], (2, 3, 1, 0))                        # OIHW -> HWIO
    pad = kernel // 2
    y = jax.lax.conv_general_dilated(
        x, w, window_strides=(stride, stride), padding=[(pad, pad), (pad, pad)],
        dimension_numbers=("NHWC", "HWIO", "NHWC"))
    if p["b"] is not None:
        y = y + p["b"]
    scale = p["gamma"] / jnp.sqrt(p["var"] + _EPS)
    y = y * scale + (p["beta"] - p["mean"] * scale)
    return jnp.maximum(y, 0.0) if relu else y


def ref_forward(params, x_nchw):
    x = jnp.transpose(x_nchw, (0, 2, 3, 1))
    x = _ref_cna(x, params["stem"], kernel=7, stride=2, relu=True)
    x = jax.lax.reduce_window(x, -jnp.inf, jax.lax.max,
                              (1, 3, 3, 1), (1, 2, 2, 1),
                              [(0, 0), (1, 1), (1, 1), (0, 0)])
    for si, blocks in enumerate(params["stages"]):
        for bi, p in enumerate(blocks):
            stride = 2 if (si > 0 and bi == 0) else 1
            y = _ref_cna(x, p["c1"], kernel=1, stride=stride, relu=True)
            y = _ref_cna(y, p["c2"], kernel=3, stride=1, relu=True)
            y = _ref_cna(y, p["c3"], kernel=1, stride=1, relu=False)
            res = _ref_cna(x, p["sc"], kernel=1, stride=stride, relu=True) if "sc" in p else x
            x = jnp.maximum(y + res, 0.0)
    return jnp.transpose(x, (0, 3, 1, 2))


# ----------------------------------------------------------------------------
# Main
# ----------------------------------------------------------------------------

if __name__ == "__main__":
    key = jax.random.PRNGKey(0)
    kx, kp = jax.random.split(key)

    in_channels, stem_features = 4, 8
    depths, widths = [2, 1], [16, 32]

    x = jax.random.normal(kx, (2, in_channels, 16, 16), jnp.float32)   # NCHW
    params = init_encoder(kp, in_channels, stem_features, depths, widths)

    out = jax.block_until_ready(jax.jit(convnext_encoder_forward)(params, x))
    ref = jax.block_until_ready(jax.jit(ref_forward)(params, x))

    assert out.shape == ref.shape, (out.shape, ref.shape)
    # bf16 MXU operands + bf16 activation storage (f32 accumulation): compare
    # against the pure-f32 XLA reference with a mixed abs/rel criterion.
    err = float(jnp.max(jnp.abs(out - ref) / (1.0 + jnp.abs(ref))))
    assert err < 5e-2, f"mixed rel/abs error too large: {err}"
    print("KERNEL_OK")
</pallas_src>

<mosaic_0001>
module attributes {stable_mosaic.version = 11 : i64} {
  func.func @_direct_conv_kernel(%arg0: i32, %arg1: memref<1x192x128xbf16, #tpu.memory_space<vmem>>, %arg2: memref<16x128x128xbf16, #tpu.memory_space<vmem>>, %arg3: memref<1x128xf32, #tpu.memory_space<vmem>>, %arg4: memref<1x128x128xbf16, #tpu.memory_space<vmem>>) attributes {dimension_semantics = [#tpu.dimension_semantics<parallel>], iteration_bounds = array<i64: 2>, scalar_prefetch = 0 : i64, scratch_operands = 0 : i64, tpu.core_type = #tpu.core_type<tc>, window_params = [{transform_indices = @transform_0, window_bounds = array<i64: 1, 192, 128>}, {pipeline_mode = #tpu.pipeline_mode<synchronous>, transform_indices = @transform_1, window_bounds = array<i64: 16, 128, 128>}, {pipeline_mode = #tpu.pipeline_mode<synchronous>, transform_indices = @transform_2, window_bounds = array<i64: 1, 128>}, {transform_indices = @transform_3, window_bounds = array<i64: 1, 128, 128>}]} {
    %cst = arith.constant 0.000000e+00 : f32
    %0 = vector.broadcast %cst : f32 to vector<128x128xf32>
    %c0 = arith.constant 0 : index
    %c0_0 = arith.constant 0 : index
    %c0_1 = arith.constant 0 : index
    %1 = vector.load %arg1[%c0, %c0_0, %c0_1] : memref<1x192x128xbf16, #tpu.memory_space<vmem>>, vector<1x128x128xbf16>
    %2 = vector.shape_cast %1 : vector<1x128x128xbf16> to vector<128x128xbf16>
    %c0_2 = arith.constant 0 : index
    %c0_3 = arith.constant 0 : index
    %c0_4 = arith.constant 0 : index
    %3 = vector.load %arg2[%c0_2, %c0_3, %c0_4] : memref<16x128x128xbf16, #tpu.memory_space<vmem>>, vector<1x128x128xbf16>
    %4 = vector.shape_cast %3 : vector<1x128x128xbf16> to vector<128x128xbf16>
    %cst_5 = arith.constant dense<0.000000e+00> : vector<128x128xf32>
    %5 = tpu.matmul %2, %4, %cst_5 {dimension_numbers = #tpu.dot_dimension_numbers<[1], [0], [0], [1], [0, 0, 1, 1], [], []>} : vector<128x128xbf16>, vector<128x128xbf16>, vector<128x128xf32> -> vector<128x128xf32>
    %6 = arith.addf %0, %5 : vector<128x128xf32>
    %c0_6 = arith.constant 0 : index
    %c1 = arith.constant 1 : index
    %c0_7 = arith.constant 0 : index
    %7 = vector.load %arg1[%c0_6, %c1, %c0_7] : memref<1x192x128xbf16, #tpu.memory_space<vmem>>, vector<1x128x128xbf16>
    %8 = vector.shape_cast %7 : vector<1x128x128xbf16> to vector<128x128xbf16>
    %c1_8 = arith.constant 1 : index
    %c0_9 = arith.constant 0 : index
    %c0_10 = arith.constant 0 : index
    %9 = vector.load %arg2[%c1_8, %c0_9, %c0_10] : memref<16x128x128xbf16, #tpu.memory_space<vmem>>, vector<1x128x128xbf16>
    %10 = vector.shape_cast %9 : vector<1x128x128xbf16> to vector<128x128xbf16>
    %cst_11 = arith.constant dense<0.000000e+00> : vector<128x128xf32>
    %11 = tpu.matmul %8, %10, %cst_11 {dimension_numbers = #tpu.dot_dimension_numbers<[1], [0], [0], [1], [0, 0, 1, 1], [], []>} : vector<128x128xbf16>, vector<128x128xbf16>, vector<128x128xf32> -> vector<128x128xf32>
    %12 = arith.addf %6, %11 : vector<128x128xf32>
    %c0_12 = arith.constant 0 : index
    %c2 = arith.constant 2 : index
    %c0_13 = arith.constant 0 : index
    %13 = vector.load %arg1[%c0_12, %c2, %c0_13] : memref<1x192x128xbf16, #tpu.memory_space<vmem>>, vector<1x128x128xbf16>
    %14 = vector.shape_cast %13 : vector<1x128x128xbf16> to vector<128x128xbf16>
    %c2_14 = arith.constant 2 : index
    %c0_15 = arith.constant 0 : index
    %c0_16 = arith.constant 0 : index
    %15 = vector.load %arg2[%c2_14, %c0_15, %c0_16] : memref<16x128x128xbf16, #tpu.memory_space<vmem>>, vector<1x128x128xbf16>
    %16 = vector.shape_cast %15 : vector<1x128x128xbf16> to vector<128x128xbf16>
    %cst_17 = arith.constant dense<0.000000e+00> : vector<128x128xf32>
    %17 = tpu.matmul %14, %16, %cst_17 {dimension_numbers = #tpu.dot_dimension_numbers<[1], [0], [0], [1], [0, 0, 1, 1], [], []>} : vector<128x128xbf16>, vector<128x128xbf16>, vector<128x128xf32> -> vector<128x128xf32>
    %18 = arith.addf %12, %17 : vector<128x128xf32>
    %c0_18 = arith.constant 0 : index
    %c3 = arith.constant 3 : index
    %c0_19 = arith.constant 0 : index
    %19 = vector.load %arg1[%c0_18, %c3, %c0_19] : memref<1x192x128xbf16, #tpu.memory_space<vmem>>, vector<1x128x128xbf16>
    %20 = vector.shape_cast %19 : vector<1x128x128xbf16> to vector<128x128xbf16>
    %c3_20 = arith.constant 3 : index
    %c0_21 = arith.constant 0 : index
    %c0_22 = arith.constant 0 : index
    %21 = vector.load %arg2[%c3_20, %c0_21, %c0_22] : memref<16x128x128xbf16, #tpu.memory_space<vmem>>, vector<1x128x128xbf16>
    %22 = vector.shape_cast %21 : vector<1x128x128xbf16> to vector<128x128xbf16>
    %cst_23 = arith.constant dense<0.000000e+00> : vector<128x128xf32>
    %23 = tpu.matmul %20, %22, %cst_23 {dimension_numbers = #tpu.dot_dimension_numbers<[1], [0], [0], [1], [0, 0, 1, 1], [], []>} : vector<128x128xbf16>, vector<128x128xbf16>, vector<128x128xf32> -> vector<128x128xf32>
    %24 = arith.addf %18, %23 : vector<128x128xf32>
    %c0_24 = arith.constant 0 : index
    %c16 = arith.constant 16 : index
    %c0_25 = arith.constant 0 : index
    %25 = vector.load %arg1[%c0_24, %c16, %c0_25] : memref<1x192x128xbf16, #tpu.memory_space<vmem>>, vector<1x128x128xbf16>
    %26 = vector.shape_cast %25 : vector<1x128x128xbf16> to vector<128x128xbf16>
    %c4 = arith.constant 4 : index
    %c0_26 = arith.constant 0 : index
    %c0_27 = arith.constant 0 : index
    %27 = vector.load %arg2[%c4, %c0_26, %c0_27] : memref<16x128x128xbf16, #tpu.memory_space<vmem>>, vector<1x128x128xbf16>
    %28 = vector.shape_cast %27 : vector<1x128x128xbf16> to vector<128x128xbf16>
    %cst_28 = arith.constant dense<0.000000e+00> : vector<128x128xf32>
    %29 = tpu.matmul %26, %28, %cst_28 {dimension_numbers = #tpu.dot_dimension_numbers<[1], [0], [0], [1], [0, 0, 1, 1], [], []>} : vector<128x128xbf16>, vector<128x128xbf16>, vector<128x128xf32> -> vector<128x128xf32>
    %30 = arith.addf %24, %29 : vector<128x128xf32>
    %c0_29 = arith.constant 0 : index
    %c17 = arith.constant 17 : index
    %c0_30 = arith.constant 0 : index
    %31 = vector.load %arg1[%c0_29, %c17, %c0_30] : memref<1x192x128xbf16, #tpu.memory_space<vmem>>, vector<1x128x128xbf16>
    %32 = vector.shape_cast %31 : vector<1x128x128xbf16> to vector<128x128xbf16>
    %c5 = arith.constant 5 : index
    %c0_31 = arith.constant 0 : index
    %c0_32 = arith.constant 0 : index
    %33 = vector.load %arg2[%c5, %c0_31, %c0_32] : memref<16x128x128xbf16, #tpu.memory_space<vmem>>, vector<1x128x128xbf16>
    %34 = vector.shape_cast %33 : vector<1x128x128xbf16> to vector<128x128xbf16>
    %cst_33 = arith.constant dense<0.000000e+00> : vector<128x128xf32>
    %35 = tpu.matmul %32, %34, %cst_33 {dimension_numbers = #tpu.dot_dimension_numbers<[1], [0], [0], [1], [0, 0, 1, 1], [], []>} : vector<128x128xbf16>, vector<128x128xbf16>, vector<128x128xf32> -> vector<128x128xf32>
    %36 = arith.addf %30, %35 : vector<128x128xf32>
    %c0_34 = arith.constant 0 : index
    %c18 = arith.constant 18 : index
    %c0_35 = arith.constant 0 : index
    %37 = vector.load %arg1[%c0_34, %c18, %c0_35] : memref<1x192x128xbf16, #tpu.memory_space<vmem>>, vector<1x128x128xbf16>
    %38 = vector.shape_cast %37 : vector<1x128x128xbf16> to vector<128x128xbf16>
    %c6 = arith.constant 6 : index
    %c0_36 = arith.constant 0 : index
    %c0_37 = arith.constant 0 : index
    %39 = vector.load %arg2[%c6, %c0_36, %c0_37] : memref<16x128x128xbf16, #tpu.memory_space<vmem>>, vector<1x128x128xbf16>
    %40 = vector.shape_cast %39 : vector<1x128x128xbf16> to vector<128x128xbf16>
    %cst_38 = arith.constant dense<0.000000e+00> : vector<128x128xf32>
    %41 = tpu.matmul %38, %40, %cst_38 {dimension_numbers = #tpu.dot_dimension_numbers<[1], [0], [0], [1], [0, 0, 1, 1], [], []>} : vector<128x128xbf16>, vector<128x128xbf16>, vector<128x128xf32> -> vector<128x128xf32>
    %42 = arith.addf %36, %41 : vector<128x128xf32>
    %c0_39 = arith.constant 0 : index
    %c19 = arith.constant 19 : index
    %c0_40 = arith.constant 0 : index
    %43 = vector.load %arg1[%c0_39, %c19, %c0_40] : memref<1x192x128xbf16, #tpu.memory_space<vmem>>, vector<1x128x128xbf16>
    %44 = vector.shape_cast %43 : vector<1x128x128xbf16> to vector<128x128xbf16>
    %c7 = arith.constant 7 : index
    %c0_41 = arith.constant 0 : index
    %c0_42 = arith.constant 0 : index
    %45 = vector.load %arg2[%c7, %c0_41, %c0_42] : memref<16x128x128xbf16, #tpu.memory_space<vmem>>, vector<1x128x128xbf16>
    %46 = vector.shape_cast %45 : vector<1x128x128xbf16> to vector<128x128xbf16>
    %cst_43 = arith.constant dense<0.000000e+00> : vector<128x128xf32>
    %47 = tpu.matmul %44, %46, %cst_43 {dimension_numbers = #tpu.dot_dimension_numbers<[1], [0], [0], [1], [0, 0, 1, 1], [], []>} : vector<128x128xbf16>, vector<128x128xbf16>, vector<128x128xf32> -> vector<128x128xf32>
    %48 = arith.addf %42, %47 : vector<128x128xf32>
    %c0_44 = arith.constant 0 : index
    %c32 = arith.constant 32 : index
    %c0_45 = arith.constant 0 : index
    %49 = vector.load %arg1[%c0_44, %c32, %c0_45] : memref<1x192x128xbf16, #tpu.memory_space<vmem>>, vector<1x128x128xbf16>
    %50 = vector.shape_cast %49 : vector<1x128x128xbf16> to vector<128x128xbf16>
    %c8 = arith.constant 8 : index
    %c0_46 = arith.constant 0 : index
    %c0_47 = arith.constant 0 : index
    %51 = vector.load %arg2[%c8, %c0_46, %c0_47] : memref<16x128x128xbf16, #tpu.memory_space<vmem>>, vector<1x128x128xbf16>
    %52 = vector.shape_cast %51 : vector<1x128x128xbf16> to vector<128x128xbf16>
    %cst_48 = arith.constant dense<0.000000e+00> : vector<128x128xf32>
    %53 = tpu.matmul %50, %52, %cst_48 {dimension_numbers = #tpu.dot_dimension_numbers<[1], [0], [0], [1], [0, 0, 1, 1], [], []>} : vector<128x128xbf16>, vector<128x128xbf16>, vector<128x128xf32> -> vector<128x128xf32>
    %54 = arith.addf %48, %53 : vector<128x128xf32>
    %c0_49 = arith.constant 0 : index
    %c33 = arith.constant 33 : index
    %c0_50 = arith.constant 0 : index
    %55 = vector.load %arg1[%c0_49, %c33, %c0_50] : memref<1x192x128xbf16, #tpu.memory_space<vmem>>, vector<1x128x128xbf16>
    %56 = vector.shape_cast %55 : vector<1x128x128xbf16> to vector<128x128xbf16>
    %c9 = arith.constant 9 : index
    %c0_51 = arith.constant 0 : index
    %c0_52 = arith.constant 0 : index
    %57 = vector.load %arg2[%c9, %c0_51, %c0_52] : memref<16x128x128xbf16, #tpu.memory_space<vmem>>, vector<1x128x128xbf16>
    %58 = vector.shape_cast %57 : vector<1x128x128xbf16> to vector<128x128xbf16>
    %cst_53 = arith.constant dense<0.000000e+00> : vector<128x128xf32>
    %59 = tpu.matmul %56, %58, %cst_53 {dimension_numbers = #tpu.dot_dimension_numbers<[1], [0], [0], [1], [0, 0, 1, 1], [], []>} : vector<128x128xbf16>, vector<128x128xbf16>, vector<128x128xf32> -> vector<128x128xf32>
    %60 = arith.addf %54, %59 : vector<128x128xf32>
    %c0_54 = arith.constant 0 : index
    %c34 = arith.constant 34 : index
    %c0_55 = arith.constant 0 : index
    %61 = vector.load %arg1[%c0_54, %c34, %c0_55] : memref<1x192x128xbf16, #tpu.memory_space<vmem>>, vector<1x128x128xbf16>
    %62 = vector.shape_cast %61 : vector<1x128x128xbf16> to vector<128x128xbf16>
    %c10 = arith.constant 10 : index
    %c0_56 = arith.constant 0 : index
    %c0_57 = arith.constant 0 : index
    %63 = vector.load %arg2[%c10, %c0_56, %c0_57] : memref<16x128x128xbf16, #tpu.memory_space<vmem>>, vector<1x128x128xbf16>
    %64 = vector.shape_cast %63 : vector<1x128x128xbf16> to vector<128x128xbf16>
    %cst_58 = arith.constant dense<0.000000e+00> : vector<128x128xf32>
    %65 = tpu.matmul %62, %64, %cst_58 {dimension_numbers = #tpu.dot_dimension_numbers<[1], [0], [0], [1], [0, 0, 1, 1], [], []>} : vector<128x128xbf16>, vector<128x128xbf16>, vector<128x128xf32> -> vector<128x128xf32>
    %66 = arith.addf %60, %65 : vector<128x128xf32>
    %c0_59 = arith.constant 0 : index
    %c35 = arith.constant 35 : index
    %c0_60 = arith.constant 0 : index
    %67 = vector.load %arg1[%c0_59, %c35, %c0_60] : memref<1x192x128xbf16, #tpu.memory_space<vmem>>, vector<1x128x128xbf16>
    %68 = vector.shape_cast %67 : vector<1x128x128xbf16> to vector<128x128xbf16>
    %c11 = arith.constant 11 : index
    %c0_61 = arith.constant 0 : index
    %c0_62 = arith.constant 0 : index
    %69 = vector.load %arg2[%c11, %c0_61, %c0_62] : memref<16x128x128xbf16, #tpu.memory_space<vmem>>, vector<1x128x128xbf16>
    %70 = vector.shape_cast %69 : vector<1x128x128xbf16> to vector<128x128xbf16>
    %cst_63 = arith.constant dense<0.000000e+00> : vector<128x128xf32>
    %71 = tpu.matmul %68, %70, %cst_63 {dimension_numbers = #tpu.dot_dimension_numbers<[1], [0], [0], [1], [0, 0, 1, 1], [], []>} : vector<128x128xbf16>, vector<128x128xbf16>, vector<128x128xf32> -> vector<128x128xf32>
    %72 = arith.addf %66, %71 : vector<128x128xf32>
    %c0_64 = arith.constant 0 : index
    %c48 = arith.constant 48 : index
    %c0_65 = arith.constant 0 : index
    %73 = vector.load %arg1[%c0_64, %c48, %c0_65] : memref<1x192x128xbf16, #tpu.memory_space<vmem>>, vector<1x128x128xbf16>
    %74 = vector.shape_cast %73 : vector<1x128x128xbf16> to vector<128x128xbf16>
    %c12 = arith.constant 12 : index
    %c0_66 = arith.constant 0 : index
    %c0_67 = arith.constant 0 : index
    %75 = vector.load %arg2[%c12, %c0_66, %c0_67] : memref<16x128x128xbf16, #tpu.memory_space<vmem>>, vector<1x128x128xbf16>
    %76 = vector.shape_cast %75 : vector<1x128x128xbf16> to vector<128x128xbf16>
    %cst_68 = arith.constant dense<0.000000e+00> : vector<128x128xf32>
    %77 = tpu.matmul %74, %76, %cst_68 {dimension_numbers = #tpu.dot_dimension_numbers<[1], [0], [0], [1], [0, 0, 1, 1], [], []>} : vector<128x128xbf16>, vector<128x128xbf16>, vector<128x128xf32> -> vector<128x128xf32>
    %78 = arith.addf %72, %77 : vector<128x128xf32>
    %c0_69 = arith.constant 0 : index
    %c49 = arith.constant 49 : index
    %c0_70 = arith.constant 0 : index
    %79 = vector.load %arg1[%c0_69, %c49, %c0_70] : memref<1x192x128xbf16, #tpu.memory_space<vmem>>, vector<1x128x128xbf16>
    %80 = vector.shape_cast %79 : vector<1x128x128xbf16> to vector<128x128xbf16>
    %c13 = arith.constant 13 : index
    %c0_71 = arith.constant 0 : index
    %c0_72 = arith.constant 0 : index
    %81 = vector.load %arg2[%c13, %c0_71, %c0_72] : memref<16x128x128xbf16, #tpu.memory_space<vmem>>, vector<1x128x128xbf16>
    %82 = vector.shape_cast %81 : vector<1x128x128xbf16> to vector<128x128xbf16>
    %cst_73 = arith.constant dense<0.000000e+00> : vector<128x128xf32>
    %83 = tpu.matmul %80, %82, %cst_73 {dimension_numbers = #tpu.dot_dimension_numbers<[1], [0], [0], [1], [0, 0, 1, 1], [], []>} : vector<128x128xbf16>, vector<128x128xbf16>, vector<128x128xf32> -> vector<128x128xf32>
    %84 = arith.addf %78, %83 : vector<128x128xf32>
    %c0_74 = arith.constant 0 : index
    %c50 = arith.constant 50 : index
    %c0_75 = arith.constant 0 : index
    %85 = vector.load %arg1[%c0_74, %c50, %c0_75] : memref<1x192x128xbf16, #tpu.memory_space<vmem>>, vector<1x128x128xbf16>
    %86 = vector.shape_cast %85 : vector<1x128x128xbf16> to vector<128x128xbf16>
    %c14 = arith.constant 14 : index
    %c0_76 = arith.constant 0 : index
    %c0_77 = arith.constant 0 : index
    %87 = vector.load %arg2[%c14, %c0_76, %c0_77] : memref<16x128x128xbf16, #tpu.memory_space<vmem>>, vector<1x128x128xbf16>
    %88 = vector.shape_cast %87 : vector<1x128x128xbf16> to vector<128x128xbf16>
    %cst_78 = arith.constant dense<0.000000e+00> : vector<128x128xf32>
    %89 = tpu.matmul %86, %88, %cst_78 {dimension_numbers = #tpu.dot_dimension_numbers<[1], [0], [0], [1], [0, 0, 1, 1], [], []>} : vector<128x128xbf16>, vector<128x128xbf16>, vector<128x128xf32> -> vector<128x128xf32>
    %90 = arith.addf %84, %89 : vector<128x128xf32>
    %c0_79 = arith.constant 0 : index
    %c51 = arith.constant 51 : index
    %c0_80 = arith.constant 0 : index
    %91 = vector.load %arg1[%c0_79, %c51, %c0_80] : memref<1x192x128xbf16, #tpu.memory_space<vmem>>, vector<1x128x128xbf16>
    %92 = vector.shape_cast %91 : vector<1x128x128xbf16> to vector<128x128xbf16>
    %c15 = arith.constant 15 : index
    %c0_81 = arith.constant 0 : index
    %c0_82 = arith.constant 0 : index
    %93 = vector.load %arg2[%c15, %c0_81, %c0_82] : memref<16x128x128xbf16, #tpu.memory_space<vmem>>, vector<1x128x128xbf16>
    %94 = vector.shape_cast %93 : vector<1x128x128xbf16> to vector<128x128xbf16>
    %cst_83 = arith.constant dense<0.000000e+00> : vector<128x128xf32>
    %95 = tpu.matmul %92, %94, %cst_83 {dimension_numbers = #tpu.dot_dimension_numbers<[1], [0], [0], [1], [0, 0, 1, 1], [], []>} : vector<128x128xbf16>, vector<128x128xbf16>, vector<128x128xf32> -> vector<128x128xf32>
    %96 = arith.addf %90, %95 : vector<128x128xf32>
    %c0_84 = arith.constant 0 : index
    %c0_85 = arith.constant 0 : index
    %97 = vector.load %arg3[%c0_84, %c0_85] : memref<1x128xf32, #tpu.memory_space<vmem>>, vector<1x128xf32>
    %98 = vector.broadcast %97 : vector<1x128xf32> to vector<128x128xf32>
    %99 = arith.addf %96, %98 : vector<128x128xf32>
    %cst_86 = arith.constant 0.000000e+00 : f32
    %100 = vector.broadcast %cst_86 : f32 to vector<128x128xf32>
    %101 = arith.maximumf %99, %100 : vector<128x128xf32>
    %102 = arith.truncf %101 : vector<128x128xf32> to vector<128x128xbf16>
    %c0_87 = arith.constant 0 : index
    %c0_88 = arith.constant 0 : index
    %c0_89 = arith.constant 0 : index
    %103 = vector.load %arg4[%c0_87, %c0_88, %c0_89] : memref<1x128x128xbf16, #tpu.memory_space<vmem>>, vector<1x128x128xbf16>
    %104 = vector.shape_cast %103 : vector<1x128x128xbf16> to vector<128x128xbf16>
    %105 = vector.shape_cast %102 : vector<128x128xbf16> to vector<1x128x128xbf16>
    tpu.vector_store %arg4[%c0_87, %c0_88, %c0_89], %105 {strides = array<i32>} : memref<1x128x128xbf16, #tpu.memory_space<vmem>>, vector<1x128x128xbf16>,
    return
  }
  func.func @transform_0(%arg0: i32) -> (i32, i32, i32) {
    %c0_i32 = arith.constant 0 : i32
    %c0_i32_0 = arith.constant 0 : i32
    %c0_i32_1 = arith.constant 0 : i32
    return %arg0, %c0_i32, %c0_i32_0 : i32, i32, i32
  }
  func.func @transform_1(%arg0: i32) -> (i32, i32, i32) {
    %c0_i32 = arith.constant 0 : i32
    %c0_i32_0 = arith.constant 0 : i32
    %c0_i32_1 = arith.constant 0 : i32
    %c0_i32_2 = arith.constant 0 : i32
    return %c0_i32, %c0_i32_0, %c0_i32_1 : i32, i32, i32
  }
  func.func @transform_2(%arg0: i32) -> (i32, i32) {
    %c0_i32 = arith.constant 0 : i32
    %c0_i32_0 = arith.constant 0 : i32
    %c0_i32_1 = arith.constant 0 : i32
    return %c0_i32, %c0_i32_0 : i32, i32
  }
  func.func @transform_3(%arg0: i32) -> (i32, i32, i32) {
    %c0_i32 = arith.constant 0 : i32
    %c0_i32_0 = arith.constant 0 : i32
    %c0_i32_1 = arith.constant 0 : i32
    return %arg0, %c0_i32, %c0_i32_0 : i32, i32, i32
  }
}

module attributes {stable_mosaic.version = 11 : i64} {
  func.func @_mm_bn_act_kernel(%arg0: i32, %arg1: memref<32x128xbf16, #tpu.memory_space<vmem>>, %arg2: memref<128x128xbf16, #tpu.memory_space<vmem>>, %arg3: memref<1x128xf32, #tpu.memory_space<vmem>>, %arg4: memref<32x128xbf16, #tpu.memory_space<vmem>>) attributes {dimension_semantics = [#tpu.dimension_semantics<parallel>], iteration_bounds = array<i64: 1>, scalar_prefetch = 0 : i64, scratch_operands = 0 : i64, tpu.core_type = #tpu.core_type<tc>, window_params = [{transform_indices = @transform_0, window_bounds = array<i64: 32, 128>}, {pipeline_mode = #tpu.pipeline_mode<synchronous>, transform_indices = @transform_1, window_bounds = array<i64: 128, 128>}, {pipeline_mode = #tpu.pipeline_mode<synchronous>, transform_indices = @transform_2, window_bounds = array<i64: 1, 128>}, {transform_indices = @transform_3, window_bounds = array<i64: 32, 128>}]} {
    %c0 = arith.constant 0 : index
    %c0_0 = arith.constant 0 : index
    %0 = vector.load %arg1[%c0, %c0_0] : memref<32x128xbf16, #tpu.memory_space<vmem>>, vector<32x128xbf16>
    %c0_1 = arith.constant 0 : index
    %c0_2 = arith.constant 0 : index
    %1 = vector.load %arg2[%c0_1, %c0_2] : memref<128x128xbf16, #tpu.memory_space<vmem>>, vector<128x128xbf16>
    %cst = arith.constant dense<0.000000e+00> : vector<32x128xf32>
    %2 = tpu.matmul %0, %1, %cst {dimension_numbers = #tpu.dot_dimension_numbers<[1], [0], [0], [1], [0, 0, 1, 1], [], []>} : vector<32x128xbf16>, vector<128x128xbf16>, vector<32x128xf32> -> vector<32x128xf32>
    %c0_3 = arith.constant 0 : index
    %c0_4 = arith.constant 0 : index
    %3 = vector.load %arg3[%c0_3, %c0_4] : memref<1x128xf32, #tpu.memory_space<vmem>>, vector<1x128xf32>
    %4 = vector.broadcast %3 : vector<1x128xf32> to vector<32x128xf32>
    %5 = arith.addf %2, %4 : vector<32x128xf32>
    %cst_5 = arith.constant 0.000000e+00 : f32
    %6 = vector.broadcast %cst_5 : f32 to vector<32x128xf32>
    %7 = arith.maximumf %5, %6 : vector<32x128xf32>
    %8 = arith.truncf %7 : vector<32x128xf32> to vector<32x128xbf16>
    %c0_6 = arith.constant 0 : index
    %c0_7 = arith.constant 0 : index
    %9 = vector.load %arg4[%c0_6, %c0_7] : memref<32x128xbf16, #tpu.memory_space<vmem>>, vector<32x128xbf16>
    tpu.vector_store %arg4[%c0_6, %c0_7], %8 {strides = array<i32>} : memref<32x128xbf16, #tpu.memory_space<vmem>>, vector<32x128xbf16>,
    return
  }
  func.func @transform_0(%arg0: i32) -> (i32, i32) {
    %c0_i32 = arith.constant 0 : i32
    %c0_i32_0 = arith.constant 0 : i32
    return %arg0, %c0_i32 : i32, i32
  }
  func.func @transform_1(%arg0: i32) -> (i32, i32) {
    %c0_i32 = arith.constant 0 : i32
    %c0_i32_0 = arith.constant 0 : i32
    %c0_i32_1 = arith.constant 0 : i32
    return %c0_i32, %c0_i32_0 : i32, i32
  }
  func.func @transform_2(%arg0: i32) -> (i32, i32) {
    %c0_i32 = arith.constant 0 : i32
    %c0_i32_0 = arith.constant 0 : i32
    %c0_i32_1 = arith.constant 0 : i32
    return %c0_i32, %c0_i32_0 : i32, i32
  }
  func.func @transform_3(%arg0: i32) -> (i32, i32) {
    %c0_i32 = arith.constant 0 : i32
    %c0_i32_0 = arith.constant 0 : i32
    return %arg0, %c0_i32 : i32, i32
  }
}

module attributes {stable_mosaic.version = 11 : i64} {
  func.func @_maxpool_kernel(%arg0: i32, %arg1: memref<1x48x512xbf16, #tpu.memory_space<vmem>>, %arg2: memref<1x32x128xbf16, #tpu.memory_space<vmem>>) attributes {dimension_semantics = [#tpu.dimension_semantics<parallel>], iteration_bounds = array<i64: 2>, scalar_prefetch = 0 : i64, scratch_operands = 0 : i64, tpu.core_type = #tpu.core_type<tc>, window_params = [{transform_indices = @transform_0, window_bounds = array<i64: 1, 48, 512>}, {transform_indices = @transform_1, window_bounds = array<i64: 1, 32, 128>}]} {
    %c0 = arith.constant 0 : index
    %c0_0 = arith.constant 0 : index
    %c0_1 = arith.constant 0 : index
    %0 = vector.load %arg1[%c0, %c0_0, %c0_1] : memref<1x48x512xbf16, #tpu.memory_space<vmem>>, vector<1x32x128xbf16>
    %1 = vector.shape_cast %0 : vector<1x32x128xbf16> to vector<32x128xbf16>
    %c0_2 = arith.constant 0 : index
    %c0_3 = arith.constant 0 : index
    %c128 = arith.constant 128 : index
    %2 = vector.load %arg1[%c0_2, %c0_3, %c128] : memref<1x48x512xbf16, #tpu.memory_space<vmem>>, vector<1x32x128xbf16>
    %3 = vector.shape_cast %2 : vector<1x32x128xbf16> to vector<32x128xbf16>
    %4 = arith.maximumf %1, %3 : vector<32x128xbf16>
    %c0_4 = arith.constant 0 : index
    %c1 = arith.constant 1 : index
    %c0_5 = arith.constant 0 : index
    %5 = vector.load %arg1[%c0_4, %c1, %c0_5] : memref<1x48x512xbf16, #tpu.memory_space<vmem>>, vector<1x32x128xbf16>
    %6 = vector.shape_cast %5 : vector<1x32x128xbf16> to vector<32x128xbf16>
    %7 = arith.maximumf %4, %6 : vector<32x128xbf16>
    %c0_6 = arith.constant 0 : index
    %c0_7 = arith.constant 0 : index
    %c256 = arith.constant 256 : index
    %8 = vector.load %arg1[%c0_6, %c0_7, %c256] : memref<1x48x512xbf16, #tpu.memory_space<vmem>>, vector<1x32x128xbf16>
    %9 = vector.shape_cast %8 : vector<1x32x128xbf16> to vector<32x128xbf16>
    %10 = arith.maximumf %7, %9 : vector<32x128xbf16>
    %c0_8 = arith.constant 0 : index
    %c0_9 = arith.constant 0 : index
    %c384 = arith.constant 384 : index
    %11 = vector.load %arg1[%c0_8, %c0_9, %c384] : memref<1x48x512xbf16, #tpu.memory_space<vmem>>, vector<1x32x128xbf16>
    %12 = vector.shape_cast %11 : vector<1x32x128xbf16> to vector<32x128xbf16>
    %13 = arith.maximumf %10, %12 : vector<32x128xbf16>
    %c0_10 = arith.constant 0 : index
    %c1_11 = arith.constant 1 : index
    %c256_12 = arith.constant 256 : index
    %14 = vector.load %arg1[%c0_10, %c1_11, %c256_12] : memref<1x48x512xbf16, #tpu.memory_space<vmem>>, vector<1x32x128xbf16>
    %15 = vector.shape_cast %14 : vector<1x32x128xbf16> to vector<32x128xbf16>
    %16 = arith.maximumf %13, %15 : vector<32x128xbf16>
    %c0_13 = arith.constant 0 : index
    %c8 = arith.constant 8 : index
    %c0_14 = arith.constant 0 : index
    %17 = vector.load %arg1[%c0_13, %c8, %c0_14] : memref<1x48x512xbf16, #tpu.memory_space<vmem>>, vector<1x32x128xbf16>
    %18 = vector.shape_cast %17 : vector<1x32x128xbf16> to vector<32x128xbf16>
    %19 = arith.maximumf %16, %18 : vector<32x128xbf16>
    %c0_15 = arith.constant 0 : index
    %c8_16 = arith.constant 8 : index
    %c128_17 = arith.constant 128 : index
    %20 = vector.load %arg1[%c0_15, %c8_16, %c128_17] : memref<1x48x512xbf16, #tpu.memory_space<vmem>>, vector<1x32x128xbf16>
    %21 = vector.shape_cast %20 : vector<1x32x128xbf16> to vector<32x128xbf16>
    %22 = arith.maximumf %19, %21 : vector<32x128xbf16>
    %c0_18 = arith.constant 0 : index
    %c9 = arith.constant 9 : index
    %c0_19 = arith.constant 0 : index
    %23 = vector.load %arg1[%c0_18, %c9, %c0_19] : memref<1x48x512xbf16, #tpu.memory_space<vmem>>, vector<1x32x128xbf16>
    %24 = vector.shape_cast %23 : vector<1x32x128xbf16> to vector<32x128xbf16>
    %25 = arith.maximumf %22, %24 : vector<32x128xbf16>
    %c0_20 = arith.constant 0 : index
    %c0_21 = arith.constant 0 : index
    %c0_22 = arith.constant 0 : index
    %26 = vector.load %arg2[%c0_20, %c0_21, %c0_22] : memref<1x32x128xbf16, #tpu.memory_space<vmem>>, vector<1x32x128xbf16>
    %27 = vector.shape_cast %26 : vector<1x32x128xbf16> to vector<32x128xbf16>
    %28 = vector.shape_cast %25 : vector<32x128xbf16> to vector<1x32x128xbf16>
    tpu.vector_store %arg2[%c0_20, %c0_21, %c0_22], %28 {strides = array<i32>} : memref<1x32x128xbf16, #tpu.memory_space<vmem>>, vector<1x32x128xbf16>,
    return
  }
  func.func @transform_0(%arg0: i32) -> (i32, i32, i32) {
    %c0_i32 = arith.constant 0 : i32
    %c0_i32_0 = arith.constant 0 : i32
    %c0_i32_1 = arith.constant 0 : i32
    return %arg0, %c0_i32, %c0_i32_0 : i32, i32, i32
  }
  func.func @transform_1(%arg0: i32) -> (i32, i32, i32) {
    %c0_i32 = arith.constant 0 : i32
    %c0_i32_0 = arith.constant 0 : i32
    %c0_i32_1 = arith.constant 0 : i32
    return %arg0, %c0_i32, %c0_i32_0 : i32, i32, i32
  }
}

module attributes {stable_mosaic.version = 11 : i64} {
  func.func @_direct_conv_kernel(%arg0: i32, %arg1: memref<1x56x128xbf16, #tpu.memory_space<vmem>>, %arg2: memref<9x128x128xbf16, #tpu.memory_space<vmem>>, %arg3: memref<1x128xf32, #tpu.memory_space<vmem>>, %arg4: memref<1x32x128xbf16, #tpu.memory_space<vmem>>) attributes {dimension_semantics = [#tpu.dimension_semantics<parallel>], iteration_bounds = array<i64: 2>, scalar_prefetch = 0 : i64, scratch_operands = 0 : i64, tpu.core_type = #tpu.core_type<tc>, window_params = [{transform_indices = @transform_0, window_bounds = array<i64: 1, 56, 128>}, {pipeline_mode = #tpu.pipeline_mode<synchronous>, transform_indices = @transform_1, window_bounds = array<i64: 9, 128, 128>}, {pipeline_mode = #tpu.pipeline_mode<synchronous>, transform_indices = @transform_2, window_bounds = array<i64: 1, 128>}, {transform_indices = @transform_3, window_bounds = array<i64: 1, 32, 128>}]} {
    %cst = arith.constant 0.000000e+00 : f32
    %0 = vector.broadcast %cst : f32 to vector<32x128xf32>
    %c0 = arith.constant 0 : index
    %c0_0 = arith.constant 0 : index
    %c0_1 = arith.constant 0 : index
    %1 = vector.load %arg1[%c0, %c0_0, %c0_1] : memref<1x56x128xbf16, #tpu.memory_space<vmem>>, vector<1x32x128xbf16>
    %2 = vector.shape_cast %1 : vector<1x32x128xbf16> to vector<32x128xbf16>
    %c0_2 = arith.constant 0 : index
    %c0_3 = arith.constant 0 : index
    %c0_4 = arith.constant 0 : index
    %3 = vector.load %arg2[%c0_2, %c0_3, %c0_4] : memref<9x128x128xbf16, #tpu.memory_space<vmem>>, vector<1x128x128xbf16>
    %4 = vector.shape_cast %3 : vector<1x128x128xbf16> to vector<128x128xbf16>
    %cst_5 = arith.constant dense<0.000000e+00> : vector<32x128xf32>
    %5 = tpu.matmul %2, %4, %cst_5 {dimension_numbers = #tpu.dot_dimension_numbers<[1], [0], [0], [1], [0, 0, 1, 1], [], []>} : vector<32x128xbf16>, vector<128x128xbf16>, vector<32x128xf32> -> vector<32x128xf32>
    %6 = arith.addf %0, %5 : vector<32x128xf32>
    %c0_6 = arith.constant 0 : index
    %c1 = arith.constant 1 : index
    %c0_7 = arith.constant 0 : index
    %7 = vector.load %arg1[%c0_6, %c1, %c0_7] : memref<1x56x128xbf16, #tpu.memory_space<vmem>>, vector<1x32x128xbf16>
    %8 = vector.shape_cast %7 : vector<1x32x128xbf16> to vector<32x128xbf16>
    %c1_8 = arith.constant 1 : index
    %c0_9 = arith.constant 0 : index
    %c0_10 = arith.constant 0 : index
    %9 = vector.load %arg2[%c1_8, %c0_9, %c0_10] : memref<9x128x128xbf16, #tpu.memory_space<vmem>>, vector<1x128x128xbf16>
    %10 = vector.shape_cast %9 : vector<1x128x128xbf16> to vector<128x128xbf16>
    %cst_11 = arith.constant dense<0.000000e+00> : vector<32x128xf32>
    %11 = tpu.matmul %8, %10, %cst_11 {dimension_numbers = #tpu.dot_dimension_numbers<[1], [0], [0], [1], [0, 0, 1, 1], [], []>} : vector<32x128xbf16>, vector<128x128xbf16>, vector<32x128xf32> -> vector<32x128xf32>
    %12 = arith.addf %6, %11 : vector<32x128xf32>
    %c0_12 = arith.constant 0 : index
    %c2 = arith.constant 2 : index
    %c0_13 = arith.constant 0 : index
    %13 = vector.load %arg1[%c0_12, %c2, %c0_13] : memref<1x56x128xbf16, #tpu.memory_space<vmem>>, vector<1x32x128xbf16>
    %14 = vector.shape_cast %13 : vector<1x32x128xbf16> to vector<32x128xbf16>
    %c2_14 = arith.constant 2 : index
    %c0_15 = arith.constant 0 : index
    %c0_16 = arith.constant 0 : index
    %15 = vector.load %arg2[%c2_14, %c0_15, %c0_16] : memref<9x128x128xbf16, #tpu.memory_space<vmem>>, vector<1x128x128xbf16>
    %16 = vector.shape_cast %15 : vector<1x128x128xbf16> to vector<128x128xbf16>
    %cst_17 = arith.constant dense<0.000000e+00> : vector<32x128xf32>
    %17 = tpu.matmul %14, %16, %cst_17 {dimension_numbers = #tpu.dot_dimension_numbers<[1], [0], [0], [1], [0, 0, 1, 1], [], []>} : vector<32x128xbf16>, vector<128x128xbf16>, vector<32x128xf32> -> vector<32x128xf32>
    %18 = arith.addf %12, %17 : vector<32x128xf32>
    %c0_18 = arith.constant 0 : index
    %c8 = arith.constant 8 : index
    %c0_19 = arith.constant 0 : index
    %19 = vector.load %arg1[%c0_18, %c8, %c0_19] : memref<1x56x128xbf16, #tpu.memory_space<vmem>>, vector<1x32x128xbf16>
    %20 = vector.shape_cast %19 : vector<1x32x128xbf16> to vector<32x128xbf16>
    %c3 = arith.constant 3 : index
    %c0_20 = arith.constant 0 : index
    %c0_21 = arith.constant 0 : index
    %21 = vector.load %arg2[%c3, %c0_20, %c0_21] : memref<9x128x128xbf16, #tpu.memory_space<vmem>>, vector<1x128x128xbf16>
    %22 = vector.shape_cast %21 : vector<1x128x128xbf16> to vector<128x128xbf16>
    %cst_22 = arith.constant dense<0.000000e+00> : vector<32x128xf32>
    %23 = tpu.matmul %20, %22, %cst_22 {dimension_numbers = #tpu.dot_dimension_numbers<[1], [0], [0], [1], [0, 0, 1, 1], [], []>} : vector<32x128xbf16>, vector<128x128xbf16>, vector<32x128xf32> -> vector<32x128xf32>
    %24 = arith.addf %18, %23 : vector<32x128xf32>
    %c0_23 = arith.constant 0 : index
    %c9 = arith.constant 9 : index
    %c0_24 = arith.constant 0 : index
    %25 = vector.load %arg1[%c0_23, %c9, %c0_24] : memref<1x56x128xbf16, #tpu.memory_space<vmem>>, vector<1x32x128xbf16>
    %26 = vector.shape_cast %25 : vector<1x32x128xbf16> to vector<32x128xbf16>
    %c4 = arith.constant 4 : index
    %c0_25 = arith.constant 0 : index
    %c0_26 = arith.constant 0 : index
    %27 = vector.load %arg2[%c4, %c0_25, %c0_26] : memref<9x128x128xbf16, #tpu.memory_space<vmem>>, vector<1x128x128xbf16>
    %28 = vector.shape_cast %27 : vector<1x128x128xbf16> to vector<128x128xbf16>
    %cst_27 = arith.constant dense<0.000000e+00> : vector<32x128xf32>
    %29 = tpu.matmul %26, %28, %cst_27 {dimension_numbers = #tpu.dot_dimension_numbers<[1], [0], [0], [1], [0, 0, 1, 1], [], []>} : vector<32x128xbf16>, vector<128x128xbf16>, vector<32x128xf32> -> vector<32x128xf32>
    %30 = arith.addf %24, %29 : vector<32x128xf32>
    %c0_28 = arith.constant 0 : index
    %c10 = arith.constant 10 : index
    %c0_29 = arith.constant 0 : index
    %31 = vector.load %arg1[%c0_28, %c10, %c0_29] : memref<1x56x128xbf16, #tpu.memory_space<vmem>>, vector<1x32x128xbf16>
    %32 = vector.shape_cast %31 : vector<1x32x128xbf16> to vector<32x128xbf16>
    %c5 = arith.constant 5 : index
    %c0_30 = arith.constant 0 : index
    %c0_31 = arith.constant 0 : index
    %33 = vector.load %arg2[%c5, %c0_30, %c0_31] : memref<9x128x128xbf16, #tpu.memory_space<vmem>>, vector<1x128x128xbf16>
    %34 = vector.shape_cast %33 : vector<1x128x128xbf16> to vector<128x128xbf16>
    %cst_32 = arith.constant dense<0.000000e+00> : vector<32x128xf32>
    %35 = tpu.matmul %32, %34, %cst_32 {dimension_numbers = #tpu.dot_dimension_numbers<[1], [0], [0], [1], [0, 0, 1, 1], [], []>} : vector<32x128xbf16>, vector<128x128xbf16>, vector<32x128xf32> -> vector<32x128xf32>
    %36 = arith.addf %30, %35 : vector<32x128xf32>
    %c0_33 = arith.constant 0 : index
    %c16 = arith.constant 16 : index
    %c0_34 = arith.constant 0 : index
    %37 = vector.load %arg1[%c0_33, %c16, %c0_34] : memref<1x56x128xbf16, #tpu.memory_space<vmem>>, vector<1x32x128xbf16>
    %38 = vector.shape_cast %37 : vector<1x32x128xbf16> to vector<32x128xbf16>
    %c6 = arith.constant 6 : index
    %c0_35 = arith.constant 0 : index
    %c0_36 = arith.constant 0 : index
    %39 = vector.load %arg2[%c6, %c0_35, %c0_36] : memref<9x128x128xbf16, #tpu.memory_space<vmem>>, vector<1x128x128xbf16>
    %40 = vector.shape_cast %39 : vector<1x128x128xbf16> to vector<128x128xbf16>
    %cst_37 = arith.constant dense<0.000000e+00> : vector<32x128xf32>
    %41 = tpu.matmul %38, %40, %cst_37 {dimension_numbers = #tpu.dot_dimension_numbers<[1], [0], [0], [1], [0, 0, 1, 1], [], []>} : vector<32x128xbf16>, vector<128x128xbf16>, vector<32x128xf32> -> vector<32x128xf32>
    %42 = arith.addf %36, %41 : vector<32x128xf32>
    %c0_38 = arith.constant 0 : index
    %c17 = arith.constant 17 : index
    %c0_39 = arith.constant 0 : index
    %43 = vector.load %arg1[%c0_38, %c17, %c0_39] : memref<1x56x128xbf16, #tpu.memory_space<vmem>>, vector<1x32x128xbf16>
    %44 = vector.shape_cast %43 : vector<1x32x128xbf16> to vector<32x128xbf16>
    %c7 = arith.constant 7 : index
    %c0_40 = arith.constant 0 : index
    %c0_41 = arith.constant 0 : index
    %45 = vector.load %arg2[%c7, %c0_40, %c0_41] : memref<9x128x128xbf16, #tpu.memory_space<vmem>>, vector<1x128x128xbf16>
    %46 = vector.shape_cast %45 : vector<1x128x128xbf16> to vector<128x128xbf16>
    %cst_42 = arith.constant dense<0.000000e+00> : vector<32x128xf32>
    %47 = tpu.matmul %44, %46, %cst_42 {dimension_numbers = #tpu.dot_dimension_numbers<[1], [0], [0], [1], [0, 0, 1, 1], [], []>} : vector<32x128xbf16>, vector<128x128xbf16>, vector<32x128xf32> -> vector<32x128xf32>
    %48 = arith.addf %42, %47 : vector<32x128xf32>
    %c0_43 = arith.constant 0 : index
    %c18 = arith.constant 18 : index
    %c0_44 = arith.constant 0 : index
    %49 = vector.load %arg1[%c0_43, %c18, %c0_44] : memref<1x56x128xbf16, #tpu.memory_space<vmem>>, vector<1x32x128xbf16>
    %50 = vector.shape_cast %49 : vector<1x32x128xbf16> to vector<32x128xbf16>
    %c8_45 = arith.constant 8 : index
    %c0_46 = arith.constant 0 : index
    %c0_47 = arith.constant 0 : index
    %51 = vector.load %arg2[%c8_45, %c0_46, %c0_47] : memref<9x128x128xbf16, #tpu.memory_space<vmem>>, vector<1x128x128xbf16>
    %52 = vector.shape_cast %51 : vector<1x128x128xbf16> to vector<128x128xbf16>
    %cst_48 = arith.constant dense<0.000000e+00> : vector<32x128xf32>
    %53 = tpu.matmul %50, %52, %cst_48 {dimension_numbers = #tpu.dot_dimension_numbers<[1], [0], [0], [1], [0, 0, 1, 1], [], []>} : vector<32x128xbf16>, vector<128x128xbf16>, vector<32x128xf32> -> vector<32x128xf32>
    %54 = arith.addf %48, %53 : vector<32x128xf32>
    %c0_49 = arith.constant 0 : index
    %c0_50 = arith.constant 0 : index
    %55 = vector.load %arg3[%c0_49, %c0_50] : memref<1x128xf32, #tpu.memory_space<vmem>>, vector<1x128xf32>
    %56 = vector.broadcast %55 : vector<1x128xf32> to vector<32x128xf32>
    %57 = arith.addf %54, %56 : vector<32x128xf32>
    %cst_51 = arith.constant 0.000000e+00 : f32
    %58 = vector.broadcast %cst_51 : f32 to vector<32x128xf32>
    %59 = arith.maximumf %57, %58 : vector<32x128xf32>
    %60 = arith.truncf %59 : vector<32x128xf32> to vector<32x128xbf16>
    %c0_52 = arith.constant 0 : index
    %c0_53 = arith.constant 0 : index
    %c0_54 = arith.constant 0 : index
    %61 = vector.load %arg4[%c0_52, %c0_53, %c0_54] : memref<1x32x128xbf16, #tpu.memory_space<vmem>>, vector<1x32x128xbf16>
    %62 = vector.shape_cast %61 : vector<1x32x128xbf16> to vector<32x128xbf16>
    %63 = vector.shape_cast %60 : vector<32x128xbf16> to vector<1x32x128xbf16>
    tpu.vector_store %arg4[%c0_52, %c0_53, %c0_54], %63 {strides = array<i32>} : memref<1x32x128xbf16, #tpu.memory_space<vmem>>, vector<1x32x128xbf16>,
    return
  }
  func.func @transform_0(%arg0: i32) -> (i32, i32, i32) {
    %c0_i32 = arith.constant 0 : i32
    %c0_i32_0 = arith.constant 0 : i32
    %c0_i32_1 = arith.constant 0 : i32
    return %arg0, %c0_i32, %c0_i32_0 : i32, i32, i32
  }
  func.func @transform_1(%arg0: i32) -> (i32, i32, i32) {
    %c0_i32 = arith.constant 0 : i32
    %c0_i32_0 = arith.constant 0 : i32
    %c0_i32_1 = arith.constant 0 : i32
    %c0_i32_2 = arith.constant 0 : i32
    return %c0_i32, %c0_i32_0, %c0_i32_1 : i32, i32, i32
  }
  func.func @transform_2(%arg0: i32) -> (i32, i32) {
    %c0_i32 = arith.constant 0 : i32
    %c0_i32_0 = arith.constant 0 : i32
    %c0_i32_1 = arith.constant 0 : i32
    return %c0_i32, %c0_i32_0 : i32, i32
  }
  func.func @transform_3(%arg0: i32) -> (i32, i32, i32) {
    %c0_i32 = arith.constant 0 : i32
    %c0_i32_0 = arith.constant 0 : i32
    %c0_i32_1 = arith.constant 0 : i32
    return %arg0, %c0_i32, %c0_i32_0 : i32, i32, i32
  }
}

module attributes {stable_mosaic.version = 11 : i64} {
  func.func @_mm_bn_res_act_kernel(%arg0: i32, %arg1: memref<32x128xbf16, #tpu.memory_space<vmem>>, %arg2: memref<128x128xbf16, #tpu.memory_space<vmem>>, %arg3: memref<1x128xf32, #tpu.memory_space<vmem>>, %arg4: memref<32x128xbf16, #tpu.memory_space<vmem>>, %arg5: memref<32x128xbf16, #tpu.memory_space<vmem>>) attributes {dimension_semantics = [#tpu.dimension_semantics<parallel>], iteration_bounds = array<i64: 1>, scalar_prefetch = 0 : i64, scratch_operands = 0 : i64, tpu.core_type = #tpu.core_type<tc>, window_params = [{transform_indices = @transform_0, window_bounds = array<i64: 32, 128>}, {pipeline_mode = #tpu.pipeline_mode<synchronous>, transform_indices = @transform_1, window_bounds = array<i64: 128, 128>}, {pipeline_mode = #tpu.pipeline_mode<synchronous>, transform_indices = @transform_2, window_bounds = array<i64: 1, 128>}, {transform_indices = @transform_3, window_bounds = array<i64: 32, 128>}, {transform_indices = @transform_4, window_bounds = array<i64: 32, 128>}]} {
    %c0 = arith.constant 0 : index
    %c0_0 = arith.constant 0 : index
    %0 = vector.load %arg1[%c0, %c0_0] : memref<32x128xbf16, #tpu.memory_space<vmem>>, vector<32x128xbf16>
    %c0_1 = arith.constant 0 : index
    %c0_2 = arith.constant 0 : index
    %1 = vector.load %arg2[%c0_1, %c0_2] : memref<128x128xbf16, #tpu.memory_space<vmem>>, vector<128x128xbf16>
    %cst = arith.constant dense<0.000000e+00> : vector<32x128xf32>
    %2 = tpu.matmul %0, %1, %cst {dimension_numbers = #tpu.dot_dimension_numbers<[1], [0], [0], [1], [0, 0, 1, 1], [], []>} : vector<32x128xbf16>, vector<128x128xbf16>, vector<32x128xf32> -> vector<32x128xf32>
    %c0_3 = arith.constant 0 : index
    %c0_4 = arith.constant 0 : index
    %3 = vector.load %arg3[%c0_3, %c0_4] : memref<1x128xf32, #tpu.memory_space<vmem>>, vector<1x128xf32>
    %4 = vector.broadcast %3 : vector<1x128xf32> to vector<32x128xf32>
    %5 = arith.addf %2, %4 : vector<32x128xf32>
    %c0_5 = arith.constant 0 : index
    %c0_6 = arith.constant 0 : index
    %6 = vector.load %arg4[%c0_5, %c0_6] : memref<32x128xbf16, #tpu.memory_space<vmem>>, vector<32x128xbf16>
    %7 = arith.extf %6 : vector<32x128xbf16> to vector<32x128xf32>
    %8 = arith.addf %5, %7 : vector<32x128xf32>
    %cst_7 = arith.constant 0.000000e+00 : f32
    %9 = vector.broadcast %cst_7 : f32 to vector<32x128xf32>
    %10 = arith.maximumf %8, %9 : vector<32x128xf32>
    %11 = arith.truncf %10 : vector<32x128xf32> to vector<32x128xbf16>
    %c0_8 = arith.constant 0 : index
    %c0_9 = arith.constant 0 : index
    %12 = vector.load %arg5[%c0_8, %c0_9] : memref<32x128xbf16, #tpu.memory_space<vmem>>, vector<32x128xbf16>
    tpu.vector_store %arg5[%c0_8, %c0_9], %11 {strides = array<i32>} : memref<32x128xbf16, #tpu.memory_space<vmem>>, vector<32x128xbf16>,
    return
  }
  func.func @transform_0(%arg0: i32) -> (i32, i32) {
    %c0_i32 = arith.constant 0 : i32
    %c0_i32_0 = arith.constant 0 : i32
    return %arg0, %c0_i32 : i32, i32
  }
  func.func @transform_1(%arg0: i32) -> (i32, i32) {
    %c0_i32 = arith.constant 0 : i32
    %c0_i32_0 = arith.constant 0 : i32
    %c0_i32_1 = arith.constant 0 : i32
    return %c0_i32, %c0_i32_0 : i32, i32
  }
  func.func @transform_2(%arg0: i32) -> (i32, i32) {
    %c0_i32 = arith.constant 0 : i32
    %c0_i32_0 = arith.constant 0 : i32
    %c0_i32_1 = arith.constant 0 : i32
    return %c0_i32, %c0_i32_0 : i32, i32
  }
  func.func @transform_3(%arg0: i32) -> (i32, i32) {
    %c0_i32 = arith.constant 0 : i32
    %c0_i32_0 = arith.constant 0 : i32
    return %arg0, %c0_i32 : i32, i32
  }
  func.func @transform_4(%arg0: i32) -> (i32, i32) {
    %c0_i32 = arith.constant 0 : i32
    %c0_i32_0 = arith.constant 0 : i32
    return %arg0, %c0_i32 : i32, i32
  }
}

module attributes {stable_mosaic.version = 11 : i64} {
  func.func @_mm_bn_act_kernel(%arg0: i32, %arg1: memref<8x128xbf16, #tpu.memory_space<vmem>>, %arg2: memref<128x128xbf16, #tpu.memory_space<vmem>>, %arg3: memref<1x128xf32, #tpu.memory_space<vmem>>, %arg4: memref<8x128xbf16, #tpu.memory_space<vmem>>) attributes {dimension_semantics = [#tpu.dimension_semantics<parallel>], iteration_bounds = array<i64: 1>, scalar_prefetch = 0 : i64, scratch_operands = 0 : i64, tpu.core_type = #tpu.core_type<tc>, window_params = [{transform_indices = @transform_0, window_bounds = array<i64: 8, 128>}, {pipeline_mode = #tpu.pipeline_mode<synchronous>, transform_indices = @transform_1, window_bounds = array<i64: 128, 128>}, {pipeline_mode = #tpu.pipeline_mode<synchronous>, transform_indices = @transform_2, window_bounds = array<i64: 1, 128>}, {transform_indices = @transform_3, window_bounds = array<i64: 8, 128>}]} {
    %c0 = arith.constant 0 : index
    %c0_0 = arith.constant 0 : index
    %0 = vector.load %arg1[%c0, %c0_0] : memref<8x128xbf16, #tpu.memory_space<vmem>>, vector<8x128xbf16>
    %c0_1 = arith.constant 0 : index
    %c0_2 = arith.constant 0 : index
    %1 = vector.load %arg2[%c0_1, %c0_2] : memref<128x128xbf16, #tpu.memory_space<vmem>>, vector<128x128xbf16>
    %cst = arith.constant dense<0.000000e+00> : vector<8x128xf32>
    %2 = tpu.matmul %0, %1, %cst {dimension_numbers = #tpu.dot_dimension_numbers<[1], [0], [0], [1], [0, 0, 1, 1], [], []>} : vector<8x128xbf16>, vector<128x128xbf16>, vector<8x128xf32> -> vector<8x128xf32>
    %c0_3 = arith.constant 0 : index
    %c0_4 = arith.constant 0 : index
    %3 = vector.load %arg3[%c0_3, %c0_4] : memref<1x128xf32, #tpu.memory_space<vmem>>, vector<1x128xf32>
    %4 = vector.broadcast %3 : vector<1x128xf32> to vector<8x128xf32>
    %5 = arith.addf %2, %4 : vector<8x128xf32>
    %cst_5 = arith.constant 0.000000e+00 : f32
    %6 = vector.broadcast %cst_5 : f32 to vector<8x128xf32>
    %7 = arith.maximumf %5, %6 : vector<8x128xf32>
    %8 = arith.truncf %7 : vector<8x128xf32> to vector<8x128xbf16>
    %c0_6 = arith.constant 0 : index
    %c0_7 = arith.constant 0 : index
    %9 = vector.load %arg4[%c0_6, %c0_7] : memref<8x128xbf16, #tpu.memory_space<vmem>>, vector<8x128xbf16>
    tpu.vector_store %arg4[%c0_6, %c0_7], %8 {strides = array<i32>} : memref<8x128xbf16, #tpu.memory_space<vmem>>, vector<8x128xbf16>,
    return
  }
  func.func @transform_0(%arg0: i32) -> (i32, i32) {
    %c0_i32 = arith.constant 0 : i32
    %c0_i32_0 = arith.constant 0 : i32
    return %arg0, %c0_i32 : i32, i32
  }
  func.func @transform_1(%arg0: i32) -> (i32, i32) {
    %c0_i32 = arith.constant 0 : i32
    %c0_i32_0 = arith.constant 0 : i32
    %c0_i32_1 = arith.constant 0 : i32
    return %c0_i32, %c0_i32_0 : i32, i32
  }
  func.func @transform_2(%arg0: i32) -> (i32, i32) {
    %c0_i32 = arith.constant 0 : i32
    %c0_i32_0 = arith.constant 0 : i32
    %c0_i32_1 = arith.constant 0 : i32
    return %c0_i32, %c0_i32_0 : i32, i32
  }
  func.func @transform_3(%arg0: i32) -> (i32, i32) {
    %c0_i32 = arith.constant 0 : i32
    %c0_i32_0 = arith.constant 0 : i32
    return %arg0, %c0_i32 : i32, i32
  }
}

module attributes {stable_mosaic.version = 11 : i64} {
  func.func @_direct_conv_kernel(%arg0: i32, %arg1: memref<1x40x128xbf16, #tpu.memory_space<vmem>>, %arg2: memref<9x128x128xbf16, #tpu.memory_space<vmem>>, %arg3: memref<1x128xf32, #tpu.memory_space<vmem>>, %arg4: memref<1x16x128xbf16, #tpu.memory_space<vmem>>) attributes {dimension_semantics = [#tpu.dimension_semantics<parallel>], iteration_bounds = array<i64: 2>, scalar_prefetch = 0 : i64, scratch_operands = 0 : i64, tpu.core_type = #tpu.core_type<tc>, window_params = [{transform_indices = @transform_0, window_bounds = array<i64: 1, 40, 128>}, {pipeline_mode = #tpu.pipeline_mode<synchronous>, transform_indices = @transform_1, window_bounds = array<i64: 9, 128, 128>}, {pipeline_mode = #tpu.pipeline_mode<synchronous>, transform_indices = @transform_2, window_bounds = array<i64: 1, 128>}, {transform_indices = @transform_3, window_bounds = array<i64: 1, 16, 128>}]} {
    %cst = arith.constant 0.000000e+00 : f32
    %0 = vector.broadcast %cst : f32 to vector<16x128xf32>
    %c0 = arith.constant 0 : index
    %c0_0 = arith.constant 0 : index
    %c0_1 = arith.constant 0 : index
    %1 = vector.load %arg1[%c0, %c0_0, %c0_1] : memref<1x40x128xbf16, #tpu.memory_space<vmem>>, vector<1x16x128xbf16>
    %2 = vector.shape_cast %1 : vector<1x16x128xbf16> to vector<16x128xbf16>
    %c0_2 = arith.constant 0 : index
    %c0_3 = arith.constant 0 : index
    %c0_4 = arith.constant 0 : index
    %3 = vector.load %arg2[%c0_2, %c0_3, %c0_4] : memref<9x128x128xbf16, #tpu.memory_space<vmem>>, vector<1x128x128xbf16>
    %4 = vector.shape_cast %3 : vector<1x128x128xbf16> to vector<128x128xbf16>
    %cst_5 = arith.constant dense<0.000000e+00> : vector<16x128xf32>
    %5 = tpu.matmul %2, %4, %cst_5 {dimension_numbers = #tpu.dot_dimension_numbers<[1], [0], [0], [1], [0, 0, 1, 1], [], []>} : vector<16x128xbf16>, vector<128x128xbf16>, vector<16x128xf32> -> vector<16x128xf32>
    %6 = arith.addf %0, %5 : vector<16x128xf32>
    %c0_6 = arith.constant 0 : index
    %c1 = arith.constant 1 : index
    %c0_7 = arith.constant 0 : index
    %7 = vector.load %arg1[%c0_6, %c1, %c0_7] : memref<1x40x128xbf16, #tpu.memory_space<vmem>>, vector<1x16x128xbf16>
    %8 = vector.shape_cast %7 : vector<1x16x128xbf16> to vector<16x128xbf16>
    %c1_8 = arith.constant 1 : index
    %c0_9 = arith.constant 0 : index
    %c0_10 = arith.constant 0 : index
    %9 = vector.load %arg2[%c1_8, %c0_9, %c0_10] : memref<9x128x128xbf16, #tpu.memory_space<vmem>>, vector<1x128x128xbf16>
    %10 = vector.shape_cast %9 : vector<1x128x128xbf16> to vector<128x128xbf16>
    %cst_11 = arith.constant dense<0.000000e+00> : vector<16x128xf32>
    %11 = tpu.matmul %8, %10, %cst_11 {dimension_numbers = #tpu.dot_dimension_numbers<[1], [0], [0], [1], [0, 0, 1, 1], [], []>} : vector<16x128xbf16>, vector<128x128xbf16>, vector<16x128xf32> -> vector<16x128xf32>
    %12 = arith.addf %6, %11 : vector<16x128xf32>
    %c0_12 = arith.constant 0 : index
    %c2 = arith.constant 2 : index
    %c0_13 = arith.constant 0 : index
    %13 = vector.load %arg1[%c0_12, %c2, %c0_13] : memref<1x40x128xbf16, #tpu.memory_space<vmem>>, vector<1x16x128xbf16>
    %14 = vector.shape_cast %13 : vector<1x16x128xbf16> to vector<16x128xbf16>
    %c2_14 = arith.constant 2 : index
    %c0_15 = arith.constant 0 : index
    %c0_16 = arith.constant 0 : index
    %15 = vector.load %arg2[%c2_14, %c0_15, %c0_16] : memref<9x128x128xbf16, #tpu.memory_space<vmem>>, vector<1x128x128xbf16>
    %16 = vector.shape_cast %15 : vector<1x128x128xbf16> to vector<128x128xbf16>
    %cst_17 = arith.constant dense<0.000000e+00> : vector<16x128xf32>
    %17 = tpu.matmul %14, %16, %cst_17 {dimension_numbers = #tpu.dot_dimension_numbers<[1], [0], [0], [1], [0, 0, 1, 1], [], []>} : vector<16x128xbf16>, vector<128x128xbf16>, vector<16x128xf32> -> vector<16x128xf32>
    %18 = arith.addf %12, %17 : vector<16x128xf32>
    %c0_18 = arith.constant 0 : index
    %c8 = arith.constant 8 : index
    %c0_19 = arith.constant 0 : index
    %19 = vector.load %arg1[%c0_18, %c8, %c0_19] : memref<1x40x128xbf16, #tpu.memory_space<vmem>>, vector<1x16x128xbf16>
    %20 = vector.shape_cast %19 : vector<1x16x128xbf16> to vector<16x128xbf16>
    %c3 = arith.constant 3 : index
    %c0_20 = arith.constant 0 : index
    %c0_21 = arith.constant 0 : index
    %21 = vector.load %arg2[%c3, %c0_20, %c0_21] : memref<9x128x128xbf16, #tpu.memory_space<vmem>>, vector<1x128x128xbf16>
    %22 = vector.shape_cast %21 : vector<1x128x128xbf16> to vector<128x128xbf16>
    %cst_22 = arith.constant dense<0.000000e+00> : vector<16x128xf32>
    %23 = tpu.matmul %20, %22, %cst_22 {dimension_numbers = #tpu.dot_dimension_numbers<[1], [0], [0], [1], [0, 0, 1, 1], [], []>} : vector<16x128xbf16>, vector<128x128xbf16>, vector<16x128xf32> -> vector<16x128xf32>
    %24 = arith.addf %18, %23 : vector<16x128xf32>
    %c0_23 = arith.constant 0 : index
    %c9 = arith.constant 9 : index
    %c0_24 = arith.constant 0 : index
    %25 = vector.load %arg1[%c0_23, %c9, %c0_24] : memref<1x40x128xbf16, #tpu.memory_space<vmem>>, vector<1x16x128xbf16>
    %26 = vector.shape_cast %25 : vector<1x16x128xbf16> to vector<16x128xbf16>
    %c4 = arith.constant 4 : index
    %c0_25 = arith.constant 0 : index
    %c0_26 = arith.constant 0 : index
    %27 = vector.load %arg2[%c4, %c0_25, %c0_26] : memref<9x128x128xbf16, #tpu.memory_space<vmem>>, vector<1x128x128xbf16>
    %28 = vector.shape_cast %27 : vector<1x128x128xbf16> to vector<128x128xbf16>
    %cst_27 = arith.constant dense<0.000000e+00> : vector<16x128xf32>
    %29 = tpu.matmul %26, %28, %cst_27 {dimension_numbers = #tpu.dot_dimension_numbers<[1], [0], [0], [1], [0, 0, 1, 1], [], []>} : vector<16x128xbf16>, vector<128x128xbf16>, vector<16x128xf32> -> vector<16x128xf32>
    %30 = arith.addf %24, %29 : vector<16x128xf32>
    %c0_28 = arith.constant 0 : index
    %c10 = arith.constant 10 : index
    %c0_29 = arith.constant 0 : index
    %31 = vector.load %arg1[%c0_28, %c10, %c0_29] : memref<1x40x128xbf16, #tpu.memory_space<vmem>>, vector<1x16x128xbf16>
    %32 = vector.shape_cast %31 : vector<1x16x128xbf16> to vector<16x128xbf16>
    %c5 = arith.constant 5 : index
    %c0_30 = arith.constant 0 : index
    %c0_31 = arith.constant 0 : index
    %33 = vector.load %arg2[%c5, %c0_30, %c0_31] : memref<9x128x128xbf16, #tpu.memory_space<vmem>>, vector<1x128x128xbf16>
    %34 = vector.shape_cast %33 : vector<1x128x128xbf16> to vector<128x128xbf16>
    %cst_32 = arith.constant dense<0.000000e+00> : vector<16x128xf32>
    %35 = tpu.matmul %32, %34, %cst_32 {dimension_numbers = #tpu.dot_dimension_numbers<[1], [0], [0], [1], [0, 0, 1, 1], [], []>} : vector<16x128xbf16>, vector<128x128xbf16>, vector<16x128xf32> -> vector<16x128xf32>
    %36 = arith.addf %30, %35 : vector<16x128xf32>
    %c0_33 = arith.constant 0 : index
    %c16 = arith.constant 16 : index
    %c0_34 = arith.constant 0 : index
    %37 = vector.load %arg1[%c0_33, %c16, %c0_34] : memref<1x40x128xbf16, #tpu.memory_space<vmem>>, vector<1x16x128xbf16>
    %38 = vector.shape_cast %37 : vector<1x16x128xbf16> to vector<16x128xbf16>
    %c6 = arith.constant 6 : index
    %c0_35 = arith.constant 0 : index
    %c0_36 = arith.constant 0 : index
    %39 = vector.load %arg2[%c6, %c0_35, %c0_36] : memref<9x128x128xbf16, #tpu.memory_space<vmem>>, vector<1x128x128xbf16>
    %40 = vector.shape_cast %39 : vector<1x128x128xbf16> to vector<128x128xbf16>
    %cst_37 = arith.constant dense<0.000000e+00> : vector<16x128xf32>
    %41 = tpu.matmul %38, %40, %cst_37 {dimension_numbers = #tpu.dot_dimension_numbers<[1], [0], [0], [1], [0, 0, 1, 1], [], []>} : vector<16x128xbf16>, vector<128x128xbf16>, vector<16x128xf32> -> vector<16x128xf32>
    %42 = arith.addf %36, %41 : vector<16x128xf32>
    %c0_38 = arith.constant 0 : index
    %c17 = arith.constant 17 : index
    %c0_39 = arith.constant 0 : index
    %43 = vector.load %arg1[%c0_38, %c17, %c0_39] : memref<1x40x128xbf16, #tpu.memory_space<vmem>>, vector<1x16x128xbf16>
    %44 = vector.shape_cast %43 : vector<1x16x128xbf16> to vector<16x128xbf16>
    %c7 = arith.constant 7 : index
    %c0_40 = arith.constant 0 : index
    %c0_41 = arith.constant 0 : index
    %45 = vector.load %arg2[%c7, %c0_40, %c0_41] : memref<9x128x128xbf16, #tpu.memory_space<vmem>>, vector<1x128x128xbf16>
    %46 = vector.shape_cast %45 : vector<1x128x128xbf16> to vector<128x128xbf16>
    %cst_42 = arith.constant dense<0.000000e+00> : vector<16x128xf32>
    %47 = tpu.matmul %44, %46, %cst_42 {dimension_numbers = #tpu.dot_dimension_numbers<[1], [0], [0], [1], [0, 0, 1, 1], [], []>} : vector<16x128xbf16>, vector<128x128xbf16>, vector<16x128xf32> -> vector<16x128xf32>
    %48 = arith.addf %42, %47 : vector<16x128xf32>
    %c0_43 = arith.constant 0 : index
    %c18 = arith.constant 18 : index
    %c0_44 = arith.constant 0 : index
    %49 = vector.load %arg1[%c0_43, %c18, %c0_44] : memref<1x40x128xbf16, #tpu.memory_space<vmem>>, vector<1x16x128xbf16>
    %50 = vector.shape_cast %49 : vector<1x16x128xbf16> to vector<16x128xbf16>
    %c8_45 = arith.constant 8 : index
    %c0_46 = arith.constant 0 : index
    %c0_47 = arith.constant 0 : index
    %51 = vector.load %arg2[%c8_45, %c0_46, %c0_47] : memref<9x128x128xbf16, #tpu.memory_space<vmem>>, vector<1x128x128xbf16>
    %52 = vector.shape_cast %51 : vector<1x128x128xbf16> to vector<128x128xbf16>
    %cst_48 = arith.constant dense<0.000000e+00> : vector<16x128xf32>
    %53 = tpu.matmul %50, %52, %cst_48 {dimension_numbers = #tpu.dot_dimension_numbers<[1], [0], [0], [1], [0, 0, 1, 1], [], []>} : vector<16x128xbf16>, vector<128x128xbf16>, vector<16x128xf32> -> vector<16x128xf32>
    %54 = arith.addf %48, %53 : vector<16x128xf32>
    %c0_49 = arith.constant 0 : index
    %c0_50 = arith.constant 0 : index
    %55 = vector.load %arg3[%c0_49, %c0_50] : memref<1x128xf32, #tpu.memory_space<vmem>>, vector<1x128xf32>
    %56 = vector.broadcast %55 : vector<1x128xf32> to vector<16x128xf32>
    %57 = arith.addf %54, %56 : vector<16x128xf32>
    %cst_51 = arith.constant 0.000000e+00 : f32
    %58 = vector.broadcast %cst_51 : f32 to vector<16x128xf32>
    %59 = arith.maximumf %57, %58 : vector<16x128xf32>
    %60 = arith.truncf %59 : vector<16x128xf32> to vector<16x128xbf16>
    %c0_52 = arith.constant 0 : index
    %c0_53 = arith.constant 0 : index
    %c0_54 = arith.constant 0 : index
    %61 = vector.load %arg4[%c0_52, %c0_53, %c0_54] : memref<1x16x128xbf16, #tpu.memory_space<vmem>>, vector<1x16x128xbf16>
    %62 = vector.shape_cast %61 : vector<1x16x128xbf16> to vector<16x128xbf16>
    %63 = vector.shape_cast %60 : vector<16x128xbf16> to vector<1x16x128xbf16>
    tpu.vector_store %arg4[%c0_52, %c0_53, %c0_54], %63 {strides = array<i32>} : memref<1x16x128xbf16, #tpu.memory_space<vmem>>, vector<1x16x128xbf16>,
    return
  }
  func.func @transform_0(%arg0: i32) -> (i32, i32, i32) {
    %c0_i32 = arith.constant 0 : i32
    %c0_i32_0 = arith.constant 0 : i32
    %c0_i32_1 = arith.constant 0 : i32
    return %arg0, %c0_i32, %c0_i32_0 : i32, i32, i32
  }
  func.func @transform_1(%arg0: i32) -> (i32, i32, i32) {
    %c0_i32 = arith.constant 0 : i32
    %c0_i32_0 = arith.constant 0 : i32
    %c0_i32_1 = arith.constant 0 : i32
    %c0_i32_2 = arith.constant 0 : i32
    return %c0_i32, %c0_i32_0, %c0_i32_1 : i32, i32, i32
  }
  func.func @transform_2(%arg0: i32) -> (i32, i32) {
    %c0_i32 = arith.constant 0 : i32
    %c0_i32_0 = arith.constant 0 : i32
    %c0_i32_1 = arith.constant 0 : i32
    return %c0_i32, %c0_i32_0 : i32, i32
  }
  func.func @transform_3(%arg0: i32) -> (i32, i32, i32) {
    %c0_i32 = arith.constant 0 : i32
    %c0_i32_0 = arith.constant 0 : i32
    %c0_i32_1 = arith.constant 0 : i32
    return %arg0, %c0_i32, %c0_i32_0 : i32, i32, i32
  }
}

module attributes {stable_mosaic.version = 11 : i64} {
  func.func @_mm_bn_res_act_kernel(%arg0: i32, %arg1: memref<8x128xbf16, #tpu.memory_space<vmem>>, %arg2: memref<128x128xbf16, #tpu.memory_space<vmem>>, %arg3: memref<1x128xf32, #tpu.memory_space<vmem>>, %arg4: memref<8x128xbf16, #tpu.memory_space<vmem>>, %arg5: memref<8x128xbf16, #tpu.memory_space<vmem>>) attributes {dimension_semantics = [#tpu.dimension_semantics<parallel>], iteration_bounds = array<i64: 1>, scalar_prefetch = 0 : i64, scratch_operands = 0 : i64, tpu.core_type = #tpu.core_type<tc>, window_params = [{transform_indices = @transform_0, window_bounds = array<i64: 8, 128>}, {pipeline_mode = #tpu.pipeline_mode<synchronous>, transform_indices = @transform_1, window_bounds = array<i64: 128, 128>}, {pipeline_mode = #tpu.pipeline_mode<synchronous>, transform_indices = @transform_2, window_bounds = array<i64: 1, 128>}, {transform_indices = @transform_3, window_bounds = array<i64: 8, 128>}, {transform_indices = @transform_4, window_bounds = array<i64: 8, 128>}]} {
    %c0 = arith.constant 0 : index
    %c0_0 = arith.constant 0 : index
    %0 = vector.load %arg1[%c0, %c0_0] : memref<8x128xbf16, #tpu.memory_space<vmem>>, vector<8x128xbf16>
    %c0_1 = arith.constant 0 : index
    %c0_2 = arith.constant 0 : index
    %1 = vector.load %arg2[%c0_1, %c0_2] : memref<128x128xbf16, #tpu.memory_space<vmem>>, vector<128x128xbf16>
    %cst = arith.constant dense<0.000000e+00> : vector<8x128xf32>
    %2 = tpu.matmul %0, %1, %cst {dimension_numbers = #tpu.dot_dimension_numbers<[1], [0], [0], [1], [0, 0, 1, 1], [], []>} : vector<8x128xbf16>, vector<128x128xbf16>, vector<8x128xf32> -> vector<8x128xf32>
    %c0_3 = arith.constant 0 : index
    %c0_4 = arith.constant 0 : index
    %3 = vector.load %arg3[%c0_3, %c0_4] : memref<1x128xf32, #tpu.memory_space<vmem>>, vector<1x128xf32>
    %4 = vector.broadcast %3 : vector<1x128xf32> to vector<8x128xf32>
    %5 = arith.addf %2, %4 : vector<8x128xf32>
    %c0_5 = arith.constant 0 : index
    %c0_6 = arith.constant 0 : index
    %6 = vector.load %arg4[%c0_5, %c0_6] : memref<8x128xbf16, #tpu.memory_space<vmem>>, vector<8x128xbf16>
    %7 = arith.extf %6 : vector<8x128xbf16> to vector<8x128xf32>
    %8 = arith.addf %5, %7 : vector<8x128xf32>
    %cst_7 = arith.constant 0.000000e+00 : f32
    %9 = vector.broadcast %cst_7 : f32 to vector<8x128xf32>
    %10 = arith.maximumf %8, %9 : vector<8x128xf32>
    %11 = arith.truncf %10 : vector<8x128xf32> to vector<8x128xbf16>
    %c0_8 = arith.constant 0 : index
    %c0_9 = arith.constant 0 : index
    %12 = vector.load %arg5[%c0_8, %c0_9] : memref<8x128xbf16, #tpu.memory_space<vmem>>, vector<8x128xbf16>
    tpu.vector_store %arg5[%c0_8, %c0_9], %11 {strides = array<i32>} : memref<8x128xbf16, #tpu.memory_space<vmem>>, vector<8x128xbf16>,
    return
  }
  func.func @transform_0(%arg0: i32) -> (i32, i32) {
    %c0_i32 = arith.constant 0 : i32
    %c0_i32_0 = arith.constant 0 : i32
    return %arg0, %c0_i32 : i32, i32
  }
  func.func @transform_1(%arg0: i32) -> (i32, i32) {
    %c0_i32 = arith.constant 0 : i32
    %c0_i32_0 = arith.constant 0 : i32
    %c0_i32_1 = arith.constant 0 : i32
    return %c0_i32, %c0_i32_0 : i32, i32
  }
  func.func @transform_2(%arg0: i32) -> (i32, i32) {
    %c0_i32 = arith.constant 0 : i32
    %c0_i32_0 = arith.constant 0 : i32
    %c0_i32_1 = arith.constant 0 : i32
    return %c0_i32, %c0_i32_0 : i32, i32
  }
  func.func @transform_3(%arg0: i32) -> (i32, i32) {
    %c0_i32 = arith.constant 0 : i32
    %c0_i32_0 = arith.constant 0 : i32
    return %arg0, %c0_i32 : i32, i32
  }
  func.func @transform_4(%arg0: i32) -> (i32, i32) {
    %c0_i32 = arith.constant 0 : i32
    %c0_i32_0 = arith.constant 0 : i32
    return %arg0, %c0_i32 : i32, i32
  }
}

</mosaic_0001>

<llo_original>
// kernel: convnext_encoder_forward.14
$region0: #{convnext_encoder_forward.14}
  #allocation0 [shape = 'u32[]', space=smem, size = 0x4, offset = 0x4, fixed_abs, tag = 'smem constant byte address 0x4 - core index']
  #allocation1 [shape = 'u32[144,128]{1,0:T(1,128)}', space=vmem, size = 0x12000, scoped, tag = 'internal scratch']
  %s0 = inlined_call_operand.vmem [shape: bf16[2,48,512], index: 0, kind: input, shape index: {}]
  %s1 = inlined_call_operand.vmem [shape: bf16[2,32,128], index: 1, kind: output, shape index: {}]
  %s2 = sld [smem:[#allocation0]]
  $region37: #{convnext_encoder_forward.14} parent=0
    _
  %s4 = ssub.s32 1, %s2
  %s5 = scalar_select 0, %s4, %s2
  loop: start=0, step=1, limit=4
  $region2: #{convnext_encoder_forward.14} parent=0 // loop_pre_header
    _
  $region3: #{convnext_encoder_forward.14} parent=0 // loop_header
    %s7 = sphi 0, %s11
    %p8 = scmp.ge.s32.totalorder %s7, 4
    %s17 = sphi 0, %s19
    %s20 = sphi 0, %s17
    %s21 = sphi 0, %s20
    %s37 = sphi 0, %s21
    %s43 = sphi 0, %s45
    %s46 = sphi 0, %s43
    %s47 = sphi 0, %s46
    %s63 = sphi 0, %s47
  $region4: #{convnext_encoder_forward.14} parent=0 // loop_header_branch
    %10 = sbr.rel (%p8) target = $region8
  $region5: #{convnext_encoder_forward.14} parent=0 // loop_body
    %s12 = ssub.s32 %s7, 1
    %s13 = ssub.s32 %s7, 2
    %s14 = sadd.s32 %s7, 1
    %s15 = ssub.s32 %s7, %s14
    %p16 = scmp.eq.s32.totalorder %s15, 0
    %s18 = sadd.s32 %s17, 1
    %s19 = scalar_select %p16, %s17, %s18
    %p22 = pneg %p16
    %p23 = scmp.eq.s32.totalorder %s7, 1
    %p24 = por %p22, %p23
    %p25 = scmp.ne.s32.totalorder %s17, %s20
    %p26 = scmp.eq.s32.totalorder %s7, 0
    %p27 = por %p25, %p26
    %p28 = scmp.ne.s32.totalorder %s17, %s20
    %p29 = scmp.eq.s32.totalorder %s12, 1
    %p30 = por %p28, %p29
    %p31 = scmp.ne.s32.totalorder %s20, %s21
    %p32 = scmp.eq.s32.totalorder %s12, 0
    %p33 = por %p31, %p32
    %p34 = scmp.ne.s32.totalorder %s20, %s21
    %p35 = scmp.eq.s32.totalorder %s13, 1
    %p36 = por %p34, %p35
    %p38 = scmp.ne.s32.totalorder %s21, %s37
    %p39 = scmp.eq.s32.totalorder %s13, 0
    %p40 = por %p38, %p39
    %s41 = ssub.s32 %s7, %s14
    %p42 = scmp.eq.s32.totalorder %s41, 0
    %s44 = sadd.s32 %s43, 1
    %s45 = scalar_select %p42, %s43, %s44
    %p48 = pneg %p42
    %p49 = scmp.eq.s32.totalorder %s7, 1
    %p50 = por %p48, %p49
    %p51 = scmp.ne.s32.totalorder %s43, %s46
    %p52 = scmp.eq.s32.totalorder %s7, 0
    %p53 = por %p51, %p52
    %p54 = scmp.ne.s32.totalorder %s43, %s46
    %p55 = scmp.eq.s32.totalorder %s12, 1
    %p56 = por %p54, %p55
    %p57 = scmp.ne.s32.totalorder %s46, %s47
    %p58 = scmp.eq.s32.totalorder %s12, 0
    %p59 = por %p57, %p58
    %p60 = scmp.ne.s32.totalorder %s46, %s47
    %p61 = scmp.eq.s32.totalorder %s13, 1
    %p62 = por %p60, %p61
    %p64 = scmp.ne.s32.totalorder %s47, %s63
    %p65 = scmp.eq.s32.totalorder %s13, 0
    %p66 = por %p64, %p65
    %p67 = scmp.le.s32.totalorder 1, %s7
    %p68 = scmp.lt.s32.totalorder %s7, 3
    %p69 = pnand %p67, %p68
    %p70 = pneg %p69
    // Predicated region
    $region9: #{convnext_encoder_forward.14} parent=5 // pred_check
      _
    $region10: #{convnext_encoder_forward.14} parent=5 // pred_check_branch
      %72 = sbr.rel (%p69) target = $region12
    $region11: #{convnext_encoder_forward.14} parent=5 // pred_region
      %s73 = ssub.s32 %s7, 1
    $region12: #{convnext_encoder_forward.14} parent=5 // pred_fallthru
      _
    %p74 = scmp.lt.s32.totalorder %s7, 2
    // Predicated region
    $region13: #{convnext_encoder_forward.14} parent=5 // pred_check
      %p75 = pneg %p74
    $region14: #{convnext_encoder_forward.14} parent=5 // pred_check_branch
      %77 = sbr.rel (%p75) target = $region16
    $region15: #{convnext_encoder_forward.14} parent=5 // pred_region
      // Predicated region
      $region17: #{convnext_encoder_forward.14} parent=15 // pred_check
        %p78 = pneg %p27
      $region18: #{convnext_encoder_forward.14} parent=15 // pred_check_branch
        %80 = sbr.rel (%p78) target = $region20
      $region19: #{convnext_encoder_forward.14} parent=15 // pred_region
        %p81 = scmp.lt.s32.totalorder %s7, 1
        %s82 = scalar_select %p81, %s7, 1
        %s83 = smul.addr %s82, 24
        %s84 = smul.addr %s83, 4
        %s85 = scalar_lea.vmem %s0, %s84
      $region20: #{convnext_encoder_forward.14} parent=15 // pred_fallthru
        _
    $region16: #{convnext_encoder_forward.14} parent=5 // pred_fallthru
      _
    %p86 = scmp.le.s32.totalorder 1, %s7
    %p87 = scmp.lt.s32.totalorder %s7, 3
    %p88 = pnand %p86, %p87
    %p89 = pneg %p88
    // Predicated region
    $region21: #{convnext_encoder_forward.14} parent=5 // pred_check
      _
    $region22: #{convnext_encoder_forward.14} parent=5 // pred_check_branch
      %91 = sbr.rel (%p88) target = $region24
    $region23: #{convnext_encoder_forward.14} parent=5 // pred_region
      %s92 = ssub.s32 %s7, 1
      %p93 = scmp.lt.s32.totalorder %s12, 1
      %s94 = scalar_select %p93, %s12, 1
      %s95 = smul.addr %s94, 24
      %s96 = smul.addr %s95, 4
      %s97 = scalar_lea.vmem %s0, %s96
      %p98 = pneg %p33
      %p99 = pneg %p30
      %p100 = pneg %p59
      %p101 = pneg %p56
      %p102 = scmp.lt.s32.totalorder %s12, 1
      %s103 = scalar_select %p102, %s12, 1
      %s104 = smul.addr %s103, 4
      %s105 = smul.addr %s104, 4
      %s106 = scalar_lea.vmem %s1, %s105
      %p107 = scmp.lt.s32.totalorder %s12, 1
      %s108 = scalar_select %p107, %s12, 1
      %s109 = smul.addr %s108, 24
      %s110 = smul.addr %s109, 4
      %s111 = scalar_lea.vmem %s0, %s110
      %p112 = scmp.lt.s32.totalorder %s12, 1
      %s113 = scalar_select %p112, %s12, 1
      %s114 = smul.addr %s113, 4
      %s115 = smul.addr %s114, 4
      %s116 = scalar_lea.vmem %s1, %s115
      %v117 = vld [vmem:[%s111] sm:$0xf]
      %v118 = vld [vmem:[%s111 + $0x10] sm:$0xf]
      %v119 = vld [vmem:[%s111 + $0x20] sm:$0xf]
      %v120 = vld [vmem:[%s111 + $0x30] sm:$0xf]
      %v121 = vld [vmem:[%s111 + $0x4] sm:$0xf]
      %v122 = vld [vmem:[%s111 + $0x14] sm:$0xf]
      %v123 = vld [vmem:[%s111 + $0x24] sm:$0xf]
      %v124 = vld [vmem:[%s111 + $0x34] sm:$0xf]
      %v125 = vmax.bf16 %v117, %v121
      %v126 = vmax.bf16 %v118, %v122
      %v127 = vmax.bf16 %v119, %v123
      %v128 = vmax.bf16 %v120, %v124
      %v129 = vld [vmem:[%s111 + $0x40] sm:$0x1]
      %vm130 = vsmask.f32 3328
      %vm131 = vsmask.f32 7440
      %vm132 = vmor %vm130, %vm131
      %v134 = vshrl.u32 %v117, 16
      %v136 = vrot.slane %v134, 4
      %v137 = vshll.u32 %v117, 16
      %v139 = vrot.slane %v137, 5
      %v140 = vor.u32 %v136, %v139
      %v141 = vrot.slane %v140, 4
      %v143 = vshll.u32 %v118, 16
      %v145 = vrot.slane %v143, 5
      %v146 = vsel %vm132, %v141, %v145
      %v147 = vshrl.u32 %v118, 16
      %v149 = vrot.slane %v147, 4
      %v150 = vor.u32 %v149, %v145
      %v151 = vrot.slane %v150, 4
      %v153 = vshll.u32 %v119, 16
      %v155 = vrot.slane %v153, 5
      %v156 = vsel %vm132, %v151, %v155
      %v157 = vshrl.u32 %v119, 16
      %v159 = vrot.slane %v157, 4
      %v160 = vor.u32 %v159, %v155
      %v161 = vrot.slane %v160, 4
      %v163 = vshll.u32 %v120, 16
      %v165 = vrot.slane %v163, 5
      %v166 = vsel %vm132, %v161, %v165
      %v167 = vshrl.u32 %v120, 16
      %v169 = vrot.slane %v167, 4
      %v170 = vor.u32 %v169, %v165
      %v171 = vrot.slane %v170, 4
      %v173 = vshll.u32 %v129, 16
      %v175 = vrot.slane %v173, 5
      %v176 = vsel %vm132, %v171, %v175
      %v181 = vmax.bf16 %v125, %v146
      %v182 = vmax.bf16 %v126, %v156
      %v183 = vmax.bf16 %v127, %v166
      %v184 = vmax.bf16 %v128, %v176
      %v185 = vld [vmem:[%s111 + $0x8] sm:$0xf]
      %v186 = vld [vmem:[%s111 + $0x18] sm:$0xf]
      %v187 = vld [vmem:[%s111 + $0x28] sm:$0xf]
      %v188 = vld [vmem:[%s111 + $0x38] sm:$0xf]
      %v189 = vmax.bf16 %v181, %v185
      %v190 = vmax.bf16 %v182, %v186
      %v191 = vmax.bf16 %v183, %v187
      %v192 = vmax.bf16 %v184, %v188
      %v193 = vld [vmem:[%s111 + $0xc] sm:$0xf]
      %v194 = vld [vmem:[%s111 + $0x1c] sm:$0xf]
      %v195 = vld [vmem:[%s111 + $0x2c] sm:$0xf]
      %v196 = vld [vmem:[%s111 + $0x3c] sm:$0xf]
      %v197 = vmax.bf16 %v189, %v193
      %v198 = vmax.bf16 %v190, %v194
      %v199 = vmax.bf16 %v191, %v195
      %v200 = vmax.bf16 %v192, %v196
      %v201 = vld [vmem:[%s111 + $0x48] sm:$0x1]
      %v203 = vshrl.u32 %v185, 16
      %v205 = vrot.slane %v203, 4
      %v206 = vshll.u32 %v185, 16
      %v208 = vrot.slane %v206, 5
      %v209 = vor.u32 %v205, %v208
      %v210 = vrot.slane %v209, 4
      %v212 = vshll.u32 %v186, 16
      %v214 = vrot.slane %v212, 5
      %v215 = vsel %vm132, %v210, %v214
      %v216 = vshrl.u32 %v186, 16
      %v218 = vrot.slane %v216, 4
      %v219 = vor.u32 %v218, %v214
      %v220 = vrot.slane %v219, 4
      %v222 = vshll.u32 %v187, 16
      %v224 = vrot.slane %v222, 5
      %v225 = vsel %vm132, %v220, %v224
      %v226 = vshrl.u32 %v187, 16
      %v228 = vrot.slane %v226, 4
      %v229 = vor.u32 %v228, %v224
      %v230 = vrot.slane %v229, 4
      %v232 = vshll.u32 %v188, 16
      %v234 = vrot.slane %v232, 5
      %v235 = vsel %vm132, %v230, %v234
      %v236 = vshrl.u32 %v188, 16
      %v238 = vrot.slane %v236, 4
      %v239 = vor.u32 %v238, %v234
      %v240 = vrot.slane %v239, 4
      %v242 = vshll.u32 %v201, 16
      %v244 = vrot.slane %v242, 5
      %v245 = vsel %vm132, %v240, %v244
      %v250 = vmax.bf16 %v197, %v215
      %v251 = vmax.bf16 %v198, %v225
      %v252 = vmax.bf16 %v199, %v235
      %v253 = vmax.bf16 %v200, %v245
      %v254 = vld [vmem:[%s111 + $0x40] sm:$0xf]
      %v255 = vmax.bf16 %v250, %v118
      %v256 = vmax.bf16 %v251, %v119
      %v257 = vmax.bf16 %v252, %v120
      %v258 = vmax.bf16 %v253, %v254
      %v259 = vld [vmem:[%s111 + $0x44] sm:$0xf]
      %v260 = vmax.bf16 %v255, %v122
      %v261 = vmax.bf16 %v256, %v123
      %v262 = vmax.bf16 %v257, %v124
      %v263 = vmax.bf16 %v258, %v259
      %v264 = vld [vmem:[%s111 + $0x50] sm:$0x1]
      %v266 = vshll.u32 %v254, 16
      %v268 = vrot.slane %v266, 5
      %v269 = vsel %vm132, %v171, %v268
      %v270 = vshrl.u32 %v254, 16
      %v272 = vrot.slane %v270, 4
      %v273 = vor.u32 %v272, %v268
      %v274 = vrot.slane %v273, 4
      %v276 = vshll.u32 %v264, 16
      %v278 = vrot.slane %v276, 5
      %v279 = vsel %vm132, %v274, %v278
      %v282 = vmax.bf16 %v260, %v156
      %v283 = vmax.bf16 %v261, %v166
      %v284 = vmax.bf16 %v262, %v269
      %v285 = vmax.bf16 %v263, %v279
      %286 = vst [vmem:[%s116] sm:$0xf] %v282
      %287 = vst [vmem:[%s116 + $0x4] sm:$0xf] %v283
      %288 = vst [vmem:[%s116 + $0x8] sm:$0xf] %v284
      %289 = vst [vmem:[%s116 + $0xc] sm:$0xf] %v285
      %p290 = scmp.lt.s32.totalorder %s12, 1
      %s291 = scalar_select %p290, %s12, 1
      %s292 = smul.addr %s291, 4
      %s293 = smul.addr %s292, 4
      %s294 = scalar_lea.vmem %s1, %s293
      // Predicated region
      $region25: #{convnext_encoder_forward.14} parent=23 // pred_check
        %p295 = pneg %p56
      $region26: #{convnext_encoder_forward.14} parent=23 // pred_check_branch
        %297 = sbr.rel (%p295) target = $region28
      $region27: #{convnext_encoder_forward.14} parent=23 // pred_region
        _
      $region28: #{convnext_encoder_forward.14} parent=23 // pred_fallthru
        _
    $region24: #{convnext_encoder_forward.14} parent=5 // pred_fallthru
      _
    %p298 = scmp.le.s32.totalorder 2, %s7
    // Predicated region
    $region29: #{convnext_encoder_forward.14} parent=5 // pred_check
      %p299 = pneg %p298
    $region30: #{convnext_encoder_forward.14} parent=5 // pred_check_branch
      %301 = sbr.rel (%p299) target = $region32
    $region31: #{convnext_encoder_forward.14} parent=5 // pred_region
      %s302 = ssub.s32 %s7, 2
      // Predicated region
      $region33: #{convnext_encoder_forward.14} parent=31 // pred_check
        %p303 = pneg %p62
      $region34: #{convnext_encoder_forward.14} parent=31 // pred_check_branch
        %305 = sbr.rel (%p303) target = $region36
      $region35: #{convnext_encoder_forward.14} parent=31 // pred_region
        %p306 = scmp.lt.s32.totalorder %s13, 1
        %s307 = scalar_select %p306, %s13, 1
        %s308 = smul.addr %s307, 4
        %s309 = smul.addr %s308, 4
        %s310 = scalar_lea.vmem %s1, %s309
      $region36: #{convnext_encoder_forward.14} parent=31 // pred_fallthru
        _
    $region32: #{convnext_encoder_forward.14} parent=5 // pred_fallthru
      _
  $region6: #{convnext_encoder_forward.14} parent=0 // loop_footer
    %s11 = sadd.s32 1, %s7
  $region7: #{convnext_encoder_forward.14} parent=0 // loop_footer_branch
    %6 = sbr.rel target = $region3
  $region8: #{convnext_encoder_forward.14} parent=0 // loop_exit
    _

// kernel: convnext_encoder_forward.15
$region0: #{convnext_encoder_forward.15}
  #allocation0 [shape = 'u32[]', space=smem, size = 0x4, offset = 0x4, fixed_abs, tag = 'smem constant byte address 0x4 - core index']
  #allocation1 [shape = 'u32[144,128]{1,0:T(1,128)}', space=vmem, size = 0x12000, scoped, tag = 'internal scratch']
  %s0 = inlined_call_operand.vmem [shape: bf16[32,128], index: 0, kind: input, shape index: {}]
  %s1 = inlined_call_operand.vmem [shape: bf16[128,128], index: 1, kind: input, shape index: {}]
  %s2 = inlined_call_operand.vmem [shape: f32[1,128], index: 2, kind: input, shape index: {}]
  %s3 = inlined_call_operand.vmem [shape: bf16[32,128], index: 3, kind: output, shape index: {}]
  %s4 = sld [smem:[#allocation0]]
  $region22: #{convnext_encoder_forward.15} parent=0
    _
  %s6 = ssub.s32 1, %s4
  %s7 = scalar_select 0, %s6, %s4
  // Predicated region
  $region2: #{convnext_encoder_forward.15} parent=0 // pred_check
    _
  $region3: #{convnext_encoder_forward.15} parent=0 // pred_check_branch
    %9 = sbr.rel (0) target = $region5
  $region4: #{convnext_encoder_forward.15} parent=0 // pred_region
    _
  $region5: #{convnext_encoder_forward.15} parent=0 // pred_fallthru
    _
  // Predicated region
  $region6: #{convnext_encoder_forward.15} parent=0 // pred_check
    _
  $region7: #{convnext_encoder_forward.15} parent=0 // pred_check_branch
    %11 = sbr.rel (0) target = $region9
  $region8: #{convnext_encoder_forward.15} parent=0 // pred_region
    _
  $region9: #{convnext_encoder_forward.15} parent=0 // pred_fallthru
    _
  // Predicated region
  $region10: #{convnext_encoder_forward.15} parent=0 // pred_check
    _
  $region11: #{convnext_encoder_forward.15} parent=0 // pred_check_branch
    %13 = sbr.rel (0) target = $region13
  $region12: #{convnext_encoder_forward.15} parent=0 // pred_region
    _
  $region13: #{convnext_encoder_forward.15} parent=0 // pred_fallthru
    _
  %v15 = vld [vmem:[%s0] sm:$0xf]
  %v16 = vld [vmem:[%s0 + $0x4] sm:$0xf]
  %v17 = vld [vmem:[%s0 + $0x8] sm:$0xf]
  %v18 = vld [vmem:[%s0 + $0xc] sm:$0xf]
  %v19 = vld [vmem:[%s1] sm:$0xf]
  %v20 = vld [vmem:[%s1 + $0x4] sm:$0xf]
  %v21 = vld [vmem:[%s1 + $0x8] sm:$0xf]
  %v22 = vld [vmem:[%s1 + $0xc] sm:$0xf]
  %v23 = vld [vmem:[%s1 + $0x10] sm:$0xf]
  %v24 = vld [vmem:[%s1 + $0x14] sm:$0xf]
  %v25 = vld [vmem:[%s1 + $0x18] sm:$0xf]
  %v26 = vld [vmem:[%s1 + $0x1c] sm:$0xf]
  %v27 = vld [vmem:[%s1 + $0x20] sm:$0xf]
  %v28 = vld [vmem:[%s1 + $0x24] sm:$0xf]
  %v29 = vld [vmem:[%s1 + $0x28] sm:$0xf]
  %v30 = vld [vmem:[%s1 + $0x2c] sm:$0xf]
  %v31 = vld [vmem:[%s1 + $0x30] sm:$0xf]
  %v32 = vld [vmem:[%s1 + $0x34] sm:$0xf]
  %v33 = vld [vmem:[%s1 + $0x38] sm:$0xf]
  %v34 = vld [vmem:[%s1 + $0x3c] sm:$0xf]
  %v35 = vld [vmem:[%s2] sm:$0x1]
  %v37 = vlaneseq
  %v38 = vshrl.u32 %v37, 7
  %v39 = vsub.s32 0, %v38
  %v40 = vrot.slane %v35, %v39
  %v46 = vunpack.c.l.b16 %v15
  %v47 = vunpack.c.l.b16 %v16
  %v48 = vunpack.c.l.b16 %v17
  %v49 = vunpack.c.l.b16 %v18
  %v50 = vpack.c.b16 %v47, %v46
  %v51 = vpack.c.b16 %v49, %v48
  %v70 = vunpack.c.l.b16 %v19
  %v71 = vunpack.c.l.b16 %v20
  %v72 = vunpack.c.l.b16 %v21
  %v73 = vunpack.c.l.b16 %v22
  %v74 = vunpack.c.l.b16 %v23
  %v75 = vunpack.c.l.b16 %v24
  %v76 = vunpack.c.l.b16 %v25
  %v77 = vunpack.c.l.b16 %v26
  %v78 = vunpack.c.l.b16 %v27
  %v79 = vunpack.c.l.b16 %v28
  %v80 = vunpack.c.l.b16 %v29
  %v81 = vunpack.c.l.b16 %v30
  %v82 = vunpack.c.l.b16 %v31
  %v83 = vunpack.c.l.b16 %v32
  %v84 = vunpack.c.l.b16 %v33
  %v85 = vunpack.c.l.b16 %v34
  %v86 = vpack.c.b16 %v71, %v70
  %v87 = vpack.c.b16 %v73, %v72
  %v88 = vpack.c.b16 %v75, %v74
  %v89 = vpack.c.b16 %v77, %v76
  %v90 = vpack.c.b16 %v79, %v78
  %v91 = vpack.c.b16 %v81, %v80
  %v92 = vpack.c.b16 %v83, %v82
  %v93 = vpack.c.b16 %v85, %v84
  %102 = vmatprep.subr.bf16.mxu0 0
  %103 = vmatpush1.bf16.msra.mxu0 %v86
  %104 = vmatprep.subr.bf16.mxu0 0
  %105 = vmatpush1.bf16.msra.mxu0 %v87
  %106 = vmatprep.subr.bf16.mxu0 0
  %107 = vmatpush1.bf16.msra.mxu0 %v88
  %108 = vmatprep.subr.bf16.mxu0 0
  %109 = vmatpush1.bf16.msra.mxu0 %v89
  %110 = vmatprep.subr.bf16.mxu0 0
  %111 = vmatpush1.bf16.msra.mxu0 %v90
  %112 = vmatprep.subr.bf16.mxu0 0
  %113 = vmatpush1.bf16.msra.mxu0 %v91
  %114 = vmatprep.subr.bf16.mxu0 0
  %115 = vmatpush1.bf16.msra.mxu0 %v92
  %116 = vmatprep.subr.bf16.mxu0 0
  %117 = vmatpush1.bf16.msra.mxu0 %v93
  %118 = vmatprep.subr.bf16.mxu0 0
  %119 = vmatpush1.bf16.msra.mxu0 0
  %120 = vmatprep.subr.bf16.mxu0 0
  %121 = vmatpush1.bf16.msra.mxu0 0
  %122 = vmatprep.subr.bf16.mxu0 0
  %123 = vmatpush1.bf16.msra.mxu0 0
  %124 = vmatprep.subr.bf16.mxu0 0
  %125 = vmatpush1.bf16.msra.mxu0 0
  %126 = vmatprep.subr.bf16.mxu0 0
  %127 = vmatpush1.bf16.msra.mxu0 0
  %128 = vmatprep.subr.bf16.mxu0 0
  %129 = vmatpush1.bf16.msra.mxu0 0
  %130 = vmatprep.subr.bf16.mxu0 0
  %131 = vmatpush1.bf16.msra.mxu0 0
  %132 = vmatprep.subr.bf16.mxu0 0
  %133 = vmatpush1.bf16.msra.mxu0 0
  %134 = vmatprep.mubr.bf16.mxu0 0
  %135 = vmatmul.mubr.bf16.gmra.mrb[0].mxu0 %v50
  %v136 = vpop.f32.mrb[0].mxu0
  %v137 = vadd.f32 %v40, %v136
  %v138 = vpop.f32.mrb[0].mxu0
  %v139 = vpop.f32.mrb[0].mxu0
  %v140 = vadd.f32 %v40, %v139
  %v141 = vpop.f32.mrb[0].mxu0
  %142 = vmatprep.mubr.bf16.mxu0 0
  %143 = vmatmul.mubr.bf16.gmra.mrb[0].mxu0 %v51
  %v144 = vpop.f32.mrb[0].mxu0
  %v145 = vadd.f32 %v40, %v144
  %v146 = vpop.f32.mrb[0].mxu0
  %v147 = vpop.f32.mrb[0].mxu0
  %v148 = vadd.f32 %v40, %v147
  %v149 = vpop.f32.mrb[0].mxu0
  %150 = vdwg.mxu0
  %v151 = vmax.f32 %v137, 0.0
  %v152 = vmax.f32 %v140, 0.0
  %v153 = vmax.f32 %v145, 0.0
  %v154 = vmax.f32 %v148, 0.0
  %v155 = vpack.c.bf16 %v152, %v151
  %v156 = vpack.c.bf16 %v154, %v153
  %v159 = vunpack.c.l.b16 %v155
  %v160 = vunpack.c.h.b16 %v155
  %v161 = vunpack.c.l.b16 %v156
  %v162 = vunpack.c.h.b16 %v156
  %v163 = vpack.c.b16 %v159, %v159
  %v164 = vpack.c.b16 %v160, %v160
  %v165 = vpack.c.b16 %v161, %v161
  %v166 = vpack.c.b16 %v162, %v162
  %171 = vst [vmem:[%s3] sm:$0xf] %v163
  %172 = vst [vmem:[%s3 + $0x4] sm:$0xf] %v164
  %173 = vst [vmem:[%s3 + $0x8] sm:$0xf] %v165
  %174 = vst [vmem:[%s3 + $0xc] sm:$0xf] %v166
  // Predicated region
  $region14: #{convnext_encoder_forward.15} parent=0 // pred_check
    _
  $region15: #{convnext_encoder_forward.15} parent=0 // pred_check_branch
    %176 = sbr.rel (0) target = $region17
  $region16: #{convnext_encoder_forward.15} parent=0 // pred_region
    _
  $region17: #{convnext_encoder_forward.15} parent=0 // pred_fallthru
    _
  // Predicated region
  $region18: #{convnext_encoder_forward.15} parent=0 // pred_check
    _
  $region19: #{convnext_encoder_forward.15} parent=0 // pred_check_branch
    %178 = sbr.rel (0) target = $region21
  $region20: #{convnext_encoder_forward.15} parent=0 // pred_region
    _
  $region21: #{convnext_encoder_forward.15} parent=0 // pred_fallthru
    _

// kernel: convnext_encoder_forward.16
$region0: #{convnext_encoder_forward.16}
  #allocation0 [shape = 'u32[]', space=smem, size = 0x4, offset = 0x4, fixed_abs, tag = 'smem constant byte address 0x4 - core index']
  #allocation1 [shape = 'u32[144,128]{1,0:T(1,128)}', space=vmem, size = 0x12000, scoped, tag = 'internal scratch']
  %s0 = inlined_call_operand.vmem [shape: bf16[2,56,128], index: 0, kind: input, shape index: {}]
  %s1 = inlined_call_operand.vmem [shape: bf16[9,128,128], index: 1, kind: input, shape index: {}]
  %s2 = inlined_call_operand.vmem [shape: f32[1,128], index: 2, kind: input, shape index: {}]
  %s3 = inlined_call_operand.vmem [shape: bf16[2,32,128], index: 3, kind: output, shape index: {}]
  %s4 = sld [smem:[#allocation0]]
  $region45: #{convnext_encoder_forward.16} parent=0
    _
  %s6 = ssub.s32 1, %s4
  %s7 = scalar_select 0, %s6, %s4
  loop: start=0, step=1, limit=4
  $region2: #{convnext_encoder_forward.16} parent=0 // loop_pre_header
    _
  $region3: #{convnext_encoder_forward.16} parent=0 // loop_header
    %s9 = sphi 0, %s13
    %p10 = scmp.ge.s32.totalorder %s9, 4
    %s19 = sphi 0, %s21
    %s22 = sphi 0, %s19
    %s23 = sphi 0, %s22
    %s39 = sphi 0, %s23
    %s43 = sphi 0, %s43
    %s45 = sphi 0, %s43
    %s46 = sphi 0, %s45
    %s60 = sphi 0, %s46
    %s64 = sphi 0, %s64
    %s66 = sphi 0, %s64
    %s67 = sphi 0, %s66
    %s81 = sphi 0, %s67
    %s87 = sphi 0, %s89
    %s90 = sphi 0, %s87
    %s91 = sphi 0, %s90
    %s107 = sphi 0, %s91
  $region4: #{convnext_encoder_forward.16} parent=0 // loop_header_branch
    %12 = sbr.rel (%p10) target = $region8
  $region5: #{convnext_encoder_forward.16} parent=0 // loop_body
    %s14 = ssub.s32 %s9, 1
    %s15 = ssub.s32 %s9, 2
    %s16 = sadd.s32 %s9, 1
    %s17 = ssub.s32 %s9, %s16
    %p18 = scmp.eq.s32.totalorder %s17, 0
    %s20 = sadd.s32 %s19, 1
    %s21 = scalar_select %p18, %s19, %s20
    %p24 = pneg %p18
    %p25 = scmp.eq.s32.totalorder %s9, 1
    %p26 = por %p24, %p25
    %p27 = scmp.ne.s32.totalorder %s19, %s22
    %p28 = scmp.eq.s32.totalorder %s9, 0
    %p29 = por %p27, %p28
    %p30 = scmp.ne.s32.totalorder %s19, %s22
    %p31 = scmp.eq.s32.totalorder %s14, 1
    %p32 = por %p30, %p31
    %p33 = scmp.ne.s32.totalorder %s22, %s23
    %p34 = scmp.eq.s32.totalorder %s14, 0
    %p35 = por %p33, %p34
    %p36 = scmp.ne.s32.totalorder %s22, %s23
    %p37 = scmp.eq.s32.totalorder %s15, 1
    %p38 = por %p36, %p37
    %p40 = scmp.ne.s32.totalorder %s23, %s39
    %p41 = scmp.eq.s32.totalorder %s15, 0
    %p42 = por %p40, %p41
    %s44 = sadd.s32 %s43, 1
    %p47 = scmp.eq.s32.totalorder %s9, 1
    %p48 = scmp.ne.s32.totalorder %s43, %s45
    %p49 = scmp.eq.s32.totalorder %s9, 0
    %p50 = por %p48, %p49
    %p51 = scmp.ne.s32.totalorder %s43, %s45
    %p52 = scmp.eq.s32.totalorder %s14, 1
    %p53 = por %p51, %p52
    %p54 = scmp.ne.s32.totalorder %s45, %s46
    %p55 = scmp.eq.s32.totalorder %s14, 0
    %p56 = por %p54, %p55
    %p57 = scmp.ne.s32.totalorder %s45, %s46
    %p58 = scmp.eq.s32.totalorder %s15, 1
    %p59 = por %p57, %p58
    %p61 = scmp.ne.s32.totalorder %s46, %s60
    %p62 = scmp.eq.s32.totalorder %s15, 0
    %p63 = por %p61, %p62
    %s65 = sadd.s32 %s64, 1
    %p68 = scmp.eq.s32.totalorder %s9, 1
    %p69 = scmp.ne.s32.totalorder %s64, %s66
    %p70 = scmp.eq.s32.totalorder %s9, 0
    %p71 = por %p69, %p70
    %p72 = scmp.ne.s32.totalorder %s64, %s66
    %p73 = scmp.eq.s32.totalorder %s14, 1
    %p74 = por %p72, %p73
    %p75 = scmp.ne.s32.totalorder %s66, %s67
    %p76 = scmp.eq.s32.totalorder %s14, 0
    %p77 = por %p75, %p76
    %p78 = scmp.ne.s32.totalorder %s66, %s67
    %p79 = scmp.eq.s32.totalorder %s15, 1
    %p80 = por %p78, %p79
    %p82 = scmp.ne.s32.totalorder %s67, %s81
    %p83 = scmp.eq.s32.totalorder %s15, 0
    %p84 = por %p82, %p83
    %s85 = ssub.s32 %s9, %s16
    %p86 = scmp.eq.s32.totalorder %s85, 0
    %s88 = sadd.s32 %s87, 1
    %s89 = scalar_select %p86, %s87, %s88
    %p92 = pneg %p86
    %p93 = scmp.eq.s32.totalorder %s9, 1
    %p94 = por %p92, %p93
    %p95 = scmp.ne.s32.totalorder %s87, %s90
    %p96 = scmp.eq.s32.totalorder %s9, 0
    %p97 = por %p95, %p96
    %p98 = scmp.ne.s32.totalorder %s87, %s90
    %p99 = scmp.eq.s32.totalorder %s14, 1
    %p100 = por %p98, %p99
    %p101 = scmp.ne.s32.totalorder %s90, %s91
    %p102 = scmp.eq.s32.totalorder %s14, 0
    %p103 = por %p101, %p102
    %p104 = scmp.ne.s32.totalorder %s90, %s91
    %p105 = scmp.eq.s32.totalorder %s15, 1
    %p106 = por %p104, %p105
    %p108 = scmp.ne.s32.totalorder %s91, %s107
    %p109 = scmp.eq.s32.totalorder %s15, 0
    %p110 = por %p108, %p109
    %p111 = scmp.le.s32.totalorder 1, %s9
    %p112 = scmp.lt.s32.totalorder %s9, 3
    %p113 = pnand %p111, %p112
    %p114 = pneg %p113
    // Predicated region
    $region9: #{convnext_encoder_forward.16} parent=5 // pred_check
      _
    $region10: #{convnext_encoder_forward.16} parent=5 // pred_check_branch
      %116 = sbr.rel (%p113) target = $region12
    $region11: #{convnext_encoder_forward.16} parent=5 // pred_region
      %s117 = ssub.s32 %s9, 1
      // Predicated region
      $region13: #{convnext_encoder_forward.16} parent=11 // pred_check
        %p118 = pneg %p56
      $region14: #{convnext_encoder_forward.16} parent=11 // pred_check_branch
        %120 = sbr.rel (%p118) target = $region16
      $region15: #{convnext_encoder_forward.16} parent=11 // pred_region
        _
      $region16: #{convnext_encoder_forward.16} parent=11 // pred_fallthru
        _
      // Predicated region
      $region17: #{convnext_encoder_forward.16} parent=11 // pred_check
        %p121 = pneg %p77
      $region18: #{convnext_encoder_forward.16} parent=11 // pred_check_branch
        %123 = sbr.rel (%p121) target = $region20
      $region19: #{convnext_encoder_forward.16} parent=11 // pred_region
        _
      $region20: #{convnext_encoder_forward.16} parent=11 // pred_fallthru
        _
    $region12: #{convnext_encoder_forward.16} parent=5 // pred_fallthru
      _
    %p124 = scmp.lt.s32.totalorder %s9, 2
    // Predicated region
    $region21: #{convnext_encoder_forward.16} parent=5 // pred_check
      %p125 = pneg %p124
    $region22: #{convnext_encoder_forward.16} parent=5 // pred_check_branch
      %127 = sbr.rel (%p125) target = $region24
    $region23: #{convnext_encoder_forward.16} parent=5 // pred_region
      // Predicated region
      $region25: #{convnext_encoder_forward.16} parent=23 // pred_check
        %p128 = pneg %p29
      $region26: #{convnext_encoder_forward.16} parent=23 // pred_check_branch
        %130 = sbr.rel (%p128) target = $region28
      $region27: #{convnext_encoder_forward.16} parent=23 // pred_region
        %p131 = scmp.lt.s32.totalorder %s9, 1
        %s132 = scalar_select %p131, %s9, 1
        %s133 = smul.addr %s132, 7
        %s134 = smul.addr %s133, 4
        %s135 = scalar_lea.vmem %s0, %s134
      $region28: #{convnext_encoder_forward.16} parent=23 // pred_fallthru
        _
    $region24: #{convnext_encoder_forward.16} parent=5 // pred_fallthru
      _
    %p136 = scmp.le.s32.totalorder 1, %s9
    %p137 = scmp.lt.s32.totalorder %s9, 3
    %p138 = pnand %p136, %p137
    %p139 = pneg %p138
    // Predicated region
    $region29: #{convnext_encoder_forward.16} parent=5 // pred_check
      _
    $region30: #{convnext_encoder_forward.16} parent=5 // pred_check_branch
      %141 = sbr.rel (%p138) target = $region32
    $region31: #{convnext_encoder_forward.16} parent=5 // pred_region
      %s142 = ssub.s32 %s9, 1
      %p143 = scmp.lt.s32.totalorder %s14, 1
      %s144 = scalar_select %p143, %s14, 1
      %s145 = smul.addr %s144, 7
      %s146 = smul.addr %s145, 4
      %s147 = scalar_lea.vmem %s0, %s146
      %p148 = pneg %p35
      %p149 = pneg %p32
      %p150 = pneg %p56
      %p151 = pneg %p53
      %p152 = pneg %p77
      %p153 = pneg %p74
      %p154 = pneg %p103
      %p155 = pneg %p100
      %p156 = scmp.lt.s32.totalorder %s14, 1
      %s157 = scalar_select %p156, %s14, 1
      %s158 = smul.addr %s157, 4
      %s159 = smul.addr %s158, 4
      %s160 = scalar_lea.vmem %s3, %s159
      %p161 = scmp.lt.s32.totalorder %s14, 1
      %s162 = scalar_select %p161, %s14, 1
      %s163 = smul.addr %s162, 7
      %s164 = smul.addr %s163, 4
      %s165 = scalar_lea.vmem %s0, %s164
      %p166 = scmp.lt.s32.totalorder %s14, 1
      %s167 = scalar_select %p166, %s14, 1
      %s168 = smul.addr %s167, 4
      %s169 = smul.addr %s168, 4
      %s170 = scalar_lea.vmem %s3, %s169
      %v172 = vld [vmem:[%s165] sm:$0xf]
      %v173 = vld [vmem:[%s165 + $0x4] sm:$0xf]
      %v174 = vld [vmem:[%s165 + $0x8] sm:$0xf]
      %v175 = vld [vmem:[%s165 + $0xc] sm:$0xf]
      %v176 = vld [vmem:[%s1] sm:$0xf]
      %v177 = vld [vmem:[%s1 + $0x4] sm:$0xf]
      %v178 = vld [vmem:[%s1 + $0x8] sm:$0xf]
      %v179 = vld [vmem:[%s1 + $0xc] sm:$0xf]
      %v180 = vld [vmem:[%s1 + $0x10] sm:$0xf]
      %v181 = vld [vmem:[%s1 + $0x14] sm:$0xf]
      %v182 = vld [vmem:[%s1 + $0x18] sm:$0xf]
      %v183 = vld [vmem:[%s1 + $0x1c] sm:$0xf]
      %v184 = vld [vmem:[%s1 + $0x20] sm:$0xf]
      %v185 = vld [vmem:[%s1 + $0x24] sm:$0xf]
      %v186 = vld [vmem:[%s1 + $0x28] sm:$0xf]
      %v187 = vld [vmem:[%s1 + $0x2c] sm:$0xf]
      %v188 = vld [vmem:[%s1 + $0x30] sm:$0xf]
      %v189 = vld [vmem:[%s1 + $0x34] sm:$0xf]
      %v190 = vld [vmem:[%s1 + $0x38] sm:$0xf]
      %v191 = vld [vmem:[%s1 + $0x3c] sm:$0xf]
      %v192 = vld [vmem:[%s165 + $0x10] sm:$0x1]
      %s193 = scalar_lea.vmem %s1, 64
      %v194 = vld [vmem:[%s193] sm:$0xf]
      %v195 = vld [vmem:[%s193 + $0x4] sm:$0xf]
      %v196 = vld [vmem:[%s193 + $0x8] sm:$0xf]
      %v197 = vld [vmem:[%s193 + $0xc] sm:$0xf]
      %v198 = vld [vmem:[%s193 + $0x10] sm:$0xf]
      %v199 = vld [vmem:[%s193 + $0x14] sm:$0xf]
      %v200 = vld [vmem:[%s193 + $0x18] sm:$0xf]
      %v201 = vld [vmem:[%s193 + $0x1c] sm:$0xf]
      %v202 = vld [vmem:[%s193 + $0x20] sm:$0xf]
      %v203 = vld [vmem:[%s193 + $0x24] sm:$0xf]
      %v204 = vld [vmem:[%s193 + $0x28] sm:$0xf]
      %v205 = vld [vmem:[%s193 + $0x2c] sm:$0xf]
      %v206 = vld [vmem:[%s193 + $0x30] sm:$0xf]
      %v207 = vld [vmem:[%s193 + $0x34] sm:$0xf]
      %v208 = vld [vmem:[%s193 + $0x38] sm:$0xf]
      %v209 = vld [vmem:[%s193 + $0x3c] sm:$0xf]
      %v215 = vunpack.c.l.b16 %v172
      %v216 = vunpack.c.l.b16 %v173
      %v217 = vunpack.c.l.b16 %v174
      %v218 = vunpack.c.l.b16 %v175
      %v219 = vunpack.c.l.b16 %v192
      %v220 = vpack.c.b16 %v216, %v215
      %v221 = vpack.c.b16 %v218, %v217
      %v222 = vpack.c.b16 %v219, %v219
      %vm223 = vsmask.f32 7424
      %v225 = vshrl.u32 %v220, 16
      %v227 = vshll.u32 %v220, 16
      %v229 = vrot.slane %v227, 1
      %v230 = vor.u32 %v225, %v229
      %v232 = vshll.u32 %v221, 16
      %v234 = vrot.slane %v232, 1
      %v235 = vsel %vm223, %v230, %v234
      %v236 = vshrl.u32 %v221, 16
      %v238 = vor.u32 %v236, %v234
      %v240 = vshll.u32 %v222, 16
      %v242 = vrot.slane %v240, 1
      %v243 = vsel %vm223, %v238, %v242
      %v262 = vunpack.c.l.b16 %v194
      %v263 = vunpack.c.l.b16 %v195
      %v264 = vunpack.c.l.b16 %v196
      %v265 = vunpack.c.l.b16 %v197
      %v266 = vunpack.c.l.b16 %v198
      %v267 = vunpack.c.l.b16 %v199
      %v268 = vunpack.c.l.b16 %v200
      %v269 = vunpack.c.l.b16 %v201
      %v270 = vunpack.c.l.b16 %v202
      %v271 = vunpack.c.l.b16 %v203
      %v272 = vunpack.c.l.b16 %v204
      %v273 = vunpack.c.l.b16 %v205
      %v274 = vunpack.c.l.b16 %v206
      %v275 = vunpack.c.l.b16 %v207
      %v276 = vunpack.c.l.b16 %v208
      %v277 = vunpack.c.l.b16 %v209
      %v278 = vpack.c.b16 %v263, %v262
      %v279 = vpack.c.b16 %v265, %v264
      %v280 = vpack.c.b16 %v267, %v266
      %v281 = vpack.c.b16 %v269, %v268
      %v282 = vpack.c.b16 %v271, %v270
      %v283 = vpack.c.b16 %v273, %v272
      %v284 = vpack.c.b16 %v275, %v274
      %v285 = vpack.c.b16 %v277, %v276
      %294 = vmatprep.subr.bf16.mxu0 0
      %295 = vmatpush1.bf16.msra.mxu0 %v278
      %296 = vmatprep.subr.bf16.mxu0 0
      %297 = vmatpush1.bf16.msra.mxu0 %v279
      %298 = vmatprep.subr.bf16.mxu0 0
      %299 = vmatpush1.bf16.msra.mxu0 %v280
      %300 = vmatprep.subr.bf16.mxu0 0
      %301 = vmatpush1.bf16.msra.mxu0 %v281
      %302 = vmatprep.subr.bf16.mxu0 0
      %303 = vmatpush1.bf16.msra.mxu0 %v282
      %304 = vmatprep.subr.bf16.mxu0 0
      %305 = vmatpush1.bf16.msra.mxu0 %v283
      %306 = vmatprep.subr.bf16.mxu0 0
      %307 = vmatpush1.bf16.msra.mxu0 %v284
      %308 = vmatprep.subr.bf16.mxu0 0
      %309 = vmatpush1.bf16.msra.mxu0 %v285
      %310 = vmatprep.subr.bf16.mxu0 0
      %311 = vmatpush1.bf16.msra.mxu0 0
      %312 = vmatprep.subr.bf16.mxu0 0
      %313 = vmatpush1.bf16.msra.mxu0 0
      %314 = vmatprep.subr.bf16.mxu0 0
      %315 = vmatpush1.bf16.msra.mxu0 0
      %316 = vmatprep.subr.bf16.mxu0 0
      %317 = vmatpush1.bf16.msra.mxu0 0
      %318 = vmatprep.subr.bf16.mxu0 0
      %319 = vmatpush1.bf16.msra.mxu0 0
      %320 = vmatprep.subr.bf16.mxu0 0
      %321 = vmatpush1.bf16.msra.mxu0 0
      %322 = vmatprep.subr.bf16.mxu0 0
      %323 = vmatpush1.bf16.msra.mxu0 0
      %324 = vmatprep.subr.bf16.mxu0 0
      %325 = vmatpush1.bf16.msra.mxu0 0
      %326 = vmatprep.mubr.bf16.mxu0 0
      %327 = vmatmul.mubr.bf16.gmra.mrb[0].mxu0 %v235
      %v328 = vpop.f32.mrb[0].mxu0
      %v329 = vadd.f32 0.0, %v328
      %v330 = vpop.f32.mrb[0].mxu0
      %v331 = vpop.f32.mrb[0].mxu0
      %v332 = vadd.f32 0.0, %v331
      %v333 = vpop.f32.mrb[0].mxu0
      %334 = vmatprep.mubr.bf16.mxu0 0
      %335 = vmatmul.mubr.bf16.gmra.mrb[0].mxu0 %v243
      %v336 = vpop.f32.mrb[0].mxu0
      %v337 = vadd.f32 0.0, %v336
      %v338 = vpop.f32.mrb[0].mxu0
      %v339 = vpop.f32.mrb[0].mxu0
      %v340 = vadd.f32 0.0, %v339
      %v341 = vpop.f32.mrb[0].mxu0
      %342 = vdwg.mxu0
      %v361 = vunpack.c.l.b16 %v176
      %v362 = vunpack.c.l.b16 %v177
      %v363 = vunpack.c.l.b16 %v178
      %v364 = vunpack.c.l.b16 %v179
      %v365 = vunpack.c.l.b16 %v180
      %v366 = vunpack.c.l.b16 %v181
      %v367 = vunpack.c.l.b16 %v182
      %v368 = vunpack.c.l.b16 %v183
      %v369 = vunpack.c.l.b16 %v184
      %v370 = vunpack.c.l.b16 %v185
      %v371 = vunpack.c.l.b16 %v186
      %v372 = vunpack.c.l.b16 %v187
      %v373 = vunpack.c.l.b16 %v188
      %v374 = vunpack.c.l.b16 %v189
      %v375 = vunpack.c.l.b16 %v190
      %v376 = vunpack.c.l.b16 %v191
      %v377 = vpack.c.b16 %v362, %v361
      %v378 = vpack.c.b16 %v364, %v363
      %v379 = vpack.c.b16 %v366, %v365
      %v380 = vpack.c.b16 %v368, %v367
      %v381 = vpack.c.b16 %v370, %v369
      %v382 = vpack.c.b16 %v372, %v371
      %v383 = vpack.c.b16 %v374, %v373
      %v384 = vpack.c.b16 %v376, %v375
      %393 = vmatprep.subr.bf16.mxu0 0
      %394 = vmatpush1.bf16.msra.mxu0 %v377
      %395 = vmatprep.subr.bf16.mxu0 0
      %396 = vmatpush1.bf16.msra.mxu0 %v378
      %397 = vmatprep.subr.bf16.mxu0 0
      %398 = vmatpush1.bf16.msra.mxu0 %v379
      %399 = vmatprep.subr.bf16.mxu0 0
      %400 = vmatpush1.bf16.msra.mxu0 %v380
      %401 = vmatprep.subr.bf16.mxu0 0
      %402 = vmatpush1.bf16.msra.mxu0 %v381
      %403 = vmatprep.subr.bf16.mxu0 0
      %404 = vmatpush1.bf16.msra.mxu0 %v382
      %405 = vmatprep.subr.bf16.mxu0 0
      %406 = vmatpush1.bf16.msra.mxu0 %v383
      %407 = vmatprep.subr.bf16.mxu0 0
      %408 = vmatpush1.bf16.msra.mxu0 %v384
      %409 = vmatprep.subr.bf16.mxu0 0
      %410 = vmatpush1.bf16.msra.mxu0 0
      %411 = vmatprep.subr.bf16.mxu0 0
      %412 = vmatpush1.bf16.msra.mxu0 0
      %413 = vmatprep.subr.bf16.mxu0 0
      %414 = vmatpush1.bf16.msra.mxu0 0
      %415 = vmatprep.subr.bf16.mxu0 0
      %416 = vmatpush1.bf16.msra.mxu0 0
      %417 = vmatprep.subr.bf16.mxu0 0
      %418 = vmatpush1.bf16.msra.mxu0 0
      %419 = vmatprep.subr.bf16.mxu0 0
      %420 = vmatpush1.bf16.msra.mxu0 0
      %421 = vmatprep.subr.bf16.mxu0 0
      %422 = vmatpush1.bf16.msra.mxu0 0
      %423 = vmatprep.subr.bf16.mxu0 0
      %424 = vmatpush1.bf16.msra.mxu0 0
      %425 = vmatprep.mubr.bf16.mxu0 0
      %426 = vmatmul.mubr.bf16.gmra.mrb[0].mxu0 %v220
      %v427 = vpop.f32.mrb[0].mxu0
      %v428 = vadd.f32 %v329, %v427
      %v429 = vpop.f32.mrb[0].mxu0
      %v430 = vpop.f32.mrb[0].mxu0
      %v431 = vadd.f32 %v332, %v430
      %v432 = vpop.f32.mrb[0].mxu0
      %433 = vmatprep.mubr.bf16.mxu0 0
      %434 = vmatmul.mubr.bf16.gmra.mrb[0].mxu0 %v221
      %v435 = vpop.f32.mrb[0].mxu0
      %v436 = vadd.f32 %v337, %v435
      %v437 = vpop.f32.mrb[0].mxu0
      %v438 = vpop.f32.mrb[0].mxu0
      %v439 = vadd.f32 %v340, %v438
      %v440 = vpop.f32.mrb[0].mxu0
      %441 = vdwg.mxu0
      %v442 = vld [vmem:[%s165] sm:$0xe]
      %s443 = scalar_lea.vmem %s1, 128
      %v444 = vld [vmem:[%s443] sm:$0xf]
      %v445 = vld [vmem:[%s443 + $0x4] sm:$0xf]
      %v446 = vld [vmem:[%s443 + $0x8] sm:$0xf]
      %v447 = vld [vmem:[%s443 + $0xc] sm:$0xf]
      %v448 = vld [vmem:[%s443 + $0x10] sm:$0xf]
      %v449 = vld [vmem:[%s443 + $0x14] sm:$0xf]
      %v450 = vld [vmem:[%s443 + $0x18] sm:$0xf]
      %v451 = vld [vmem:[%s443 + $0x1c] sm:$0xf]
      %v452 = vld [vmem:[%s443 + $0x20] sm:$0xf]
      %v453 = vld [vmem:[%s443 + $0x24] sm:$0xf]
      %v454 = vld [vmem:[%s443 + $0x28] sm:$0xf]
      %v455 = vld [vmem:[%s443 + $0x2c] sm:$0xf]
      %v456 = vld [vmem:[%s443 + $0x30] sm:$0xf]
      %v457 = vld [vmem:[%s443 + $0x34] sm:$0xf]
      %v458 = vld [vmem:[%s443 + $0x38] sm:$0xf]
      %v459 = vld [vmem:[%s443 + $0x3c] sm:$0xf]
      %v461 = vunpack.c.l.b16 %v442
      %v462 = vpack.c.b16 %v216, %v461
      %vm463 = vcmask 1046528
      %v464 = vrot.slane %v462, 1
      %v465 = vrot.slane %v221, 1
      %v466 = vsel %vm463, %v464, %v465
      %v467 = vrot.slane %v222, 1
      %v468 = vsel %vm463, %v465, %v467
      %v487 = vunpack.c.l.b16 %v444
      %v488 = vunpack.c.l.b16 %v445
      %v489 = vunpack.c.l.b16 %v446
      %v490 = vunpack.c.l.b16 %v447
      %v491 = vunpack.c.l.b16 %v448
      %v492 = vunpack.c.l.b16 %v449
      %v493 = vunpack.c.l.b16 %v450
      %v494 = vunpack.c.l.b16 %v451
      %v495 = vunpack.c.l.b16 %v452
      %v496 = vunpack.c.l.b16 %v453
      %v497 = vunpack.c.l.b16 %v454
      %v498 = vunpack.c.l.b16 %v455
      %v499 = vunpack.c.l.b16 %v456
      %v500 = vunpack.c.l.b16 %v457
      %v501 = vunpack.c.l.b16 %v458
      %v502 = vunpack.c.l.b16 %v459
      %v503 = vpack.c.b16 %v488, %v487
      %v504 = vpack.c.b16 %v490, %v489
      %v505 = vpack.c.b16 %v492, %v491
      %v506 = vpack.c.b16 %v494, %v493
      %v507 = vpack.c.b16 %v496, %v495
      %v508 = vpack.c.b16 %v498, %v497
      %v509 = vpack.c.b16 %v500, %v499
      %v510 = vpack.c.b16 %v502, %v501
      %519 = vmatprep.subr.bf16.mxu0 0
      %520 = vmatpush1.bf16.msra.mxu0 %v503
      %521 = vmatprep.subr.bf16.mxu0 0
      %522 = vmatpush1.bf16.msra.mxu0 %v504
      %523 = vmatprep.subr.bf16.mxu0 0
      %524 = vmatpush1.bf16.msra.mxu0 %v505
      %525 = vmatprep.subr.bf16.mxu0 0
      %526 = vmatpush1.bf16.msra.mxu0 %v506
      %527 = vmatprep.subr.bf16.mxu0 0
      %528 = vmatpush1.bf16.msra.mxu0 %v507
      %529 = vmatprep.subr.bf16.mxu0 0
      %530 = vmatpush1.bf16.msra.mxu0 %v508
      %531 = vmatprep.subr.bf16.mxu0 0
      %532 = vmatpush1.bf16.msra.mxu0 %v509
      %533 = vmatprep.subr.bf16.mxu0 0
      %534 = vmatpush1.bf16.msra.mxu0 %v510
      %535 = vmatprep.subr.bf16.mxu0 0
      %536 = vmatpush1.bf16.msra.mxu0 0
      %537 = vmatprep.subr.bf16.mxu0 0
      %538 = vmatpush1.bf16.msra.mxu0 0
      %539 = vmatprep.subr.bf16.mxu0 0
      %540 = vmatpush1.bf16.msra.mxu0 0
      %541 = vmatprep.subr.bf16.mxu0 0
      %542 = vmatpush1.bf16.msra.mxu0 0
      %543 = vmatprep.subr.bf16.mxu0 0
      %544 = vmatpush1.bf16.msra.mxu0 0
      %545 = vmatprep.subr.bf16.mxu0 0
      %546 = vmatpush1.bf16.msra.mxu0 0
      %547 = vmatprep.subr.bf16.mxu0 0
      %548 = vmatpush1.bf16.msra.mxu0 0
      %549 = vmatprep.subr.bf16.mxu0 0
      %550 = vmatpush1.bf16.msra.mxu0 0
      %551 = vmatprep.mubr.bf16.mxu0 0
      %552 = vmatmul.mubr.bf16.gmra.mrb[0].mxu0 %v466
      %v553 = vpop.f32.mrb[0].mxu0
      %v554 = vadd.f32 0.0, %v553
      %v555 = vpop.f32.mrb[0].mxu0
      %v556 = vpop.f32.mrb[0].mxu0
      %v557 = vadd.f32 0.0, %v556
      %v558 = vpop.f32.mrb[0].mxu0
      %559 = vmatprep.mubr.bf16.mxu0 0
      %560 = vmatmul.mubr.bf16.gmra.mrb[0].mxu0 %v468
      %v561 = vpop.f32.mrb[0].mxu0
      %v562 = vadd.f32 0.0, %v561
      %v563 = vpop.f32.mrb[0].mxu0
      %v564 = vpop.f32.mrb[0].mxu0
      %v565 = vadd.f32 0.0, %v564
      %v566 = vpop.f32.mrb[0].mxu0
      %567 = vdwg.mxu0
      %v568 = vadd.f32 %v428, %v554
      %v569 = vadd.f32 %v431, %v557
      %v570 = vadd.f32 %v436, %v562
      %v571 = vadd.f32 %v439, %v565
      %v572 = vld [vmem:[%s165 + $0x10] sm:$0xf]
      %s573 = scalar_lea.vmem %s1, 192
      %v574 = vld [vmem:[%s573] sm:$0xf]
      %v575 = vld [vmem:[%s573 + $0x4] sm:$0xf]
      %v576 = vld [vmem:[%s573 + $0x8] sm:$0xf]
      %v577 = vld [vmem:[%s573 + $0xc] sm:$0xf]
      %v578 = vld [vmem:[%s573 + $0x10] sm:$0xf]
      %v579 = vld [vmem:[%s573 + $0x14] sm:$0xf]
      %v580 = vld [vmem:[%s573 + $0x18] sm:$0xf]
      %v581 = vld [vmem:[%s573 + $0x1c] sm:$0xf]
      %v582 = vld [vmem:[%s573 + $0x20] sm:$0xf]
      %v583 = vld [vmem:[%s573 + $0x24] sm:$0xf]
      %v584 = vld [vmem:[%s573 + $0x28] sm:$0xf]
      %v585 = vld [vmem:[%s573 + $0x2c] sm:$0xf]
      %v586 = vld [vmem:[%s573 + $0x30] sm:$0xf]
      %v587 = vld [vmem:[%s573 + $0x34] sm:$0xf]
      %v588 = vld [vmem:[%s573 + $0x38] sm:$0xf]
      %v589 = vld [vmem:[%s573 + $0x3c] sm:$0xf]
      %v591 = vunpack.c.l.b16 %v572
      %v592 = vpack.c.b16 %v217, %v216
      %v593 = vpack.c.b16 %v591, %v218
      %v612 = vunpack.c.l.b16 %v574
      %v613 = vunpack.c.l.b16 %v575
      %v614 = vunpack.c.l.b16 %v576
      %v615 = vunpack.c.l.b16 %v577
      %v616 = vunpack.c.l.b16 %v578
      %v617 = vunpack.c.l.b16 %v579
      %v618 = vunpack.c.l.b16 %v580
      %v619 = vunpack.c.l.b16 %v581
      %v620 = vunpack.c.l.b16 %v582
      %v621 = vunpack.c.l.b16 %v583
      %v622 = vunpack.c.l.b16 %v584
      %v623 = vunpack.c.l.b16 %v585
      %v624 = vunpack.c.l.b16 %v586
      %v625 = vunpack.c.l.b16 %v587
      %v626 = vunpack.c.l.b16 %v588
      %v627 = vunpack.c.l.b16 %v589
      %v628 = vpack.c.b16 %v613, %v612
      %v629 = vpack.c.b16 %v615, %v614
      %v630 = vpack.c.b16 %v617, %v616
      %v631 = vpack.c.b16 %v619, %v618
      %v632 = vpack.c.b16 %v621, %v620
      %v633 = vpack.c.b16 %v623, %v622
      %v634 = vpack.c.b16 %v625, %v624
      %v635 = vpack.c.b16 %v627, %v626
      %644 = vmatprep.subr.bf16.mxu0 0
      %645 = vmatpush1.bf16.msra.mxu0 %v628
      %646 = vmatprep.subr.bf16.mxu0 0
      %647 = vmatpush1.bf16.msra.mxu0 %v629
      %648 = vmatprep.subr.bf16.mxu0 0
      %649 = vmatpush1.bf16.msra.mxu0 %v630
      %650 = vmatprep.subr.bf16.mxu0 0
      %651 = vmatpush1.bf16.msra.mxu0 %v631
      %652 = vmatprep.subr.bf16.mxu0 0
      %653 = vmatpush1.bf16.msra.mxu0 %v632
      %654 = vmatprep.subr.bf16.mxu0 0
      %655 = vmatpush1.bf16.msra.mxu0 %v633
      %656 = vmatprep.subr.bf16.mxu0 0
      %657 = vmatpush1.bf16.msra.mxu0 %v634
      %658 = vmatprep.subr.bf16.mxu0 0
      %659 = vmatpush1.bf16.msra.mxu0 %v635
      %660 = vmatprep.subr.bf16.mxu0 0
      %661 = vmatpush1.bf16.msra.mxu0 0
      %662 = vmatprep.subr.bf16.mxu0 0
      %663 = vmatpush1.bf16.msra.mxu0 0
      %664 = vmatprep.subr.bf16.mxu0 0
      %665 = vmatpush1.bf16.msra.mxu0 0
      %666 = vmatprep.subr.bf16.mxu0 0
      %667 = vmatpush1.bf16.msra.mxu0 0
      %668 = vmatprep.subr.bf16.mxu0 0
      %669 = vmatpush1.bf16.msra.mxu0 0
      %670 = vmatprep.subr.bf16.mxu0 0
      %671 = vmatpush1.bf16.msra.mxu0 0
      %672 = vmatprep.subr.bf16.mxu0 0
      %673 = vmatpush1.bf16.msra.mxu0 0
      %674 = vmatprep.subr.bf16.mxu0 0
      %675 = vmatpush1.bf16.msra.mxu0 0
      %676 = vmatprep.mubr.bf16.mxu0 0
      %677 = vmatmul.mubr.bf16.gmra.mrb[0].mxu0 %v592
      %v678 = vpop.f32.mrb[0].mxu0
      %v679 = vadd.f32 0.0, %v678
      %v680 = vpop.f32.mrb[0].mxu0
      %v681 = vpop.f32.mrb[0].mxu0
      %v682 = vadd.f32 0.0, %v681
      %v683 = vpop.f32.mrb[0].mxu0
      %684 = vmatprep.mubr.bf16.mxu0 0
      %685 = vmatmul.mubr.bf16.gmra.mrb[0].mxu0 %v593
      %v686 = vpop.f32.mrb[0].mxu0
      %v687 = vadd.f32 0.0, %v686
      %v688 = vpop.f32.mrb[0].mxu0
      %v689 = vpop.f32.mrb[0].mxu0
      %v690 = vadd.f32 0.0, %v689
      %v691 = vpop.f32.mrb[0].mxu0
      %692 = vdwg.mxu0
      %v693 = vadd.f32 %v568, %v679
      %v694 = vadd.f32 %v569, %v682
      %v695 = vadd.f32 %v570, %v687
      %v696 = vadd.f32 %v571, %v690
      %v697 = vld [vmem:[%s165 + $0x4] sm:$0xf]
      %v698 = vld [vmem:[%s165 + $0x8] sm:$0xf]
      %v699 = vld [vmem:[%s165 + $0xc] sm:$0xf]
      %v700 = vld [vmem:[%s165 + $0x10] sm:$0xf]
      %v701 = vld [vmem:[%s165 + $0x14] sm:$0x1]
      %s702 = scalar_lea.vmem %s1, 256
      %v703 = vld [vmem:[%s702] sm:$0xf]
      %v704 = vld [vmem:[%s702 + $0x4] sm:$0xf]
      %v705 = vld [vmem:[%s702 + $0x8] sm:$0xf]
      %v706 = vld [vmem:[%s702 + $0xc] sm:$0xf]
      %v707 = vld [vmem:[%s702 + $0x10] sm:$0xf]
      %v708 = vld [vmem:[%s702 + $0x14] sm:$0xf]
      %v709 = vld [vmem:[%s702 + $0x18] sm:$0xf]
      %v710 = vld [vmem:[%s702 + $0x1c] sm:$0xf]
      %v711 = vld [vmem:[%s702 + $0x20] sm:$0xf]
      %v712 = vld [vmem:[%s702 + $0x24] sm:$0xf]
      %v713 = vld [vmem:[%s702 + $0x28] sm:$0xf]
      %v714 = vld [vmem:[%s702 + $0x2c] sm:$0xf]
      %v715 = vld [vmem:[%s702 + $0x30] sm:$0xf]
      %v716 = vld [vmem:[%s702 + $0x34] sm:$0xf]
      %v717 = vld [vmem:[%s702 + $0x38] sm:$0xf]
      %v718 = vld [vmem:[%s702 + $0x3c] sm:$0xf]
      %v724 = vunpack.c.l.b16 %v697
      %v725 = vunpack.c.l.b16 %v698
      %v726 = vunpack.c.l.b16 %v699
      %v727 = vunpack.c.l.b16 %v700
      %v728 = vunpack.c.l.b16 %v701
      %v729 = vpack.c.b16 %v725, %v724
      %v730 = vpack.c.b16 %v727, %v726
      %v731 = vpack.c.b16 %v728, %v728
      %v733 = vshrl.u32 %v729, 16
      %v735 = vshll.u32 %v729, 16
      %v737 = vrot.slane %v735, 1
      %v738 = vor.u32 %v733, %v737
      %v740 = vshll.u32 %v730, 16
      %v742 = vrot.slane %v740, 1
      %v743 = vsel %vm223, %v738, %v742
      %v744 = vshrl.u32 %v730, 16
      %v746 = vor.u32 %v744, %v742
      %v748 = vshll.u32 %v731, 16
      %v750 = vrot.slane %v748, 1
      %v751 = vsel %vm223, %v746, %v750
      %v770 = vunpack.c.l.b16 %v703
      %v771 = vunpack.c.l.b16 %v704
      %v772 = vunpack.c.l.b16 %v705
      %v773 = vunpack.c.l.b16 %v706
      %v774 = vunpack.c.l.b16 %v707
      %v775 = vunpack.c.l.b16 %v708
      %v776 = vunpack.c.l.b16 %v709
      %v777 = vunpack.c.l.b16 %v710
      %v778 = vunpack.c.l.b16 %v711
      %v779 = vunpack.c.l.b16 %v712
      %v780 = vunpack.c.l.b16 %v713
      %v781 = vunpack.c.l.b16 %v714
      %v782 = vunpack.c.l.b16 %v715
      %v783 = vunpack.c.l.b16 %v716
      %v784 = vunpack.c.l.b16 %v717
      %v785 = vunpack.c.l.b16 %v718
      %v786 = vpack.c.b16 %v771, %v770
      %v787 = vpack.c.b16 %v773, %v772
      %v788 = vpack.c.b16 %v775, %v774
      %v789 = vpack.c.b16 %v777, %v776
      %v790 = vpack.c.b16 %v779, %v778
      %v791 = vpack.c.b16 %v781, %v780
      %v792 = vpack.c.b16 %v783, %v782
      %v793 = vpack.c.b16 %v785, %v784
      %802 = vmatprep.subr.bf16.mxu0 0
      %803 = vmatpush1.bf16.msra.mxu0 %v786
      %804 = vmatprep.subr.bf16.mxu0 0
      %805 = vmatpush1.bf16.msra.mxu0 %v787
      %806 = vmatprep.subr.bf16.mxu0 0
      %807 = vmatpush1.bf16.msra.mxu0 %v788
      %808 = vmatprep.subr.bf16.mxu0 0
      %809 = vmatpush1.bf16.msra.mxu0 %v789
      %810 = vmatprep.subr.bf16.mxu0 0
      %811 = vmatpush1.bf16.msra.mxu0 %v790
      %812 = vmatprep.subr.bf16.mxu0 0
      %813 = vmatpush1.bf16.msra.mxu0 %v791
      %814 = vmatprep.subr.bf16.mxu0 0
      %815 = vmatpush1.bf16.msra.mxu0 %v792
      %816 = vmatprep.subr.bf16.mxu0 0
      %817 = vmatpush1.bf16.msra.mxu0 %v793
      %818 = vmatprep.subr.bf16.mxu0 0
      %819 = vmatpush1.bf16.msra.mxu0 0
      %820 = vmatprep.subr.bf16.mxu0 0
      %821 = vmatpush1.bf16.msra.mxu0 0
      %822 = vmatprep.subr.bf16.mxu0 0
      %823 = vmatpush1.bf16.msra.mxu0 0
      %824 = vmatprep.subr.bf16.mxu0 0
      %825 = vmatpush1.bf16.msra.mxu0 0
      %826 = vmatprep.subr.bf16.mxu0 0
      %827 = vmatpush1.bf16.msra.mxu0 0
      %828 = vmatprep.subr.bf16.mxu0 0
      %829 = vmatpush1.bf16.msra.mxu0 0
      %830 = vmatprep.subr.bf16.mxu0 0
      %831 = vmatpush1.bf16.msra.mxu0 0
      %832 = vmatprep.subr.bf16.mxu0 0
      %833 = vmatpush1.bf16.msra.mxu0 0
      %834 = vmatprep.mubr.bf16.mxu0 0
      %835 = vmatmul.mubr.bf16.gmra.mrb[0].mxu0 %v743
      %v836 = vpop.f32.mrb[0].mxu0
      %v837 = vadd.f32 0.0, %v836
      %v838 = vpop.f32.mrb[0].mxu0
      %v839 = vpop.f32.mrb[0].mxu0
      %v840 = vadd.f32 0.0, %v839
      %v841 = vpop.f32.mrb[0].mxu0
      %842 = vmatprep.mubr.bf16.mxu0 0
      %843 = vmatmul.mubr.bf16.gmra.mrb[0].mxu0 %v751
      %v844 = vpop.f32.mrb[0].mxu0
      %v845 = vadd.f32 0.0, %v844
      %v846 = vpop.f32.mrb[0].mxu0
      %v847 = vpop.f32.mrb[0].mxu0
      %v848 = vadd.f32 0.0, %v847
      %v849 = vpop.f32.mrb[0].mxu0
      %850 = vdwg.mxu0
      %v851 = vadd.f32 %v693, %v837
      %v852 = vadd.f32 %v694, %v840
      %v853 = vadd.f32 %v695, %v845
      %v854 = vadd.f32 %v696, %v848
      %v855 = vld [vmem:[%s165 + $0x4] sm:$0xe]
      %s856 = scalar_lea.vmem %s1, 320
      %v857 = vld [vmem:[%s856] sm:$0xf]
      %v858 = vld [vmem:[%s856 + $0x4] sm:$0xf]
      %v859 = vld [vmem:[%s856 + $0x8] sm:$0xf]
      %v860 = vld [vmem:[%s856 + $0xc] sm:$0xf]
      %v861 = vld [vmem:[%s856 + $0x10] sm:$0xf]
      %v862 = vld [vmem:[%s856 + $0x14] sm:$0xf]
      %v863 = vld [vmem:[%s856 + $0x18] sm:$0xf]
      %v864 = vld [vmem:[%s856 + $0x1c] sm:$0xf]
      %v865 = vld [vmem:[%s856 + $0x20] sm:$0xf]
      %v866 = vld [vmem:[%s856 + $0x24] sm:$0xf]
      %v867 = vld [vmem:[%s856 + $0x28] sm:$0xf]
      %v868 = vld [vmem:[%s856 + $0x2c] sm:$0xf]
      %v869 = vld [vmem:[%s856 + $0x30] sm:$0xf]
      %v870 = vld [vmem:[%s856 + $0x34] sm:$0xf]
      %v871 = vld [vmem:[%s856 + $0x38] sm:$0xf]
      %v872 = vld [vmem:[%s856 + $0x3c] sm:$0xf]
      %v874 = vunpack.c.l.b16 %v855
      %v875 = vpack.c.b16 %v725, %v874
      %v876 = vrot.slane %v875, 1
      %v877 = vrot.slane %v730, 1
      %v878 = vsel %vm463, %v876, %v877
      %v879 = vrot.slane %v731, 1
      %v880 = vsel %vm463, %v877, %v879
      %v899 = vunpack.c.l.b16 %v857
      %v900 = vunpack.c.l.b16 %v858
      %v901 = vunpack.c.l.b16 %v859
      %v902 = vunpack.c.l.b16 %v860
      %v903 = vunpack.c.l.b16 %v861
      %v904 = vunpack.c.l.b16 %v862
      %v905 = vunpack.c.l.b16 %v863
      %v906 = vunpack.c.l.b16 %v864
      %v907 = vunpack.c.l.b16 %v865
      %v908 = vunpack.c.l.b16 %v866
      %v909 = vunpack.c.l.b16 %v867
      %v910 = vunpack.c.l.b16 %v868
      %v911 = vunpack.c.l.b16 %v869
      %v912 = vunpack.c.l.b16 %v870
      %v913 = vunpack.c.l.b16 %v871
      %v914 = vunpack.c.l.b16 %v872
      %v915 = vpack.c.b16 %v900, %v899
      %v916 = vpack.c.b16 %v902, %v901
      %v917 = vpack.c.b16 %v904, %v903
      %v918 = vpack.c.b16 %v906, %v905
      %v919 = vpack.c.b16 %v908, %v907
      %v920 = vpack.c.b16 %v910, %v909
      %v921 = vpack.c.b16 %v912, %v911
      %v922 = vpack.c.b16 %v914, %v913
      %931 = vmatprep.subr.bf16.mxu0 0
      %932 = vmatpush1.bf16.msra.mxu0 %v915
      %933 = vmatprep.subr.bf16.mxu0 0
      %934 = vmatpush1.bf16.msra.mxu0 %v916
      %935 = vmatprep.subr.bf16.mxu0 0
      %936 = vmatpush1.bf16.msra.mxu0 %v917
      %937 = vmatprep.subr.bf16.mxu0 0
      %938 = vmatpush1.bf16.msra.mxu0 %v918
      %939 = vmatprep.subr.bf16.mxu0 0
      %940 = vmatpush1.bf16.msra.mxu0 %v919
      %941 = vmatprep.subr.bf16.mxu0 0
      %942 = vmatpush1.bf16.msra.mxu0 %v920
      %943 = vmatprep.subr.bf16.mxu0 0
      %944 = vmatpush1.bf16.msra.mxu0 %v921
      %945 = vmatprep.subr.bf16.mxu0 0
      %946 = vmatpush1.bf16.msra.mxu0 %v922
      %947 = vmatprep.subr.bf16.mxu0 0
      %948 = vmatpush1.bf16.msra.mxu0 0
      %949 = vmatprep.subr.bf16.mxu0 0
      %950 = vmatpush1.bf16.msra.mxu0 0
      %951 = vmatprep.subr.bf16.mxu0 0
      %952 = vmatpush1.bf16.msra.mxu0 0
      %953 = vmatprep.subr.bf16.mxu0 0
      %954 = vmatpush1.bf16.msra.mxu0 0
      %955 = vmatprep.subr.bf16.mxu0 0
      %956 = vmatpush1.bf16.msra.mxu0 0
      %957 = vmatprep.subr.bf16.mxu0 0
      %958 = vmatpush1.bf16.msra.mxu0 0
      %959 = vmatprep.subr.bf16.mxu0 0
      %960 = vmatpush1.bf16.msra.mxu0 0
      %961 = vmatprep.subr.bf16.mxu0 0
      %962 = vmatpush1.bf16.msra.mxu0 0
      %963 = vmatprep.mubr.bf16.mxu0 0
      %964 = vmatmul.mubr.bf16.gmra.mrb[0].mxu0 %v878
      %v965 = vpop.f32.mrb[0].mxu0
      %v966 = vadd.f32 0.0, %v965
      %v967 = vpop.f32.mrb[0].mxu0
      %v968 = vpop.f32.mrb[0].mxu0
      %v969 = vadd.f32 0.0, %v968
      %v970 = vpop.f32.mrb[0].mxu0
      %971 = vmatprep.mubr.bf16.mxu0 0
      %972 = vmatmul.mubr.bf16.gmra.mrb[0].mxu0 %v880
      %v973 = vpop.f32.mrb[0].mxu0
      %v974 = vadd.f32 0.0, %v973
      %v975 = vpop.f32.mrb[0].mxu0
      %v976 = vpop.f32.mrb[0].mxu0
      %v977 = vadd.f32 0.0, %v976
      %v978 = vpop.f32.mrb[0].mxu0
      %979 = vdwg.mxu0
      %v980 = vadd.f32 %v851, %v966
      %v981 = vadd.f32 %v852, %v969
      %v982 = vadd.f32 %v853, %v974
      %v983 = vadd.f32 %v854, %v977
      %v984 = vld [vmem:[%s165 + $0x14] sm:$0xf]
      %s985 = scalar_lea.vmem %s1, 384
      %v986 = vld [vmem:[%s985] sm:$0xf]
      %v987 = vld [vmem:[%s985 + $0x4] sm:$0xf]
      %v988 = vld [vmem:[%s985 + $0x8] sm:$0xf]
      %v989 = vld [vmem:[%s985 + $0xc] sm:$0xf]
      %v990 = vld [vmem:[%s985 + $0x10] sm:$0xf]
      %v991 = vld [vmem:[%s985 + $0x14] sm:$0xf]
      %v992 = vld [vmem:[%s985 + $0x18] sm:$0xf]
      %v993 = vld [vmem:[%s985 + $0x1c] sm:$0xf]
      %v994 = vld [vmem:[%s985 + $0x20] sm:$0xf]
      %v995 = vld [vmem:[%s985 + $0x24] sm:$0xf]
      %v996 = vld [vmem:[%s985 + $0x28] sm:$0xf]
      %v997 = vld [vmem:[%s985 + $0x2c] sm:$0xf]
      %v998 = vld [vmem:[%s985 + $0x30] sm:$0xf]
      %v999 = vld [vmem:[%s985 + $0x34] sm:$0xf]
      %v1000 = vld [vmem:[%s985 + $0x38] sm:$0xf]
      %v1001 = vld [vmem:[%s985 + $0x3c] sm:$0xf]
      %v1003 = vunpack.c.l.b16 %v984
      %v1004 = vpack.c.b16 %v726, %v725
      %v1005 = vpack.c.b16 %v1003, %v727
      %v1024 = vunpack.c.l.b16 %v986
      %v1025 = vunpack.c.l.b16 %v987
      %v1026 = vunpack.c.l.b16 %v988
      %v1027 = vunpack.c.l.b16 %v989
      %v1028 = vunpack.c.l.b16 %v990
      %v1029 = vunpack.c.l.b16 %v991
      %v1030 = vunpack.c.l.b16 %v992
      %v1031 = vunpack.c.l.b16 %v993
      %v1032 = vunpack.c.l.b16 %v994
      %v1033 = vunpack.c.l.b16 %v995
      %v1034 = vunpack.c.l.b16 %v996
      %v1035 = vunpack.c.l.b16 %v997
      %v1036 = vunpack.c.l.b16 %v998
      %v1037 = vunpack.c.l.b16 %v999
      %v1038 = vunpack.c.l.b16 %v1000
      %v1039 = vunpack.c.l.b16 %v1001
      %v1040 = vpack.c.b16 %v1025, %v1024
      %v1041 = vpack.c.b16 %v1027, %v1026
      %v1042 = vpack.c.b16 %v1029, %v1028
      %v1043 = vpack.c.b16 %v1031, %v1030
      %v1044 = vpack.c.b16 %v1033, %v1032
      %v1045 = vpack.c.b16 %v1035, %v1034
      %v1046 = vpack.c.b16 %v1037, %v1036
      %v1047 = vpack.c.b16 %v1039, %v1038
      %1056 = vmatprep.subr.bf16.mxu0 0
      %1057 = vmatpush1.bf16.msra.mxu0 %v1040
      %1058 = vmatprep.subr.bf16.mxu0 0
      %1059 = vmatpush1.bf16.msra.mxu0 %v1041
      %1060 = vmatprep.subr.bf16.mxu0 0
      %1061 = vmatpush1.bf16.msra.mxu0 %v1042
      %1062 = vmatprep.subr.bf16.mxu0 0
      %1063 = vmatpush1.bf16.msra.mxu0 %v1043
      %1064 = vmatprep.subr.bf16.mxu0 0
      %1065 = vmatpush1.bf16.msra.mxu0 %v1044
      %1066 = vmatprep.subr.bf16.mxu0 0
      %1067 = vmatpush1.bf16.msra.mxu0 %v1045
      %1068 = vmatprep.subr.bf16.mxu0 0
      %1069 = vmatpush1.bf16.msra.mxu0 %v1046
      %1070 = vmatprep.subr.bf16.mxu0 0
      %1071 = vmatpush1.bf16.msra.mxu0 %v1047
      %1072 = vmatprep.subr.bf16.mxu0 0
      %1073 = vmatpush1.bf16.msra.mxu0 0
      %1074 = vmatprep.subr.bf16.mxu0 0
      %1075 = vmatpush1.bf16.msra.mxu0 0
      %1076 = vmatprep.subr.bf16.mxu0 0
      %1077 = vmatpush1.bf16.msra.mxu0 0
      %1078 = vmatprep.subr.bf16.mxu0 0
      %1079 = vmatpush1.bf16.msra.mxu0 0
      %1080 = vmatprep.subr.bf16.mxu0 0
      %1081 = vmatpush1.bf16.msra.mxu0 0
      %1082 = vmatprep.subr.bf16.mxu0 0
      %1083 = vmatpush1.bf16.msra.mxu0 0
      %1084 = vmatprep.subr.bf16.mxu0 0
      %1085 = vmatpush1.bf16.msra.mxu0 0
      %1086 = vmatprep.subr.bf16.mxu0 0
      %1087 = vmatpush1.bf16.msra.mxu0 0
      %1088 = vmatprep.mubr.bf16.mxu0 0
      %1089 = vmatmul.mubr.bf16.gmra.mrb[0].mxu0 %v1004
      %v1090 = vpop.f32.mrb[0].mxu0
      %v1091 = vadd.f32 0.0, %v1090
      %v1092 = vpop.f32.mrb[0].mxu0
      %v1093 = vpop.f32.mrb[0].mxu0
      %v1094 = vadd.f32 0.0, %v1093
      %v1095 = vpop.f32.mrb[0].mxu0
      %1096 = vmatprep.mubr.bf16.mxu0 0
      %1097 = vmatmul.mubr.bf16.gmra.mrb[0].mxu0 %v1005
      %v1098 = vpop.f32.mrb[0].mxu0
      %v1099 = vadd.f32 0.0, %v1098
      %v1100 = vpop.f32.mrb[0].mxu0
      %v1101 = vpop.f32.mrb[0].mxu0
      %v1102 = vadd.f32 0.0, %v1101
      %v1103 = vpop.f32.mrb[0].mxu0
      %1104 = vdwg.mxu0
      %v1105 = vadd.f32 %v980, %v1091
      %v1106 = vadd.f32 %v981, %v1094
      %v1107 = vadd.f32 %v982, %v1099
      %v1108 = vadd.f32 %v983, %v1102
      %v1109 = vld [vmem:[%s165 + $0x8] sm:$0xf]
      %v1110 = vld [vmem:[%s165 + $0xc] sm:$0xf]
      %v1111 = vld [vmem:[%s165 + $0x10] sm:$0xf]
      %v1112 = vld [vmem:[%s165 + $0x14] sm:$0xf]
      %v1113 = vld [vmem:[%s165 + $0x18] sm:$0x1]
      %s1114 = scalar_lea.vmem %s1, 448
      %v1115 = vld [vmem:[%s1114] sm:$0xf]
      %v1116 = vld [vmem:[%s1114 + $0x4] sm:$0xf]
      %v1117 = vld [vmem:[%s1114 + $0x8] sm:$0xf]
      %v1118 = vld [vmem:[%s1114 + $0xc] sm:$0xf]
      %v1119 = vld [vmem:[%s1114 + $0x10] sm:$0xf]
      %v1120 = vld [vmem:[%s1114 + $0x14] sm:$0xf]
      %v1121 = vld [vmem:[%s1114 + $0x18] sm:$0xf]
      %v1122 = vld [vmem:[%s1114 + $0x1c] sm:$0xf]
      %v1123 = vld [vmem:[%s1114 + $0x20] sm:$0xf]
      %v1124 = vld [vmem:[%s1114 + $0x24] sm:$0xf]
      %v1125 = vld [vmem:[%s1114 + $0x28] sm:$0xf]
      %v1126 = vld [vmem:[%s1114 + $0x2c] sm:$0xf]
      %v1127 = vld [vmem:[%s1114 + $0x30] sm:$0xf]
      %v1128 = vld [vmem:[%s1114 + $0x34] sm:$0xf]
      %v1129 = vld [vmem:[%s1114 + $0x38] sm:$0xf]
      %v1130 = vld [vmem:[%s1114 + $0x3c] sm:$0xf]
      %v1136 = vunpack.c.l.b16 %v1109
      %v1137 = vunpack.c.l.b16 %v1110
      %v1138 = vunpack.c.l.b16 %v1111
      %v1139 = vunpack.c.l.b16 %v1112
      %v1140 = vunpack.c.l.b16 %v1113
      %v1141 = vpack.c.b16 %v1137, %v1136
      %v1142 = vpack.c.b16 %v1139, %v1138
      %v1143 = vpack.c.b16 %v1140, %v1140
      %v1145 = vshrl.u32 %v1141, 16
      %v1147 = vshll.u32 %v1141, 16
      %v1149 = vrot.slane %v1147, 1
      %v1150 = vor.u32 %v1145, %v1149
      %v1152 = vshll.u32 %v1142, 16
      %v1154 = vrot.slane %v1152, 1
      %v1155 = vsel %vm223, %v1150, %v1154
      %v1156 = vshrl.u32 %v1142, 16
      %v1158 = vor.u32 %v1156, %v1154
      %v1160 = vshll.u32 %v1143, 16
      %v1162 = vrot.slane %v1160, 1
      %v1163 = vsel %vm223, %v1158, %v1162
      %v1182 = vunpack.c.l.b16 %v1115
      %v1183 = vunpack.c.l.b16 %v1116
      %v1184 = vunpack.c.l.b16 %v1117
      %v1185 = vunpack.c.l.b16 %v1118
      %v1186 = vunpack.c.l.b16 %v1119
      %v1187 = vunpack.c.l.b16 %v1120
      %v1188 = vunpack.c.l.b16 %v1121
      %v1189 = vunpack.c.l.b16 %v1122
      %v1190 = vunpack.c.l.b16 %v1123
      %v1191 = vunpack.c.l.b16 %v1124
      %v1192 = vunpack.c.l.b16 %v1125
      %v1193 = vunpack.c.l.b16 %v1126
      %v1194 = vunpack.c.l.b16 %v1127
      %v1195 = vunpack.c.l.b16 %v1128
      %v1196 = vunpack.c.l.b16 %v1129
      %v1197 = vunpack.c.l.b16 %v1130
      %v1198 = vpack.c.b16 %v1183, %v1182
      %v1199 = vpack.c.b16 %v1185, %v1184
      %v1200 = vpack.c.b16 %v1187, %v1186
      %v1201 = vpack.c.b16 %v1189, %v1188
      %v1202 = vpack.c.b16 %v1191, %v1190
      %v1203 = vpack.c.b16 %v1193, %v1192
      %v1204 = vpack.c.b16 %v1195, %v1194
      %v1205 = vpack.c.b16 %v1197, %v1196
      %1214 = vmatprep.subr.bf16.mxu0 0
      %1215 = vmatpush1.bf16.msra.mxu0 %v1198
      %1216 = vmatprep.subr.bf16.mxu0 0
      %1217 = vmatpush1.bf16.msra.mxu0 %v1199
      %1218 = vmatprep.subr.bf16.mxu0 0
      %1219 = vmatpush1.bf16.msra.mxu0 %v1200
      %1220 = vmatprep.subr.bf16.mxu0 0
      %1221 = vmatpush1.bf16.msra.mxu0 %v1201
      %1222 = vmatprep.subr.bf16.mxu0 0
      %1223 = vmatpush1.bf16.msra.mxu0 %v1202
      %1224 = vmatprep.subr.bf16.mxu0 0
      %1225 = vmatpush1.bf16.msra.mxu0 %v1203
      %1226 = vmatprep.subr.bf16.mxu0 0
      %1227 = vmatpush1.bf16.msra.mxu0 %v1204
      %1228 = vmatprep.subr.bf16.mxu0 0
      %1229 = vmatpush1.bf16.msra.mxu0 %v1205
      %1230 = vmatprep.subr.bf16.mxu0 0
      %1231 = vmatpush1.bf16.msra.mxu0 0
      %1232 = vmatprep.subr.bf16.mxu0 0
      %1233 = vmatpush1.bf16.msra.mxu0 0
      %1234 = vmatprep.subr.bf16.mxu0 0
      %1235 = vmatpush1.bf16.msra.mxu0 0
      %1236 = vmatprep.subr.bf16.mxu0 0
      %1237 = vmatpush1.bf16.msra.mxu0 0
      %1238 = vmatprep.subr.bf16.mxu0 0
      %1239 = vmatpush1.bf16.msra.mxu0 0
      %1240 = vmatprep.subr.bf16.mxu0 0
      %1241 = vmatpush1.bf16.msra.mxu0 0
      %1242 = vmatprep.subr.bf16.mxu0 0
      %1243 = vmatpush1.bf16.msra.mxu0 0
      %1244 = vmatprep.subr.bf16.mxu0 0
      %1245 = vmatpush1.bf16.msra.mxu0 0
      %1246 = vmatprep.mubr.bf16.mxu0 0
      %1247 = vmatmul.mubr.bf16.gmra.mrb[0].mxu0 %v1155
      %v1248 = vpop.f32.mrb[0].mxu0
      %v1249 = vadd.f32 0.0, %v1248
      %v1250 = vpop.f32.mrb[0].mxu0
      %v1251 = vpop.f32.mrb[0].mxu0
      %v1252 = vadd.f32 0.0, %v1251
      %v1253 = vpop.f32.mrb[0].mxu0
      %1254 = vmatprep.mubr.bf16.mxu0 0
      %1255 = vmatmul.mubr.bf16.gmra.mrb[0].mxu0 %v1163
      %v1256 = vpop.f32.mrb[0].mxu0
      %v1257 = vadd.f32 0.0, %v1256
      %v1258 = vpop.f32.mrb[0].mxu0
      %v1259 = vpop.f32.mrb[0].mxu0
      %v1260 = vadd.f32 0.0, %v1259
      %v1261 = vpop.f32.mrb[0].mxu0
      %1262 = vdwg.mxu0
      %v1263 = vadd.f32 %v1105, %v1249
      %v1264 = vadd.f32 %v1106, %v1252
      %v1265 = vadd.f32 %v1107, %v1257
      %v1266 = vadd.f32 %v1108, %v1260
      %v1267 = vld [vmem:[%s165 + $0x8] sm:$0xe]
      %s1268 = scalar_lea.vmem %s1, 512
      %v1269 = vld [vmem:[%s1268] sm:$0xf]
      %v1270 = vld [vmem:[%s1268 + $0x4] sm:$0xf]
      %v1271 = vld [vmem:[%s1268 + $0x8] sm:$0xf]
      %v1272 = vld [vmem:[%s1268 + $0xc] sm:$0xf]
      %v1273 = vld [vmem:[%s1268 + $0x10] sm:$0xf]
      %v1274 = vld [vmem:[%s1268 + $0x14] sm:$0xf]
      %v1275 = vld [vmem:[%s1268 + $0x18] sm:$0xf]
      %v1276 = vld [vmem:[%s1268 + $0x1c] sm:$0xf]
      %v1277 = vld [vmem:[%s1268 + $0x20] sm:$0xf]
      %v1278 = vld [vmem:[%s1268 + $0x24] sm:$0xf]
      %v1279 = vld [vmem:[%s1268 + $0x28] sm:$0xf]
      %v1280 = vld [vmem:[%s1268 + $0x2c] sm:$0xf]
      %v1281 = vld [vmem:[%s1268 + $0x30] sm:$0xf]
      %v1282 = vld [vmem:[%s1268 + $0x34] sm:$0xf]
      %v1283 = vld [vmem:[%s1268 + $0x38] sm:$0xf]
      %v1284 = vld [vmem:[%s1268 + $0x3c] sm:$0xf]
      %v1286 = vunpack.c.l.b16 %v1267
      %v1287 = vpack.c.b16 %v1137, %v1286
      %v1288 = vrot.slane %v1287, 1
      %v1289 = vrot.slane %v1142, 1
      %v1290 = vsel %vm463, %v1288, %v1289
      %v1291 = vrot.slane %v1143, 1
      %v1292 = vsel %vm463, %v1289, %v1291
      %v1311 = vunpack.c.l.b16 %v1269
      %v1312 = vunpack.c.l.b16 %v1270
      %v1313 = vunpack.c.l.b16 %v1271
      %v1314 = vunpack.c.l.b16 %v1272
      %v1315 = vunpack.c.l.b16 %v1273
      %v1316 = vunpack.c.l.b16 %v1274
      %v1317 = vunpack.c.l.b16 %v1275
      %v1318 = vunpack.c.l.b16 %v1276
      %v1319 = vunpack.c.l.b16 %v1277
      %v1320 = vunpack.c.l.b16 %v1278
      %v1321 = vunpack.c.l.b16 %v1279
      %v1322 = vunpack.c.l.b16 %v1280
      %v1323 = vunpack.c.l.b16 %v1281
      %v1324 = vunpack.c.l.b16 %v1282
      %v1325 = vunpack.c.l.b16 %v1283
      %v1326 = vunpack.c.l.b16 %v1284
      %v1327 = vpack.c.b16 %v1312, %v1311
      %v1328 = vpack.c.b16 %v1314, %v1313
      %v1329 = vpack.c.b16 %v1316, %v1315
      %v1330 = vpack.c.b16 %v1318, %v1317
      %v1331 = vpack.c.b16 %v1320, %v1319
      %v1332 = vpack.c.b16 %v1322, %v1321
      %v1333 = vpack.c.b16 %v1324, %v1323
      %v1334 = vpack.c.b16 %v1326, %v1325
      %1343 = vmatprep.subr.bf16.mxu0 0
      %1344 = vmatpush1.bf16.msra.mxu0 %v1327
      %1345 = vmatprep.subr.bf16.mxu0 0
      %1346 = vmatpush1.bf16.msra.mxu0 %v1328
      %1347 = vmatprep.subr.bf16.mxu0 0
      %1348 = vmatpush1.bf16.msra.mxu0 %v1329
      %1349 = vmatprep.subr.bf16.mxu0 0
      %1350 = vmatpush1.bf16.msra.mxu0 %v1330
      %1351 = vmatprep.subr.bf16.mxu0 0
      %1352 = vmatpush1.bf16.msra.mxu0 %v1331
      %1353 = vmatprep.subr.bf16.mxu0 0
      %1354 = vmatpush1.bf16.msra.mxu0 %v1332
      %1355 = vmatprep.subr.bf16.mxu0 0
      %1356 = vmatpush1.bf16.msra.mxu0 %v1333
      %1357 = vmatprep.subr.bf16.mxu0 0
      %1358 = vmatpush1.bf16.msra.mxu0 %v1334
      %1359 = vmatprep.subr.bf16.mxu0 0
      %1360 = vmatpush1.bf16.msra.mxu0 0
      %1361 = vmatprep.subr.bf16.mxu0 0
      %1362 = vmatpush1.bf16.msra.mxu0 0
      %1363 = vmatprep.subr.bf16.mxu0 0
      %1364 = vmatpush1.bf16.msra.mxu0 0
      %1365 = vmatprep.subr.bf16.mxu0 0
      %1366 = vmatpush1.bf16.msra.mxu0 0
      %1367 = vmatprep.subr.bf16.mxu0 0
      %1368 = vmatpush1.bf16.msra.mxu0 0
      %1369 = vmatprep.subr.bf16.mxu0 0
      %1370 = vmatpush1.bf16.msra.mxu0 0
      %1371 = vmatprep.subr.bf16.mxu0 0
      %1372 = vmatpush1.bf16.msra.mxu0 0
      %1373 = vmatprep.subr.bf16.mxu0 0
      %1374 = vmatpush1.bf16.msra.mxu0 0
      %1375 = vmatprep.mubr.bf16.mxu0 0
      %1376 = vmatmul.mubr.bf16.gmra.mrb[0].mxu0 %v1290
      %v1377 = vpop.f32.mrb[0].mxu0
      %v1378 = vadd.f32 0.0, %v1377
      %v1379 = vpop.f32.mrb[0].mxu0
      %v1380 = vpop.f32.mrb[0].mxu0
      %v1381 = vadd.f32 0.0, %v1380
      %v1382 = vpop.f32.mrb[0].mxu0
      %1383 = vmatprep.mubr.bf16.mxu0 0
      %1384 = vmatmul.mubr.bf16.gmra.mrb[0].mxu0 %v1292
      %v1385 = vpop.f32.mrb[0].mxu0
      %v1386 = vadd.f32 0.0, %v1385
      %v1387 = vpop.f32.mrb[0].mxu0
      %v1388 = vpop.f32.mrb[0].mxu0
      %v1389 = vadd.f32 0.0, %v1388
      %v1390 = vpop.f32.mrb[0].mxu0
      %1391 = vdwg.mxu0
      %v1392 = vadd.f32 %v1263, %v1378
      %v1393 = vadd.f32 %v1264, %v1381
      %v1394 = vadd.f32 %v1265, %v1386
      %v1395 = vadd.f32 %v1266, %v1389
      %v1396 = vld [vmem:[%s2] sm:$0x1]
      %v1398 = vlaneseq
      %v1399 = vshrl.u32 %v1398, 7
      %v1400 = vsub.s32 0, %v1399
      %v1401 = vrot.slane %v1396, %v1400
      %v1403 = vadd.f32 %v1392, %v1401
      %v1404 = vadd.f32 %v1393, %v1401
      %v1405 = vadd.f32 %v1394, %v1401
      %v1406 = vadd.f32 %v1395, %v1401
      %v1407 = vmax.f32 %v1403, 0.0
      %v1408 = vmax.f32 %v1404, 0.0
      %v1409 = vmax.f32 %v1405, 0.0
      %v1410 = vmax.f32 %v1406, 0.0
      %v1411 = vpack.c.bf16 %v1408, %v1407
      %v1412 = vpack.c.bf16 %v1410, %v1409
      %v1415 = vunpack.c.l.b16 %v1411
      %v1416 = vunpack.c.h.b16 %v1411
      %v1417 = vunpack.c.l.b16 %v1412
      %v1418 = vunpack.c.h.b16 %v1412
      %v1419 = vpack.c.b16 %v1415, %v1415
      %v1420 = vpack.c.b16 %v1416, %v1416
      %v1421 = vpack.c.b16 %v1417, %v1417
      %v1422 = vpack.c.b16 %v1418, %v1418
      %1427 = vst [vmem:[%s170] sm:$0xf] %v1419
      %1428 = vst [vmem:[%s170 + $0x4] sm:$0xf] %v1420
      %1429 = vst [vmem:[%s170 + $0x8] sm:$0xf] %v1421
      %1430 = vst [vmem:[%s170 + $0xc] sm:$0xf] %v1422
      %p1431 = scmp.lt.s32.totalorder %s14, 1
      %s1432 = scalar_select %p1431, %s14, 1
      %s1433 = smul.addr %s1432, 4
      %s1434 = smul.addr %s1433, 4
      %s1435 = scalar_lea.vmem %s3, %s1434
      // Predicated region
      $region33: #{convnext_encoder_forward.16} parent=31 // pred_check
        %p1436 = pneg %p100
      $region34: #{convnext_encoder_forward.16} parent=31 // pred_check_branch
        %1438 = sbr.rel (%p1436) target = $region36
      $region35: #{convnext_encoder_forward.16} parent=31 // pred_region
        _
      $region36: #{convnext_encoder_forward.16} parent=31 // pred_fallthru
        _
    $region32: #{convnext_encoder_forward.16} parent=5 // pred_fallthru
      _
    %p1439 = scmp.le.s32.totalorder 2, %s9
    // Predicated region
    $region37: #{convnext_encoder_forward.16} parent=5 // pred_check
      %p1440 = pneg %p1439
    $region38: #{convnext_encoder_forward.16} parent=5 // pred_check_branch
      %1442 = sbr.rel (%p1440) target = $region40
    $region39: #{convnext_encoder_forward.16} parent=5 // pred_region
      %s1443 = ssub.s32 %s9, 2
      // Predicated region
      $region41: #{convnext_encoder_forward.16} parent=39 // pred_check
        %p1444 = pneg %p106
      $region42: #{convnext_encoder_forward.16} parent=39 // pred_check_branch
        %1446 = sbr.rel (%p1444) target = $region44
      $region43: #{convnext_encoder_forward.16} parent=39 // pred_region
        %p1447 = scmp.lt.s32.totalorder %s15, 1
        %s1448 = scalar_select %p1447, %s15, 1
        %s1449 = smul.addr %s1448, 4
        %s1450 = smul.addr %s1449, 4
        %s1451 = scalar_lea.vmem %s3, %s1450
      $region44: #{convnext_encoder_forward.16} parent=39 // pred_fallthru
        _
    $region40: #{convnext_encoder_forward.16} parent=5 // pred_fallthru
      _
  $region6: #{convnext_encoder_forward.16} parent=0 // loop_footer
    %s13 = sadd.s32 1, %s9
  $region7: #{convnext_encoder_forward.16} parent=0 // loop_footer_branch
    %8 = sbr.rel target = $region3
  $region8: #{convnext_encoder_forward.16} parent=0 // loop_exit
    _

// kernel: convnext_encoder_forward.18
$region0: #{convnext_encoder_forward.18}
  #allocation0 [shape = 'u32[]', space=smem, size = 0x4, offset = 0x4, fixed_abs, tag = 'smem constant byte address 0x4 - core index']
  #allocation1 [shape = 'u32[144,128]{1,0:T(1,128)}', space=vmem, size = 0x12000, scoped, tag = 'internal scratch']
  %s0 = inlined_call_operand.vmem [shape: bf16[32,128], index: 0, kind: input, shape index: {}]
  %s1 = inlined_call_operand.vmem [shape: bf16[128,128], index: 1, kind: input, shape index: {}]
  %s2 = inlined_call_operand.vmem [shape: f32[1,128], index: 2, kind: input, shape index: {}]
  %s3 = inlined_call_operand.vmem [shape: bf16[32,128], index: 3, kind: input, shape index: {}]
  %s4 = inlined_call_operand.vmem [shape: bf16[32,128], index: 4, kind: output, shape index: {}]
  %s5 = sld [smem:[#allocation0]]
  $region26: #{convnext_encoder_forward.18} parent=0
    _
  %s7 = ssub.s32 1, %s5
  %s8 = scalar_select 0, %s7, %s5
  // Predicated region
  $region2: #{convnext_encoder_forward.18} parent=0 // pred_check
    _
  $region3: #{convnext_encoder_forward.18} parent=0 // pred_check_branch
    %10 = sbr.rel (0) target = $region5
  $region4: #{convnext_encoder_forward.18} parent=0 // pred_region
    _
  $region5: #{convnext_encoder_forward.18} parent=0 // pred_fallthru
    _
  // Predicated region
  $region6: #{convnext_encoder_forward.18} parent=0 // pred_check
    _
  $region7: #{convnext_encoder_forward.18} parent=0 // pred_check_branch
    %12 = sbr.rel (0) target = $region9
  $region8: #{convnext_encoder_forward.18} parent=0 // pred_region
    _
  $region9: #{convnext_encoder_forward.18} parent=0 // pred_fallthru
    _
  // Predicated region
  $region10: #{convnext_encoder_forward.18} parent=0 // pred_check
    _
  $region11: #{convnext_encoder_forward.18} parent=0 // pred_check_branch
    %14 = sbr.rel (0) target = $region13
  $region12: #{convnext_encoder_forward.18} parent=0 // pred_region
    _
  $region13: #{convnext_encoder_forward.18} parent=0 // pred_fallthru
    _
  // Predicated region
  $region14: #{convnext_encoder_forward.18} parent=0 // pred_check
    _
  $region15: #{convnext_encoder_forward.18} parent=0 // pred_check_branch
    %16 = sbr.rel (0) target = $region17
  $region16: #{convnext_encoder_forward.18} parent=0 // pred_region
    _
  $region17: #{convnext_encoder_forward.18} parent=0 // pred_fallthru
    _
  %v18 = vld [vmem:[%s0] sm:$0xf]
  %v19 = vld [vmem:[%s0 + $0x4] sm:$0xf]
  %v20 = vld [vmem:[%s0 + $0x8] sm:$0xf]
  %v21 = vld [vmem:[%s0 + $0xc] sm:$0xf]
  %v22 = vld [vmem:[%s1] sm:$0xf]
  %v23 = vld [vmem:[%s1 + $0x4] sm:$0xf]
  %v24 = vld [vmem:[%s1 + $0x8] sm:$0xf]
  %v25 = vld [vmem:[%s1 + $0xc] sm:$0xf]
  %v26 = vld [vmem:[%s1 + $0x10] sm:$0xf]
  %v27 = vld [vmem:[%s1 + $0x14] sm:$0xf]
  %v28 = vld [vmem:[%s1 + $0x18] sm:$0xf]
  %v29 = vld [vmem:[%s1 + $0x1c] sm:$0xf]
  %v30 = vld [vmem:[%s1 + $0x20] sm:$0xf]
  %v31 = vld [vmem:[%s1 + $0x24] sm:$0xf]
  %v32 = vld [vmem:[%s1 + $0x28] sm:$0xf]
  %v33 = vld [vmem:[%s1 + $0x2c] sm:$0xf]
  %v34 = vld [vmem:[%s1 + $0x30] sm:$0xf]
  %v35 = vld [vmem:[%s1 + $0x34] sm:$0xf]
  %v36 = vld [vmem:[%s1 + $0x38] sm:$0xf]
  %v37 = vld [vmem:[%s1 + $0x3c] sm:$0xf]
  %v38 = vld [vmem:[%s2] sm:$0x1]
  %v40 = vlaneseq
  %v41 = vshrl.u32 %v40, 7
  %v42 = vsub.s32 0, %v41
  %v43 = vrot.slane %v38, %v42
  %v49 = vunpack.c.l.b16 %v18
  %v50 = vunpack.c.l.b16 %v19
  %v51 = vunpack.c.l.b16 %v20
  %v52 = vunpack.c.l.b16 %v21
  %v53 = vpack.c.b16 %v50, %v49
  %v54 = vpack.c.b16 %v52, %v51
  %v73 = vunpack.c.l.b16 %v22
  %v74 = vunpack.c.l.b16 %v23
  %v75 = vunpack.c.l.b16 %v24
  %v76 = vunpack.c.l.b16 %v25
  %v77 = vunpack.c.l.b16 %v26
  %v78 = vunpack.c.l.b16 %v27
  %v79 = vunpack.c.l.b16 %v28
  %v80 = vunpack.c.l.b16 %v29
  %v81 = vunpack.c.l.b16 %v30
  %v82 = vunpack.c.l.b16 %v31
  %v83 = vunpack.c.l.b16 %v32
  %v84 = vunpack.c.l.b16 %v33
  %v85 = vunpack.c.l.b16 %v34
  %v86 = vunpack.c.l.b16 %v35
  %v87 = vunpack.c.l.b16 %v36
  %v88 = vunpack.c.l.b16 %v37
  %v89 = vpack.c.b16 %v74, %v73
  %v90 = vpack.c.b16 %v76, %v75
  %v91 = vpack.c.b16 %v78, %v77
  %v92 = vpack.c.b16 %v80, %v79
  %v93 = vpack.c.b16 %v82, %v81
  %v94 = vpack.c.b16 %v84, %v83
  %v95 = vpack.c.b16 %v86, %v85
  %v96 = vpack.c.b16 %v88, %v87
  %105 = vmatprep.subr.bf16.mxu0 0
  %106 = vmatpush1.bf16.msra.mxu0 %v89
  %107 = vmatprep.subr.bf16.mxu0 0
  %108 = vmatpush1.bf16.msra.mxu0 %v90
  %109 = vmatprep.subr.bf16.mxu0 0
  %110 = vmatpush1.bf16.msra.mxu0 %v91
  %111 = vmatprep.subr.bf16.mxu0 0
  %112 = vmatpush1.bf16.msra.mxu0 %v92
  %113 = vmatprep.subr.bf16.mxu0 0
  %114 = vmatpush1.bf16.msra.mxu0 %v93
  %115 = vmatprep.subr.bf16.mxu0 0
  %116 = vmatpush1.bf16.msra.mxu0 %v94
  %117 = vmatprep.subr.bf16.mxu0 0
  %118 = vmatpush1.bf16.msra.mxu0 %v95
  %119 = vmatprep.subr.bf16.mxu0 0
  %120 = vmatpush1.bf16.msra.mxu0 %v96
  %121 = vmatprep.subr.bf16.mxu0 0
  %122 = vmatpush1.bf16.msra.mxu0 0
  %123 = vmatprep.subr.bf16.mxu0 0
  %124 = vmatpush1.bf16.msra.mxu0 0
  %125 = vmatprep.subr.bf16.mxu0 0
  %126 = vmatpush1.bf16.msra.mxu0 0
  %127 = vmatprep.subr.bf16.mxu0 0
  %128 = vmatpush1.bf16.msra.mxu0 0
  %129 = vmatprep.subr.bf16.mxu0 0
  %130 = vmatpush1.bf16.msra.mxu0 0
  %131 = vmatprep.subr.bf16.mxu0 0
  %132 = vmatpush1.bf16.msra.mxu0 0
  %133 = vmatprep.subr.bf16.mxu0 0
  %134 = vmatpush1.bf16.msra.mxu0 0
  %135 = vmatprep.subr.bf16.mxu0 0
  %136 = vmatpush1.bf16.msra.mxu0 0
  %137 = vmatprep.mubr.bf16.mxu0 0
  %138 = vmatmul.mubr.bf16.gmra.mrb[0].mxu0 %v53
  %v139 = vpop.f32.mrb[0].mxu0
  %v140 = vadd.f32 %v43, %v139
  %v141 = vpop.f32.mrb[0].mxu0
  %v142 = vpop.f32.mrb[0].mxu0
  %v143 = vadd.f32 %v43, %v142
  %v144 = vpop.f32.mrb[0].mxu0
  %145 = vmatprep.mubr.bf16.mxu0 0
  %146 = vmatmul.mubr.bf16.gmra.mrb[0].mxu0 %v54
  %v147 = vpop.f32.mrb[0].mxu0
  %v148 = vadd.f32 %v43, %v147
  %v149 = vpop.f32.mrb[0].mxu0
  %v150 = vpop.f32.mrb[0].mxu0
  %v151 = vadd.f32 %v43, %v150
  %v152 = vpop.f32.mrb[0].mxu0
  %153 = vdwg.mxu0
  %v154 = vld [vmem:[%s3] sm:$0xf]
  %v155 = vld [vmem:[%s3 + $0x4] sm:$0xf]
  %v156 = vld [vmem:[%s3 + $0x8] sm:$0xf]
  %v157 = vld [vmem:[%s3 + $0xc] sm:$0xf]
  %v158 = vunpack.c.l.bf16 %v154
  %v159 = vunpack.c.l.bf16 %v155
  %v160 = vunpack.c.l.bf16 %v156
  %v161 = vunpack.c.l.bf16 %v157
  %v162 = vadd.f32 %v140, %v158
  %v163 = vadd.f32 %v143, %v159
  %v164 = vadd.f32 %v148, %v160
  %v165 = vadd.f32 %v151, %v161
  %v166 = vmax.f32 %v162, 0.0
  %v167 = vmax.f32 %v163, 0.0
  %v168 = vmax.f32 %v164, 0.0
  %v169 = vmax.f32 %v165, 0.0
  %v170 = vpack.c.bf16 %v167, %v166
  %v171 = vpack.c.bf16 %v169, %v168
  %v174 = vunpack.c.l.b16 %v170
  %v175 = vunpack.c.h.b16 %v170
  %v176 = vunpack.c.l.b16 %v171
  %v177 = vunpack.c.h.b16 %v171
  %v178 = vpack.c.b16 %v174, %v174
  %v179 = vpack.c.b16 %v175, %v175
  %v180 = vpack.c.b16 %v176, %v176
  %v181 = vpack.c.b16 %v177, %v177
  %186 = vst [vmem:[%s4] sm:$0xf] %v178
  %187 = vst [vmem:[%s4 + $0x4] sm:$0xf] %v179
  %188 = vst [vmem:[%s4 + $0x8] sm:$0xf] %v180
  %189 = vst [vmem:[%s4 + $0xc] sm:$0xf] %v181
  // Predicated region
  $region18: #{convnext_encoder_forward.18} parent=0 // pred_check
    _
  $region19: #{convnext_encoder_forward.18} parent=0 // pred_check_branch
    %191 = sbr.rel (0) target = $region21
  $region20: #{convnext_encoder_forward.18} parent=0 // pred_region
    _
  $region21: #{convnext_encoder_forward.18} parent=0 // pred_fallthru
    _
  // Predicated region
  $region22: #{convnext_encoder_forward.18} parent=0 // pred_check
    _
  $region23: #{convnext_encoder_forward.18} parent=0 // pred_check_branch
    %193 = sbr.rel (0) target = $region25
  $region24: #{convnext_encoder_forward.18} parent=0 // pred_region
    _
  $region25: #{convnext_encoder_forward.18} parent=0 // pred_fallthru
    _

// kernel: convnext_encoder_forward.22
$region0: #{convnext_encoder_forward.22}
  #allocation0 [shape = 'u32[]', space=smem, size = 0x4, offset = 0x4, fixed_abs, tag = 'smem constant byte address 0x4 - core index']
  #allocation1 [shape = 'u32[144,128]{1,0:T(1,128)}', space=vmem, size = 0x12000, scoped, tag = 'internal scratch']
  %s0 = inlined_call_operand.vmem [shape: bf16[8,128], index: 0, kind: input, shape index: {}]
  %s1 = inlined_call_operand.vmem [shape: bf16[128,128], index: 1, kind: input, shape index: {}]
  %s2 = inlined_call_operand.vmem [shape: f32[1,128], index: 2, kind: input, shape index: {}]
  %s3 = inlined_call_operand.vmem [shape: bf16[8,128], index: 3, kind: output, shape index: {}]
  %s4 = sld [smem:[#allocation0]]
  $region22: #{convnext_encoder_forward.22} parent=0
    _
  %s6 = ssub.s32 1, %s4
  %s7 = scalar_select 0, %s6, %s4
  // Predicated region
  $region2: #{convnext_encoder_forward.22} parent=0 // pred_check
    _
  $region3: #{convnext_encoder_forward.22} parent=0 // pred_check_branch
    %9 = sbr.rel (0) target = $region5
  $region4: #{convnext_encoder_forward.22} parent=0 // pred_region
    _
  $region5: #{convnext_encoder_forward.22} parent=0 // pred_fallthru
    _
  // Predicated region
  $region6: #{convnext_encoder_forward.22} parent=0 // pred_check
    _
  $region7: #{convnext_encoder_forward.22} parent=0 // pred_check_branch
    %11 = sbr.rel (0) target = $region9
  $region8: #{convnext_encoder_forward.22} parent=0 // pred_region
    _
  $region9: #{convnext_encoder_forward.22} parent=0 // pred_fallthru
    _
  // Predicated region
  $region10: #{convnext_encoder_forward.22} parent=0 // pred_check
    _
  $region11: #{convnext_encoder_forward.22} parent=0 // pred_check_branch
    %13 = sbr.rel (0) target = $region13
  $region12: #{convnext_encoder_forward.22} parent=0 // pred_region
    _
  $region13: #{convnext_encoder_forward.22} parent=0 // pred_fallthru
    _
  %v15 = vld [vmem:[%s0] sm:$0xf]
  %v16 = vld [vmem:[%s1] sm:$0xf]
  %v17 = vld [vmem:[%s1 + $0x4] sm:$0xf]
  %v18 = vld [vmem:[%s1 + $0x8] sm:$0xf]
  %v19 = vld [vmem:[%s1 + $0xc] sm:$0xf]
  %v20 = vld [vmem:[%s1 + $0x10] sm:$0xf]
  %v21 = vld [vmem:[%s1 + $0x14] sm:$0xf]
  %v22 = vld [vmem:[%s1 + $0x18] sm:$0xf]
  %v23 = vld [vmem:[%s1 + $0x1c] sm:$0xf]
  %v24 = vld [vmem:[%s1 + $0x20] sm:$0xf]
  %v25 = vld [vmem:[%s1 + $0x24] sm:$0xf]
  %v26 = vld [vmem:[%s1 + $0x28] sm:$0xf]
  %v27 = vld [vmem:[%s1 + $0x2c] sm:$0xf]
  %v28 = vld [vmem:[%s1 + $0x30] sm:$0xf]
  %v29 = vld [vmem:[%s1 + $0x34] sm:$0xf]
  %v30 = vld [vmem:[%s1 + $0x38] sm:$0xf]
  %v31 = vld [vmem:[%s1 + $0x3c] sm:$0xf]
  %v32 = vld [vmem:[%s2] sm:$0x1]
  %v34 = vlaneseq
  %v35 = vshrl.u32 %v34, 7
  %v36 = vsub.s32 0, %v35
  %v37 = vrot.slane %v32, %v36
  %v55 = vunpack.c.l.b16 %v16
  %v56 = vunpack.c.l.b16 %v17
  %v57 = vunpack.c.l.b16 %v18
  %v58 = vunpack.c.l.b16 %v19
  %v59 = vunpack.c.l.b16 %v20
  %v60 = vunpack.c.l.b16 %v21
  %v61 = vunpack.c.l.b16 %v22
  %v62 = vunpack.c.l.b16 %v23
  %v63 = vunpack.c.l.b16 %v24
  %v64 = vunpack.c.l.b16 %v25
  %v65 = vunpack.c.l.b16 %v26
  %v66 = vunpack.c.l.b16 %v27
  %v67 = vunpack.c.l.b16 %v28
  %v68 = vunpack.c.l.b16 %v29
  %v69 = vunpack.c.l.b16 %v30
  %v70 = vunpack.c.l.b16 %v31
  %v71 = vpack.c.b16 %v56, %v55
  %v72 = vpack.c.b16 %v58, %v57
  %v73 = vpack.c.b16 %v60, %v59
  %v74 = vpack.c.b16 %v62, %v61
  %v75 = vpack.c.b16 %v64, %v63
  %v76 = vpack.c.b16 %v66, %v65
  %v77 = vpack.c.b16 %v68, %v67
  %v78 = vpack.c.b16 %v70, %v69
  %87 = vmatprep.subr.bf16.mxu0 0
  %88 = vmatpush1.bf16.msra.mxu0 %v71
  %89 = vmatprep.subr.bf16.mxu0 0
  %90 = vmatpush1.bf16.msra.mxu0 %v72
  %91 = vmatprep.subr.bf16.mxu0 0
  %92 = vmatpush1.bf16.msra.mxu0 %v73
  %93 = vmatprep.subr.bf16.mxu0 0
  %94 = vmatpush1.bf16.msra.mxu0 %v74
  %95 = vmatprep.subr.bf16.mxu0 0
  %96 = vmatpush1.bf16.msra.mxu0 %v75
  %97 = vmatprep.subr.bf16.mxu0 0
  %98 = vmatpush1.bf16.msra.mxu0 %v76
  %99 = vmatprep.subr.bf16.mxu0 0
  %100 = vmatpush1.bf16.msra.mxu0 %v77
  %101 = vmatprep.subr.bf16.mxu0 0
  %102 = vmatpush1.bf16.msra.mxu0 %v78
  %103 = vmatprep.subr.bf16.mxu0 0
  %104 = vmatpush1.bf16.msra.mxu0 0
  %105 = vmatprep.subr.bf16.mxu0 0
  %106 = vmatpush1.bf16.msra.mxu0 0
  %107 = vmatprep.subr.bf16.mxu0 0
  %108 = vmatpush1.bf16.msra.mxu0 0
  %109 = vmatprep.subr.bf16.mxu0 0
  %110 = vmatpush1.bf16.msra.mxu0 0
  %111 = vmatprep.subr.bf16.mxu0 0
  %112 = vmatpush1.bf16.msra.mxu0 0
  %113 = vmatprep.subr.bf16.mxu0 0
  %114 = vmatpush1.bf16.msra.mxu0 0
  %115 = vmatprep.subr.bf16.mxu0 0
  %116 = vmatpush1.bf16.msra.mxu0 0
  %117 = vmatprep.subr.bf16.mxu0 0
  %118 = vmatpush1.bf16.msra.mxu0 0
  %119 = vmatprep.mubr.bf16.mxu0 0
  %120 = vmatmul.mubr.bf16.gmra.mrb[0].mxu0 %v15
  %v121 = vpop.f32.mrb[0].mxu0
  %v122 = vadd.f32 %v37, %v121
  %v123 = vpop.f32.mrb[0].mxu0
  %v124 = vpop.f32.mrb[0].mxu0
  %v125 = vpop.f32.mrb[0].mxu0
  %126 = vdwg.mxu0
  %v127 = vmax.f32 %v122, 0.0
  %v128 = vpack.c.bf16 %v127, %v127
  %129 = vst [vmem:[%s3] sm:$0xf] %v128
  // Predicated region
  $region14: #{convnext_encoder_forward.22} parent=0 // pred_check
    _
  $region15: #{convnext_encoder_forward.22} parent=0 // pred_check_branch
    %131 = sbr.rel (0) target = $region17
  $region16: #{convnext_encoder_forward.22} parent=0 // pred_region
    _
  $region17: #{convnext_encoder_forward.22} parent=0 // pred_fallthru
    _
  // Predicated region
  $region18: #{convnext_encoder_forward.22} parent=0 // pred_check
    _
  $region19: #{convnext_encoder_forward.22} parent=0 // pred_check_branch
    %133 = sbr.rel (0) target = $region21
  $region20: #{convnext_encoder_forward.22} parent=0 // pred_region
    _
  $region21: #{convnext_encoder_forward.22} parent=0 // pred_fallthru
    _

// kernel: convnext_encoder_forward.13
$region0: #{convnext_encoder_forward.13}
  #allocation0 [shape = 'u32[]', space=smem, size = 0x4, offset = 0x4, fixed_abs, tag = 'smem constant byte address 0x4 - core index']
  #allocation1 [shape = 'u32[144,128]{1,0:T(1,128)}', space=vmem, size = 0x12000, scoped, tag = 'internal scratch']
  %s0 = inlined_call_operand.vmem [shape: bf16[2,192,128], index: 0, kind: input, shape index: {}]
  %s1 = inlined_call_operand.vmem [shape: bf16[16,128,128], index: 1, kind: input, shape index: {}]
  %s2 = inlined_call_operand.vmem [shape: f32[1,128], index: 2, kind: input, shape index: {}]
  %s3 = inlined_call_operand.vmem [shape: bf16[2,128,128], index: 3, kind: output, shape index: {}]
  %s4 = sld [smem:[#allocation0]]
  $region45: #{convnext_encoder_forward.13} parent=0
    _
  %s6 = ssub.s32 1, %s4
  %s7 = scalar_select 0, %s6, %s4
  loop: start=0, step=1, limit=4
  $region2: #{convnext_encoder_forward.13} parent=0 // loop_pre_header
    _
  $region3: #{convnext_encoder_forward.13} parent=0 // loop_header
    %s9 = sphi 0, %s13
    %p10 = scmp.ge.s32.totalorder %s9, 4
    %s19 = sphi 0, %s21
    %s22 = sphi 0, %s19
    %s23 = sphi 0, %s22
    %s39 = sphi 0, %s23
    %s43 = sphi 0, %s43
    %s45 = sphi 0, %s43
    %s46 = sphi 0, %s45
    %s60 = sphi 0, %s46
    %s64 = sphi 0, %s64
    %s66 = sphi 0, %s64
    %s67 = sphi 0, %s66
    %s81 = sphi 0, %s67
    %s87 = sphi 0, %s89
    %s90 = sphi 0, %s87
    %s91 = sphi 0, %s90
    %s107 = sphi 0, %s91
  $region4: #{convnext_encoder_forward.13} parent=0 // loop_header_branch
    %12 = sbr.rel (%p10) target = $region8
  $region5: #{convnext_encoder_forward.13} parent=0 // loop_body
    %s14 = ssub.s32 %s9, 1
    %s15 = ssub.s32 %s9, 2
    %s16 = sadd.s32 %s9, 1
    %s17 = ssub.s32 %s9, %s16
    %p18 = scmp.eq.s32.totalorder %s17, 0
    %s20 = sadd.s32 %s19, 1
    %s21 = scalar_select %p18, %s19, %s20
    %p24 = pneg %p18
    %p25 = scmp.eq.s32.totalorder %s9, 1
    %p26 = por %p24, %p25
    %p27 = scmp.ne.s32.totalorder %s19, %s22
    %p28 = scmp.eq.s32.totalorder %s9, 0
    %p29 = por %p27, %p28
    %p30 = scmp.ne.s32.totalorder %s19, %s22
    %p31 = scmp.eq.s32.totalorder %s14, 1
    %p32 = por %p30, %p31
    %p33 = scmp.ne.s32.totalorder %s22, %s23
    %p34 = scmp.eq.s32.totalorder %s14, 0
    %p35 = por %p33, %p34
    %p36 = scmp.ne.s32.totalorder %s22, %s23
    %p37 = scmp.eq.s32.totalorder %s15, 1
    %p38 = por %p36, %p37
    %p40 = scmp.ne.s32.totalorder %s23, %s39
    %p41 = scmp.eq.s32.totalorder %s15, 0
    %p42 = por %p40, %p41
    %s44 = sadd.s32 %s43, 1
    %p47 = scmp.eq.s32.totalorder %s9, 1
    %p48 = scmp.ne.s32.totalorder %s43, %s45
    %p49 = scmp.eq.s32.totalorder %s9, 0
    %p50 = por %p48, %p49
    %p51 = scmp.ne.s32.totalorder %s43, %s45
    %p52 = scmp.eq.s32.totalorder %s14, 1
    %p53 = por %p51, %p52
    %p54 = scmp.ne.s32.totalorder %s45, %s46
    %p55 = scmp.eq.s32.totalorder %s14, 0
    %p56 = por %p54, %p55
    %p57 = scmp.ne.s32.totalorder %s45, %s46
    %p58 = scmp.eq.s32.totalorder %s15, 1
    %p59 = por %p57, %p58
    %p61 = scmp.ne.s32.totalorder %s46, %s60
    %p62 = scmp.eq.s32.totalorder %s15, 0
    %p63 = por %p61, %p62
    %s65 = sadd.s32 %s64, 1
    %p68 = scmp.eq.s32.totalorder %s9, 1
    %p69 = scmp.ne.s32.totalorder %s64, %s66
    %p70 = scmp.eq.s32.totalorder %s9, 0
    %p71 = por %p69, %p70
    %p72 = scmp.ne.s32.totalorder %s64, %s66
    %p73 = scmp.eq.s32.totalorder %s14, 1
    %p74 = por %p72, %p73
    %p75 = scmp.ne.s32.totalorder %s66, %s67
    %p76 = scmp.eq.s32.totalorder %s14, 0
    %p77 = por %p75, %p76
    %p78 = scmp.ne.s32.totalorder %s66, %s67
    %p79 = scmp.eq.s32.totalorder %s15, 1
    %p80 = por %p78, %p79
    %p82 = scmp.ne.s32.totalorder %s67, %s81
    %p83 = scmp.eq.s32.totalorder %s15, 0
    %p84 = por %p82, %p83
    %s85 = ssub.s32 %s9, %s16
    %p86 = scmp.eq.s32.totalorder %s85, 0
    %s88 = sadd.s32 %s87, 1
    %s89 = scalar_select %p86, %s87, %s88
    %p92 = pneg %p86
    %p93 = scmp.eq.s32.totalorder %s9, 1
    %p94 = por %p92, %p93
    %p95 = scmp.ne.s32.totalorder %s87, %s90
    %p96 = scmp.eq.s32.totalorder %s9, 0
    %p97 = por %p95, %p96
    %p98 = scmp.ne.s32.totalorder %s87, %s90
    %p99 = scmp.eq.s32.totalorder %s14, 1
    %p100 = por %p98, %p99
    %p101 = scmp.ne.s32.totalorder %s90, %s91
    %p102 = scmp.eq.s32.totalorder %s14, 0
    %p103 = por %p101, %p102
    %p104 = scmp.ne.s32.totalorder %s90, %s91
    %p105 = scmp.eq.s32.totalorder %s15, 1
    %p106 = por %p104, %p105
    %p108 = scmp.ne.s32.totalorder %s91, %s107
    %p109 = scmp.eq.s32.totalorder %s15, 0
    %p110 = por %p108, %p109
    %p111 = scmp.le.s32.totalorder 1, %s9
    %p112 = scmp.lt.s32.totalorder %s9, 3
    %p113 = pnand %p111, %p112
    %p114 = pneg %p113
    // Predicated region
    $region9: #{convnext_encoder_forward.13} parent=5 // pred_check
      _
    $region10: #{convnext_encoder_forward.13} parent=5 // pred_check_branch
      %116 = sbr.rel (%p113) target = $region12
    $region11: #{convnext_encoder_forward.13} parent=5 // pred_region
      %s117 = ssub.s32 %s9, 1
      // Predicated region
      $region13: #{convnext_encoder_forward.13} parent=11 // pred_check
        %p118 = pneg %p56
      $region14: #{convnext_encoder_forward.13} parent=11 // pred_check_branch
        %120 = sbr.rel (%p118) target = $region16
      $region15: #{convnext_encoder_forward.13} parent=11 // pred_region
        _
      $region16: #{convnext_encoder_forward.13} parent=11 // pred_fallthru
        _
      // Predicated region
      $region17: #{convnext_encoder_forward.13} parent=11 // pred_check
        %p121 = pneg %p77
      $region18: #{convnext_encoder_forward.13} parent=11 // pred_check_branch
        %123 = sbr.rel (%p121) target = $region20
      $region19: #{convnext_encoder_forward.13} parent=11 // pred_region
        _
      $region20: #{convnext_encoder_forward.13} parent=11 // pred_fallthru
        _
    $region12: #{convnext_encoder_forward.13} parent=5 // pred_fallthru
      _
    %p124 = scmp.lt.s32.totalorder %s9, 2
    // Predicated region
    $region21: #{convnext_encoder_forward.13} parent=5 // pred_check
      %p125 = pneg %p124
    $region22: #{convnext_encoder_forward.13} parent=5 // pred_check_branch
      %127 = sbr.rel (%p125) target = $region24
    $region23: #{convnext_encoder_forward.13} parent=5 // pred_region
      // Predicated region
      $region25: #{convnext_encoder_forward.13} parent=23 // pred_check
        %p128 = pneg %p29
      $region26: #{convnext_encoder_forward.13} parent=23 // pred_check_branch
        %130 = sbr.rel (%p128) target = $region28
      $region27: #{convnext_encoder_forward.13} parent=23 // pred_region
        %p131 = scmp.lt.s32.totalorder %s9, 1
        %s132 = scalar_select %p131, %s9, 1
        %s133 = smul.addr %s132, 24
        %s134 = smul.addr %s133, 4
        %s135 = scalar_lea.vmem %s0, %s134
      $region28: #{convnext_encoder_forward.13} parent=23 // pred_fallthru
        _
    $region24: #{convnext_encoder_forward.13} parent=5 // pred_fallthru
      _
    %p136 = scmp.le.s32.totalorder 1, %s9
    %p137 = scmp.lt.s32.totalorder %s9, 3
    %p138 = pnand %p136, %p137
    %p139 = pneg %p138
    // Predicated region
    $region29: #{convnext_encoder_forward.13} parent=5 // pred_check
      _
    $region30: #{convnext_encoder_forward.13} parent=5 // pred_check_branch
      %141 = sbr.rel (%p138) target = $region32
    $region31: #{convnext_encoder_forward.13} parent=5 // pred_region
      %s142 = ssub.s32 %s9, 1
      %p143 = scmp.lt.s32.totalorder %s14, 1
      %s144 = scalar_select %p143, %s14, 1
      %s145 = smul.addr %s144, 24
      %s146 = smul.addr %s145, 4
      %s147 = scalar_lea.vmem %s0, %s146
      %p148 = pneg %p35
      %p149 = pneg %p32
      %p150 = pneg %p56
      %p151 = pneg %p53
      %p152 = pneg %p77
      %p153 = pneg %p74
      %p154 = pneg %p103
      %p155 = pneg %p100
      %p156 = scmp.lt.s32.totalorder %s14, 1
      %s157 = scalar_select %p156, %s14, 1
      %s158 = smul.addr %s157, 16
      %s159 = smul.addr %s158, 4
      %s160 = scalar_lea.vmem %s3, %s159
      %p161 = scmp.lt.s32.totalorder %s14, 1
      %s162 = scalar_select %p161, %s14, 1
      %s163 = smul.addr %s162, 24
      %s164 = smul.addr %s163, 4
      %s165 = scalar_lea.vmem %s0, %s164
      %p166 = scmp.lt.s32.totalorder %s14, 1
      %s167 = scalar_select %p166, %s14, 1
      %s168 = smul.addr %s167, 16
      %s169 = smul.addr %s168, 4
      %s170 = scalar_lea.vmem %s3, %s169
      %v172 = vld [vmem:[%s165] sm:$0xf]
      %v173 = vld [vmem:[%s165 + $0x4] sm:$0xf]
      %v174 = vld [vmem:[%s165 + $0x8] sm:$0xf]
      %v175 = vld [vmem:[%s165 + $0xc] sm:$0xf]
      %v176 = vld [vmem:[%s165 + $0x10] sm:$0xf]
      %v177 = vld [vmem:[%s165 + $0x14] sm:$0xf]
      %v178 = vld [vmem:[%s165 + $0x18] sm:$0xf]
      %v179 = vld [vmem:[%s165 + $0x1c] sm:$0xf]
      %v180 = vld [vmem:[%s165 + $0x20] sm:$0xf]
      %v181 = vld [vmem:[%s165 + $0x24] sm:$0xf]
      %v182 = vld [vmem:[%s165 + $0x28] sm:$0xf]
      %v183 = vld [vmem:[%s165 + $0x2c] sm:$0xf]
      %v184 = vld [vmem:[%s165 + $0x30] sm:$0xf]
      %v185 = vld [vmem:[%s165 + $0x34] sm:$0xf]
      %v186 = vld [vmem:[%s165 + $0x38] sm:$0xf]
      %v187 = vld [vmem:[%s165 + $0x3c] sm:$0xf]
      %v188 = vld [vmem:[%s1] sm:$0xf]
      %v189 = vld [vmem:[%s1 + $0x4] sm:$0xf]
      %v190 = vld [vmem:[%s1 + $0x8] sm:$0xf]
      %v191 = vld [vmem:[%s1 + $0xc] sm:$0xf]
      %v192 = vld [vmem:[%s1 + $0x10] sm:$0xf]
      %v193 = vld [vmem:[%s1 + $0x14] sm:$0xf]
      %v194 = vld [vmem:[%s1 + $0x18] sm:$0xf]
      %v195 = vld [vmem:[%s1 + $0x1c] sm:$0xf]
      %v196 = vld [vmem:[%s1 + $0x20] sm:$0xf]
      %v197 = vld [vmem:[%s1 + $0x24] sm:$0xf]
      %v198 = vld [vmem:[%s1 + $0x28] sm:$0xf]
      %v199 = vld [vmem:[%s1 + $0x2c] sm:$0xf]
      %v200 = vld [vmem:[%s1 + $0x30] sm:$0xf]
      %v201 = vld [vmem:[%s1 + $0x34] sm:$0xf]
      %v202 = vld [vmem:[%s1 + $0x38] sm:$0xf]
      %v203 = vld [vmem:[%s1 + $0x3c] sm:$0xf]
      %v204 = vld [vmem:[%s165 + $0x40] sm:$0x1]
      %s205 = scalar_lea.vmem %s1, 64
      %v206 = vld [vmem:[%s205] sm:$0xf]
      %v207 = vld [vmem:[%s205 + $0x4] sm:$0xf]
      %v208 = vld [vmem:[%s205 + $0x8] sm:$0xf]
      %v209 = vld [vmem:[%s205 + $0xc] sm:$0xf]
      %v210 = vld [vmem:[%s205 + $0x10] sm:$0xf]
      %v211 = vld [vmem:[%s205 + $0x14] sm:$0xf]
      %v212 = vld [vmem:[%s205 + $0x18] sm:$0xf]
      %v213 = vld [vmem:[%s205 + $0x1c] sm:$0xf]
      %v214 = vld [vmem:[%s205 + $0x20] sm:$0xf]
      %v215 = vld [vmem:[%s205 + $0x24] sm:$0xf]
      %v216 = vld [vmem:[%s205 + $0x28] sm:$0xf]
      %v217 = vld [vmem:[%s205 + $0x2c] sm:$0xf]
      %v218 = vld [vmem:[%s205 + $0x30] sm:$0xf]
      %v219 = vld [vmem:[%s205 + $0x34] sm:$0xf]
      %v220 = vld [vmem:[%s205 + $0x38] sm:$0xf]
      %v221 = vld [vmem:[%s205 + $0x3c] sm:$0xf]
      %v239 = vunpack.c.l.b16 %v172
      %v240 = vunpack.c.l.b16 %v173
      %v241 = vunpack.c.l.b16 %v174
      %v242 = vunpack.c.l.b16 %v175
      %v243 = vunpack.c.l.b16 %v176
      %v244 = vunpack.c.l.b16 %v177
      %v245 = vunpack.c.l.b16 %v178
      %v246 = vunpack.c.l.b16 %v179
      %v247 = vunpack.c.l.b16 %v180
      %v248 = vunpack.c.l.b16 %v181
      %v249 = vunpack.c.l.b16 %v182
      %v250 = vunpack.c.l.b16 %v183
      %v251 = vunpack.c.l.b16 %v184
      %v252 = vunpack.c.l.b16 %v185
      %v253 = vunpack.c.l.b16 %v186
      %v254 = vunpack.c.l.b16 %v187
      %v255 = vunpack.c.l.b16 %v204
      %v256 = vpack.c.b16 %v240, %v239
      %v257 = vpack.c.b16 %v242, %v241
      %v258 = vpack.c.b16 %v244, %v243
      %v259 = vpack.c.b16 %v246, %v245
      %v260 = vpack.c.b16 %v248, %v247
      %v261 = vpack.c.b16 %v250, %v249
      %v262 = vpack.c.b16 %v252, %v251
      %v263 = vpack.c.b16 %v254, %v253
      %v264 = vpack.c.b16 %v255, %v255
      %vm265 = vsmask.f32 7424
      %v267 = vshrl.u32 %v256, 16
      %v269 = vshll.u32 %v256, 16
      %v271 = vrot.slane %v269, 1
      %v272 = vor.u32 %v267, %v271
      %v274 = vshll.u32 %v257, 16
      %v276 = vrot.slane %v274, 1
      %v277 = vsel %vm265, %v272, %v276
      %v278 = vshrl.u32 %v257, 16
      %v280 = vor.u32 %v278, %v276
      %v282 = vshll.u32 %v258, 16
      %v284 = vrot.slane %v282, 1
      %v285 = vsel %vm265, %v280, %v284
      %v286 = vshrl.u32 %v258, 16
      %v288 = vor.u32 %v286, %v284
      %v290 = vshll.u32 %v259, 16
      %v292 = vrot.slane %v290, 1
      %v293 = vsel %vm265, %v288, %v292
      %v294 = vshrl.u32 %v259, 16
      %v296 = vor.u32 %v294, %v292
      %v298 = vshll.u32 %v260, 16
      %v300 = vrot.slane %v298, 1
      %v301 = vsel %vm265, %v296, %v300
      %v302 = vshrl.u32 %v260, 16
      %v304 = vor.u32 %v302, %v300
      %v306 = vshll.u32 %v261, 16
      %v308 = vrot.slane %v306, 1
      %v309 = vsel %vm265, %v304, %v308
      %v310 = vshrl.u32 %v261, 16
      %v312 = vor.u32 %v310, %v308
      %v314 = vshll.u32 %v262, 16
      %v316 = vrot.slane %v314, 1
      %v317 = vsel %vm265, %v312, %v316
      %v318 = vshrl.u32 %v262, 16
      %v320 = vor.u32 %v318, %v316
      %v322 = vshll.u32 %v263, 16
      %v324 = vrot.slane %v322, 1
      %v325 = vsel %vm265, %v320, %v324
      %v326 = vshrl.u32 %v263, 16
      %v328 = vor.u32 %v326, %v324
      %v330 = vshll.u32 %v264, 16
      %v332 = vrot.slane %v330, 1
      %v333 = vsel %vm265, %v328, %v332
      %v358 = vunpack.c.l.b16 %v206
      %v359 = vunpack.c.l.b16 %v207
      %v360 = vunpack.c.l.b16 %v208
      %v361 = vunpack.c.l.b16 %v209
      %v362 = vunpack.c.l.b16 %v210
      %v363 = vunpack.c.l.b16 %v211
      %v364 = vunpack.c.l.b16 %v212
      %v365 = vunpack.c.l.b16 %v213
      %v366 = vunpack.c.l.b16 %v214
      %v367 = vunpack.c.l.b16 %v215
      %v368 = vunpack.c.l.b16 %v216
      %v369 = vunpack.c.l.b16 %v217
      %v370 = vunpack.c.l.b16 %v218
      %v371 = vunpack.c.l.b16 %v219
      %v372 = vunpack.c.l.b16 %v220
      %v373 = vunpack.c.l.b16 %v221
      %v374 = vpack.c.b16 %v359, %v358
      %v375 = vpack.c.b16 %v361, %v360
      %v376 = vpack.c.b16 %v363, %v362
      %v377 = vpack.c.b16 %v365, %v364
      %v378 = vpack.c.b16 %v367, %v366
      %v379 = vpack.c.b16 %v369, %v368
      %v380 = vpack.c.b16 %v371, %v370
      %v381 = vpack.c.b16 %v373, %v372
      %390 = vmatprep.subr.bf16.mxu0 0
      %391 = vmatpush1.bf16.msra.mxu0 %v374
      %392 = vmatprep.subr.bf16.mxu0 0
      %393 = vmatpush1.bf16.msra.mxu0 %v375
      %394 = vmatprep.subr.bf16.mxu0 0
      %395 = vmatpush1.bf16.msra.mxu0 %v376
      %396 = vmatprep.subr.bf16.mxu0 0
      %397 = vmatpush1.bf16.msra.mxu0 %v377
      %398 = vmatprep.subr.bf16.mxu0 0
      %399 = vmatpush1.bf16.msra.mxu0 %v378
      %400 = vmatprep.subr.bf16.mxu0 0
      %401 = vmatpush1.bf16.msra.mxu0 %v379
      %402 = vmatprep.subr.bf16.mxu0 0
      %403 = vmatpush1.bf16.msra.mxu0 %v380
      %404 = vmatprep.subr.bf16.mxu0 0
      %405 = vmatpush1.bf16.msra.mxu0 %v381
      %406 = vmatprep.subr.bf16.mxu0 0
      %407 = vmatpush1.bf16.msra.mxu0 0
      %408 = vmatprep.subr.bf16.mxu0 0
      %409 = vmatpush1.bf16.msra.mxu0 0
      %410 = vmatprep.subr.bf16.mxu0 0
      %411 = vmatpush1.bf16.msra.mxu0 0
      %412 = vmatprep.subr.bf16.mxu0 0
      %413 = vmatpush1.bf16.msra.mxu0 0
      %414 = vmatprep.subr.bf16.mxu0 0
      %415 = vmatpush1.bf16.msra.mxu0 0
      %416 = vmatprep.subr.bf16.mxu0 0
      %417 = vmatpush1.bf16.msra.mxu0 0
      %418 = vmatprep.subr.bf16.mxu0 0
      %419 = vmatpush1.bf16.msra.mxu0 0
      %420 = vmatprep.subr.bf16.mxu0 0
      %421 = vmatpush1.bf16.msra.mxu0 0
      %422 = vmatprep.mubr.bf16.mxu0 0
      %423 = vmatmul.mubr.bf16.gmra.mrb[0].mxu0 %v277
      %v424 = vpop.f32.mrb[0].mxu0
      %v425 = vadd.f32 0.0, %v424
      %v426 = vpop.f32.mrb[0].mxu0
      %v427 = vpop.f32.mrb[0].mxu0
      %v428 = vadd.f32 0.0, %v427
      %v429 = vpop.f32.mrb[0].mxu0
      %430 = vmatprep.mubr.bf16.mxu0 0
      %431 = vmatmul.mubr.bf16.gmra.mrb[0].mxu0 %v285
      %v432 = vpop.f32.mrb[0].mxu0
      %v433 = vadd.f32 0.0, %v432
      %v434 = vpop.f32.mrb[0].mxu0
      %v435 = vpop.f32.mrb[0].mxu0
      %v436 = vadd.f32 0.0, %v435
      %v437 = vpop.f32.mrb[0].mxu0
      %438 = vmatprep.mubr.bf16.mxu0 0
      %439 = vmatmul.mubr.bf16.gmra.mrb[0].mxu0 %v293
      %v440 = vpop.f32.mrb[0].mxu0
      %v441 = vadd.f32 0.0, %v440
      %v442 = vpop.f32.mrb[0].mxu0
      %v443 = vpop.f32.mrb[0].mxu0
      %v444 = vadd.f32 0.0, %v443
      %v445 = vpop.f32.mrb[0].mxu0
      %446 = vmatprep.mubr.bf16.mxu0 0
      %447 = vmatmul.mubr.bf16.gmra.mrb[0].mxu0 %v301
      %v448 = vpop.f32.mrb[0].mxu0
      %v449 = vadd.f32 0.0, %v448
      %v450 = vpop.f32.mrb[0].mxu0
      %v451 = vpop.f32.mrb[0].mxu0
      %v452 = vadd.f32 0.0, %v451
      %v453 = vpop.f32.mrb[0].mxu0
      %454 = vmatprep.mubr.bf16.mxu0 0
      %455 = vmatmul.mubr.bf16.gmra.mrb[0].mxu0 %v309
      %v456 = vpop.f32.mrb[0].mxu0
      %v457 = vadd.f32 0.0, %v456
      %v458 = vpop.f32.mrb[0].mxu0
      %v459 = vpop.f32.mrb[0].mxu0
      %v460 = vadd.f32 0.0, %v459
      %v461 = vpop.f32.mrb[0].mxu0
      %462 = vmatprep.mubr.bf16.mxu0 0
      %463 = vmatmul.mubr.bf16.gmra.mrb[0].mxu0 %v317
      %v464 = vpop.f32.mrb[0].mxu0
      %v465 = vadd.f32 0.0, %v464
      %v466 = vpop.f32.mrb[0].mxu0
      %v467 = vpop.f32.mrb[0].mxu0
      %v468 = vadd.f32 0.0, %v467
      %v469 = vpop.f32.mrb[0].mxu0
      %470 = vmatprep.mubr.bf16.mxu0 0
      %471 = vmatmul.mubr.bf16.gmra.mrb[0].mxu0 %v325
      %v472 = vpop.f32.mrb[0].mxu0
      %v473 = vadd.f32 0.0, %v472
      %v474 = vpop.f32.mrb[0].mxu0
      %v475 = vpop.f32.mrb[0].mxu0
      %v476 = vadd.f32 0.0, %v475
      %v477 = vpop.f32.mrb[0].mxu0
      %478 = vmatprep.mubr.bf16.mxu0 0
      %479 = vmatmul.mubr.bf16.gmra.mrb[0].mxu0 %v333
      %v480 = vpop.f32.mrb[0].mxu0
      %v481 = vadd.f32 0.0, %v480
      %v482 = vpop.f32.mrb[0].mxu0
      %v483 = vpop.f32.mrb[0].mxu0
      %v484 = vadd.f32 0.0, %v483
      %v485 = vpop.f32.mrb[0].mxu0
      %486 = vdwg.mxu0
      %v511 = vunpack.c.l.b16 %v188
      %v512 = vunpack.c.l.b16 %v189
      %v513 = vunpack.c.l.b16 %v190
      %v514 = vunpack.c.l.b16 %v191
      %v515 = vunpack.c.l.b16 %v192
      %v516 = vunpack.c.l.b16 %v193
      %v517 = vunpack.c.l.b16 %v194
      %v518 = vunpack.c.l.b16 %v195
      %v519 = vunpack.c.l.b16 %v196
      %v520 = vunpack.c.l.b16 %v197
      %v521 = vunpack.c.l.b16 %v198
      %v522 = vunpack.c.l.b16 %v199
      %v523 = vunpack.c.l.b16 %v200
      %v524 = vunpack.c.l.b16 %v201
      %v525 = vunpack.c.l.b16 %v202
      %v526 = vunpack.c.l.b16 %v203
      %v527 = vpack.c.b16 %v512, %v511
      %v528 = vpack.c.b16 %v514, %v513
      %v529 = vpack.c.b16 %v516, %v515
      %v530 = vpack.c.b16 %v518, %v517
      %v531 = vpack.c.b16 %v520, %v519
      %v532 = vpack.c.b16 %v522, %v521
      %v533 = vpack.c.b16 %v524, %v523
      %v534 = vpack.c.b16 %v526, %v525
      %543 = vmatprep.subr.bf16.mxu0 0
      %544 = vmatpush1.bf16.msra.mxu0 %v527
      %545 = vmatprep.subr.bf16.mxu0 0
      %546 = vmatpush1.bf16.msra.mxu0 %v528
      %547 = vmatprep.subr.bf16.mxu0 0
      %548 = vmatpush1.bf16.msra.mxu0 %v529
      %549 = vmatprep.subr.bf16.mxu0 0
      %550 = vmatpush1.bf16.msra.mxu0 %v530
      %551 = vmatprep.subr.bf16.mxu0 0
      %552 = vmatpush1.bf16.msra.mxu0 %v531
      %553 = vmatprep.subr.bf16.mxu0 0
      %554 = vmatpush1.bf16.msra.mxu0 %v532
      %555 = vmatprep.subr.bf16.mxu0 0
      %556 = vmatpush1.bf16.msra.mxu0 %v533
      %557 = vmatprep.subr.bf16.mxu0 0
      %558 = vmatpush1.bf16.msra.mxu0 %v534
      %559 = vmatprep.subr.bf16.mxu0 0
      %560 = vmatpush1.bf16.msra.mxu0 0
      %561 = vmatprep.subr.bf16.mxu0 0
      %562 = vmatpush1.bf16.msra.mxu0 0
      %563 = vmatprep.subr.bf16.mxu0 0
      %564 = vmatpush1.bf16.msra.mxu0 0
      %565 = vmatprep.subr.bf16.mxu0 0
      %566 = vmatpush1.bf16.msra.mxu0 0
      %567 = vmatprep.subr.bf16.mxu0 0
      %568 = vmatpush1.bf16.msra.mxu0 0
      %569 = vmatprep.subr.bf16.mxu0 0
      %570 = vmatpush1.bf16.msra.mxu0 0
      %571 = vmatprep.subr.bf16.mxu0 0
      %572 = vmatpush1.bf16.msra.mxu0 0
      %573 = vmatprep.subr.bf16.mxu0 0
      %574 = vmatpush1.bf16.msra.mxu0 0
      %575 = vmatprep.mubr.bf16.mxu0 0
      %576 = vmatmul.mubr.bf16.gmra.mrb[0].mxu0 %v256
      %v577 = vpop.f32.mrb[0].mxu0
      %v578 = vadd.f32 %v425, %v577
      %v579 = vpop.f32.mrb[0].mxu0
      %v580 = vpop.f32.mrb[0].mxu0
      %v581 = vadd.f32 %v428, %v580
      %v582 = vpop.f32.mrb[0].mxu0
      %583 = vmatprep.mubr.bf16.mxu0 0
      %584 = vmatmul.mubr.bf16.gmra.mrb[0].mxu0 %v257
      %v585 = vpop.f32.mrb[0].mxu0
      %v586 = vadd.f32 %v433, %v585
      %v587 = vpop.f32.mrb[0].mxu0
      %v588 = vpop.f32.mrb[0].mxu0
      %v589 = vadd.f32 %v436, %v588
      %v590 = vpop.f32.mrb[0].mxu0
      %591 = vmatprep.mubr.bf16.mxu0 0
      %592 = vmatmul.mubr.bf16.gmra.mrb[0].mxu0 %v258
      %v593 = vpop.f32.mrb[0].mxu0
      %v594 = vadd.f32 %v441, %v593
      %v595 = vpop.f32.mrb[0].mxu0
      %v596 = vpop.f32.mrb[0].mxu0
      %v597 = vadd.f32 %v444, %v596
      %v598 = vpop.f32.mrb[0].mxu0
      %599 = vmatprep.mubr.bf16.mxu0 0
      %600 = vmatmul.mubr.bf16.gmra.mrb[0].mxu0 %v259
      %v601 = vpop.f32.mrb[0].mxu0
      %v602 = vadd.f32 %v449, %v601
      %v603 = vpop.f32.mrb[0].mxu0
      %v604 = vpop.f32.mrb[0].mxu0
      %v605 = vadd.f32 %v452, %v604
      %v606 = vpop.f32.mrb[0].mxu0
      %607 = vmatprep.mubr.bf16.mxu0 0
      %608 = vmatmul.mubr.bf16.gmra.mrb[0].mxu0 %v260
      %v609 = vpop.f32.mrb[0].mxu0
      %v610 = vadd.f32 %v457, %v609
      %v611 = vpop.f32.mrb[0].mxu0
      %v612 = vpop.f32.mrb[0].mxu0
      %v613 = vadd.f32 %v460, %v612
      %v614 = vpop.f32.mrb[0].mxu0
      %615 = vmatprep.mubr.bf16.mxu0 0
      %616 = vmatmul.mubr.bf16.gmra.mrb[0].mxu0 %v261
      %v617 = vpop.f32.mrb[0].mxu0
      %v618 = vadd.f32 %v465, %v617
      %v619 = vpop.f32.mrb[0].mxu0
      %v620 = vpop.f32.mrb[0].mxu0
      %v621 = vadd.f32 %v468, %v620
      %v622 = vpop.f32.mrb[0].mxu0
      %623 = vmatprep.mubr.bf16.mxu0 0
      %624 = vmatmul.mubr.bf16.gmra.mrb[0].mxu0 %v262
      %v625 = vpop.f32.mrb[0].mxu0
      %v626 = vadd.f32 %v473, %v625
      %v627 = vpop.f32.mrb[0].mxu0
      %v628 = vpop.f32.mrb[0].mxu0
      %v629 = vadd.f32 %v476, %v628
      %v630 = vpop.f32.mrb[0].mxu0
      %631 = vmatprep.mubr.bf16.mxu0 0
      %632 = vmatmul.mubr.bf16.gmra.mrb[0].mxu0 %v263
      %v633 = vpop.f32.mrb[0].mxu0
      %v634 = vadd.f32 %v481, %v633
      %v635 = vpop.f32.mrb[0].mxu0
      %v636 = vpop.f32.mrb[0].mxu0
      %v637 = vadd.f32 %v484, %v636
      %v638 = vpop.f32.mrb[0].mxu0
      %639 = vdwg.mxu0
      %v640 = vld [vmem:[%s165] sm:$0xe]
      %s641 = scalar_lea.vmem %s1, 128
      %v642 = vld [vmem:[%s641] sm:$0xf]
      %v643 = vld [vmem:[%s641 + $0x4] sm:$0xf]
      %v644 = vld [vmem:[%s641 + $0x8] sm:$0xf]
      %v645 = vld [vmem:[%s641 + $0xc] sm:$0xf]
      %v646 = vld [vmem:[%s641 + $0x10] sm:$0xf]
      %v647 = vld [vmem:[%s641 + $0x14] sm:$0xf]
      %v648 = vld [vmem:[%s641 + $0x18] sm:$0xf]
      %v649 = vld [vmem:[%s641 + $0x1c] sm:$0xf]
      %v650 = vld [vmem:[%s641 + $0x20] sm:$0xf]
      %v651 = vld [vmem:[%s641 + $0x24] sm:$0xf]
      %v652 = vld [vmem:[%s641 + $0x28] sm:$0xf]
      %v653 = vld [vmem:[%s641 + $0x2c] sm:$0xf]
      %v654 = vld [vmem:[%s641 + $0x30] sm:$0xf]
      %v655 = vld [vmem:[%s641 + $0x34] sm:$0xf]
      %v656 = vld [vmem:[%s641 + $0x38] sm:$0xf]
      %v657 = vld [vmem:[%s641 + $0x3c] sm:$0xf]
      %v659 = vunpack.c.l.b16 %v640
      %v660 = vpack.c.b16 %v240, %v659
      %vm661 = vcmask 1046528
      %v662 = vrot.slane %v660, 1
      %v663 = vrot.slane %v257, 1
      %v664 = vsel %vm661, %v662, %v663
      %v665 = vrot.slane %v258, 1
      %v666 = vsel %vm661, %v663, %v665
      %v667 = vrot.slane %v259, 1
      %v668 = vsel %vm661, %v665, %v667
      %v669 = vrot.slane %v260, 1
      %v670 = vsel %vm661, %v667, %v669
      %v671 = vrot.slane %v261, 1
      %v672 = vsel %vm661, %v669, %v671
      %v673 = vrot.slane %v262, 1
      %v674 = vsel %vm661, %v671, %v673
      %v675 = vrot.slane %v263, 1
      %v676 = vsel %vm661, %v673, %v675
      %v677 = vrot.slane %v264, 1
      %v678 = vsel %vm661, %v675, %v677
      %v703 = vunpack.c.l.b16 %v642
      %v704 = vunpack.c.l.b16 %v643
      %v705 = vunpack.c.l.b16 %v644
      %v706 = vunpack.c.l.b16 %v645
      %v707 = vunpack.c.l.b16 %v646
      %v708 = vunpack.c.l.b16 %v647
      %v709 = vunpack.c.l.b16 %v648
      %v710 = vunpack.c.l.b16 %v649
      %v711 = vunpack.c.l.b16 %v650
      %v712 = vunpack.c.l.b16 %v651
      %v713 = vunpack.c.l.b16 %v652
      %v714 = vunpack.c.l.b16 %v653
      %v715 = vunpack.c.l.b16 %v654
      %v716 = vunpack.c.l.b16 %v655
      %v717 = vunpack.c.l.b16 %v656
      %v718 = vunpack.c.l.b16 %v657
      %v719 = vpack.c.b16 %v704, %v703
      %v720 = vpack.c.b16 %v706, %v705
      %v721 = vpack.c.b16 %v708, %v707
      %v722 = vpack.c.b16 %v710, %v709
      %v723 = vpack.c.b16 %v712, %v711
      %v724 = vpack.c.b16 %v714, %v713
      %v725 = vpack.c.b16 %v716, %v715
      %v726 = vpack.c.b16 %v718, %v717
      %735 = vmatprep.subr.bf16.mxu0 0
      %736 = vmatpush1.bf16.msra.mxu0 %v719
      %737 = vmatprep.subr.bf16.mxu0 0
      %738 = vmatpush1.bf16.msra.mxu0 %v720
      %739 = vmatprep.subr.bf16.mxu0 0
      %740 = vmatpush1.bf16.msra.mxu0 %v721
      %741 = vmatprep.subr.bf16.mxu0 0
      %742 = vmatpush1.bf16.msra.mxu0 %v722
      %743 = vmatprep.subr.bf16.mxu0 0
      %744 = vmatpush1.bf16.msra.mxu0 %v723
      %745 = vmatprep.subr.bf16.mxu0 0
      %746 = vmatpush1.bf16.msra.mxu0 %v724
      %747 = vmatprep.subr.bf16.mxu0 0
      %748 = vmatpush1.bf16.msra.mxu0 %v725
      %749 = vmatprep.subr.bf16.mxu0 0
      %750 = vmatpush1.bf16.msra.mxu0 %v726
      %751 = vmatprep.subr.bf16.mxu0 0
      %752 = vmatpush1.bf16.msra.mxu0 0
      %753 = vmatprep.subr.bf16.mxu0 0
      %754 = vmatpush1.bf16.msra.mxu0 0
      %755 = vmatprep.subr.bf16.mxu0 0
      %756 = vmatpush1.bf16.msra.mxu0 0
      %757 = vmatprep.subr.bf16.mxu0 0
      %758 = vmatpush1.bf16.msra.mxu0 0
      %759 = vmatprep.subr.bf16.mxu0 0
      %760 = vmatpush1.bf16.msra.mxu0 0
      %761 = vmatprep.subr.bf16.mxu0 0
      %762 = vmatpush1.bf16.msra.mxu0 0
      %763 = vmatprep.subr.bf16.mxu0 0
      %764 = vmatpush1.bf16.msra.mxu0 0
      %765 = vmatprep.subr.bf16.mxu0 0
      %766 = vmatpush1.bf16.msra.mxu0 0
      %767 = vmatprep.mubr.bf16.mxu0 0
      %768 = vmatmul.mubr.bf16.gmra.mrb[0].mxu0 %v664
      %v769 = vpop.f32.mrb[0].mxu0
      %v770 = vadd.f32 0.0, %v769
      %v771 = vpop.f32.mrb[0].mxu0
      %v772 = vpop.f32.mrb[0].mxu0
      %v773 = vadd.f32 0.0, %v772
      %v774 = vpop.f32.mrb[0].mxu0
      %775 = vmatprep.mubr.bf16.mxu0 0
      %776 = vmatmul.mubr.bf16.gmra.mrb[0].mxu0 %v666
      %v777 = vpop.f32.mrb[0].mxu0
      %v778 = vadd.f32 0.0, %v777
      %v779 = vpop.f32.mrb[0].mxu0
      %v780 = vpop.f32.mrb[0].mxu0
      %v781 = vadd.f32 0.0, %v780
      %v782 = vpop.f32.mrb[0].mxu0
      %783 = vmatprep.mubr.bf16.mxu0 0
      %784 = vmatmul.mubr.bf16.gmra.mrb[0].mxu0 %v668
      %v785 = vpop.f32.mrb[0].mxu0
      %v786 = vadd.f32 0.0, %v785
      %v787 = vpop.f32.mrb[0].mxu0
      %v788 = vpop.f32.mrb[0].mxu0
      %v789 = vadd.f32 0.0, %v788
      %v790 = vpop.f32.mrb[0].mxu0
      %791 = vmatprep.mubr.bf16.mxu0 0
      %792 = vmatmul.mubr.bf16.gmra.mrb[0].mxu0 %v670
      %v793 = vpop.f32.mrb[0].mxu0
      %v794 = vadd.f32 0.0, %v793
      %v795 = vpop.f32.mrb[0].mxu0
      %v796 = vpop.f32.mrb[0].mxu0
      %v797 = vadd.f32 0.0, %v796
      %v798 = vpop.f32.mrb[0].mxu0
      %799 = vmatprep.mubr.bf16.mxu0 0
      %800 = vmatmul.mubr.bf16.gmra.mrb[0].mxu0 %v672
      %v801 = vpop.f32.mrb[0].mxu0
      %v802 = vadd.f32 0.0, %v801
      %v803 = vpop.f32.mrb[0].mxu0
      %v804 = vpop.f32.mrb[0].mxu0
      %v805 = vadd.f32 0.0, %v804
      %v806 = vpop.f32.mrb[0].mxu0
      %807 = vmatprep.mubr.bf16.mxu0 0
      %808 = vmatmul.mubr.bf16.gmra.mrb[0].mxu0 %v674
      %v809 = vpop.f32.mrb[0].mxu0
      %v810 = vadd.f32 0.0, %v809
      %v811 = vpop.f32.mrb[0].mxu0
      %v812 = vpop.f32.mrb[0].mxu0
      %v813 = vadd.f32 0.0, %v812
      %v814 = vpop.f32.mrb[0].mxu0
      %815 = vmatprep.mubr.bf16.mxu0 0
      %816 = vmatmul.mubr.bf16.gmra.mrb[0].mxu0 %v676
      %v817 = vpop.f32.mrb[0].mxu0
      %v818 = vadd.f32 0.0, %v817
      %v819 = vpop.f32.mrb[0].mxu0
      %v820 = vpop.f32.mrb[0].mxu0
      %v821 = vadd.f32 0.0, %v820
      %v822 = vpop.f32.mrb[0].mxu0
      %823 = vmatprep.mubr.bf16.mxu0 0
      %824 = vmatmul.mubr.bf16.gmra.mrb[0].mxu0 %v678
      %v825 = vpop.f32.mrb[0].mxu0
      %v826 = vadd.f32 0.0, %v825
      %v827 = vpop.f32.mrb[0].mxu0
      %v828 = vpop.f32.mrb[0].mxu0
      %v829 = vadd.f32 0.0, %v828
      %v830 = vpop.f32.mrb[0].mxu0
      %831 = vdwg.mxu0
      %v832 = vadd.f32 %v578, %v770
      %v833 = vadd.f32 %v581, %v773
      %v834 = vadd.f32 %v586, %v778
      %v835 = vadd.f32 %v589, %v781
      %v836 = vadd.f32 %v594, %v786
      %v837 = vadd.f32 %v597, %v789
      %v838 = vadd.f32 %v602, %v794
      %v839 = vadd.f32 %v605, %v797
      %v840 = vadd.f32 %v610, %v802
      %v841 = vadd.f32 %v613, %v805
      %v842 = vadd.f32 %v618, %v810
      %v843 = vadd.f32 %v621, %v813
      %v844 = vadd.f32 %v626, %v818
      %v845 = vadd.f32 %v629, %v821
      %v846 = vadd.f32 %v634, %v826
      %v847 = vadd.f32 %v637, %v829
      %v848 = vld [vmem:[%s165 + $0x40] sm:$0x3]
      %s849 = scalar_lea.vmem %s1, 192
      %v850 = vld [vmem:[%s849] sm:$0xf]
      %v851 = vld [vmem:[%s849 + $0x4] sm:$0xf]
      %v852 = vld [vmem:[%s849 + $0x8] sm:$0xf]
      %v853 = vld [vmem:[%s849 + $0xc] sm:$0xf]
      %v854 = vld [vmem:[%s849 + $0x10] sm:$0xf]
      %v855 = vld [vmem:[%s849 + $0x14] sm:$0xf]
      %v856 = vld [vmem:[%s849 + $0x18] sm:$0xf]
      %v857 = vld [vmem:[%s849 + $0x1c] sm:$0xf]
      %v858 = vld [vmem:[%s849 + $0x20] sm:$0xf]
      %v859 = vld [vmem:[%s849 + $0x24] sm:$0xf]
      %v860 = vld [vmem:[%s849 + $0x28] sm:$0xf]
      %v861 = vld [vmem:[%s849 + $0x2c] sm:$0xf]
      %v862 = vld [vmem:[%s849 + $0x30] sm:$0xf]
      %v863 = vld [vmem:[%s849 + $0x34] sm:$0xf]
      %v864 = vld [vmem:[%s849 + $0x38] sm:$0xf]
      %v865 = vld [vmem:[%s849 + $0x3c] sm:$0xf]
      %v867 = vunpack.c.l.b16 %v848
      %v868 = vpack.c.b16 %v867, %v867
      %vm869 = vsmask.f32 6400
      %v871 = vshrl.u32 %v660, 16
      %v873 = vrot.slane %v871, 1
      %v874 = vshll.u32 %v660, 16
      %v876 = vrot.slane %v874, 2
      %v877 = vor.u32 %v873, %v876
      %v878 = vrot.slane %v278, 1
      %v879 = vrot.slane %v274, 2
      %v880 = vor.u32 %v878, %v879
      %v881 = vsel %vm869, %v877, %v880
      %v882 = vrot.slane %v286, 1
      %v883 = vrot.slane %v282, 2
      %v884 = vor.u32 %v882, %v883
      %v885 = vsel %vm869, %v880, %v884
      %v886 = vrot.slane %v294, 1
      %v887 = vrot.slane %v290, 2
      %v888 = vor.u32 %v886, %v887
      %v889 = vsel %vm869, %v884, %v888
      %v890 = vrot.slane %v302, 1
      %v891 = vrot.slane %v298, 2
      %v892 = vor.u32 %v890, %v891
      %v893 = vsel %vm869, %v888, %v892
      %v894 = vrot.slane %v310, 1
      %v895 = vrot.slane %v306, 2
      %v896 = vor.u32 %v894, %v895
      %v897 = vsel %vm869, %v892, %v896
      %v898 = vrot.slane %v318, 1
      %v899 = vrot.slane %v314, 2
      %v900 = vor.u32 %v898, %v899
      %v901 = vsel %vm869, %v896, %v900
      %v902 = vrot.slane %v326, 1
      %v903 = vrot.slane %v322, 2
      %v904 = vor.u32 %v902, %v903
      %v905 = vsel %vm869, %v900, %v904
      %v907 = vshrl.u32 %v868, 16
      %v909 = vrot.slane %v907, 1
      %v910 = vshll.u32 %v868, 16
      %v912 = vrot.slane %v910, 2
      %v913 = vor.u32 %v909, %v912
      %v914 = vsel %vm869, %v904, %v913
      %v939 = vunpack.c.l.b16 %v850
      %v940 = vunpack.c.l.b16 %v851
      %v941 = vunpack.c.l.b16 %v852
      %v942 = vunpack.c.l.b16 %v853
      %v943 = vunpack.c.l.b16 %v854
      %v944 = vunpack.c.l.b16 %v855
      %v945 = vunpack.c.l.b16 %v856
      %v946 = vunpack.c.l.b16 %v857
      %v947 = vunpack.c.l.b16 %v858
      %v948 = vunpack.c.l.b16 %v859
      %v949 = vunpack.c.l.b16 %v860
      %v950 = vunpack.c.l.b16 %v861
      %v951 = vunpack.c.l.b16 %v862
      %v952 = vunpack.c.l.b16 %v863
      %v953 = vunpack.c.l.b16 %v864
      %v954 = vunpack.c.l.b16 %v865
      %v955 = vpack.c.b16 %v940, %v939
      %v956 = vpack.c.b16 %v942, %v941
      %v957 = vpack.c.b16 %v944, %v943
      %v958 = vpack.c.b16 %v946, %v945
      %v959 = vpack.c.b16 %v948, %v947
      %v960 = vpack.c.b16 %v950, %v949
      %v961 = vpack.c.b16 %v952, %v951
      %v962 = vpack.c.b16 %v954, %v953
      %971 = vmatprep.subr.bf16.mxu0 0
      %972 = vmatpush1.bf16.msra.mxu0 %v955
      %973 = vmatprep.subr.bf16.mxu0 0
      %974 = vmatpush1.bf16.msra.mxu0 %v956
      %975 = vmatprep.subr.bf16.mxu0 0
      %976 = vmatpush1.bf16.msra.mxu0 %v957
      %977 = vmatprep.subr.bf16.mxu0 0
      %978 = vmatpush1.bf16.msra.mxu0 %v958
      %979 = vmatprep.subr.bf16.mxu0 0
      %980 = vmatpush1.bf16.msra.mxu0 %v959
      %981 = vmatprep.subr.bf16.mxu0 0
      %982 = vmatpush1.bf16.msra.mxu0 %v960
      %983 = vmatprep.subr.bf16.mxu0 0
      %984 = vmatpush1.bf16.msra.mxu0 %v961
      %985 = vmatprep.subr.bf16.mxu0 0
      %986 = vmatpush1.bf16.msra.mxu0 %v962
      %987 = vmatprep.subr.bf16.mxu0 0
      %988 = vmatpush1.bf16.msra.mxu0 0
      %989 = vmatprep.subr.bf16.mxu0 0
      %990 = vmatpush1.bf16.msra.mxu0 0
      %991 = vmatprep.subr.bf16.mxu0 0
      %992 = vmatpush1.bf16.msra.mxu0 0
      %993 = vmatprep.subr.bf16.mxu0 0
      %994 = vmatpush1.bf16.msra.mxu0 0
      %995 = vmatprep.subr.bf16.mxu0 0
      %996 = vmatpush1.bf16.msra.mxu0 0
      %997 = vmatprep.subr.bf16.mxu0 0
      %998 = vmatpush1.bf16.msra.mxu0 0
      %999 = vmatprep.subr.bf16.mxu0 0
      %1000 = vmatpush1.bf16.msra.mxu0 0
      %1001 = vmatprep.subr.bf16.mxu0 0
      %1002 = vmatpush1.bf16.msra.mxu0 0
      %1003 = vmatprep.mubr.bf16.mxu0 0
      %1004 = vmatmul.mubr.bf16.gmra.mrb[0].mxu0 %v881
      %v1005 = vpop.f32.mrb[0].mxu0
      %v1006 = vadd.f32 0.0, %v1005
      %v1007 = vpop.f32.mrb[0].mxu0
      %v1008 = vpop.f32.mrb[0].mxu0
      %v1009 = vadd.f32 0.0, %v1008
      %v1010 = vpop.f32.mrb[0].mxu0
      %1011 = vmatprep.mubr.bf16.mxu0 0
      %1012 = vmatmul.mubr.bf16.gmra.mrb[0].mxu0 %v885
      %v1013 = vpop.f32.mrb[0].mxu0
      %v1014 = vadd.f32 0.0, %v1013
      %v1015 = vpop.f32.mrb[0].mxu0
      %v1016 = vpop.f32.mrb[0].mxu0
      %v1017 = vadd.f32 0.0, %v1016
      %v1018 = vpop.f32.mrb[0].mxu0
      %1019 = vmatprep.mubr.bf16.mxu0 0
      %1020 = vmatmul.mubr.bf16.gmra.mrb[0].mxu0 %v889
      %v1021 = vpop.f32.mrb[0].mxu0
      %v1022 = vadd.f32 0.0, %v1021
      %v1023 = vpop.f32.mrb[0].mxu0
      %v1024 = vpop.f32.mrb[0].mxu0
      %v1025 = vadd.f32 0.0, %v1024
      %v1026 = vpop.f32.mrb[0].mxu0
      %1027 = vmatprep.mubr.bf16.mxu0 0
      %1028 = vmatmul.mubr.bf16.gmra.mrb[0].mxu0 %v893
      %v1029 = vpop.f32.mrb[0].mxu0
      %v1030 = vadd.f32 0.0, %v1029
      %v1031 = vpop.f32.mrb[0].mxu0
      %v1032 = vpop.f32.mrb[0].mxu0
      %v1033 = vadd.f32 0.0, %v1032
      %v1034 = vpop.f32.mrb[0].mxu0
      %1035 = vmatprep.mubr.bf16.mxu0 0
      %1036 = vmatmul.mubr.bf16.gmra.mrb[0].mxu0 %v897
      %v1037 = vpop.f32.mrb[0].mxu0
      %v1038 = vadd.f32 0.0, %v1037
      %v1039 = vpop.f32.mrb[0].mxu0
      %v1040 = vpop.f32.mrb[0].mxu0
      %v1041 = vadd.f32 0.0, %v1040
      %v1042 = vpop.f32.mrb[0].mxu0
      %1043 = vmatprep.mubr.bf16.mxu0 0
      %1044 = vmatmul.mubr.bf16.gmra.mrb[0].mxu0 %v901
      %v1045 = vpop.f32.mrb[0].mxu0
      %v1046 = vadd.f32 0.0, %v1045
      %v1047 = vpop.f32.mrb[0].mxu0
      %v1048 = vpop.f32.mrb[0].mxu0
      %v1049 = vadd.f32 0.0, %v1048
      %v1050 = vpop.f32.mrb[0].mxu0
      %1051 = vmatprep.mubr.bf16.mxu0 0
      %1052 = vmatmul.mubr.bf16.gmra.mrb[0].mxu0 %v905
      %v1053 = vpop.f32.mrb[0].mxu0
      %v1054 = vadd.f32 0.0, %v1053
      %v1055 = vpop.f32.mrb[0].mxu0
      %v1056 = vpop.f32.mrb[0].mxu0
      %v1057 = vadd.f32 0.0, %v1056
      %v1058 = vpop.f32.mrb[0].mxu0
      %1059 = vmatprep.mubr.bf16.mxu0 0
      %1060 = vmatmul.mubr.bf16.gmra.mrb[0].mxu0 %v914
      %v1061 = vpop.f32.mrb[0].mxu0
      %v1062 = vadd.f32 0.0, %v1061
      %v1063 = vpop.f32.mrb[0].mxu0
      %v1064 = vpop.f32.mrb[0].mxu0
      %v1065 = vadd.f32 0.0, %v1064
      %v1066 = vpop.f32.mrb[0].mxu0
      %1067 = vdwg.mxu0
      %v1068 = vadd.f32 %v832, %v1006
      %v1069 = vadd.f32 %v833, %v1009
      %v1070 = vadd.f32 %v834, %v1014
      %v1071 = vadd.f32 %v835, %v1017
      %v1072 = vadd.f32 %v836, %v1022
      %v1073 = vadd.f32 %v837, %v1025
      %v1074 = vadd.f32 %v838, %v1030
      %v1075 = vadd.f32 %v839, %v1033
      %v1076 = vadd.f32 %v840, %v1038
      %v1077 = vadd.f32 %v841, %v1041
      %v1078 = vadd.f32 %v842, %v1046
      %v1079 = vadd.f32 %v843, %v1049
      %v1080 = vadd.f32 %v844, %v1054
      %v1081 = vadd.f32 %v845, %v1057
      %v1082 = vadd.f32 %v846, %v1062
      %v1083 = vadd.f32 %v847, %v1065
      %v1084 = vld [vmem:[%s165 + $0x8] sm:$0xf]
      %v1085 = vld [vmem:[%s165 + $0xc] sm:$0xf]
      %v1086 = vld [vmem:[%s165 + $0x10] sm:$0xf]
      %v1087 = vld [vmem:[%s165 + $0x14] sm:$0xf]
      %v1088 = vld [vmem:[%s165 + $0x18] sm:$0xf]
      %v1089 = vld [vmem:[%s165 + $0x1c] sm:$0xf]
      %v1090 = vld [vmem:[%s165 + $0x20] sm:$0xf]
      %v1091 = vld [vmem:[%s165 + $0x24] sm:$0xf]
      %v1092 = vld [vmem:[%s165 + $0x28] sm:$0xf]
      %v1093 = vld [vmem:[%s165 + $0x2c] sm:$0xf]
      %v1094 = vld [vmem:[%s165 + $0x30] sm:$0xf]
      %v1095 = vld [vmem:[%s165 + $0x34] sm:$0xf]
      %v1096 = vld [vmem:[%s165 + $0x38] sm:$0xf]
      %v1097 = vld [vmem:[%s165 + $0x3c] sm:$0xf]
      %v1098 = vld [vmem:[%s165 + $0x40] sm:$0xf]
      %v1099 = vld [vmem:[%s165 + $0x44] sm:$0xf]
      %s1100 = scalar_lea.vmem %s1, 256
      %v1101 = vld [vmem:[%s1100] sm:$0xf]
      %v1102 = vld [vmem:[%s1100 + $0x4] sm:$0xf]
      %v1103 = vld [vmem:[%s1100 + $0x8] sm:$0xf]
      %v1104 = vld [vmem:[%s1100 + $0xc] sm:$0xf]
      %v1105 = vld [vmem:[%s1100 + $0x10] sm:$0xf]
      %v1106 = vld [vmem:[%s1100 + $0x14] sm:$0xf]
      %v1107 = vld [vmem:[%s1100 + $0x18] sm:$0xf]
      %v1108 = vld [vmem:[%s1100 + $0x1c] sm:$0xf]
      %v1109 = vld [vmem:[%s1100 + $0x20] sm:$0xf]
      %v1110 = vld [vmem:[%s1100 + $0x24] sm:$0xf]
      %v1111 = vld [vmem:[%s1100 + $0x28] sm:$0xf]
      %v1112 = vld [vmem:[%s1100 + $0x2c] sm:$0xf]
      %v1113 = vld [vmem:[%s1100 + $0x30] sm:$0xf]
      %v1114 = vld [vmem:[%s1100 + $0x34] sm:$0xf]
      %v1115 = vld [vmem:[%s1100 + $0x38] sm:$0xf]
      %v1116 = vld [vmem:[%s1100 + $0x3c] sm:$0xf]
      %v1133 = vunpack.c.l.b16 %v1084
      %v1134 = vunpack.c.l.b16 %v1085
      %v1135 = vunpack.c.l.b16 %v1086
      %v1136 = vunpack.c.l.b16 %v1087
      %v1137 = vunpack.c.l.b16 %v1088
      %v1138 = vunpack.c.l.b16 %v1089
      %v1139 = vunpack.c.l.b16 %v1090
      %v1140 = vunpack.c.l.b16 %v1091
      %v1141 = vunpack.c.l.b16 %v1092
      %v1142 = vunpack.c.l.b16 %v1093
      %v1143 = vunpack.c.l.b16 %v1094
      %v1144 = vunpack.c.l.b16 %v1095
      %v1145 = vunpack.c.l.b16 %v1096
      %v1146 = vunpack.c.l.b16 %v1097
      %v1147 = vunpack.c.l.b16 %v1098
      %v1148 = vunpack.c.l.b16 %v1099
      %v1149 = vpack.c.b16 %v1134, %v1133
      %v1150 = vpack.c.b16 %v1136, %v1135
      %v1151 = vpack.c.b16 %v1138, %v1137
      %v1152 = vpack.c.b16 %v1140, %v1139
      %v1153 = vpack.c.b16 %v1142, %v1141
      %v1154 = vpack.c.b16 %v1144, %v1143
      %v1155 = vpack.c.b16 %v1146, %v1145
      %v1156 = vpack.c.b16 %v1148, %v1147
      %v1181 = vunpack.c.l.b16 %v1101
      %v1182 = vunpack.c.l.b16 %v1102
      %v1183 = vunpack.c.l.b16 %v1103
      %v1184 = vunpack.c.l.b16 %v1104
      %v1185 = vunpack.c.l.b16 %v1105
      %v1186 = vunpack.c.l.b16 %v1106
      %v1187 = vunpack.c.l.b16 %v1107
      %v1188 = vunpack.c.l.b16 %v1108
      %v1189 = vunpack.c.l.b16 %v1109
      %v1190 = vunpack.c.l.b16 %v1110
      %v1191 = vunpack.c.l.b16 %v1111
      %v1192 = vunpack.c.l.b16 %v1112
      %v1193 = vunpack.c.l.b16 %v1113
      %v1194 = vunpack.c.l.b16 %v1114
      %v1195 = vunpack.c.l.b16 %v1115
      %v1196 = vunpack.c.l.b16 %v1116
      %v1197 = vpack.c.b16 %v1182, %v1181
      %v1198 = vpack.c.b16 %v1184, %v1183
      %v1199 = vpack.c.b16 %v1186, %v1185
      %v1200 = vpack.c.b16 %v1188, %v1187
      %v1201 = vpack.c.b16 %v1190, %v1189
      %v1202 = vpack.c.b16 %v1192, %v1191
      %v1203 = vpack.c.b16 %v1194, %v1193
      %v1204 = vpack.c.b16 %v1196, %v1195
      %1213 = vmatprep.subr.bf16.mxu0 0
      %1214 = vmatpush1.bf16.msra.mxu0 %v1197
      %1215 = vmatprep.subr.bf16.mxu0 0
      %1216 = vmatpush1.bf16.msra.mxu0 %v1198
      %1217 = vmatprep.subr.bf16.mxu0 0
      %1218 = vmatpush1.bf16.msra.mxu0 %v1199
      %1219 = vmatprep.subr.bf16.mxu0 0
      %1220 = vmatpush1.bf16.msra.mxu0 %v1200
      %1221 = vmatprep.subr.bf16.mxu0 0
      %1222 = vmatpush1.bf16.msra.mxu0 %v1201
      %1223 = vmatprep.subr.bf16.mxu0 0
      %1224 = vmatpush1.bf16.msra.mxu0 %v1202
      %1225 = vmatprep.subr.bf16.mxu0 0
      %1226 = vmatpush1.bf16.msra.mxu0 %v1203
      %1227 = vmatprep.subr.bf16.mxu0 0
      %1228 = vmatpush1.bf16.msra.mxu0 %v1204
      %1229 = vmatprep.subr.bf16.mxu0 0
      %1230 = vmatpush1.bf16.msra.mxu0 0
      %1231 = vmatprep.subr.bf16.mxu0 0
      %1232 = vmatpush1.bf16.msra.mxu0 0
      %1233 = vmatprep.subr.bf16.mxu0 0
      %1234 = vmatpush1.bf16.msra.mxu0 0
      %1235 = vmatprep.subr.bf16.mxu0 0
      %1236 = vmatpush1.bf16.msra.mxu0 0
      %1237 = vmatprep.subr.bf16.mxu0 0
      %1238 = vmatpush1.bf16.msra.mxu0 0
      %1239 = vmatprep.subr.bf16.mxu0 0
      %1240 = vmatpush1.bf16.msra.mxu0 0
      %1241 = vmatprep.subr.bf16.mxu0 0
      %1242 = vmatpush1.bf16.msra.mxu0 0
      %1243 = vmatprep.subr.bf16.mxu0 0
      %1244 = vmatpush1.bf16.msra.mxu0 0
      %1245 = vmatprep.mubr.bf16.mxu0 0
      %1246 = vmatmul.mubr.bf16.gmra.mrb[0].mxu0 %v1149
      %v1247 = vpop.f32.mrb[0].mxu0
      %v1248 = vadd.f32 0.0, %v1247
      %v1249 = vpop.f32.mrb[0].mxu0
      %v1250 = vpop.f32.mrb[0].mxu0
      %v1251 = vadd.f32 0.0, %v1250
      %v1252 = vpop.f32.mrb[0].mxu0
      %1253 = vmatprep.mubr.bf16.mxu0 0
      %1254 = vmatmul.mubr.bf16.gmra.mrb[0].mxu0 %v1150
      %v1255 = vpop.f32.mrb[0].mxu0
      %v1256 = vadd.f32 0.0, %v1255
      %v1257 = vpop.f32.mrb[0].mxu0
      %v1258 = vpop.f32.mrb[0].mxu0
      %v1259 = vadd.f32 0.0, %v1258
      %v1260 = vpop.f32.mrb[0].mxu0
      %1261 = vmatprep.mubr.bf16.mxu0 0
      %1262 = vmatmul.mubr.bf16.gmra.mrb[0].mxu0 %v1151
      %v1263 = vpop.f32.mrb[0].mxu0
      %v1264 = vadd.f32 0.0, %v1263
      %v1265 = vpop.f32.mrb[0].mxu0
      %v1266 = vpop.f32.mrb[0].mxu0
      %v1267 = vadd.f32 0.0, %v1266
      %v1268 = vpop.f32.mrb[0].mxu0
      %1269 = vmatprep.mubr.bf16.mxu0 0
      %1270 = vmatmul.mubr.bf16.gmra.mrb[0].mxu0 %v1152
      %v1271 = vpop.f32.mrb[0].mxu0
      %v1272 = vadd.f32 0.0, %v1271
      %v1273 = vpop.f32.mrb[0].mxu0
      %v1274 = vpop.f32.mrb[0].mxu0
      %v1275 = vadd.f32 0.0, %v1274
      %v1276 = vpop.f32.mrb[0].mxu0
      %1277 = vmatprep.mubr.bf16.mxu0 0
      %1278 = vmatmul.mubr.bf16.gmra.mrb[0].mxu0 %v1153
      %v1279 = vpop.f32.mrb[0].mxu0
      %v1280 = vadd.f32 0.0, %v1279
      %v1281 = vpop.f32.mrb[0].mxu0
      %v1282 = vpop.f32.mrb[0].mxu0
      %v1283 = vadd.f32 0.0, %v1282
      %v1284 = vpop.f32.mrb[0].mxu0
      %1285 = vmatprep.mubr.bf16.mxu0 0
      %1286 = vmatmul.mubr.bf16.gmra.mrb[0].mxu0 %v1154
      %v1287 = vpop.f32.mrb[0].mxu0
      %v1288 = vadd.f32 0.0, %v1287
      %v1289 = vpop.f32.mrb[0].mxu0
      %v1290 = vpop.f32.mrb[0].mxu0
      %v1291 = vadd.f32 0.0, %v1290
      %v1292 = vpop.f32.mrb[0].mxu0
      %1293 = vmatprep.mubr.bf16.mxu0 0
      %1294 = vmatmul.mubr.bf16.gmra.mrb[0].mxu0 %v1155
      %v1295 = vpop.f32.mrb[0].mxu0
      %v1296 = vadd.f32 0.0, %v1295
      %v1297 = vpop.f32.mrb[0].mxu0
      %v1298 = vpop.f32.mrb[0].mxu0
      %v1299 = vadd.f32 0.0, %v1298
      %v1300 = vpop.f32.mrb[0].mxu0
      %1301 = vmatprep.mubr.bf16.mxu0 0
      %1302 = vmatmul.mubr.bf16.gmra.mrb[0].mxu0 %v1156
      %v1303 = vpop.f32.mrb[0].mxu0
      %v1304 = vadd.f32 0.0, %v1303
      %v1305 = vpop.f32.mrb[0].mxu0
      %v1306 = vpop.f32.mrb[0].mxu0
      %v1307 = vadd.f32 0.0, %v1306
      %v1308 = vpop.f32.mrb[0].mxu0
      %1309 = vdwg.mxu0
      %v1310 = vadd.f32 %v1068, %v1248
      %v1311 = vadd.f32 %v1069, %v1251
      %v1312 = vadd.f32 %v1070, %v1256
      %v1313 = vadd.f32 %v1071, %v1259
      %v1314 = vadd.f32 %v1072, %v1264
      %v1315 = vadd.f32 %v1073, %v1267
      %v1316 = vadd.f32 %v1074, %v1272
      %v1317 = vadd.f32 %v1075, %v1275
      %v1318 = vadd.f32 %v1076, %v1280
      %v1319 = vadd.f32 %v1077, %v1283
      %v1320 = vadd.f32 %v1078, %v1288
      %v1321 = vadd.f32 %v1079, %v1291
      %v1322 = vadd.f32 %v1080, %v1296
      %v1323 = vadd.f32 %v1081, %v1299
      %v1324 = vadd.f32 %v1082, %v1304
      %v1325 = vadd.f32 %v1083, %v1307
      %v1326 = vld [vmem:[%s165 + $0x8] sm:$0xf]
      %v1327 = vld [vmem:[%s165 + $0xc] sm:$0xf]
      %v1328 = vld [vmem:[%s165 + $0x10] sm:$0xf]
      %v1329 = vld [vmem:[%s165 + $0x14] sm:$0xf]
      %v1330 = vld [vmem:[%s165 + $0x18] sm:$0xf]
      %v1331 = vld [vmem:[%s165 + $0x1c] sm:$0xf]
      %v1332 = vld [vmem:[%s165 + $0x20] sm:$0xf]
      %v1333 = vld [vmem:[%s165 + $0x24] sm:$0xf]
      %v1334 = vld [vmem:[%s165 + $0x28] sm:$0xf]
      %v1335 = vld [vmem:[%s165 + $0x2c] sm:$0xf]
      %v1336 = vld [vmem:[%s165 + $0x30] sm:$0xf]
      %v1337 = vld [vmem:[%s165 + $0x34] sm:$0xf]
      %v1338 = vld [vmem:[%s165 + $0x38] sm:$0xf]
      %v1339 = vld [vmem:[%s165 + $0x3c] sm:$0xf]
      %v1340 = vld [vmem:[%s165 + $0x40] sm:$0xf]
      %v1341 = vld [vmem:[%s165 + $0x44] sm:$0xf]
      %v1342 = vld [vmem:[%s165 + $0x48] sm:$0x1]
      %s1343 = scalar_lea.vmem %s1, 320
      %v1344 = vld [vmem:[%s1343] sm:$0xf]
      %v1345 = vld [vmem:[%s1343 + $0x4] sm:$0xf]
      %v1346 = vld [vmem:[%s1343 + $0x8] sm:$0xf]
      %v1347 = vld [vmem:[%s1343 + $0xc] sm:$0xf]
      %v1348 = vld [vmem:[%s1343 + $0x10] sm:$0xf]
      %v1349 = vld [vmem:[%s1343 + $0x14] sm:$0xf]
      %v1350 = vld [vmem:[%s1343 + $0x18] sm:$0xf]
      %v1351 = vld [vmem:[%s1343 + $0x1c] sm:$0xf]
      %v1352 = vld [vmem:[%s1343 + $0x20] sm:$0xf]
      %v1353 = vld [vmem:[%s1343 + $0x24] sm:$0xf]
      %v1354 = vld [vmem:[%s1343 + $0x28] sm:$0xf]
      %v1355 = vld [vmem:[%s1343 + $0x2c] sm:$0xf]
      %v1356 = vld [vmem:[%s1343 + $0x30] sm:$0xf]
      %v1357 = vld [vmem:[%s1343 + $0x34] sm:$0xf]
      %v1358 = vld [vmem:[%s1343 + $0x38] sm:$0xf]
      %v1359 = vld [vmem:[%s1343 + $0x3c] sm:$0xf]
      %v1377 = vunpack.c.l.b16 %v1326
      %v1378 = vunpack.c.l.b16 %v1327
      %v1379 = vunpack.c.l.b16 %v1328
      %v1380 = vunpack.c.l.b16 %v1329
      %v1381 = vunpack.c.l.b16 %v1330
      %v1382 = vunpack.c.l.b16 %v1331
      %v1383 = vunpack.c.l.b16 %v1332
      %v1384 = vunpack.c.l.b16 %v1333
      %v1385 = vunpack.c.l.b16 %v1334
      %v1386 = vunpack.c.l.b16 %v1335
      %v1387 = vunpack.c.l.b16 %v1336
      %v1388 = vunpack.c.l.b16 %v1337
      %v1389 = vunpack.c.l.b16 %v1338
      %v1390 = vunpack.c.l.b16 %v1339
      %v1391 = vunpack.c.l.b16 %v1340
      %v1392 = vunpack.c.l.b16 %v1341
      %v1393 = vunpack.c.l.b16 %v1342
      %v1394 = vpack.c.b16 %v1378, %v1377
      %v1395 = vpack.c.b16 %v1380, %v1379
      %v1396 = vpack.c.b16 %v1382, %v1381
      %v1397 = vpack.c.b16 %v1384, %v1383
      %v1398 = vpack.c.b16 %v1386, %v1385
      %v1399 = vpack.c.b16 %v1388, %v1387
      %v1400 = vpack.c.b16 %v1390, %v1389
      %v1401 = vpack.c.b16 %v1392, %v1391
      %v1402 = vpack.c.b16 %v1393, %v1393
      %v1404 = vshrl.u32 %v1394, 16
      %v1406 = vshll.u32 %v1394, 16
      %v1408 = vrot.slane %v1406, 1
      %v1409 = vor.u32 %v1404, %v1408
      %v1411 = vshll.u32 %v1395, 16
      %v1413 = vrot.slane %v1411, 1
      %v1414 = vsel %vm265, %v1409, %v1413
      %v1415 = vshrl.u32 %v1395, 16
      %v1417 = vor.u32 %v1415, %v1413
      %v1419 = vshll.u32 %v1396, 16
      %v1421 = vrot.slane %v1419, 1
      %v1422 = vsel %vm265, %v1417, %v1421
      %v1423 = vshrl.u32 %v1396, 16
      %v1425 = vor.u32 %v1423, %v1421
      %v1427 = vshll.u32 %v1397, 16
      %v1429 = vrot.slane %v1427, 1
      %v1430 = vsel %vm265, %v1425, %v1429
      %v1431 = vshrl.u32 %v1397, 16
      %v1433 = vor.u32 %v1431, %v1429
      %v1435 = vshll.u32 %v1398, 16
      %v1437 = vrot.slane %v1435, 1
      %v1438 = vsel %vm265, %v1433, %v1437
      %v1439 = vshrl.u32 %v1398, 16
      %v1441 = vor.u32 %v1439, %v1437
      %v1443 = vshll.u32 %v1399, 16
      %v1445 = vrot.slane %v1443, 1
      %v1446 = vsel %vm265, %v1441, %v1445
      %v1447 = vshrl.u32 %v1399, 16
      %v1449 = vor.u32 %v1447, %v1445
      %v1451 = vshll.u32 %v1400, 16
      %v1453 = vrot.slane %v1451, 1
      %v1454 = vsel %vm265, %v1449, %v1453
      %v1455 = vshrl.u32 %v1400, 16
      %v1457 = vor.u32 %v1455, %v1453
      %v1459 = vshll.u32 %v1401, 16
      %v1461 = vrot.slane %v1459, 1
      %v1462 = vsel %vm265, %v1457, %v1461
      %v1463 = vshrl.u32 %v1401, 16
      %v1465 = vor.u32 %v1463, %v1461
      %v1467 = vshll.u32 %v1402, 16
      %v1469 = vrot.slane %v1467, 1
      %v1470 = vsel %vm265, %v1465, %v1469
      %v1495 = vunpack.c.l.b16 %v1344
      %v1496 = vunpack.c.l.b16 %v1345
      %v1497 = vunpack.c.l.b16 %v1346
      %v1498 = vunpack.c.l.b16 %v1347
      %v1499 = vunpack.c.l.b16 %v1348
      %v1500 = vunpack.c.l.b16 %v1349
      %v1501 = vunpack.c.l.b16 %v1350
      %v1502 = vunpack.c.l.b16 %v1351
      %v1503 = vunpack.c.l.b16 %v1352
      %v1504 = vunpack.c.l.b16 %v1353
      %v1505 = vunpack.c.l.b16 %v1354
      %v1506 = vunpack.c.l.b16 %v1355
      %v1507 = vunpack.c.l.b16 %v1356
      %v1508 = vunpack.c.l.b16 %v1357
      %v1509 = vunpack.c.l.b16 %v1358
      %v1510 = vunpack.c.l.b16 %v1359
      %v1511 = vpack.c.b16 %v1496, %v1495
      %v1512 = vpack.c.b16 %v1498, %v1497
      %v1513 = vpack.c.b16 %v1500, %v1499
      %v1514 = vpack.c.b16 %v1502, %v1501
      %v1515 = vpack.c.b16 %v1504, %v1503
      %v1516 = vpack.c.b16 %v1506, %v1505
      %v1517 = vpack.c.b16 %v1508, %v1507
      %v1518 = vpack.c.b16 %v1510, %v1509
      %1527 = vmatprep.subr.bf16.mxu0 0
      %1528 = vmatpush1.bf16.msra.mxu0 %v1511
      %1529 = vmatprep.subr.bf16.mxu0 0
      %1530 = vmatpush1.bf16.msra.mxu0 %v1512
      %1531 = vmatprep.subr.bf16.mxu0 0
      %1532 = vmatpush1.bf16.msra.mxu0 %v1513
      %1533 = vmatprep.subr.bf16.mxu0 0
      %1534 = vmatpush1.bf16.msra.mxu0 %v1514
      %1535 = vmatprep.subr.bf16.mxu0 0
      %1536 = vmatpush1.bf16.msra.mxu0 %v1515
      %1537 = vmatprep.subr.bf16.mxu0 0
      %1538 = vmatpush1.bf16.msra.mxu0 %v1516
      %1539 = vmatprep.subr.bf16.mxu0 0
      %1540 = vmatpush1.bf16.msra.mxu0 %v1517
      %1541 = vmatprep.subr.bf16.mxu0 0
      %1542 = vmatpush1.bf16.msra.mxu0 %v1518
      %1543 = vmatprep.subr.bf16.mxu0 0
      %1544 = vmatpush1.bf16.msra.mxu0 0
      %1545 = vmatprep.subr.bf16.mxu0 0
      %1546 = vmatpush1.bf16.msra.mxu0 0
      %1547 = vmatprep.subr.bf16.mxu0 0
      %1548 = vmatpush1.bf16.msra.mxu0 0
      %1549 = vmatprep.subr.bf16.mxu0 0
      %1550 = vmatpush1.bf16.msra.mxu0 0
      %1551 = vmatprep.subr.bf16.mxu0 0
      %1552 = vmatpush1.bf16.msra.mxu0 0
      %1553 = vmatprep.subr.bf16.mxu0 0
      %1554 = vmatpush1.bf16.msra.mxu0 0
      %1555 = vmatprep.subr.bf16.mxu0 0
      %1556 = vmatpush1.bf16.msra.mxu0 0
      %1557 = vmatprep.subr.bf16.mxu0 0
      %1558 = vmatpush1.bf16.msra.mxu0 0
      %1559 = vmatprep.mubr.bf16.mxu0 0
      %1560 = vmatmul.mubr.bf16.gmra.mrb[0].mxu0 %v1414
      %v1561 = vpop.f32.mrb[0].mxu0
      %v1562 = vadd.f32 0.0, %v1561
      %v1563 = vpop.f32.mrb[0].mxu0
      %v1564 = vpop.f32.mrb[0].mxu0
      %v1565 = vadd.f32 0.0, %v1564
      %v1566 = vpop.f32.mrb[0].mxu0
      %1567 = vmatprep.mubr.bf16.mxu0 0
      %1568 = vmatmul.mubr.bf16.gmra.mrb[0].mxu0 %v1422
      %v1569 = vpop.f32.mrb[0].mxu0
      %v1570 = vadd.f32 0.0, %v1569
      %v1571 = vpop.f32.mrb[0].mxu0
      %v1572 = vpop.f32.mrb[0].mxu0
      %v1573 = vadd.f32 0.0, %v1572
      %v1574 = vpop.f32.mrb[0].mxu0
      %1575 = vmatprep.mubr.bf16.mxu0 0
      %1576 = vmatmul.mubr.bf16.gmra.mrb[0].mxu0 %v1430
      %v1577 = vpop.f32.mrb[0].mxu0
      %v1578 = vadd.f32 0.0, %v1577
      %v1579 = vpop.f32.mrb[0].mxu0
      %v1580 = vpop.f32.mrb[0].mxu0
      %v1581 = vadd.f32 0.0, %v1580
      %v1582 = vpop.f32.mrb[0].mxu0
      %1583 = vmatprep.mubr.bf16.mxu0 0
      %1584 = vmatmul.mubr.bf16.gmra.mrb[0].mxu0 %v1438
      %v1585 = vpop.f32.mrb[0].mxu0
      %v1586 = vadd.f32 0.0, %v1585
      %v1587 = vpop.f32.mrb[0].mxu0
      %v1588 = vpop.f32.mrb[0].mxu0
      %v1589 = vadd.f32 0.0, %v1588
      %v1590 = vpop.f32.mrb[0].mxu0
      %1591 = vmatprep.mubr.bf16.mxu0 0
      %1592 = vmatmul.mubr.bf16.gmra.mrb[0].mxu0 %v1446
      %v1593 = vpop.f32.mrb[0].mxu0
      %v1594 = vadd.f32 0.0, %v1593
      %v1595 = vpop.f32.mrb[0].mxu0
      %v1596 = vpop.f32.mrb[0].mxu0
      %v1597 = vadd.f32 0.0, %v1596
      %v1598 = vpop.f32.mrb[0].mxu0
      %1599 = vmatprep.mubr.bf16.mxu0 0
      %1600 = vmatmul.mubr.bf16.gmra.mrb[0].mxu0 %v1454
      %v1601 = vpop.f32.mrb[0].mxu0
      %v1602 = vadd.f32 0.0, %v1601
      %v1603 = vpop.f32.mrb[0].mxu0
      %v1604 = vpop.f32.mrb[0].mxu0
      %v1605 = vadd.f32 0.0, %v1604
      %v1606 = vpop.f32.mrb[0].mxu0
      %1607 = vmatprep.mubr.bf16.mxu0 0
      %1608 = vmatmul.mubr.bf16.gmra.mrb[0].mxu0 %v1462
      %v1609 = vpop.f32.mrb[0].mxu0
      %v1610 = vadd.f32 0.0, %v1609
      %v1611 = vpop.f32.mrb[0].mxu0
      %v1612 = vpop.f32.mrb[0].mxu0
      %v1613 = vadd.f32 0.0, %v1612
      %v1614 = vpop.f32.mrb[0].mxu0
      %1615 = vmatprep.mubr.bf16.mxu0 0
      %1616 = vmatmul.mubr.bf16.gmra.mrb[0].mxu0 %v1470
      %v1617 = vpop.f32.mrb[0].mxu0
      %v1618 = vadd.f32 0.0, %v1617
      %v1619 = vpop.f32.mrb[0].mxu0
      %v1620 = vpop.f32.mrb[0].mxu0
      %v1621 = vadd.f32 0.0, %v1620
      %v1622 = vpop.f32.mrb[0].mxu0
      %1623 = vdwg.mxu0
      %v1624 = vadd.f32 %v1310, %v1562
      %v1625 = vadd.f32 %v1311, %v1565
      %v1626 = vadd.f32 %v1312, %v1570
      %v1627 = vadd.f32 %v1313, %v1573
      %v1628 = vadd.f32 %v1314, %v1578
      %v1629 = vadd.f32 %v1315, %v1581
      %v1630 = vadd.f32 %v1316, %v1586
      %v1631 = vadd.f32 %v1317, %v1589
      %v1632 = vadd.f32 %v1318, %v1594
      %v1633 = vadd.f32 %v1319, %v1597
      %v1634 = vadd.f32 %v1320, %v1602
      %v1635 = vadd.f32 %v1321, %v1605
      %v1636 = vadd.f32 %v1322, %v1610
      %v1637 = vadd.f32 %v1323, %v1613
      %v1638 = vadd.f32 %v1324, %v1618
      %v1639 = vadd.f32 %v1325, %v1621
      %v1640 = vld [vmem:[%s165 + $0x8] sm:$0xe]
      %s1641 = scalar_lea.vmem %s1, 384
      %v1642 = vld [vmem:[%s1641] sm:$0xf]
      %v1643 = vld [vmem:[%s1641 + $0x4] sm:$0xf]
      %v1644 = vld [vmem:[%s1641 + $0x8] sm:$0xf]
      %v1645 = vld [vmem:[%s1641 + $0xc] sm:$0xf]
      %v1646 = vld [vmem:[%s1641 + $0x10] sm:$0xf]
      %v1647 = vld [vmem:[%s1641 + $0x14] sm:$0xf]
      %v1648 = vld [vmem:[%s1641 + $0x18] sm:$0xf]
      %v1649 = vld [vmem:[%s1641 + $0x1c] sm:$0xf]
      %v1650 = vld [vmem:[%s1641 + $0x20] sm:$0xf]
      %v1651 = vld [vmem:[%s1641 + $0x24] sm:$0xf]
      %v1652 = vld [vmem:[%s1641 + $0x28] sm:$0xf]
      %v1653 = vld [vmem:[%s1641 + $0x2c] sm:$0xf]
      %v1654 = vld [vmem:[%s1641 + $0x30] sm:$0xf]
      %v1655 = vld [vmem:[%s1641 + $0x34] sm:$0xf]
      %v1656 = vld [vmem:[%s1641 + $0x38] sm:$0xf]
      %v1657 = vld [vmem:[%s1641 + $0x3c] sm:$0xf]
      %v1659 = vunpack.c.l.b16 %v1640
      %v1660 = vpack.c.b16 %v1378, %v1659
      %v1661 = vrot.slane %v1660, 1
      %v1662 = vrot.slane %v1395, 1
      %v1663 = vsel %vm661, %v1661, %v1662
      %v1664 = vrot.slane %v1396, 1
      %v1665 = vsel %vm661, %v1662, %v1664
      %v1666 = vrot.slane %v1397, 1
      %v1667 = vsel %vm661, %v1664, %v1666
      %v1668 = vrot.slane %v1398, 1
      %v1669 = vsel %vm661, %v1666, %v1668
      %v1670 = vrot.slane %v1399, 1
      %v1671 = vsel %vm661, %v1668, %v1670
      %v1672 = vrot.slane %v1400, 1
      %v1673 = vsel %vm661, %v1670, %v1672
      %v1674 = vrot.slane %v1401, 1
      %v1675 = vsel %vm661, %v1672, %v1674
      %v1676 = vrot.slane %v1402, 1
      %v1677 = vsel %vm661, %v1674, %v1676
      %v1702 = vunpack.c.l.b16 %v1642
      %v1703 = vunpack.c.l.b16 %v1643
      %v1704 = vunpack.c.l.b16 %v1644
      %v1705 = vunpack.c.l.b16 %v1645
      %v1706 = vunpack.c.l.b16 %v1646
      %v1707 = vunpack.c.l.b16 %v1647
      %v1708 = vunpack.c.l.b16 %v1648
      %v1709 = vunpack.c.l.b16 %v1649
      %v1710 = vunpack.c.l.b16 %v1650
      %v1711 = vunpack.c.l.b16 %v1651
      %v1712 = vunpack.c.l.b16 %v1652
      %v1713 = vunpack.c.l.b16 %v1653
      %v1714 = vunpack.c.l.b16 %v1654
      %v1715 = vunpack.c.l.b16 %v1655
      %v1716 = vunpack.c.l.b16 %v1656
      %v1717 = vunpack.c.l.b16 %v1657
      %v1718 = vpack.c.b16 %v1703, %v1702
      %v1719 = vpack.c.b16 %v1705, %v1704
      %v1720 = vpack.c.b16 %v1707, %v1706
      %v1721 = vpack.c.b16 %v1709, %v1708
      %v1722 = vpack.c.b16 %v1711, %v1710
      %v1723 = vpack.c.b16 %v1713, %v1712
      %v1724 = vpack.c.b16 %v1715, %v1714
      %v1725 = vpack.c.b16 %v1717, %v1716
      %1734 = vmatprep.subr.bf16.mxu0 0
      %1735 = vmatpush1.bf16.msra.mxu0 %v1718
      %1736 = vmatprep.subr.bf16.mxu0 0
      %1737 = vmatpush1.bf16.msra.mxu0 %v1719
      %1738 = vmatprep.subr.bf16.mxu0 0
      %1739 = vmatpush1.bf16.msra.mxu0 %v1720
      %1740 = vmatprep.subr.bf16.mxu0 0
      %1741 = vmatpush1.bf16.msra.mxu0 %v1721
      %1742 = vmatprep.subr.bf16.mxu0 0
      %1743 = vmatpush1.bf16.msra.mxu0 %v1722
      %1744 = vmatprep.subr.bf16.mxu0 0
      %1745 = vmatpush1.bf16.msra.mxu0 %v1723
      %1746 = vmatprep.subr.bf16.mxu0 0
      %1747 = vmatpush1.bf16.msra.mxu0 %v1724
      %1748 = vmatprep.subr.bf16.mxu0 0
      %1749 = vmatpush1.bf16.msra.mxu0 %v1725
      %1750 = vmatprep.subr.bf16.mxu0 0
      %1751 = vmatpush1.bf16.msra.mxu0 0
      %1752 = vmatprep.subr.bf16.mxu0 0
      %1753 = vmatpush1.bf16.msra.mxu0 0
      %1754 = vmatprep.subr.bf16.mxu0 0
      %1755 = vmatpush1.bf16.msra.mxu0 0
      %1756 = vmatprep.subr.bf16.mxu0 0
      %1757 = vmatpush1.bf16.msra.mxu0 0
      %1758 = vmatprep.subr.bf16.mxu0 0
      %1759 = vmatpush1.bf16.msra.mxu0 0
      %1760 = vmatprep.subr.bf16.mxu0 0
      %1761 = vmatpush1.bf16.msra.mxu0 0
      %1762 = vmatprep.subr.bf16.mxu0 0
      %1763 = vmatpush1.bf16.msra.mxu0 0
      %1764 = vmatprep.subr.bf16.mxu0 0
      %1765 = vmatpush1.bf16.msra.mxu0 0
      %1766 = vmatprep.mubr.bf16.mxu0 0
      %1767 = vmatmul.mubr.bf16.gmra.mrb[0].mxu0 %v1663
      %v1768 = vpop.f32.mrb[0].mxu0
      %v1769 = vadd.f32 0.0, %v1768
      %v1770 = vpop.f32.mrb[0].mxu0
      %v1771 = vpop.f32.mrb[0].mxu0
      %v1772 = vadd.f32 0.0, %v1771
      %v1773 = vpop.f32.mrb[0].mxu0
      %1774 = vmatprep.mubr.bf16.mxu0 0
      %1775 = vmatmul.mubr.bf16.gmra.mrb[0].mxu0 %v1665
      %v1776 = vpop.f32.mrb[0].mxu0
      %v1777 = vadd.f32 0.0, %v1776
      %v1778 = vpop.f32.mrb[0].mxu0
      %v1779 = vpop.f32.mrb[0].mxu0
      %v1780 = vadd.f32 0.0, %v1779
      %v1781 = vpop.f32.mrb[0].mxu0
      %1782 = vmatprep.mubr.bf16.mxu0 0
      %1783 = vmatmul.mubr.bf16.gmra.mrb[0].mxu0 %v1667
      %v1784 = vpop.f32.mrb[0].mxu0
      %v1785 = vadd.f32 0.0, %v1784
      %v1786 = vpop.f32.mrb[0].mxu0
      %v1787 = vpop.f32.mrb[0].mxu0
      %v1788 = vadd.f32 0.0, %v1787
      %v1789 = vpop.f32.mrb[0].mxu0
      %1790 = vmatprep.mubr.bf16.mxu0 0
      %1791 = vmatmul.mubr.bf16.gmra.mrb[0].mxu0 %v1669
      %v1792 = vpop.f32.mrb[0].mxu0
      %v1793 = vadd.f32 0.0, %v1792
      %v1794 = vpop.f32.mrb[0].mxu0
      %v1795 = vpop.f32.mrb[0].mxu0
      %v1796 = vadd.f32 0.0, %v1795
      %v1797 = vpop.f32.mrb[0].mxu0
      %1798 = vmatprep.mubr.bf16.mxu0 0
      %1799 = vmatmul.mubr.bf16.gmra.mrb[0].mxu0 %v1671
      %v1800 = vpop.f32.mrb[0].mxu0
      %v1801 = vadd.f32 0.0, %v1800
      %v1802 = vpop.f32.mrb[0].mxu0
      %v1803 = vpop.f32.mrb[0].mxu0
      %v1804 = vadd.f32 0.0, %v1803
      %v1805 = vpop.f32.mrb[0].mxu0
      %1806 = vmatprep.mubr.bf16.mxu0 0
      %1807 = vmatmul.mubr.bf16.gmra.mrb[0].mxu0 %v1673
      %v1808 = vpop.f32.mrb[0].mxu0
      %v1809 = vadd.f32 0.0, %v1808
      %v1810 = vpop.f32.mrb[0].mxu0
      %v1811 = vpop.f32.mrb[0].mxu0
      %v1812 = vadd.f32 0.0, %v1811
      %v1813 = vpop.f32.mrb[0].mxu0
      %1814 = vmatprep.mubr.bf16.mxu0 0
      %1815 = vmatmul.mubr.bf16.gmra.mrb[0].mxu0 %v1675
      %v1816 = vpop.f32.mrb[0].mxu0
      %v1817 = vadd.f32 0.0, %v1816
      %v1818 = vpop.f32.mrb[0].mxu0
      %v1819 = vpop.f32.mrb[0].mxu0
      %v1820 = vadd.f32 0.0, %v1819
      %v1821 = vpop.f32.mrb[0].mxu0
      %1822 = vmatprep.mubr.bf16.mxu0 0
      %1823 = vmatmul.mubr.bf16.gmra.mrb[0].mxu0 %v1677
      %v1824 = vpop.f32.mrb[0].mxu0
      %v1825 = vadd.f32 0.0, %v1824
      %v1826 = vpop.f32.mrb[0].mxu0
      %v1827 = vpop.f32.mrb[0].mxu0
      %v1828 = vadd.f32 0.0, %v1827
      %v1829 = vpop.f32.mrb[0].mxu0
      %1830 = vdwg.mxu0
      %v1831 = vadd.f32 %v1624, %v1769
      %v1832 = vadd.f32 %v1625, %v1772
      %v1833 = vadd.f32 %v1626, %v1777
      %v1834 = vadd.f32 %v1627, %v1780
      %v1835 = vadd.f32 %v1628, %v1785
      %v1836 = vadd.f32 %v1629, %v1788
      %v1837 = vadd.f32 %v1630, %v1793
      %v1838 = vadd.f32 %v1631, %v1796
      %v1839 = vadd.f32 %v1632, %v1801
      %v1840 = vadd.f32 %v1633, %v1804
      %v1841 = vadd.f32 %v1634, %v1809
      %v1842 = vadd.f32 %v1635, %v1812
      %v1843 = vadd.f32 %v1636, %v1817
      %v1844 = vadd.f32 %v1637, %v1820
      %v1845 = vadd.f32 %v1638, %v1825
      %v1846 = vadd.f32 %v1639, %v1828
      %v1847 = vld [vmem:[%s165 + $0x48] sm:$0x3]
      %s1848 = scalar_lea.vmem %s1, 448
      %v1849 = vld [vmem:[%s1848] sm:$0xf]
      %v1850 = vld [vmem:[%s1848 + $0x4] sm:$0xf]
      %v1851 = vld [vmem:[%s1848 + $0x8] sm:$0xf]
      %v1852 = vld [vmem:[%s1848 + $0xc] sm:$0xf]
      %v1853 = vld [vmem:[%s1848 + $0x10] sm:$0xf]
      %v1854 = vld [vmem:[%s1848 + $0x14] sm:$0xf]
      %v1855 = vld [vmem:[%s1848 + $0x18] sm:$0xf]
      %v1856 = vld [vmem:[%s1848 + $0x1c] sm:$0xf]
      %v1857 = vld [vmem:[%s1848 + $0x20] sm:$0xf]
      %v1858 = vld [vmem:[%s1848 + $0x24] sm:$0xf]
      %v1859 = vld [vmem:[%s1848 + $0x28] sm:$0xf]
      %v1860 = vld [vmem:[%s1848 + $0x2c] sm:$0xf]
      %v1861 = vld [vmem:[%s1848 + $0x30] sm:$0xf]
      %v1862 = vld [vmem:[%s1848 + $0x34] sm:$0xf]
      %v1863 = vld [vmem:[%s1848 + $0x38] sm:$0xf]
      %v1864 = vld [vmem:[%s1848 + $0x3c] sm:$0xf]
      %v1866 = vunpack.c.l.b16 %v1847
      %v1867 = vpack.c.b16 %v1866, %v1866
      %v1869 = vshrl.u32 %v1660, 16
      %v1871 = vrot.slane %v1869, 1
      %v1872 = vshll.u32 %v1660, 16
      %v1874 = vrot.slane %v1872, 2
      %v1875 = vor.u32 %v1871, %v1874
      %v1876 = vrot.slane %v1415, 1
      %v1877 = vrot.slane %v1411, 2
      %v1878 = vor.u32 %v1876, %v1877
      %v1879 = vsel %vm869, %v1875, %v1878
      %v1880 = vrot.slane %v1423, 1
      %v1881 = vrot.slane %v1419, 2
      %v1882 = vor.u32 %v1880, %v1881
      %v1883 = vsel %vm869, %v1878, %v1882
      %v1884 = vrot.slane %v1431, 1
      %v1885 = vrot.slane %v1427, 2
      %v1886 = vor.u32 %v1884, %v1885
      %v1887 = vsel %vm869, %v1882, %v1886
      %v1888 = vrot.slane %v1439, 1
      %v1889 = vrot.slane %v1435, 2
      %v1890 = vor.u32 %v1888, %v1889
      %v1891 = vsel %vm869, %v1886, %v1890
      %v1892 = vrot.slane %v1447, 1
      %v1893 = vrot.slane %v1443, 2
      %v1894 = vor.u32 %v1892, %v1893
      %v1895 = vsel %vm869, %v1890, %v1894
      %v1896 = vrot.slane %v1455, 1
      %v1897 = vrot.slane %v1451, 2
      %v1898 = vor.u32 %v1896, %v1897
      %v1899 = vsel %vm869, %v1894, %v1898
      %v1900 = vrot.slane %v1463, 1
      %v1901 = vrot.slane %v1459, 2
      %v1902 = vor.u32 %v1900, %v1901
      %v1903 = vsel %vm869, %v1898, %v1902
      %v1905 = vshrl.u32 %v1867, 16
      %v1907 = vrot.slane %v1905, 1
      %v1908 = vshll.u32 %v1867, 16
      %v1910 = vrot.slane %v1908, 2
      %v1911 = vor.u32 %v1907, %v1910
      %v1912 = vsel %vm869, %v1902, %v1911
      %v1937 = vunpack.c.l.b16 %v1849
      %v1938 = vunpack.c.l.b16 %v1850
      %v1939 = vunpack.c.l.b16 %v1851
      %v1940 = vunpack.c.l.b16 %v1852
      %v1941 = vunpack.c.l.b16 %v1853
      %v1942 = vunpack.c.l.b16 %v1854
      %v1943 = vunpack.c.l.b16 %v1855
      %v1944 = vunpack.c.l.b16 %v1856
      %v1945 = vunpack.c.l.b16 %v1857
      %v1946 = vunpack.c.l.b16 %v1858
      %v1947 = vunpack.c.l.b16 %v1859
      %v1948 = vunpack.c.l.b16 %v1860
      %v1949 = vunpack.c.l.b16 %v1861
      %v1950 = vunpack.c.l.b16 %v1862
      %v1951 = vunpack.c.l.b16 %v1863
      %v1952 = vunpack.c.l.b16 %v1864
      %v1953 = vpack.c.b16 %v1938, %v1937
      %v1954 = vpack.c.b16 %v1940, %v1939
      %v1955 = vpack.c.b16 %v1942, %v1941
      %v1956 = vpack.c.b16 %v1944, %v1943
      %v1957 = vpack.c.b16 %v1946, %v1945
      %v1958 = vpack.c.b16 %v1948, %v1947
      %v1959 = vpack.c.b16 %v1950, %v1949
      %v1960 = vpack.c.b16 %v1952, %v1951
      %1969 = vmatprep.subr.bf16.mxu0 0
      %1970 = vmatpush1.bf16.msra.mxu0 %v1953
      %1971 = vmatprep.subr.bf16.mxu0 0
      %1972 = vmatpush1.bf16.msra.mxu0 %v1954
      %1973 = vmatprep.subr.bf16.mxu0 0
      %1974 = vmatpush1.bf16.msra.mxu0 %v1955
      %1975 = vmatprep.subr.bf16.mxu0 0
      %1976 = vmatpush1.bf16.msra.mxu0 %v1956
      %1977 = vmatprep.subr.bf16.mxu0 0
      %1978 = vmatpush1.bf16.msra.mxu0 %v1957
      %1979 = vmatprep.subr.bf16.mxu0 0
      %1980 = vmatpush1.bf16.msra.mxu0 %v1958
      %1981 = vmatprep.subr.bf16.mxu0 0
      %1982 = vmatpush1.bf16.msra.mxu0 %v1959
      %1983 = vmatprep.subr.bf16.mxu0 0
      %1984 = vmatpush1.bf16.msra.mxu0 %v1960
      %1985 = vmatprep.subr.bf16.mxu0 0
      %1986 = vmatpush1.bf16.msra.mxu0 0
      %1987 = vmatprep.subr.bf16.mxu0 0
      %1988 = vmatpush1.bf16.msra.mxu0 0
      %1989 = vmatprep.subr.bf16.mxu0 0
      %1990 = vmatpush1.bf16.msra.mxu0 0
      %1991 = vmatprep.subr.bf16.mxu0 0
      %1992 = vmatpush1.bf16.msra.mxu0 0
      %1993 = vmatprep.subr.bf16.mxu0 0
      %1994 = vmatpush1.bf16.msra.mxu0 0
      %1995 = vmatprep.subr.bf16.mxu0 0
      %1996 = vmatpush1.bf16.msra.mxu0 0
      %1997 = vmatprep.subr.bf16.mxu0 0
      %1998 = vmatpush1.bf16.msra.mxu0 0
      %1999 = vmatprep.subr.bf16.mxu0 0
      %2000 = vmatpush1.bf16.msra.mxu0 0
      %2001 = vmatprep.mubr.bf16.mxu0 0
      %2002 = vmatmul.mubr.bf16.gmra.mrb[0].mxu0 %v1879
      %v2003 = vpop.f32.mrb[0].mxu0
      %v2004 = vadd.f32 0.0, %v2003
      %v2005 = vpop.f32.mrb[0].mxu0
      %v2006 = vpop.f32.mrb[0].mxu0
      %v2007 = vadd.f32 0.0, %v2006
      %v2008 = vpop.f32.mrb[0].mxu0
      %2009 = vmatprep.mubr.bf16.mxu0 0
      %2010 = vmatmul.mubr.bf16.gmra.mrb[0].mxu0 %v1883
      %v2011 = vpop.f32.mrb[0].mxu0
      %v2012 = vadd.f32 0.0, %v2011
      %v2013 = vpop.f32.mrb[0].mxu0
      %v2014 = vpop.f32.mrb[0].mxu0
      %v2015 = vadd.f32 0.0, %v2014
      %v2016 = vpop.f32.mrb[0].mxu0
      %2017 = vmatprep.mubr.bf16.mxu0 0
      %2018 = vmatmul.mubr.bf16.gmra.mrb[0].mxu0 %v1887
      %v2019 = vpop.f32.mrb[0].mxu0
      %v2020 = vadd.f32 0.0, %v2019
      %v2021 = vpop.f32.mrb[0].mxu0
      %v2022 = vpop.f32.mrb[0].mxu0
      %v2023 = vadd.f32 0.0, %v2022
      %v2024 = vpop.f32.mrb[0].mxu0
      %2025 = vmatprep.mubr.bf16.mxu0 0
      %2026 = vmatmul.mubr.bf16.gmra.mrb[0].mxu0 %v1891
      %v2027 = vpop.f32.mrb[0].mxu0
      %v2028 = vadd.f32 0.0, %v2027
      %v2029 = vpop.f32.mrb[0].mxu0
      %v2030 = vpop.f32.mrb[0].mxu0
      %v2031 = vadd.f32 0.0, %v2030
      %v2032 = vpop.f32.mrb[0].mxu0
      %2033 = vmatprep.mubr.bf16.mxu0 0
      %2034 = vmatmul.mubr.bf16.gmra.mrb[0].mxu0 %v1895
      %v2035 = vpop.f32.mrb[0].mxu0
      %v2036 = vadd.f32 0.0, %v2035
      %v2037 = vpop.f32.mrb[0].mxu0
      %v2038 = vpop.f32.mrb[0].mxu0
      %v2039 = vadd.f32 0.0, %v2038
      %v2040 = vpop.f32.mrb[0].mxu0
      %2041 = vmatprep.mubr.bf16.mxu0 0
      %2042 = vmatmul.mubr.bf16.gmra.mrb[0].mxu0 %v1899
      %v2043 = vpop.f32.mrb[0].mxu0
      %v2044 = vadd.f32 0.0, %v2043
      %v2045 = vpop.f32.mrb[0].mxu0
      %v2046 = vpop.f32.mrb[0].mxu0
      %v2047 = vadd.f32 0.0, %v2046
      %v2048 = vpop.f32.mrb[0].mxu0
      %2049 = vmatprep.mubr.bf16.mxu0 0
      %2050 = vmatmul.mubr.bf16.gmra.mrb[0].mxu0 %v1903
      %v2051 = vpop.f32.mrb[0].mxu0
      %v2052 = vadd.f32 0.0, %v2051
      %v2053 = vpop.f32.mrb[0].mxu0
      %v2054 = vpop.f32.mrb[0].mxu0
      %v2055 = vadd.f32 0.0, %v2054
      %v2056 = vpop.f32.mrb[0].mxu0
      %2057 = vmatprep.mubr.bf16.mxu0 0
      %2058 = vmatmul.mubr.bf16.gmra.mrb[0].mxu0 %v1912
      %v2059 = vpop.f32.mrb[0].mxu0
      %v2060 = vadd.f32 0.0, %v2059
      %v2061 = vpop.f32.mrb[0].mxu0
      %v2062 = vpop.f32.mrb[0].mxu0
      %v2063 = vadd.f32 0.0, %v2062
      %v2064 = vpop.f32.mrb[0].mxu0
      %2065 = vdwg.mxu0
      %v2066 = vadd.f32 %v1831, %v2004
      %v2067 = vadd.f32 %v1832, %v2007
      %v2068 = vadd.f32 %v1833, %v2012
      %v2069 = vadd.f32 %v1834, %v2015
      %v2070 = vadd.f32 %v1835, %v2020
      %v2071 = vadd.f32 %v1836, %v2023
      %v2072 = vadd.f32 %v1837, %v2028
      %v2073 = vadd.f32 %v1838, %v2031
      %v2074 = vadd.f32 %v1839, %v2036
      %v2075 = vadd.f32 %v1840, %v2039
      %v2076 = vadd.f32 %v1841, %v2044
      %v2077 = vadd.f32 %v1842, %v2047
      %v2078 = vadd.f32 %v1843, %v2052
      %v2079 = vadd.f32 %v1844, %v2055
      %v2080 = vadd.f32 %v1845, %v2060
      %v2081 = vadd.f32 %v1846, %v2063
      %v2082 = vld [vmem:[%s165 + $0x10] sm:$0xf]
      %v2083 = vld [vmem:[%s165 + $0x14] sm:$0xf]
      %v2084 = vld [vmem:[%s165 + $0x18] sm:$0xf]
      %v2085 = vld [vmem:[%s165 + $0x1c] sm:$0xf]
      %v2086 = vld [vmem:[%s165 + $0x20] sm:$0xf]
      %v2087 = vld [vmem:[%s165 + $0x24] sm:$0xf]
      %v2088 = vld [vmem:[%s165 + $0x28] sm:$0xf]
      %v2089 = vld [vmem:[%s165 + $0x2c] sm:$0xf]
      %v2090 = vld [vmem:[%s165 + $0x30] sm:$0xf]
      %v2091 = vld [vmem:[%s165 + $0x34] sm:$0xf]
      %v2092 = vld [vmem:[%s165 + $0x38] sm:$0xf]
      %v2093 = vld [vmem:[%s165 + $0x3c] sm:$0xf]
      %v2094 = vld [vmem:[%s165 + $0x40] sm:$0xf]
      %v2095 = vld [vmem:[%s165 + $0x44] sm:$0xf]
      %v2096 = vld [vmem:[%s165 + $0x48] sm:$0xf]
      %v2097 = vld [vmem:[%s165 + $0x4c] sm:$0xf]
      %s2098 = scalar_lea.vmem %s1, 512
      %v2099 = vld [vmem:[%s2098] sm:$0xf]
      %v2100 = vld [vmem:[%s2098 + $0x4] sm:$0xf]
      %v2101 = vld [vmem:[%s2098 + $0x8] sm:$0xf]
      %v2102 = vld [vmem:[%s2098 + $0xc] sm:$0xf]
      %v2103 = vld [vmem:[%s2098 + $0x10] sm:$0xf]
      %v2104 = vld [vmem:[%s2098 + $0x14] sm:$0xf]
      %v2105 = vld [vmem:[%s2098 + $0x18] sm:$0xf]
      %v2106 = vld [vmem:[%s2098 + $0x1c] sm:$0xf]
      %v2107 = vld [vmem:[%s2098 + $0x20] sm:$0xf]
      %v2108 = vld [vmem:[%s2098 + $0x24] sm:$0xf]
      %v2109 = vld [vmem:[%s2098 + $0x28] sm:$0xf]
      %v2110 = vld [vmem:[%s2098 + $0x2c] sm:$0xf]
      %v2111 = vld [vmem:[%s2098 + $0x30] sm:$0xf]
      %v2112 = vld [vmem:[%s2098 + $0x34] sm:$0xf]
      %v2113 = vld [vmem:[%s2098 + $0x38] sm:$0xf]
      %v2114 = vld [vmem:[%s2098 + $0x3c] sm:$0xf]
      %v2131 = vunpack.c.l.b16 %v2082
      %v2132 = vunpack.c.l.b16 %v2083
      %v2133 = vunpack.c.l.b16 %v2084
      %v2134 = vunpack.c.l.b16 %v2085
      %v2135 = vunpack.c.l.b16 %v2086
      %v2136 = vunpack.c.l.b16 %v2087
      %v2137 = vunpack.c.l.b16 %v2088
      %v2138 = vunpack.c.l.b16 %v2089
      %v2139 = vunpack.c.l.b16 %v2090
      %v2140 = vunpack.c.l.b16 %v2091
      %v2141 = vunpack.c.l.b16 %v2092
      %v2142 = vunpack.c.l.b16 %v2093
      %v2143 = vunpack.c.l.b16 %v2094
      %v2144 = vunpack.c.l.b16 %v2095
      %v2145 = vunpack.c.l.b16 %v2096
      %v2146 = vunpack.c.l.b16 %v2097
      %v2147 = vpack.c.b16 %v2132, %v2131
      %v2148 = vpack.c.b16 %v2134, %v2133
      %v2149 = vpack.c.b16 %v2136, %v2135
      %v2150 = vpack.c.b16 %v2138, %v2137
      %v2151 = vpack.c.b16 %v2140, %v2139
      %v2152 = vpack.c.b16 %v2142, %v2141
      %v2153 = vpack.c.b16 %v2144, %v2143
      %v2154 = vpack.c.b16 %v2146, %v2145
      %v2179 = vunpack.c.l.b16 %v2099
      %v2180 = vunpack.c.l.b16 %v2100
      %v2181 = vunpack.c.l.b16 %v2101
      %v2182 = vunpack.c.l.b16 %v2102
      %v2183 = vunpack.c.l.b16 %v2103
      %v2184 = vunpack.c.l.b16 %v2104
      %v2185 = vunpack.c.l.b16 %v2105
      %v2186 = vunpack.c.l.b16 %v2106
      %v2187 = vunpack.c.l.b16 %v2107
      %v2188 = vunpack.c.l.b16 %v2108
      %v2189 = vunpack.c.l.b16 %v2109
      %v2190 = vunpack.c.l.b16 %v2110
      %v2191 = vunpack.c.l.b16 %v2111
      %v2192 = vunpack.c.l.b16 %v2112
      %v2193 = vunpack.c.l.b16 %v2113
      %v2194 = vunpack.c.l.b16 %v2114
      %v2195 = vpack.c.b16 %v2180, %v2179
      %v2196 = vpack.c.b16 %v2182, %v2181
      %v2197 = vpack.c.b16 %v2184, %v2183
      %v2198 = vpack.c.b16 %v2186, %v2185
      %v2199 = vpack.c.b16 %v2188, %v2187
      %v2200 = vpack.c.b16 %v2190, %v2189
      %v2201 = vpack.c.b16 %v2192, %v2191
      %v2202 = vpack.c.b16 %v2194, %v2193
      %2211 = vmatprep.subr.bf16.mxu0 0
      %2212 = vmatpush1.bf16.msra.mxu0 %v2195
      %2213 = vmatprep.subr.bf16.mxu0 0
      %2214 = vmatpush1.bf16.msra.mxu0 %v2196
      %2215 = vmatprep.subr.bf16.mxu0 0
      %2216 = vmatpush1.bf16.msra.mxu0 %v2197
      %2217 = vmatprep.subr.bf16.mxu0 0
      %2218 = vmatpush1.bf16.msra.mxu0 %v2198
      %2219 = vmatprep.subr.bf16.mxu0 0
      %2220 = vmatpush1.bf16.msra.mxu0 %v2199
      %2221 = vmatprep.subr.bf16.mxu0 0
      %2222 = vmatpush1.bf16.msra.mxu0 %v2200
      %2223 = vmatprep.subr.bf16.mxu0 0
      %2224 = vmatpush1.bf16.msra.mxu0 %v2201
      %2225 = vmatprep.subr.bf16.mxu0 0
      %2226 = vmatpush1.bf16.msra.mxu0 %v2202
      %2227 = vmatprep.subr.bf16.mxu0 0
      %2228 = vmatpush1.bf16.msra.mxu0 0
      %2229 = vmatprep.subr.bf16.mxu0 0
      %2230 = vmatpush1.bf16.msra.mxu0 0
      %2231 = vmatprep.subr.bf16.mxu0 0
      %2232 = vmatpush1.bf16.msra.mxu0 0
      %2233 = vmatprep.subr.bf16.mxu0 0
      %2234 = vmatpush1.bf16.msra.mxu0 0
      %2235 = vmatprep.subr.bf16.mxu0 0
      %2236 = vmatpush1.bf16.msra.mxu0 0
      %2237 = vmatprep.subr.bf16.mxu0 0
      %2238 = vmatpush1.bf16.msra.mxu0 0
      %2239 = vmatprep.subr.bf16.mxu0 0
      %2240 = vmatpush1.bf16.msra.mxu0 0
      %2241 = vmatprep.subr.bf16.mxu0 0
      %2242 = vmatpush1.bf16.msra.mxu0 0
      %2243 = vmatprep.mubr.bf16.mxu0 0
      %2244 = vmatmul.mubr.bf16.gmra.mrb[0].mxu0 %v2147
      %v2245 = vpop.f32.mrb[0].mxu0
      %v2246 = vadd.f32 0.0, %v2245
      %v2247 = vpop.f32.mrb[0].mxu0
      %v2248 = vpop.f32.mrb[0].mxu0
      %v2249 = vadd.f32 0.0, %v2248
      %v2250 = vpop.f32.mrb[0].mxu0
      %2251 = vmatprep.mubr.bf16.mxu0 0
      %2252 = vmatmul.mubr.bf16.gmra.mrb[0].mxu0 %v2148
      %v2253 = vpop.f32.mrb[0].mxu0
      %v2254 = vadd.f32 0.0, %v2253
      %v2255 = vpop.f32.mrb[0].mxu0
      %v2256 = vpop.f32.mrb[0].mxu0
      %v2257 = vadd.f32 0.0, %v2256
      %v2258 = vpop.f32.mrb[0].mxu0
      %2259 = vmatprep.mubr.bf16.mxu0 0
      %2260 = vmatmul.mubr.bf16.gmra.mrb[0].mxu0 %v2149
      %v2261 = vpop.f32.mrb[0].mxu0
      %v2262 = vadd.f32 0.0, %v2261
      %v2263 = vpop.f32.mrb[0].mxu0
      %v2264 = vpop.f32.mrb[0].mxu0
      %v2265 = vadd.f32 0.0, %v2264
      %v2266 = vpop.f32.mrb[0].mxu0
      %2267 = vmatprep.mubr.bf16.mxu0 0
      %2268 = vmatmul.mubr.bf16.gmra.mrb[0].mxu0 %v2150
      %v2269 = vpop.f32.mrb[0].mxu0
      %v2270 = vadd.f32 0.0, %v2269
      %v2271 = vpop.f32.mrb[0].mxu0
      %v2272 = vpop.f32.mrb[0].mxu0
      %v2273 = vadd.f32 0.0, %v2272
      %v2274 = vpop.f32.mrb[0].mxu0
      %2275 = vmatprep.mubr.bf16.mxu0 0
      %2276 = vmatmul.mubr.bf16.gmra.mrb[0].mxu0 %v2151
      %v2277 = vpop.f32.mrb[0].mxu0
      %v2278 = vadd.f32 0.0, %v2277
      %v2279 = vpop.f32.mrb[0].mxu0
      %v2280 = vpop.f32.mrb[0].mxu0
      %v2281 = vadd.f32 0.0, %v2280
      %v2282 = vpop.f32.mrb[0].mxu0
      %2283 = vmatprep.mubr.bf16.mxu0 0
      %2284 = vmatmul.mubr.bf16.gmra.mrb[0].mxu0 %v2152
      %v2285 = vpop.f32.mrb[0].mxu0
      %v2286 = vadd.f32 0.0, %v2285
      %v2287 = vpop.f32.mrb[0].mxu0
      %v2288 = vpop.f32.mrb[0].mxu0
      %v2289 = vadd.f32 0.0, %v2288
      %v2290 = vpop.f32.mrb[0].mxu0
      %2291 = vmatprep.mubr.bf16.mxu0 0
      %2292 = vmatmul.mubr.bf16.gmra.mrb[0].mxu0 %v2153
      %v2293 = vpop.f32.mrb[0].mxu0
      %v2294 = vadd.f32 0.0, %v2293
      %v2295 = vpop.f32.mrb[0].mxu0
      %v2296 = vpop.f32.mrb[0].mxu0
      %v2297 = vadd.f32 0.0, %v2296
      %v2298 = vpop.f32.mrb[0].mxu0
      %2299 = vmatprep.mubr.bf16.mxu0 0
      %2300 = vmatmul.mubr.bf16.gmra.mrb[0].mxu0 %v2154
      %v2301 = vpop.f32.mrb[0].mxu0
      %v2302 = vadd.f32 0.0, %v2301
      %v2303 = vpop.f32.mrb[0].mxu0
      %v2304 = vpop.f32.mrb[0].mxu0
      %v2305 = vadd.f32 0.0, %v2304
      %v2306 = vpop.f32.mrb[0].mxu0
      %2307 = vdwg.mxu0
      %v2308 = vadd.f32 %v2066, %v2246
      %v2309 = vadd.f32 %v2067, %v2249
      %v2310 = vadd.f32 %v2068, %v2254
      %v2311 = vadd.f32 %v2069, %v2257
      %v2312 = vadd.f32 %v2070, %v2262
      %v2313 = vadd.f32 %v2071, %v2265
      %v2314 = vadd.f32 %v2072, %v2270
      %v2315 = vadd.f32 %v2073, %v2273
      %v2316 = vadd.f32 %v2074, %v2278
      %v2317 = vadd.f32 %v2075, %v2281
      %v2318 = vadd.f32 %v2076, %v2286
      %v2319 = vadd.f32 %v2077, %v2289
      %v2320 = vadd.f32 %v2078, %v2294
      %v2321 = vadd.f32 %v2079, %v2297
      %v2322 = vadd.f32 %v2080, %v2302
      %v2323 = vadd.f32 %v2081, %v2305
      %v2324 = vld [vmem:[%s165 + $0x10] sm:$0xf]
      %v2325 = vld [vmem:[%s165 + $0x14] sm:$0xf]
      %v2326 = vld [vmem:[%s165 + $0x18] sm:$0xf]
      %v2327 = vld [vmem:[%s165 + $0x1c] sm:$0xf]
      %v2328 = vld [vmem:[%s165 + $0x20] sm:$0xf]
      %v2329 = vld [vmem:[%s165 + $0x24] sm:$0xf]
      %v2330 = vld [vmem:[%s165 + $0x28] sm:$0xf]
      %v2331 = vld [vmem:[%s165 + $0x2c] sm:$0xf]
      %v2332 = vld [vmem:[%s165 + $0x30] sm:$0xf]
      %v2333 = vld [vmem:[%s165 + $0x34] sm:$0xf]
      %v2334 = vld [vmem:[%s165 + $0x38] sm:$0xf]
      %v2335 = vld [vmem:[%s165 + $0x3c] sm:$0xf]
      %v2336 = vld [vmem:[%s165 + $0x40] sm:$0xf]
      %v2337 = vld [vmem:[%s165 + $0x44] sm:$0xf]
      %v2338 = vld [vmem:[%s165 + $0x48] sm:$0xf]
      %v2339 = vld [vmem:[%s165 + $0x4c] sm:$0xf]
      %v2340 = vld [vmem:[%s165 + $0x50] sm:$0x1]
      %s2341 = scalar_lea.vmem %s1, 576
      %v2342 = vld [vmem:[%s2341] sm:$0xf]
      %v2343 = vld [vmem:[%s2341 + $0x4] sm:$0xf]
      %v2344 = vld [vmem:[%s2341 + $0x8] sm:$0xf]
      %v2345 = vld [vmem:[%s2341 + $0xc] sm:$0xf]
      %v2346 = vld [vmem:[%s2341 + $0x10] sm:$0xf]
      %v2347 = vld [vmem:[%s2341 + $0x14] sm:$0xf]
      %v2348 = vld [vmem:[%s2341 + $0x18] sm:$0xf]
      %v2349 = vld [vmem:[%s2341 + $0x1c] sm:$0xf]
      %v2350 = vld [vmem:[%s2341 + $0x20] sm:$0xf]
      %v2351 = vld [vmem:[%s2341 + $0x24] sm:$0xf]
      %v2352 = vld [vmem:[%s2341 + $0x28] sm:$0xf]
      %v2353 = vld [vmem:[%s2341 + $0x2c] sm:$0xf]
      %v2354 = vld [vmem:[%s2341 + $0x30] sm:$0xf]
      %v2355 = vld [vmem:[%s2341 + $0x34] sm:$0xf]
      %v2356 = vld [vmem:[%s2341 + $0x38] sm:$0xf]
      %v2357 = vld [vmem:[%s2341 + $0x3c] sm:$0xf]
      %v2375 = vunpack.c.l.b16 %v2324
      %v2376 = vunpack.c.l.b16 %v2325
      %v2377 = vunpack.c.l.b16 %v2326
      %v2378 = vunpack.c.l.b16 %v2327
      %v2379 = vunpack.c.l.b16 %v2328
      %v2380 = vunpack.c.l.b16 %v2329
      %v2381 = vunpack.c.l.b16 %v2330
      %v2382 = vunpack.c.l.b16 %v2331
      %v2383 = vunpack.c.l.b16 %v2332
      %v2384 = vunpack.c.l.b16 %v2333
      %v2385 = vunpack.c.l.b16 %v2334
      %v2386 = vunpack.c.l.b16 %v2335
      %v2387 = vunpack.c.l.b16 %v2336
      %v2388 = vunpack.c.l.b16 %v2337
      %v2389 = vunpack.c.l.b16 %v2338
      %v2390 = vunpack.c.l.b16 %v2339
      %v2391 = vunpack.c.l.b16 %v2340
      %v2392 = vpack.c.b16 %v2376, %v2375
      %v2393 = vpack.c.b16 %v2378, %v2377
      %v2394 = vpack.c.b16 %v2380, %v2379
      %v2395 = vpack.c.b16 %v2382, %v2381
      %v2396 = vpack.c.b16 %v2384, %v2383
      %v2397 = vpack.c.b16 %v2386, %v2385
      %v2398 = vpack.c.b16 %v2388, %v2387
      %v2399 = vpack.c.b16 %v2390, %v2389
      %v2400 = vpack.c.b16 %v2391, %v2391
      %v2402 = vshrl.u32 %v2392, 16
      %v2404 = vshll.u32 %v2392, 16
      %v2406 = vrot.slane %v2404, 1
      %v2407 = vor.u32 %v2402, %v2406
      %v2409 = vshll.u32 %v2393, 16
      %v2411 = vrot.slane %v2409, 1
      %v2412 = vsel %vm265, %v2407, %v2411
      %v2413 = vshrl.u32 %v2393, 16
      %v2415 = vor.u32 %v2413, %v2411
      %v2417 = vshll.u32 %v2394, 16
      %v2419 = vrot.slane %v2417, 1
      %v2420 = vsel %vm265, %v2415, %v2419
      %v2421 = vshrl.u32 %v2394, 16
      %v2423 = vor.u32 %v2421, %v2419
      %v2425 = vshll.u32 %v2395, 16
      %v2427 = vrot.slane %v2425, 1
      %v2428 = vsel %vm265, %v2423, %v2427
      %v2429 = vshrl.u32 %v2395, 16
      %v2431 = vor.u32 %v2429, %v2427
      %v2433 = vshll.u32 %v2396, 16
      %v2435 = vrot.slane %v2433, 1
      %v2436 = vsel %vm265, %v2431, %v2435
      %v2437 = vshrl.u32 %v2396, 16
      %v2439 = vor.u32 %v2437, %v2435
      %v2441 = vshll.u32 %v2397, 16
      %v2443 = vrot.slane %v2441, 1
      %v2444 = vsel %vm265, %v2439, %v2443
      %v2445 = vshrl.u32 %v2397, 16
      %v2447 = vor.u32 %v2445, %v2443
      %v2449 = vshll.u32 %v2398, 16
      %v2451 = vrot.slane %v2449, 1
      %v2452 = vsel %vm265, %v2447, %v2451
      %v2453 = vshrl.u32 %v2398, 16
      %v2455 = vor.u32 %v2453, %v2451
      %v2457 = vshll.u32 %v2399, 16
      %v2459 = vrot.slane %v2457, 1
      %v2460 = vsel %vm265, %v2455, %v2459
      %v2461 = vshrl.u32 %v2399, 16
      %v2463 = vor.u32 %v2461, %v2459
      %v2465 = vshll.u32 %v2400, 16
      %v2467 = vrot.slane %v2465, 1
      %v2468 = vsel %vm265, %v2463, %v2467
      %v2493 = vunpack.c.l.b16 %v2342
      %v2494 = vunpack.c.l.b16 %v2343
      %v2495 = vunpack.c.l.b16 %v2344
      %v2496 = vunpack.c.l.b16 %v2345
      %v2497 = vunpack.c.l.b16 %v2346
      %v2498 = vunpack.c.l.b16 %v2347
      %v2499 = vunpack.c.l.b16 %v2348
      %v2500 = vunpack.c.l.b16 %v2349
      %v2501 = vunpack.c.l.b16 %v2350
      %v2502 = vunpack.c.l.b16 %v2351
      %v2503 = vunpack.c.l.b16 %v2352
      %v2504 = vunpack.c.l.b16 %v2353
      %v2505 = vunpack.c.l.b16 %v2354
      %v2506 = vunpack.c.l.b16 %v2355
      %v2507 = vunpack.c.l.b16 %v2356
      %v2508 = vunpack.c.l.b16 %v2357
      %v2509 = vpack.c.b16 %v2494, %v2493
      %v2510 = vpack.c.b16 %v2496, %v2495
      %v2511 = vpack.c.b16 %v2498, %v2497
      %v2512 = vpack.c.b16 %v2500, %v2499
      %v2513 = vpack.c.b16 %v2502, %v2501
      %v2514 = vpack.c.b16 %v2504, %v2503
      %v2515 = vpack.c.b16 %v2506, %v2505
      %v2516 = vpack.c.b16 %v2508, %v2507
      %2525 = vmatprep.subr.bf16.mxu0 0
      %2526 = vmatpush1.bf16.msra.mxu0 %v2509
      %2527 = vmatprep.subr.bf16.mxu0 0
      %2528 = vmatpush1.bf16.msra.mxu0 %v2510
      %2529 = vmatprep.subr.bf16.mxu0 0
      %2530 = vmatpush1.bf16.msra.mxu0 %v2511
      %2531 = vmatprep.subr.bf16.mxu0 0
      %2532 = vmatpush1.bf16.msra.mxu0 %v2512
      %2533 = vmatprep.subr.bf16.mxu0 0
      %2534 = vmatpush1.bf16.msra.mxu0 %v2513
      %2535 = vmatprep.subr.bf16.mxu0 0
      %2536 = vmatpush1.bf16.msra.mxu0 %v2514
      %2537 = vmatprep.subr.bf16.mxu0 0
      %2538 = vmatpush1.bf16.msra.mxu0 %v2515
      %2539 = vmatprep.subr.bf16.mxu0 0
      %2540 = vmatpush1.bf16.msra.mxu0 %v2516
      %2541 = vmatprep.subr.bf16.mxu0 0
      %2542 = vmatpush1.bf16.msra.mxu0 0
      %2543 = vmatprep.subr.bf16.mxu0 0
      %2544 = vmatpush1.bf16.msra.mxu0 0
      %2545 = vmatprep.subr.bf16.mxu0 0
      %2546 = vmatpush1.bf16.msra.mxu0 0
      %2547 = vmatprep.subr.bf16.mxu0 0
      %2548 = vmatpush1.bf16.msra.mxu0 0
      %2549 = vmatprep.subr.bf16.mxu0 0
      %2550 = vmatpush1.bf16.msra.mxu0 0
      %2551 = vmatprep.subr.bf16.mxu0 0
      %2552 = vmatpush1.bf16.msra.mxu0 0
      %2553 = vmatprep.subr.bf16.mxu0 0
      %2554 = vmatpush1.bf16.msra.mxu0 0
      %2555 = vmatprep.subr.bf16.mxu0 0
      %2556 = vmatpush1.bf16.msra.mxu0 0
      %2557 = vmatprep.mubr.bf16.mxu0 0
      %2558 = vmatmul.mubr.bf16.gmra.mrb[0].mxu0 %v2412
      %v2559 = vpop.f32.mrb[0].mxu0
      %v2560 = vadd.f32 0.0, %v2559
      %v2561 = vpop.f32.mrb[0].mxu0
      %v2562 = vpop.f32.mrb[0].mxu0
      %v2563 = vadd.f32 0.0, %v2562
      %v2564 = vpop.f32.mrb[0].mxu0
      %2565 = vmatprep.mubr.bf16.mxu0 0
      %2566 = vmatmul.mubr.bf16.gmra.mrb[0].mxu0 %v2420
      %v2567 = vpop.f32.mrb[0].mxu0
      %v2568 = vadd.f32 0.0, %v2567
      %v2569 = vpop.f32.mrb[0].mxu0
      %v2570 = vpop.f32.mrb[0].mxu0
      %v2571 = vadd.f32 0.0, %v2570
      %v2572 = vpop.f32.mrb[0].mxu0
      %2573 = vmatprep.mubr.bf16.mxu0 0
      %2574 = vmatmul.mubr.bf16.gmra.mrb[0].mxu0 %v2428
      %v2575 = vpop.f32.mrb[0].mxu0
      %v2576 = vadd.f32 0.0, %v2575
      %v2577 = vpop.f32.mrb[0].mxu0
      %v2578 = vpop.f32.mrb[0].mxu0
      %v2579 = vadd.f32 0.0, %v2578
      %v2580 = vpop.f32.mrb[0].mxu0
      %2581 = vmatprep.mubr.bf16.mxu0 0
      %2582 = vmatmul.mubr.bf16.gmra.mrb[0].mxu0 %v2436
      %v2583 = vpop.f32.mrb[0].mxu0
      %v2584 = vadd.f32 0.0, %v2583
      %v2585 = vpop.f32.mrb[0].mxu0
      %v2586 = vpop.f32.mrb[0].mxu0
      %v2587 = vadd.f32 0.0, %v2586
      %v2588 = vpop.f32.mrb[0].mxu0
      %2589 = vmatprep.mubr.bf16.mxu0 0
      %2590 = vmatmul.mubr.bf16.gmra.mrb[0].mxu0 %v2444
      %v2591 = vpop.f32.mrb[0].mxu0
      %v2592 = vadd.f32 0.0, %v2591
      %v2593 = vpop.f32.mrb[0].mxu0
      %v2594 = vpop.f32.mrb[0].mxu0
      %v2595 = vadd.f32 0.0, %v2594
      %v2596 = vpop.f32.mrb[0].mxu0
      %2597 = vmatprep.mubr.bf16.mxu0 0
      %2598 = vmatmul.mubr.bf16.gmra.mrb[0].mxu0 %v2452
      %v2599 = vpop.f32.mrb[0].mxu0
      %v2600 = vadd.f32 0.0, %v2599
      %v2601 = vpop.f32.mrb[0].mxu0
      %v2602 = vpop.f32.mrb[0].mxu0
      %v2603 = vadd.f32 0.0, %v2602
      %v2604 = vpop.f32.mrb[0].mxu0
      %2605 = vmatprep.mubr.bf16.mxu0 0
      %2606 = vmatmul.mubr.bf16.gmra.mrb[0].mxu0 %v2460
      %v2607 = vpop.f32.mrb[0].mxu0
      %v2608 = vadd.f32 0.0, %v2607
      %v2609 = vpop.f32.mrb[0].mxu0
      %v2610 = vpop.f32.mrb[0].mxu0
      %v2611 = vadd.f32 0.0, %v2610
      %v2612 = vpop.f32.mrb[0].mxu0
      %2613 = vmatprep.mubr.bf16.mxu0 0
      %2614 = vmatmul.mubr.bf16.gmra.mrb[0].mxu0 %v2468
      %v2615 = vpop.f32.mrb[0].mxu0
      %v2616 = vadd.f32 0.0, %v2615
      %v2617 = vpop.f32.mrb[0].mxu0
      %v2618 = vpop.f32.mrb[0].mxu0
      %v2619 = vadd.f32 0.0, %v2618
      %v2620 = vpop.f32.mrb[0].mxu0
      %2621 = vdwg.mxu0
      %v2622 = vadd.f32 %v2308, %v2560
      %v2623 = vadd.f32 %v2309, %v2563
      %v2624 = vadd.f32 %v2310, %v2568
      %v2625 = vadd.f32 %v2311, %v2571
      %v2626 = vadd.f32 %v2312, %v2576
      %v2627 = vadd.f32 %v2313, %v2579
      %v2628 = vadd.f32 %v2314, %v2584
      %v2629 = vadd.f32 %v2315, %v2587
      %v2630 = vadd.f32 %v2316, %v2592
      %v2631 = vadd.f32 %v2317, %v2595
      %v2632 = vadd.f32 %v2318, %v2600
      %v2633 = vadd.f32 %v2319, %v2603
      %v2634 = vadd.f32 %v2320, %v2608
      %v2635 = vadd.f32 %v2321, %v2611
      %v2636 = vadd.f32 %v2322, %v2616
      %v2637 = vadd.f32 %v2323, %v2619
      %v2638 = vld [vmem:[%s165 + $0x10] sm:$0xe]
      %s2639 = scalar_lea.vmem %s1, 640
      %v2640 = vld [vmem:[%s2639] sm:$0xf]
      %v2641 = vld [vmem:[%s2639 + $0x4] sm:$0xf]
      %v2642 = vld [vmem:[%s2639 + $0x8] sm:$0xf]
      %v2643 = vld [vmem:[%s2639 + $0xc] sm:$0xf]
      %v2644 = vld [vmem:[%s2639 + $0x10] sm:$0xf]
      %v2645 = vld [vmem:[%s2639 + $0x14] sm:$0xf]
      %v2646 = vld [vmem:[%s2639 + $0x18] sm:$0xf]
      %v2647 = vld [vmem:[%s2639 + $0x1c] sm:$0xf]
      %v2648 = vld [vmem:[%s2639 + $0x20] sm:$0xf]
      %v2649 = vld [vmem:[%s2639 + $0x24] sm:$0xf]
      %v2650 = vld [vmem:[%s2639 + $0x28] sm:$0xf]
      %v2651 = vld [vmem:[%s2639 + $0x2c] sm:$0xf]
      %v2652 = vld [vmem:[%s2639 + $0x30] sm:$0xf]
      %v2653 = vld [vmem:[%s2639 + $0x34] sm:$0xf]
      %v2654 = vld [vmem:[%s2639 + $0x38] sm:$0xf]
      %v2655 = vld [vmem:[%s2639 + $0x3c] sm:$0xf]
      %v2657 = vunpack.c.l.b16 %v2638
      %v2658 = vpack.c.b16 %v2376, %v2657
      %v2659 = vrot.slane %v2658, 1
      %v2660 = vrot.slane %v2393, 1
      %v2661 = vsel %vm661, %v2659, %v2660
      %v2662 = vrot.slane %v2394, 1
      %v2663 = vsel %vm661, %v2660, %v2662
      %v2664 = vrot.slane %v2395, 1
      %v2665 = vsel %vm661, %v2662, %v2664
      %v2666 = vrot.slane %v2396, 1
      %v2667 = vsel %vm661, %v2664, %v2666
      %v2668 = vrot.slane %v2397, 1
      %v2669 = vsel %vm661, %v2666, %v2668
      %v2670 = vrot.slane %v2398, 1
      %v2671 = vsel %vm661, %v2668, %v2670
      %v2672 = vrot.slane %v2399, 1
      %v2673 = vsel %vm661, %v2670, %v2672
      %v2674 = vrot.slane %v2400, 1
      %v2675 = vsel %vm661, %v2672, %v2674
      %v2700 = vunpack.c.l.b16 %v2640
      %v2701 = vunpack.c.l.b16 %v2641
      %v2702 = vunpack.c.l.b16 %v2642
      %v2703 = vunpack.c.l.b16 %v2643
      %v2704 = vunpack.c.l.b16 %v2644
      %v2705 = vunpack.c.l.b16 %v2645
      %v2706 = vunpack.c.l.b16 %v2646
      %v2707 = vunpack.c.l.b16 %v2647
      %v2708 = vunpack.c.l.b16 %v2648
      %v2709 = vunpack.c.l.b16 %v2649
      %v2710 = vunpack.c.l.b16 %v2650
      %v2711 = vunpack.c.l.b16 %v2651
      %v2712 = vunpack.c.l.b16 %v2652
      %v2713 = vunpack.c.l.b16 %v2653
      %v2714 = vunpack.c.l.b16 %v2654
      %v2715 = vunpack.c.l.b16 %v2655
      %v2716 = vpack.c.b16 %v2701, %v2700
      %v2717 = vpack.c.b16 %v2703, %v2702
      %v2718 = vpack.c.b16 %v2705, %v2704
      %v2719 = vpack.c.b16 %v2707, %v2706
      %v2720 = vpack.c.b16 %v2709, %v2708
      %v2721 = vpack.c.b16 %v2711, %v2710
      %v2722 = vpack.c.b16 %v2713, %v2712
      %v2723 = vpack.c.b16 %v2715, %v2714
      %2732 = vmatprep.subr.bf16.mxu0 0
      %2733 = vmatpush1.bf16.msra.mxu0 %v2716
      %2734 = vmatprep.subr.bf16.mxu0 0
      %2735 = vmatpush1.bf16.msra.mxu0 %v2717
      %2736 = vmatprep.subr.bf16.mxu0 0
      %2737 = vmatpush1.bf16.msra.mxu0 %v2718
      %2738 = vmatprep.subr.bf16.mxu0 0
      %2739 = vmatpush1.bf16.msra.mxu0 %v2719
      %2740 = vmatprep.subr.bf16.mxu0 0
      %2741 = vmatpush1.bf16.msra.mxu0 %v2720
      %2742 = vmatprep.subr.bf16.mxu0 0
      %2743 = vmatpush1.bf16.msra.mxu0 %v2721
      %2744 = vmatprep.subr.bf16.mxu0 0
      %2745 = vmatpush1.bf16.msra.mxu0 %v2722
      %2746 = vmatprep.subr.bf16.mxu0 0
      %2747 = vmatpush1.bf16.msra.mxu0 %v2723
      %2748 = vmatprep.subr.bf16.mxu0 0
      %2749 = vmatpush1.bf16.msra.mxu0 0
      %2750 = vmatprep.subr.bf16.mxu0 0
      %2751 = vmatpush1.bf16.msra.mxu0 0
      %2752 = vmatprep.subr.bf16.mxu0 0
      %2753 = vmatpush1.bf16.msra.mxu0 0
      %2754 = vmatprep.subr.bf16.mxu0 0
      %2755 = vmatpush1.bf16.msra.mxu0 0
      %2756 = vmatprep.subr.bf16.mxu0 0
      %2757 = vmatpush1.bf16.msra.mxu0 0
      %2758 = vmatprep.subr.bf16.mxu0 0
      %2759 = vmatpush1.bf16.msra.mxu0 0
      %2760 = vmatprep.subr.bf16.mxu0 0
      %2761 = vmatpush1.bf16.msra.mxu0 0
      %2762 = vmatprep.subr.bf16.mxu0 0
      %2763 = vmatpush1.bf16.msra.mxu0 0
      %2764 = vmatprep.mubr.bf16.mxu0 0
      %2765 = vmatmul.mubr.bf16.gmra.mrb[0].mxu0 %v2661
      %v2766 = vpop.f32.mrb[0].mxu0
      %v2767 = vadd.f32 0.0, %v2766
      %v2768 = vpop.f32.mrb[0].mxu0
      %v2769 = vpop.f32.mrb[0].mxu0
      %v2770 = vadd.f32 0.0, %v2769
      %v2771 = vpop.f32.mrb[0].mxu0
      %2772 = vmatprep.mubr.bf16.mxu0 0
      %2773 = vmatmul.mubr.bf16.gmra.mrb[0].mxu0 %v2663
      %v2774 = vpop.f32.mrb[0].mxu0
      %v2775 = vadd.f32 0.0, %v2774
      %v2776 = vpop.f32.mrb[0].mxu0
      %v2777 = vpop.f32.mrb[0].mxu0
      %v2778 = vadd.f32 0.0, %v2777
      %v2779 = vpop.f32.mrb[0].mxu0
      %2780 = vmatprep.mubr.bf16.mxu0 0
      %2781 = vmatmul.mubr.bf16.gmra.mrb[0].mxu0 %v2665
      %v2782 = vpop.f32.mrb[0].mxu0
      %v2783 = vadd.f32 0.0, %v2782
      %v2784 = vpop.f32.mrb[0].mxu0
      %v2785 = vpop.f32.mrb[0].mxu0
      %v2786 = vadd.f32 0.0, %v2785
      %v2787 = vpop.f32.mrb[0].mxu0
      %2788 = vmatprep.mubr.bf16.mxu0 0
      %2789 = vmatmul.mubr.bf16.gmra.mrb[0].mxu0 %v2667
      %v2790 = vpop.f32.mrb[0].mxu0
      %v2791 = vadd.f32 0.0, %v2790
      %v2792 = vpop.f32.mrb[0].mxu0
      %v2793 = vpop.f32.mrb[0].mxu0
      %v2794 = vadd.f32 0.0, %v2793
      %v2795 = vpop.f32.mrb[0].mxu0
      %2796 = vmatprep.mubr.bf16.mxu0 0
      %2797 = vmatmul.mubr.bf16.gmra.mrb[0].mxu0 %v2669
      %v2798 = vpop.f32.mrb[0].mxu0
      %v2799 = vadd.f32 0.0, %v2798
      %v2800 = vpop.f32.mrb[0].mxu0
      %v2801 = vpop.f32.mrb[0].mxu0
      %v2802 = vadd.f32 0.0, %v2801
      %v2803 = vpop.f32.mrb[0].mxu0
      %2804 = vmatprep.mubr.bf16.mxu0 0
      %2805 = vmatmul.mubr.bf16.gmra.mrb[0].mxu0 %v2671
      %v2806 = vpop.f32.mrb[0].mxu0
      %v2807 = vadd.f32 0.0, %v2806
      %v2808 = vpop.f32.mrb[0].mxu0
      %v2809 = vpop.f32.mrb[0].mxu0
      %v2810 = vadd.f32 0.0, %v2809
      %v2811 = vpop.f32.mrb[0].mxu0
      %2812 = vmatprep.mubr.bf16.mxu0 0
      %2813 = vmatmul.mubr.bf16.gmra.mrb[0].mxu0 %v2673
      %v2814 = vpop.f32.mrb[0].mxu0
      %v2815 = vadd.f32 0.0, %v2814
      %v2816 = vpop.f32.mrb[0].mxu0
      %v2817 = vpop.f32.mrb[0].mxu0
      %v2818 = vadd.f32 0.0, %v2817
      %v2819 = vpop.f32.mrb[0].mxu0
      %2820 = vmatprep.mubr.bf16.mxu0 0
      %2821 = vmatmul.mubr.bf16.gmra.mrb[0].mxu0 %v2675
      %v2822 = vpop.f32.mrb[0].mxu0
      %v2823 = vadd.f32 0.0, %v2822
      %v2824 = vpop.f32.mrb[0].mxu0
      %v2825 = vpop.f32.mrb[0].mxu0
      %v2826 = vadd.f32 0.0, %v2825
      %v2827 = vpop.f32.mrb[0].mxu0
      %2828 = vdwg.mxu0
      %v2829 = vadd.f32 %v2622, %v2767
      %v2830 = vadd.f32 %v2623, %v2770
      %v2831 = vadd.f32 %v2624, %v2775
      %v2832 = vadd.f32 %v2625, %v2778
      %v2833 = vadd.f32 %v2626, %v2783
      %v2834 = vadd.f32 %v2627, %v2786
      %v2835 = vadd.f32 %v2628, %v2791
      %v2836 = vadd.f32 %v2629, %v2794
      %v2837 = vadd.f32 %v2630, %v2799
      %v2838 = vadd.f32 %v2631, %v2802
      %v2839 = vadd.f32 %v2632, %v2807
      %v2840 = vadd.f32 %v2633, %v2810
      %v2841 = vadd.f32 %v2634, %v2815
      %v2842 = vadd.f32 %v2635, %v2818
      %v2843 = vadd.f32 %v2636, %v2823
      %v2844 = vadd.f32 %v2637, %v2826
      %v2845 = vld [vmem:[%s165 + $0x50] sm:$0x3]
      %s2846 = scalar_lea.vmem %s1, 704
      %v2847 = vld [vmem:[%s2846] sm:$0xf]
      %v2848 = vld [vmem:[%s2846 + $0x4] sm:$0xf]
      %v2849 = vld [vmem:[%s2846 + $0x8] sm:$0xf]
      %v2850 = vld [vmem:[%s2846 + $0xc] sm:$0xf]
      %v2851 = vld [vmem:[%s2846 + $0x10] sm:$0xf]
      %v2852 = vld [vmem:[%s2846 + $0x14] sm:$0xf]
      %v2853 = vld [vmem:[%s2846 + $0x18] sm:$0xf]
      %v2854 = vld [vmem:[%s2846 + $0x1c] sm:$0xf]
      %v2855 = vld [vmem:[%s2846 + $0x20] sm:$0xf]
      %v2856 = vld [vmem:[%s2846 + $0x24] sm:$0xf]
      %v2857 = vld [vmem:[%s2846 + $0x28] sm:$0xf]
      %v2858 = vld [vmem:[%s2846 + $0x2c] sm:$0xf]
      %v2859 = vld [vmem:[%s2846 + $0x30] sm:$0xf]
      %v2860 = vld [vmem:[%s2846 + $0x34] sm:$0xf]
      %v2861 = vld [vmem:[%s2846 + $0x38] sm:$0xf]
      %v2862 = vld [vmem:[%s2846 + $0x3c] sm:$0xf]
      %v2864 = vunpack.c.l.b16 %v2845
      %v2865 = vpack.c.b16 %v2864, %v2864
      %v2867 = vshrl.u32 %v2658, 16
      %v2869 = vrot.slane %v2867, 1
      %v2870 = vshll.u32 %v2658, 16
      %v2872 = vrot.slane %v2870, 2
      %v2873 = vor.u32 %v2869, %v2872
      %v2874 = vrot.slane %v2413, 1
      %v2875 = vrot.slane %v2409, 2
      %v2876 = vor.u32 %v2874, %v2875
      %v2877 = vsel %vm869, %v2873, %v2876
      %v2878 = vrot.slane %v2421, 1
      %v2879 = vrot.slane %v2417, 2
      %v2880 = vor.u32 %v2878, %v2879
      %v2881 = vsel %vm869, %v2876, %v2880
      %v2882 = vrot.slane %v2429, 1
      %v2883 = vrot.slane %v2425, 2
      %v2884 = vor.u32 %v2882, %v2883
      %v2885 = vsel %vm869, %v2880, %v2884
      %v2886 = vrot.slane %v2437, 1
      %v2887 = vrot.slane %v2433, 2
      %v2888 = vor.u32 %v2886, %v2887
      %v2889 = vsel %vm869, %v2884, %v2888
      %v2890 = vrot.slane %v2445, 1
      %v2891 = vrot.slane %v2441, 2
      %v2892 = vor.u32 %v2890, %v2891
      %v2893 = vsel %vm869, %v2888, %v2892
      %v2894 = vrot.slane %v2453, 1
      %v2895 = vrot.slane %v2449, 2
      %v2896 = vor.u32 %v2894, %v2895
      %v2897 = vsel %vm869, %v2892, %v2896
      %v2898 = vrot.slane %v2461, 1
      %v2899 = vrot.slane %v2457, 2
      %v2900 = vor.u32 %v2898, %v2899
      %v2901 = vsel %vm869, %v2896, %v2900
      %v2903 = vshrl.u32 %v2865, 16
      %v2905 = vrot.slane %v2903, 1
      %v2906 = vshll.u32 %v2865, 16
      %v2908 = vrot.slane %v2906, 2
      %v2909 = vor.u32 %v2905, %v2908
      %v2910 = vsel %vm869, %v2900, %v2909
      %v2935 = vunpack.c.l.b16 %v2847
      %v2936 = vunpack.c.l.b16 %v2848
      %v2937 = vunpack.c.l.b16 %v2849
      %v2938 = vunpack.c.l.b16 %v2850
      %v2939 = vunpack.c.l.b16 %v2851
      %v2940 = vunpack.c.l.b16 %v2852
      %v2941 = vunpack.c.l.b16 %v2853
      %v2942 = vunpack.c.l.b16 %v2854
      %v2943 = vunpack.c.l.b16 %v2855
      %v2944 = vunpack.c.l.b16 %v2856
      %v2945 = vunpack.c.l.b16 %v2857
      %v2946 = vunpack.c.l.b16 %v2858
      %v2947 = vunpack.c.l.b16 %v2859
      %v2948 = vunpack.c.l.b16 %v2860
      %v2949 = vunpack.c.l.b16 %v2861
      %v2950 = vunpack.c.l.b16 %v2862
      %v2951 = vpack.c.b16 %v2936, %v2935
      %v2952 = vpack.c.b16 %v2938, %v2937
      %v2953 = vpack.c.b16 %v2940, %v2939
      %v2954 = vpack.c.b16 %v2942, %v2941
      %v2955 = vpack.c.b16 %v2944, %v2943
      %v2956 = vpack.c.b16 %v2946, %v2945
      %v2957 = vpack.c.b16 %v2948, %v2947
      %v2958 = vpack.c.b16 %v2950, %v2949
      %2967 = vmatprep.subr.bf16.mxu0 0
      %2968 = vmatpush1.bf16.msra.mxu0 %v2951
      %2969 = vmatprep.subr.bf16.mxu0 0
      %2970 = vmatpush1.bf16.msra.mxu0 %v2952
      %2971 = vmatprep.subr.bf16.mxu0 0
      %2972 = vmatpush1.bf16.msra.mxu0 %v2953
      %2973 = vmatprep.subr.bf16.mxu0 0
      %2974 = vmatpush1.bf16.msra.mxu0 %v2954
      %2975 = vmatprep.subr.bf16.mxu0 0
      %2976 = vmatpush1.bf16.msra.mxu0 %v2955
      %2977 = vmatprep.subr.bf16.mxu0 0
      %2978 = vmatpush1.bf16.msra.mxu0 %v2956
      %2979 = vmatprep.subr.bf16.mxu0 0
      %2980 = vmatpush1.bf16.msra.mxu0 %v2957
      %2981 = vmatprep.subr.bf16.mxu0 0
      %2982 = vmatpush1.bf16.msra.mxu0 %v2958
      %2983 = vmatprep.subr.bf16.mxu0 0
      %2984 = vmatpush1.bf16.msra.mxu0 0
      %2985 = vmatprep.subr.bf16.mxu0 0
      %2986 = vmatpush1.bf16.msra.mxu0 0
      %2987 = vmatprep.subr.bf16.mxu0 0
      %2988 = vmatpush1.bf16.msra.mxu0 0
      %2989 = vmatprep.subr.bf16.mxu0 0
      %2990 = vmatpush1.bf16.msra.mxu0 0
      %2991 = vmatprep.subr.bf16.mxu0 0
      %2992 = vmatpush1.bf16.msra.mxu0 0
      %2993 = vmatprep.subr.bf16.mxu0 0
      %2994 = vmatpush1.bf16.msra.mxu0 0
      %2995 = vmatprep.subr.bf16.mxu0 0
      %2996 = vmatpush1.bf16.msra.mxu0 0
      %2997 = vmatprep.subr.bf16.mxu0 0
      %2998 = vmatpush1.bf16.msra.mxu0 0
      %2999 = vmatprep.mubr.bf16.mxu0 0
      %3000 = vmatmul.mubr.bf16.gmra.mrb[0].mxu0 %v2877
      %v3001 = vpop.f32.mrb[0].mxu0
      %v3002 = vadd.f32 0.0, %v3001
      %v3003 = vpop.f32.mrb[0].mxu0
      %v3004 = vpop.f32.mrb[0].mxu0
      %v3005 = vadd.f32 0.0, %v3004
      %v3006 = vpop.f32.mrb[0].mxu0
      %3007 = vmatprep.mubr.bf16.mxu0 0
      %3008 = vmatmul.mubr.bf16.gmra.mrb[0].mxu0 %v2881
      %v3009 = vpop.f32.mrb[0].mxu0
      %v3010 = vadd.f32 0.0, %v3009
      %v3011 = vpop.f32.mrb[0].mxu0
      %v3012 = vpop.f32.mrb[0].mxu0
      %v3013 = vadd.f32 0.0, %v3012
      %v3014 = vpop.f32.mrb[0].mxu0
      %3015 = vmatprep.mubr.bf16.mxu0 0
      %3016 = vmatmul.mubr.bf16.gmra.mrb[0].mxu0 %v2885
      %v3017 = vpop.f32.mrb[0].mxu0
      %v3018 = vadd.f32 0.0, %v3017
      %v3019 = vpop.f32.mrb[0].mxu0
      %v3020 = vpop.f32.mrb[0].mxu0
      %v3021 = vadd.f32 0.0, %v3020
      %v3022 = vpop.f32.mrb[0].mxu0
      %3023 = vmatprep.mubr.bf16.mxu0 0
      %3024 = vmatmul.mubr.bf16.gmra.mrb[0].mxu0 %v2889
      %v3025 = vpop.f32.mrb[0].mxu0
      %v3026 = vadd.f32 0.0, %v3025
      %v3027 = vpop.f32.mrb[0].mxu0
      %v3028 = vpop.f32.mrb[0].mxu0
      %v3029 = vadd.f32 0.0, %v3028
      %v3030 = vpop.f32.mrb[0].mxu0
      %3031 = vmatprep.mubr.bf16.mxu0 0
      %3032 = vmatmul.mubr.bf16.gmra.mrb[0].mxu0 %v2893
      %v3033 = vpop.f32.mrb[0].mxu0
      %v3034 = vadd.f32 0.0, %v3033
      %v3035 = vpop.f32.mrb[0].mxu0
      %v3036 = vpop.f32.mrb[0].mxu0
      %v3037 = vadd.f32 0.0, %v3036
      %v3038 = vpop.f32.mrb[0].mxu0
      %3039 = vmatprep.mubr.bf16.mxu0 0
      %3040 = vmatmul.mubr.bf16.gmra.mrb[0].mxu0 %v2897
      %v3041 = vpop.f32.mrb[0].mxu0
      %v3042 = vadd.f32 0.0, %v3041
      %v3043 = vpop.f32.mrb[0].mxu0
      %v3044 = vpop.f32.mrb[0].mxu0
      %v3045 = vadd.f32 0.0, %v3044
      %v3046 = vpop.f32.mrb[0].mxu0
      %3047 = vmatprep.mubr.bf16.mxu0 0
      %3048 = vmatmul.mubr.bf16.gmra.mrb[0].mxu0 %v2901
      %v3049 = vpop.f32.mrb[0].mxu0
      %v3050 = vadd.f32 0.0, %v3049
      %v3051 = vpop.f32.mrb[0].mxu0
      %v3052 = vpop.f32.mrb[0].mxu0
      %v3053 = vadd.f32 0.0, %v3052
      %v3054 = vpop.f32.mrb[0].mxu0
      %3055 = vmatprep.mubr.bf16.mxu0 0
      %3056 = vmatmul.mubr.bf16.gmra.mrb[0].mxu0 %v2910
      %v3057 = vpop.f32.mrb[0].mxu0
      %v3058 = vadd.f32 0.0, %v3057
      %v3059 = vpop.f32.mrb[0].mxu0
      %v3060 = vpop.f32.mrb[0].mxu0
      %v3061 = vadd.f32 0.0, %v3060
      %v3062 = vpop.f32.mrb[0].mxu0
      %3063 = vdwg.mxu0
      %v3064 = vadd.f32 %v2829, %v3002
      %v3065 = vadd.f32 %v2830, %v3005
      %v3066 = vadd.f32 %v2831, %v3010
      %v3067 = vadd.f32 %v2832, %v3013
      %v3068 = vadd.f32 %v2833, %v3018
      %v3069 = vadd.f32 %v2834, %v3021
      %v3070 = vadd.f32 %v2835, %v3026
      %v3071 = vadd.f32 %v2836, %v3029
      %v3072 = vadd.f32 %v2837, %v3034
      %v3073 = vadd.f32 %v2838, %v3037
      %v3074 = vadd.f32 %v2839, %v3042
      %v3075 = vadd.f32 %v2840, %v3045
      %v3076 = vadd.f32 %v2841, %v3050
      %v3077 = vadd.f32 %v2842, %v3053
      %v3078 = vadd.f32 %v2843, %v3058
      %v3079 = vadd.f32 %v2844, %v3061
      %v3080 = vld [vmem:[%s165 + $0x18] sm:$0xf]
      %v3081 = vld [vmem:[%s165 + $0x1c] sm:$0xf]
      %v3082 = vld [vmem:[%s165 + $0x20] sm:$0xf]
      %v3083 = vld [vmem:[%s165 + $0x24] sm:$0xf]
      %v3084 = vld [vmem:[%s165 + $0x28] sm:$0xf]
      %v3085 = vld [vmem:[%s165 + $0x2c] sm:$0xf]
      %v3086 = vld [vmem:[%s165 + $0x30] sm:$0xf]
      %v3087 = vld [vmem:[%s165 + $0x34] sm:$0xf]
      %v3088 = vld [vmem:[%s165 + $0x38] sm:$0xf]
      %v3089 = vld [vmem:[%s165 + $0x3c] sm:$0xf]
      %v3090 = vld [vmem:[%s165 + $0x40] sm:$0xf]
      %v3091 = vld [vmem:[%s165 + $0x44] sm:$0xf]
      %v3092 = vld [vmem:[%s165 + $0x48] sm:$0xf]
      %v3093 = vld [vmem:[%s165 + $0x4c] sm:$0xf]
      %v3094 = vld [vmem:[%s165 + $0x50] sm:$0xf]
      %v3095 = vld [vmem:[%s165 + $0x54] sm:$0xf]
      %s3096 = scalar_lea.vmem %s1, 768
      %v3097 = vld [vmem:[%s3096] sm:$0xf]
      %v3098 = vld [vmem:[%s3096 + $0x4] sm:$0xf]
      %v3099 = vld [vmem:[%s3096 + $0x8] sm:$0xf]
      %v3100 = vld [vmem:[%s3096 + $0xc] sm:$0xf]
      %v3101 = vld [vmem:[%s3096 + $0x10] sm:$0xf]
      %v3102 = vld [vmem:[%s3096 + $0x14] sm:$0xf]
      %v3103 = vld [vmem:[%s3096 + $0x18] sm:$0xf]
      %v3104 = vld [vmem:[%s3096 + $0x1c] sm:$0xf]
      %v3105 = vld [vmem:[%s3096 + $0x20] sm:$0xf]
      %v3106 = vld [vmem:[%s3096 + $0x24] sm:$0xf]
      %v3107 = vld [vmem:[%s3096 + $0x28] sm:$0xf]
      %v3108 = vld [vmem:[%s3096 + $0x2c] sm:$0xf]
      %v3109 = vld [vmem:[%s3096 + $0x30] sm:$0xf]
      %v3110 = vld [vmem:[%s3096 + $0x34] sm:$0xf]
      %v3111 = vld [vmem:[%s3096 + $0x38] sm:$0xf]
      %v3112 = vld [vmem:[%s3096 + $0x3c] sm:$0xf]
      %v3129 = vunpack.c.l.b16 %v3080
      %v3130 = vunpack.c.l.b16 %v3081
      %v3131 = vunpack.c.l.b16 %v3082
      %v3132 = vunpack.c.l.b16 %v3083
      %v3133 = vunpack.c.l.b16 %v3084
      %v3134 = vunpack.c.l.b16 %v3085
      %v3135 = vunpack.c.l.b16 %v3086
      %v3136 = vunpack.c.l.b16 %v3087
      %v3137 = vunpack.c.l.b16 %v3088
      %v3138 = vunpack.c.l.b16 %v3089
      %v3139 = vunpack.c.l.b16 %v3090
      %v3140 = vunpack.c.l.b16 %v3091
      %v3141 = vunpack.c.l.b16 %v3092
      %v3142 = vunpack.c.l.b16 %v3093
      %v3143 = vunpack.c.l.b16 %v3094
      %v3144 = vunpack.c.l.b16 %v3095
      %v3145 = vpack.c.b16 %v3130, %v3129
      %v3146 = vpack.c.b16 %v3132, %v3131
      %v3147 = vpack.c.b16 %v3134, %v3133
      %v3148 = vpack.c.b16 %v3136, %v3135
      %v3149 = vpack.c.b16 %v3138, %v3137
      %v3150 = vpack.c.b16 %v3140, %v3139
      %v3151 = vpack.c.b16 %v3142, %v3141
      %v3152 = vpack.c.b16 %v3144, %v3143
      %v3177 = vunpack.c.l.b16 %v3097
      %v3178 = vunpack.c.l.b16 %v3098
      %v3179 = vunpack.c.l.b16 %v3099
      %v3180 = vunpack.c.l.b16 %v3100
      %v3181 = vunpack.c.l.b16 %v3101
      %v3182 = vunpack.c.l.b16 %v3102
      %v3183 = vunpack.c.l.b16 %v3103
      %v3184 = vunpack.c.l.b16 %v3104
      %v3185 = vunpack.c.l.b16 %v3105
      %v3186 = vunpack.c.l.b16 %v3106
      %v3187 = vunpack.c.l.b16 %v3107
      %v3188 = vunpack.c.l.b16 %v3108
      %v3189 = vunpack.c.l.b16 %v3109
      %v3190 = vunpack.c.l.b16 %v3110
      %v3191 = vunpack.c.l.b16 %v3111
      %v3192 = vunpack.c.l.b16 %v3112
      %v3193 = vpack.c.b16 %v3178, %v3177
      %v3194 = vpack.c.b16 %v3180, %v3179
      %v3195 = vpack.c.b16 %v3182, %v3181
      %v3196 = vpack.c.b16 %v3184, %v3183
      %v3197 = vpack.c.b16 %v3186, %v3185
      %v3198 = vpack.c.b16 %v3188, %v3187
      %v3199 = vpack.c.b16 %v3190, %v3189
      %v3200 = vpack.c.b16 %v3192, %v3191
      %3209 = vmatprep.subr.bf16.mxu0 0
      %3210 = vmatpush1.bf16.msra.mxu0 %v3193
      %3211 = vmatprep.subr.bf16.mxu0 0
      %3212 = vmatpush1.bf16.msra.mxu0 %v3194
      %3213 = vmatprep.subr.bf16.mxu0 0
      %3214 = vmatpush1.bf16.msra.mxu0 %v3195
      %3215 = vmatprep.subr.bf16.mxu0 0
      %3216 = vmatpush1.bf16.msra.mxu0 %v3196
      %3217 = vmatprep.subr.bf16.mxu0 0
      %3218 = vmatpush1.bf16.msra.mxu0 %v3197
      %3219 = vmatprep.subr.bf16.mxu0 0
      %3220 = vmatpush1.bf16.msra.mxu0 %v3198
      %3221 = vmatprep.subr.bf16.mxu0 0
      %3222 = vmatpush1.bf16.msra.mxu0 %v3199
      %3223 = vmatprep.subr.bf16.mxu0 0
      %3224 = vmatpush1.bf16.msra.mxu0 %v3200
      %3225 = vmatprep.subr.bf16.mxu0 0
      %3226 = vmatpush1.bf16.msra.mxu0 0
      %3227 = vmatprep.subr.bf16.mxu0 0
      %3228 = vmatpush1.bf16.msra.mxu0 0
      %3229 = vmatprep.subr.bf16.mxu0 0
      %3230 = vmatpush1.bf16.msra.mxu0 0
      %3231 = vmatprep.subr.bf16.mxu0 0
      %3232 = vmatpush1.bf16.msra.mxu0 0
      %3233 = vmatprep.subr.bf16.mxu0 0
      %3234 = vmatpush1.bf16.msra.mxu0 0
      %3235 = vmatprep.subr.bf16.mxu0 0
      %3236 = vmatpush1.bf16.msra.mxu0 0
      %3237 = vmatprep.subr.bf16.mxu0 0
      %3238 = vmatpush1.bf16.msra.mxu0 0
      %3239 = vmatprep.subr.bf16.mxu0 0
      %3240 = vmatpush1.bf16.msra.mxu0 0
      %3241 = vmatprep.mubr.bf16.mxu0 0
      %3242 = vmatmul.mubr.bf16.gmra.mrb[0].mxu0 %v3145
      %v3243 = vpop.f32.mrb[0].mxu0
      %v3244 = vadd.f32 0.0, %v3243
      %v3245 = vpop.f32.mrb[0].mxu0
      %v3246 = vpop.f32.mrb[0].mxu0
      %v3247 = vadd.f32 0.0, %v3246
      %v3248 = vpop.f32.mrb[0].mxu0
      %3249 = vmatprep.mubr.bf16.mxu0 0
      %3250 = vmatmul.mubr.bf16.gmra.mrb[0].mxu0 %v3146
      %v3251 = vpop.f32.mrb[0].mxu0
      %v3252 = vadd.f32 0.0, %v3251
      %v3253 = vpop.f32.mrb[0].mxu0
      %v3254 = vpop.f32.mrb[0].mxu0
      %v3255 = vadd.f32 0.0, %v3254
      %v3256 = vpop.f32.mrb[0].mxu0
      %3257 = vmatprep.mubr.bf16.mxu0 0
      %3258 = vmatmul.mubr.bf16.gmra.mrb[0].mxu0 %v3147
      %v3259 = vpop.f32.mrb[0].mxu0
      %v3260 = vadd.f32 0.0, %v3259
      %v3261 = vpop.f32.mrb[0].mxu0
      %v3262 = vpop.f32.mrb[0].mxu0
      %v3263 = vadd.f32 0.0, %v3262
      %v3264 = vpop.f32.mrb[0].mxu0
      %3265 = vmatprep.mubr.bf16.mxu0 0
      %3266 = vmatmul.mubr.bf16.gmra.mrb[0].mxu0 %v3148
      %v3267 = vpop.f32.mrb[0].mxu0
      %v3268 = vadd.f32 0.0, %v3267
      %v3269 = vpop.f32.mrb[0].mxu0
      %v3270 = vpop.f32.mrb[0].mxu0
      %v3271 = vadd.f32 0.0, %v3270
      %v3272 = vpop.f32.mrb[0].mxu0
      %3273 = vmatprep.mubr.bf16.mxu0 0
      %3274 = vmatmul.mubr.bf16.gmra.mrb[0].mxu0 %v3149
      %v3275 = vpop.f32.mrb[0].mxu0
      %v3276 = vadd.f32 0.0, %v3275
      %v3277 = vpop.f32.mrb[0].mxu0
      %v3278 = vpop.f32.mrb[0].mxu0
      %v3279 = vadd.f32 0.0, %v3278
      %v3280 = vpop.f32.mrb[0].mxu0
      %3281 = vmatprep.mubr.bf16.mxu0 0
      %3282 = vmatmul.mubr.bf16.gmra.mrb[0].mxu0 %v3150
      %v3283 = vpop.f32.mrb[0].mxu0
      %v3284 = vadd.f32 0.0, %v3283
      %v3285 = vpop.f32.mrb[0].mxu0
      %v3286 = vpop.f32.mrb[0].mxu0
      %v3287 = vadd.f32 0.0, %v3286
      %v3288 = vpop.f32.mrb[0].mxu0
      %3289 = vmatprep.mubr.bf16.mxu0 0
      %3290 = vmatmul.mubr.bf16.gmra.mrb[0].mxu0 %v3151
      %v3291 = vpop.f32.mrb[0].mxu0
      %v3292 = vadd.f32 0.0, %v3291
      %v3293 = vpop.f32.mrb[0].mxu0
      %v3294 = vpop.f32.mrb[0].mxu0
      %v3295 = vadd.f32 0.0, %v3294
      %v3296 = vpop.f32.mrb[0].mxu0
      %3297 = vmatprep.mubr.bf16.mxu0 0
      %3298 = vmatmul.mubr.bf16.gmra.mrb[0].mxu0 %v3152
      %v3299 = vpop.f32.mrb[0].mxu0
      %v3300 = vadd.f32 0.0, %v3299
      %v3301 = vpop.f32.mrb[0].mxu0
      %v3302 = vpop.f32.mrb[0].mxu0
      %v3303 = vadd.f32 0.0, %v3302
      %v3304 = vpop.f32.mrb[0].mxu0
      %3305 = vdwg.mxu0
      %v3306 = vadd.f32 %v3064, %v3244
      %v3307 = vadd.f32 %v3065, %v3247
      %v3308 = vadd.f32 %v3066, %v3252
      %v3309 = vadd.f32 %v3067, %v3255
      %v3310 = vadd.f32 %v3068, %v3260
      %v3311 = vadd.f32 %v3069, %v3263
      %v3312 = vadd.f32 %v3070, %v3268
      %v3313 = vadd.f32 %v3071, %v3271
      %v3314 = vadd.f32 %v3072, %v3276
      %v3315 = vadd.f32 %v3073, %v3279
      %v3316 = vadd.f32 %v3074, %v3284
      %v3317 = vadd.f32 %v3075, %v3287
      %v3318 = vadd.f32 %v3076, %v3292
      %v3319 = vadd.f32 %v3077, %v3295
      %v3320 = vadd.f32 %v3078, %v3300
      %v3321 = vadd.f32 %v3079, %v3303
      %v3322 = vld [vmem:[%s165 + $0x18] sm:$0xf]
      %v3323 = vld [vmem:[%s165 + $0x1c] sm:$0xf]
      %v3324 = vld [vmem:[%s165 + $0x20] sm:$0xf]
      %v3325 = vld [vmem:[%s165 + $0x24] sm:$0xf]
      %v3326 = vld [vmem:[%s165 + $0x28] sm:$0xf]
      %v3327 = vld [vmem:[%s165 + $0x2c] sm:$0xf]
      %v3328 = vld [vmem:[%s165 + $0x30] sm:$0xf]
      %v3329 = vld [vmem:[%s165 + $0x34] sm:$0xf]
      %v3330 = vld [vmem:[%s165 + $0x38] sm:$0xf]
      %v3331 = vld [vmem:[%s165 + $0x3c] sm:$0xf]
      %v3332 = vld [vmem:[%s165 + $0x40] sm:$0xf]
      %v3333 = vld [vmem:[%s165 + $0x44] sm:$0xf]
      %v3334 = vld [vmem:[%s165 + $0x48] sm:$0xf]
      %v3335 = vld [vmem:[%s165 + $0x4c] sm:$0xf]
      %v3336 = vld [vmem:[%s165 + $0x50] sm:$0xf]
      %v3337 = vld [vmem:[%s165 + $0x54] sm:$0xf]
      %v3338 = vld [vmem:[%s165 + $0x58] sm:$0x1]
      %s3339 = scalar_lea.vmem %s1, 832
      %v3340 = vld [vmem:[%s3339] sm:$0xf]
      %v3341 = vld [vmem:[%s3339 + $0x4] sm:$0xf]
      %v3342 = vld [vmem:[%s3339 + $0x8] sm:$0xf]
      %v3343 = vld [vmem:[%s3339 + $0xc] sm:$0xf]
      %v3344 = vld [vmem:[%s3339 + $0x10] sm:$0xf]
      %v3345 = vld [vmem:[%s3339 + $0x14] sm:$0xf]
      %v3346 = vld [vmem:[%s3339 + $0x18] sm:$0xf]
      %v3347 = vld [vmem:[%s3339 + $0x1c] sm:$0xf]
      %v3348 = vld [vmem:[%s3339 + $0x20] sm:$0xf]
      %v3349 = vld [vmem:[%s3339 + $0x24] sm:$0xf]
      %v3350 = vld [vmem:[%s3339 + $0x28] sm:$0xf]
      %v3351 = vld [vmem:[%s3339 + $0x2c] sm:$0xf]
      %v3352 = vld [vmem:[%s3339 + $0x30] sm:$0xf]
      %v3353 = vld [vmem:[%s3339 + $0x34] sm:$0xf]
      %v3354 = vld [vmem:[%s3339 + $0x38] sm:$0xf]
      %v3355 = vld [vmem:[%s3339 + $0x3c] sm:$0xf]
      %v3373 = vunpack.c.l.b16 %v3322
      %v3374 = vunpack.c.l.b16 %v3323
      %v3375 = vunpack.c.l.b16 %v3324
      %v3376 = vunpack.c.l.b16 %v3325
      %v3377 = vunpack.c.l.b16 %v3326
      %v3378 = vunpack.c.l.b16 %v3327
      %v3379 = vunpack.c.l.b16 %v3328
      %v3380 = vunpack.c.l.b16 %v3329
      %v3381 = vunpack.c.l.b16 %v3330
      %v3382 = vunpack.c.l.b16 %v3331
      %v3383 = vunpack.c.l.b16 %v3332
      %v3384 = vunpack.c.l.b16 %v3333
      %v3385 = vunpack.c.l.b16 %v3334
      %v3386 = vunpack.c.l.b16 %v3335
      %v3387 = vunpack.c.l.b16 %v3336
      %v3388 = vunpack.c.l.b16 %v3337
      %v3389 = vunpack.c.l.b16 %v3338
      %v3390 = vpack.c.b16 %v3374, %v3373
      %v3391 = vpack.c.b16 %v3376, %v3375
      %v3392 = vpack.c.b16 %v3378, %v3377
      %v3393 = vpack.c.b16 %v3380, %v3379
      %v3394 = vpack.c.b16 %v3382, %v3381
      %v3395 = vpack.c.b16 %v3384, %v3383
      %v3396 = vpack.c.b16 %v3386, %v3385
      %v3397 = vpack.c.b16 %v3388, %v3387
      %v3398 = vpack.c.b16 %v3389, %v3389
      %v3400 = vshrl.u32 %v3390, 16
      %v3402 = vshll.u32 %v3390, 16
      %v3404 = vrot.slane %v3402, 1
      %v3405 = vor.u32 %v3400, %v3404
      %v3407 = vshll.u32 %v3391, 16
      %v3409 = vrot.slane %v3407, 1
      %v3410 = vsel %vm265, %v3405, %v3409
      %v3411 = vshrl.u32 %v3391, 16
      %v3413 = vor.u32 %v3411, %v3409
      %v3415 = vshll.u32 %v3392, 16
      %v3417 = vrot.slane %v3415, 1
      %v3418 = vsel %vm265, %v3413, %v3417
      %v3419 = vshrl.u32 %v3392, 16
      %v3421 = vor.u32 %v3419, %v3417
      %v3423 = vshll.u32 %v3393, 16
      %v3425 = vrot.slane %v3423, 1
      %v3426 = vsel %vm265, %v3421, %v3425
      %v3427 = vshrl.u32 %v3393, 16
      %v3429 = vor.u32 %v3427, %v3425
      %v3431 = vshll.u32 %v3394, 16
      %v3433 = vrot.slane %v3431, 1
      %v3434 = vsel %vm265, %v3429, %v3433
      %v3435 = vshrl.u32 %v3394, 16
      %v3437 = vor.u32 %v3435, %v3433
      %v3439 = vshll.u32 %v3395, 16
      %v3441 = vrot.slane %v3439, 1
      %v3442 = vsel %vm265, %v3437, %v3441
      %v3443 = vshrl.u32 %v3395, 16
      %v3445 = vor.u32 %v3443, %v3441
      %v3447 = vshll.u32 %v3396, 16
      %v3449 = vrot.slane %v3447, 1
      %v3450 = vsel %vm265, %v3445, %v3449
      %v3451 = vshrl.u32 %v3396, 16
      %v3453 = vor.u32 %v3451, %v3449
      %v3455 = vshll.u32 %v3397, 16
      %v3457 = vrot.slane %v3455, 1
      %v3458 = vsel %vm265, %v3453, %v3457
      %v3459 = vshrl.u32 %v3397, 16
      %v3461 = vor.u32 %v3459, %v3457
      %v3463 = vshll.u32 %v3398, 16
      %v3465 = vrot.slane %v3463, 1
      %v3466 = vsel %vm265, %v3461, %v3465
      %v3491 = vunpack.c.l.b16 %v3340
      %v3492 = vunpack.c.l.b16 %v3341
      %v3493 = vunpack.c.l.b16 %v3342
      %v3494 = vunpack.c.l.b16 %v3343
      %v3495 = vunpack.c.l.b16 %v3344
      %v3496 = vunpack.c.l.b16 %v3345
      %v3497 = vunpack.c.l.b16 %v3346
      %v3498 = vunpack.c.l.b16 %v3347
      %v3499 = vunpack.c.l.b16 %v3348
      %v3500 = vunpack.c.l.b16 %v3349
      %v3501 = vunpack.c.l.b16 %v3350
      %v3502 = vunpack.c.l.b16 %v3351
      %v3503 = vunpack.c.l.b16 %v3352
      %v3504 = vunpack.c.l.b16 %v3353
      %v3505 = vunpack.c.l.b16 %v3354
      %v3506 = vunpack.c.l.b16 %v3355
      %v3507 = vpack.c.b16 %v3492, %v3491
      %v3508 = vpack.c.b16 %v3494, %v3493
      %v3509 = vpack.c.b16 %v3496, %v3495
      %v3510 = vpack.c.b16 %v3498, %v3497
      %v3511 = vpack.c.b16 %v3500, %v3499
      %v3512 = vpack.c.b16 %v3502, %v3501
      %v3513 = vpack.c.b16 %v3504, %v3503
      %v3514 = vpack.c.b16 %v3506, %v3505
      %3523 = vmatprep.subr.bf16.mxu0 0
      %3524 = vmatpush1.bf16.msra.mxu0 %v3507
      %3525 = vmatprep.subr.bf16.mxu0 0
      %3526 = vmatpush1.bf16.msra.mxu0 %v3508
      %3527 = vmatprep.subr.bf16.mxu0 0
      %3528 = vmatpush1.bf16.msra.mxu0 %v3509
      %3529 = vmatprep.subr.bf16.mxu0 0
      %3530 = vmatpush1.bf16.msra.mxu0 %v3510
      %3531 = vmatprep.subr.bf16.mxu0 0
      %3532 = vmatpush1.bf16.msra.mxu0 %v3511
      %3533 = vmatprep.subr.bf16.mxu0 0
      %3534 = vmatpush1.bf16.msra.mxu0 %v3512
      %3535 = vmatprep.subr.bf16.mxu0 0
      %3536 = vmatpush1.bf16.msra.mxu0 %v3513
      %3537 = vmatprep.subr.bf16.mxu0 0
      %3538 = vmatpush1.bf16.msra.mxu0 %v3514
      %3539 = vmatprep.subr.bf16.mxu0 0
      %3540 = vmatpush1.bf16.msra.mxu0 0
      %3541 = vmatprep.subr.bf16.mxu0 0
      %3542 = vmatpush1.bf16.msra.mxu0 0
      %3543 = vmatprep.subr.bf16.mxu0 0
      %3544 = vmatpush1.bf16.msra.mxu0 0
      %3545 = vmatprep.subr.bf16.mxu0 0
      %3546 = vmatpush1.bf16.msra.mxu0 0
      %3547 = vmatprep.subr.bf16.mxu0 0
      %3548 = vmatpush1.bf16.msra.mxu0 0
      %3549 = vmatprep.subr.bf16.mxu0 0
      %3550 = vmatpush1.bf16.msra.mxu0 0
      %3551 = vmatprep.subr.bf16.mxu0 0
      %3552 = vmatpush1.bf16.msra.mxu0 0
      %3553 = vmatprep.subr.bf16.mxu0 0
      %3554 = vmatpush1.bf16.msra.mxu0 0
      %3555 = vmatprep.mubr.bf16.mxu0 0
      %3556 = vmatmul.mubr.bf16.gmra.mrb[0].mxu0 %v3410
      %v3557 = vpop.f32.mrb[0].mxu0
      %v3558 = vadd.f32 0.0, %v3557
      %v3559 = vpop.f32.mrb[0].mxu0
      %v3560 = vpop.f32.mrb[0].mxu0
      %v3561 = vadd.f32 0.0, %v3560
      %v3562 = vpop.f32.mrb[0].mxu0
      %3563 = vmatprep.mubr.bf16.mxu0 0
      %3564 = vmatmul.mubr.bf16.gmra.mrb[0].mxu0 %v3418
      %v3565 = vpop.f32.mrb[0].mxu0
      %v3566 = vadd.f32 0.0, %v3565
      %v3567 = vpop.f32.mrb[0].mxu0
      %v3568 = vpop.f32.mrb[0].mxu0
      %v3569 = vadd.f32 0.0, %v3568
      %v3570 = vpop.f32.mrb[0].mxu0
      %3571 = vmatprep.mubr.bf16.mxu0 0
      %3572 = vmatmul.mubr.bf16.gmra.mrb[0].mxu0 %v3426
      %v3573 = vpop.f32.mrb[0].mxu0
      %v3574 = vadd.f32 0.0, %v3573
      %v3575 = vpop.f32.mrb[0].mxu0
      %v3576 = vpop.f32.mrb[0].mxu0
      %v3577 = vadd.f32 0.0, %v3576
      %v3578 = vpop.f32.mrb[0].mxu0
      %3579 = vmatprep.mubr.bf16.mxu0 0
      %3580 = vmatmul.mubr.bf16.gmra.mrb[0].mxu0 %v3434
      %v3581 = vpop.f32.mrb[0].mxu0
      %v3582 = vadd.f32 0.0, %v3581
      %v3583 = vpop.f32.mrb[0].mxu0
      %v3584 = vpop.f32.mrb[0].mxu0
      %v3585 = vadd.f32 0.0, %v3584
      %v3586 = vpop.f32.mrb[0].mxu0
      %3587 = vmatprep.mubr.bf16.mxu0 0
      %3588 = vmatmul.mubr.bf16.gmra.mrb[0].mxu0 %v3442
      %v3589 = vpop.f32.mrb[0].mxu0
      %v3590 = vadd.f32 0.0, %v3589
      %v3591 = vpop.f32.mrb[0].mxu0
      %v3592 = vpop.f32.mrb[0].mxu0
      %v3593 = vadd.f32 0.0, %v3592
      %v3594 = vpop.f32.mrb[0].mxu0
      %3595 = vmatprep.mubr.bf16.mxu0 0
      %3596 = vmatmul.mubr.bf16.gmra.mrb[0].mxu0 %v3450
      %v3597 = vpop.f32.mrb[0].mxu0
      %v3598 = vadd.f32 0.0, %v3597
      %v3599 = vpop.f32.mrb[0].mxu0
      %v3600 = vpop.f32.mrb[0].mxu0
      %v3601 = vadd.f32 0.0, %v3600
      %v3602 = vpop.f32.mrb[0].mxu0
      %3603 = vmatprep.mubr.bf16.mxu0 0
      %3604 = vmatmul.mubr.bf16.gmra.mrb[0].mxu0 %v3458
      %v3605 = vpop.f32.mrb[0].mxu0
      %v3606 = vadd.f32 0.0, %v3605
      %v3607 = vpop.f32.mrb[0].mxu0
      %v3608 = vpop.f32.mrb[0].mxu0
      %v3609 = vadd.f32 0.0, %v3608
      %v3610 = vpop.f32.mrb[0].mxu0
      %3611 = vmatprep.mubr.bf16.mxu0 0
      %3612 = vmatmul.mubr.bf16.gmra.mrb[0].mxu0 %v3466
      %v3613 = vpop.f32.mrb[0].mxu0
      %v3614 = vadd.f32 0.0, %v3613
      %v3615 = vpop.f32.mrb[0].mxu0
      %v3616 = vpop.f32.mrb[0].mxu0
      %v3617 = vadd.f32 0.0, %v3616
      %v3618 = vpop.f32.mrb[0].mxu0
      %3619 = vdwg.mxu0
      %v3620 = vadd.f32 %v3306, %v3558
      %v3621 = vadd.f32 %v3307, %v3561
      %v3622 = vadd.f32 %v3308, %v3566
      %v3623 = vadd.f32 %v3309, %v3569
      %v3624 = vadd.f32 %v3310, %v3574
      %v3625 = vadd.f32 %v3311, %v3577
      %v3626 = vadd.f32 %v3312, %v3582
      %v3627 = vadd.f32 %v3313, %v3585
      %v3628 = vadd.f32 %v3314, %v3590
      %v3629 = vadd.f32 %v3315, %v3593
      %v3630 = vadd.f32 %v3316, %v3598
      %v3631 = vadd.f32 %v3317, %v3601
      %v3632 = vadd.f32 %v3318, %v3606
      %v3633 = vadd.f32 %v3319, %v3609
      %v3634 = vadd.f32 %v3320, %v3614
      %v3635 = vadd.f32 %v3321, %v3617
      %v3636 = vld [vmem:[%s165 + $0x18] sm:$0xe]
      %s3637 = scalar_lea.vmem %s1, 896
      %v3638 = vld [vmem:[%s3637] sm:$0xf]
      %v3639 = vld [vmem:[%s3637 + $0x4] sm:$0xf]
      %v3640 = vld [vmem:[%s3637 + $0x8] sm:$0xf]
      %v3641 = vld [vmem:[%s3637 + $0xc] sm:$0xf]
      %v3642 = vld [vmem:[%s3637 + $0x10] sm:$0xf]
      %v3643 = vld [vmem:[%s3637 + $0x14] sm:$0xf]
      %v3644 = vld [vmem:[%s3637 + $0x18] sm:$0xf]
      %v3645 = vld [vmem:[%s3637 + $0x1c] sm:$0xf]
      %v3646 = vld [vmem:[%s3637 + $0x20] sm:$0xf]
      %v3647 = vld [vmem:[%s3637 + $0x24] sm:$0xf]
      %v3648 = vld [vmem:[%s3637 + $0x28] sm:$0xf]
      %v3649 = vld [vmem:[%s3637 + $0x2c] sm:$0xf]
      %v3650 = vld [vmem:[%s3637 + $0x30] sm:$0xf]
      %v3651 = vld [vmem:[%s3637 + $0x34] sm:$0xf]
      %v3652 = vld [vmem:[%s3637 + $0x38] sm:$0xf]
      %v3653 = vld [vmem:[%s3637 + $0x3c] sm:$0xf]
      %v3655 = vunpack.c.l.b16 %v3636
      %v3656 = vpack.c.b16 %v3374, %v3655
      %v3657 = vrot.slane %v3656, 1
      %v3658 = vrot.slane %v3391, 1
      %v3659 = vsel %vm661, %v3657, %v3658
      %v3660 = vrot.slane %v3392, 1
      %v3661 = vsel %vm661, %v3658, %v3660
      %v3662 = vrot.slane %v3393, 1
      %v3663 = vsel %vm661, %v3660, %v3662
      %v3664 = vrot.slane %v3394, 1
      %v3665 = vsel %vm661, %v3662, %v3664
      %v3666 = vrot.slane %v3395, 1
      %v3667 = vsel %vm661, %v3664, %v3666
      %v3668 = vrot.slane %v3396, 1
      %v3669 = vsel %vm661, %v3666, %v3668
      %v3670 = vrot.slane %v3397, 1
      %v3671 = vsel %vm661, %v3668, %v3670
      %v3672 = vrot.slane %v3398, 1
      %v3673 = vsel %vm661, %v3670, %v3672
      %v3698 = vunpack.c.l.b16 %v3638
      %v3699 = vunpack.c.l.b16 %v3639
      %v3700 = vunpack.c.l.b16 %v3640
      %v3701 = vunpack.c.l.b16 %v3641
      %v3702 = vunpack.c.l.b16 %v3642
      %v3703 = vunpack.c.l.b16 %v3643
      %v3704 = vunpack.c.l.b16 %v3644
      %v3705 = vunpack.c.l.b16 %v3645
      %v3706 = vunpack.c.l.b16 %v3646
      %v3707 = vunpack.c.l.b16 %v3647
      %v3708 = vunpack.c.l.b16 %v3648
      %v3709 = vunpack.c.l.b16 %v3649
      %v3710 = vunpack.c.l.b16 %v3650
      %v3711 = vunpack.c.l.b16 %v3651
      %v3712 = vunpack.c.l.b16 %v3652
      %v3713 = vunpack.c.l.b16 %v3653
      %v3714 = vpack.c.b16 %v3699, %v3698
      %v3715 = vpack.c.b16 %v3701, %v3700
      %v3716 = vpack.c.b16 %v3703, %v3702
      %v3717 = vpack.c.b16 %v3705, %v3704
      %v3718 = vpack.c.b16 %v3707, %v3706
      %v3719 = vpack.c.b16 %v3709, %v3708
      %v3720 = vpack.c.b16 %v3711, %v3710
      %v3721 = vpack.c.b16 %v3713, %v3712
      %3730 = vmatprep.subr.bf16.mxu0 0
      %3731 = vmatpush1.bf16.msra.mxu0 %v3714
      %3732 = vmatprep.subr.bf16.mxu0 0
      %3733 = vmatpush1.bf16.msra.mxu0 %v3715
      %3734 = vmatprep.subr.bf16.mxu0 0
      %3735 = vmatpush1.bf16.msra.mxu0 %v3716
      %3736 = vmatprep.subr.bf16.mxu0 0
      %3737 = vmatpush1.bf16.msra.mxu0 %v3717
      %3738 = vmatprep.subr.bf16.mxu0 0
      %3739 = vmatpush1.bf16.msra.mxu0 %v3718
      %3740 = vmatprep.subr.bf16.mxu0 0
      %3741 = vmatpush1.bf16.msra.mxu0 %v3719
      %3742 = vmatprep.subr.bf16.mxu0 0
      %3743 = vmatpush1.bf16.msra.mxu0 %v3720
      %3744 = vmatprep.subr.bf16.mxu0 0
      %3745 = vmatpush1.bf16.msra.mxu0 %v3721
      %3746 = vmatprep.subr.bf16.mxu0 0
      %3747 = vmatpush1.bf16.msra.mxu0 0
      %3748 = vmatprep.subr.bf16.mxu0 0
      %3749 = vmatpush1.bf16.msra.mxu0 0
      %3750 = vmatprep.subr.bf16.mxu0 0
      %3751 = vmatpush1.bf16.msra.mxu0 0
      %3752 = vmatprep.subr.bf16.mxu0 0
      %3753 = vmatpush1.bf16.msra.mxu0 0
      %3754 = vmatprep.subr.bf16.mxu0 0
      %3755 = vmatpush1.bf16.msra.mxu0 0
      %3756 = vmatprep.subr.bf16.mxu0 0
      %3757 = vmatpush1.bf16.msra.mxu0 0
      %3758 = vmatprep.subr.bf16.mxu0 0
      %3759 = vmatpush1.bf16.msra.mxu0 0
      %3760 = vmatprep.subr.bf16.mxu0 0
      %3761 = vmatpush1.bf16.msra.mxu0 0
      %3762 = vmatprep.mubr.bf16.mxu0 0
      %3763 = vmatmul.mubr.bf16.gmra.mrb[0].mxu0 %v3659
      %v3764 = vpop.f32.mrb[0].mxu0
      %v3765 = vadd.f32 0.0, %v3764
      %v3766 = vpop.f32.mrb[0].mxu0
      %v3767 = vpop.f32.mrb[0].mxu0
      %v3768 = vadd.f32 0.0, %v3767
      %v3769 = vpop.f32.mrb[0].mxu0
      %3770 = vmatprep.mubr.bf16.mxu0 0
      %3771 = vmatmul.mubr.bf16.gmra.mrb[0].mxu0 %v3661
      %v3772 = vpop.f32.mrb[0].mxu0
      %v3773 = vadd.f32 0.0, %v3772
      %v3774 = vpop.f32.mrb[0].mxu0
      %v3775 = vpop.f32.mrb[0].mxu0
      %v3776 = vadd.f32 0.0, %v3775
      %v3777 = vpop.f32.mrb[0].mxu0
      %3778 = vmatprep.mubr.bf16.mxu0 0
      %3779 = vmatmul.mubr.bf16.gmra.mrb[0].mxu0 %v3663
      %v3780 = vpop.f32.mrb[0].mxu0
      %v3781 = vadd.f32 0.0, %v3780
      %v3782 = vpop.f32.mrb[0].mxu0
      %v3783 = vpop.f32.mrb[0].mxu0
      %v3784 = vadd.f32 0.0, %v3783
      %v3785 = vpop.f32.mrb[0].mxu0
      %3786 = vmatprep.mubr.bf16.mxu0 0
      %3787 = vmatmul.mubr.bf16.gmra.mrb[0].mxu0 %v3665
      %v3788 = vpop.f32.mrb[0].mxu0
      %v3789 = vadd.f32 0.0, %v3788
      %v3790 = vpop.f32.mrb[0].mxu0
      %v3791 = vpop.f32.mrb[0].mxu0
      %v3792 = vadd.f32 0.0, %v3791
      %v3793 = vpop.f32.mrb[0].mxu0
      %3794 = vmatprep.mubr.bf16.mxu0 0
      %3795 = vmatmul.mubr.bf16.gmra.mrb[0].mxu0 %v3667
      %v3796 = vpop.f32.mrb[0].mxu0
      %v3797 = vadd.f32 0.0, %v3796
      %v3798 = vpop.f32.mrb[0].mxu0
      %v3799 = vpop.f32.mrb[0].mxu0
      %v3800 = vadd.f32 0.0, %v3799
      %v3801 = vpop.f32.mrb[0].mxu0
      %3802 = vmatprep.mubr.bf16.mxu0 0
      %3803 = vmatmul.mubr.bf16.gmra.mrb[0].mxu0 %v3669
      %v3804 = vpop.f32.mrb[0].mxu0
      %v3805 = vadd.f32 0.0, %v3804
      %v3806 = vpop.f32.mrb[0].mxu0
      %v3807 = vpop.f32.mrb[0].mxu0
      %v3808 = vadd.f32 0.0, %v3807
      %v3809 = vpop.f32.mrb[0].mxu0
      %3810 = vmatprep.mubr.bf16.mxu0 0
      %3811 = vmatmul.mubr.bf16.gmra.mrb[0].mxu0 %v3671
      %v3812 = vpop.f32.mrb[0].mxu0
      %v3813 = vadd.f32 0.0, %v3812
      %v3814 = vpop.f32.mrb[0].mxu0
      %v3815 = vpop.f32.mrb[0].mxu0
      %v3816 = vadd.f32 0.0, %v3815
      %v3817 = vpop.f32.mrb[0].mxu0
      %3818 = vmatprep.mubr.bf16.mxu0 0
      %3819 = vmatmul.mubr.bf16.gmra.mrb[0].mxu0 %v3673
      %v3820 = vpop.f32.mrb[0].mxu0
      %v3821 = vadd.f32 0.0, %v3820
      %v3822 = vpop.f32.mrb[0].mxu0
      %v3823 = vpop.f32.mrb[0].mxu0
      %v3824 = vadd.f32 0.0, %v3823
      %v3825 = vpop.f32.mrb[0].mxu0
      %3826 = vdwg.mxu0
      %v3827 = vadd.f32 %v3620, %v3765
      %v3828 = vadd.f32 %v3621, %v3768
      %v3829 = vadd.f32 %v3622, %v3773
      %v3830 = vadd.f32 %v3623, %v3776
      %v3831 = vadd.f32 %v3624, %v3781
      %v3832 = vadd.f32 %v3625, %v3784
      %v3833 = vadd.f32 %v3626, %v3789
      %v3834 = vadd.f32 %v3627, %v3792
      %v3835 = vadd.f32 %v3628, %v3797
      %v3836 = vadd.f32 %v3629, %v3800
      %v3837 = vadd.f32 %v3630, %v3805
      %v3838 = vadd.f32 %v3631, %v3808
      %v3839 = vadd.f32 %v3632, %v3813
      %v3840 = vadd.f32 %v3633, %v3816
      %v3841 = vadd.f32 %v3634, %v3821
      %v3842 = vadd.f32 %v3635, %v3824
      %v3843 = vld [vmem:[%s165 + $0x58] sm:$0x3]
      %s3844 = scalar_lea.vmem %s1, 960
      %v3845 = vld [vmem:[%s3844] sm:$0xf]
      %v3846 = vld [vmem:[%s3844 + $0x4] sm:$0xf]
      %v3847 = vld [vmem:[%s3844 + $0x8] sm:$0xf]
      %v3848 = vld [vmem:[%s3844 + $0xc] sm:$0xf]
      %v3849 = vld [vmem:[%s3844 + $0x10] sm:$0xf]
      %v3850 = vld [vmem:[%s3844 + $0x14] sm:$0xf]
      %v3851 = vld [vmem:[%s3844 + $0x18] sm:$0xf]
      %v3852 = vld [vmem:[%s3844 + $0x1c] sm:$0xf]
      %v3853 = vld [vmem:[%s3844 + $0x20] sm:$0xf]
      %v3854 = vld [vmem:[%s3844 + $0x24] sm:$0xf]
      %v3855 = vld [vmem:[%s3844 + $0x28] sm:$0xf]
      %v3856 = vld [vmem:[%s3844 + $0x2c] sm:$0xf]
      %v3857 = vld [vmem:[%s3844 + $0x30] sm:$0xf]
      %v3858 = vld [vmem:[%s3844 + $0x34] sm:$0xf]
      %v3859 = vld [vmem:[%s3844 + $0x38] sm:$0xf]
      %v3860 = vld [vmem:[%s3844 + $0x3c] sm:$0xf]
      %v3862 = vunpack.c.l.b16 %v3843
      %v3863 = vpack.c.b16 %v3862, %v3862
      %v3865 = vshrl.u32 %v3656, 16
      %v3867 = vrot.slane %v3865, 1
      %v3868 = vshll.u32 %v3656, 16
      %v3870 = vrot.slane %v3868, 2
      %v3871 = vor.u32 %v3867, %v3870
      %v3872 = vrot.slane %v3411, 1
      %v3873 = vrot.slane %v3407, 2
      %v3874 = vor.u32 %v3872, %v3873
      %v3875 = vsel %vm869, %v3871, %v3874
      %v3876 = vrot.slane %v3419, 1
      %v3877 = vrot.slane %v3415, 2
      %v3878 = vor.u32 %v3876, %v3877
      %v3879 = vsel %vm869, %v3874, %v3878
      %v3880 = vrot.slane %v3427, 1
      %v3881 = vrot.slane %v3423, 2
      %v3882 = vor.u32 %v3880, %v3881
      %v3883 = vsel %vm869, %v3878, %v3882
      %v3884 = vrot.slane %v3435, 1
      %v3885 = vrot.slane %v3431, 2
      %v3886 = vor.u32 %v3884, %v3885
      %v3887 = vsel %vm869, %v3882, %v3886
      %v3888 = vrot.slane %v3443, 1
      %v3889 = vrot.slane %v3439, 2
      %v3890 = vor.u32 %v3888, %v3889
      %v3891 = vsel %vm869, %v3886, %v3890
      %v3892 = vrot.slane %v3451, 1
      %v3893 = vrot.slane %v3447, 2
      %v3894 = vor.u32 %v3892, %v3893
      %v3895 = vsel %vm869, %v3890, %v3894
      %v3896 = vrot.slane %v3459, 1
      %v3897 = vrot.slane %v3455, 2
      %v3898 = vor.u32 %v3896, %v3897
      %v3899 = vsel %vm869, %v3894, %v3898
      %v3901 = vshrl.u32 %v3863, 16
      %v3903 = vrot.slane %v3901, 1
      %v3904 = vshll.u32 %v3863, 16
      %v3906 = vrot.slane %v3904, 2
      %v3907 = vor.u32 %v3903, %v3906
      %v3908 = vsel %vm869, %v3898, %v3907
      %v3933 = vunpack.c.l.b16 %v3845
      %v3934 = vunpack.c.l.b16 %v3846
      %v3935 = vunpack.c.l.b16 %v3847
      %v3936 = vunpack.c.l.b16 %v3848
      %v3937 = vunpack.c.l.b16 %v3849
      %v3938 = vunpack.c.l.b16 %v3850
      %v3939 = vunpack.c.l.b16 %v3851
      %v3940 = vunpack.c.l.b16 %v3852
      %v3941 = vunpack.c.l.b16 %v3853
      %v3942 = vunpack.c.l.b16 %v3854
      %v3943 = vunpack.c.l.b16 %v3855
      %v3944 = vunpack.c.l.b16 %v3856
      %v3945 = vunpack.c.l.b16 %v3857
      %v3946 = vunpack.c.l.b16 %v3858
      %v3947 = vunpack.c.l.b16 %v3859
      %v3948 = vunpack.c.l.b16 %v3860
      %v3949 = vpack.c.b16 %v3934, %v3933
      %v3950 = vpack.c.b16 %v3936, %v3935
      %v3951 = vpack.c.b16 %v3938, %v3937
      %v3952 = vpack.c.b16 %v3940, %v3939
      %v3953 = vpack.c.b16 %v3942, %v3941
      %v3954 = vpack.c.b16 %v3944, %v3943
      %v3955 = vpack.c.b16 %v3946, %v3945
      %v3956 = vpack.c.b16 %v3948, %v3947
      %3965 = vmatprep.subr.bf16.mxu0 0
      %3966 = vmatpush1.bf16.msra.mxu0 %v3949
      %3967 = vmatprep.subr.bf16.mxu0 0
      %3968 = vmatpush1.bf16.msra.mxu0 %v3950
      %3969 = vmatprep.subr.bf16.mxu0 0
      %3970 = vmatpush1.bf16.msra.mxu0 %v3951
      %3971 = vmatprep.subr.bf16.mxu0 0
      %3972 = vmatpush1.bf16.msra.mxu0 %v3952
      %3973 = vmatprep.subr.bf16.mxu0 0
      %3974 = vmatpush1.bf16.msra.mxu0 %v3953
      %3975 = vmatprep.subr.bf16.mxu0 0
      %3976 = vmatpush1.bf16.msra.mxu0 %v3954
      %3977 = vmatprep.subr.bf16.mxu0 0
      %3978 = vmatpush1.bf16.msra.mxu0 %v3955
      %3979 = vmatprep.subr.bf16.mxu0 0
      %3980 = vmatpush1.bf16.msra.mxu0 %v3956
      %3981 = vmatprep.subr.bf16.mxu0 0
      %3982 = vmatpush1.bf16.msra.mxu0 0
      %3983 = vmatprep.subr.bf16.mxu0 0
      %3984 = vmatpush1.bf16.msra.mxu0 0
      %3985 = vmatprep.subr.bf16.mxu0 0
      %3986 = vmatpush1.bf16.msra.mxu0 0
      %3987 = vmatprep.subr.bf16.mxu0 0
      %3988 = vmatpush1.bf16.msra.mxu0 0
      %3989 = vmatprep.subr.bf16.mxu0 0
      %3990 = vmatpush1.bf16.msra.mxu0 0
      %3991 = vmatprep.subr.bf16.mxu0 0
      %3992 = vmatpush1.bf16.msra.mxu0 0
      %3993 = vmatprep.subr.bf16.mxu0 0
      %3994 = vmatpush1.bf16.msra.mxu0 0
      %3995 = vmatprep.subr.bf16.mxu0 0
      %3996 = vmatpush1.bf16.msra.mxu0 0
      %3997 = vmatprep.mubr.bf16.mxu0 0
      %3998 = vmatmul.mubr.bf16.gmra.mrb[0].mxu0 %v3875
      %v3999 = vpop.f32.mrb[0].mxu0
      %v4000 = vadd.f32 0.0, %v3999
      %v4001 = vpop.f32.mrb[0].mxu0
      %v4002 = vpop.f32.mrb[0].mxu0
      %v4003 = vadd.f32 0.0, %v4002
      %v4004 = vpop.f32.mrb[0].mxu0
      %4005 = vmatprep.mubr.bf16.mxu0 0
      %4006 = vmatmul.mubr.bf16.gmra.mrb[0].mxu0 %v3879
      %v4007 = vpop.f32.mrb[0].mxu0
      %v4008 = vadd.f32 0.0, %v4007
      %v4009 = vpop.f32.mrb[0].mxu0
      %v4010 = vpop.f32.mrb[0].mxu0
      %v4011 = vadd.f32 0.0, %v4010
      %v4012 = vpop.f32.mrb[0].mxu0
      %4013 = vmatprep.mubr.bf16.mxu0 0
      %4014 = vmatmul.mubr.bf16.gmra.mrb[0].mxu0 %v3883
      %v4015 = vpop.f32.mrb[0].mxu0
      %v4016 = vadd.f32 0.0, %v4015
      %v4017 = vpop.f32.mrb[0].mxu0
      %v4018 = vpop.f32.mrb[0].mxu0
      %v4019 = vadd.f32 0.0, %v4018
      %v4020 = vpop.f32.mrb[0].mxu0
      %4021 = vmatprep.mubr.bf16.mxu0 0
      %4022 = vmatmul.mubr.bf16.gmra.mrb[0].mxu0 %v3887
      %v4023 = vpop.f32.mrb[0].mxu0
      %v4024 = vadd.f32 0.0, %v4023
      %v4025 = vpop.f32.mrb[0].mxu0
      %v4026 = vpop.f32.mrb[0].mxu0
      %v4027 = vadd.f32 0.0, %v4026
      %v4028 = vpop.f32.mrb[0].mxu0
      %4029 = vmatprep.mubr.bf16.mxu0 0
      %4030 = vmatmul.mubr.bf16.gmra.mrb[0].mxu0 %v3891
      %v4031 = vpop.f32.mrb[0].mxu0
      %v4032 = vadd.f32 0.0, %v4031
      %v4033 = vpop.f32.mrb[0].mxu0
      %v4034 = vpop.f32.mrb[0].mxu0
      %v4035 = vadd.f32 0.0, %v4034
      %v4036 = vpop.f32.mrb[0].mxu0
      %4037 = vmatprep.mubr.bf16.mxu0 0
      %4038 = vmatmul.mubr.bf16.gmra.mrb[0].mxu0 %v3895
      %v4039 = vpop.f32.mrb[0].mxu0
      %v4040 = vadd.f32 0.0, %v4039
      %v4041 = vpop.f32.mrb[0].mxu0
      %v4042 = vpop.f32.mrb[0].mxu0
      %v4043 = vadd.f32 0.0, %v4042
      %v4044 = vpop.f32.mrb[0].mxu0
      %4045 = vmatprep.mubr.bf16.mxu0 0
      %4046 = vmatmul.mubr.bf16.gmra.mrb[0].mxu0 %v3899
      %v4047 = vpop.f32.mrb[0].mxu0
      %v4048 = vadd.f32 0.0, %v4047
      %v4049 = vpop.f32.mrb[0].mxu0
      %v4050 = vpop.f32.mrb[0].mxu0
      %v4051 = vadd.f32 0.0, %v4050
      %v4052 = vpop.f32.mrb[0].mxu0
      %4053 = vmatprep.mubr.bf16.mxu0 0
      %4054 = vmatmul.mubr.bf16.gmra.mrb[0].mxu0 %v3908
      %v4055 = vpop.f32.mrb[0].mxu0
      %v4056 = vadd.f32 0.0, %v4055
      %v4057 = vpop.f32.mrb[0].mxu0
      %v4058 = vpop.f32.mrb[0].mxu0
      %v4059 = vadd.f32 0.0, %v4058
      %v4060 = vpop.f32.mrb[0].mxu0
      %4061 = vdwg.mxu0
      %v4062 = vadd.f32 %v3827, %v4000
      %v4063 = vadd.f32 %v3828, %v4003
      %v4064 = vadd.f32 %v3829, %v4008
      %v4065 = vadd.f32 %v3830, %v4011
      %v4066 = vadd.f32 %v3831, %v4016
      %v4067 = vadd.f32 %v3832, %v4019
      %v4068 = vadd.f32 %v3833, %v4024
      %v4069 = vadd.f32 %v3834, %v4027
      %v4070 = vadd.f32 %v3835, %v4032
      %v4071 = vadd.f32 %v3836, %v4035
      %v4072 = vadd.f32 %v3837, %v4040
      %v4073 = vadd.f32 %v3838, %v4043
      %v4074 = vadd.f32 %v3839, %v4048
      %v4075 = vadd.f32 %v3840, %v4051
      %v4076 = vadd.f32 %v3841, %v4056
      %v4077 = vadd.f32 %v3842, %v4059
      %v4078 = vld [vmem:[%s2] sm:$0x1]
      %v4080 = vlaneseq
      %v4081 = vshrl.u32 %v4080, 7
      %v4082 = vsub.s32 0, %v4081
      %v4083 = vrot.slane %v4078, %v4082
      %v4085 = vadd.f32 %v4062, %v4083
      %v4086 = vadd.f32 %v4063, %v4083
      %v4087 = vadd.f32 %v4064, %v4083
      %v4088 = vadd.f32 %v4065, %v4083
      %v4089 = vadd.f32 %v4066, %v4083
      %v4090 = vadd.f32 %v4067, %v4083
      %v4091 = vadd.f32 %v4068, %v4083
      %v4092 = vadd.f32 %v4069, %v4083
      %v4093 = vadd.f32 %v4070, %v4083
      %v4094 = vadd.f32 %v4071, %v4083
      %v4095 = vadd.f32 %v4072, %v4083
      %v4096 = vadd.f32 %v4073, %v4083
      %v4097 = vadd.f32 %v4074, %v4083
      %v4098 = vadd.f32 %v4075, %v4083
      %v4099 = vadd.f32 %v4076, %v4083
      %v4100 = vadd.f32 %v4077, %v4083
      %v4101 = vmax.f32 %v4085, 0.0
      %v4102 = vmax.f32 %v4086, 0.0
      %v4103 = vmax.f32 %v4087, 0.0
      %v4104 = vmax.f32 %v4088, 0.0
      %v4105 = vmax.f32 %v4089, 0.0
      %v4106 = vmax.f32 %v4090, 0.0
      %v4107 = vmax.f32 %v4091, 0.0
      %v4108 = vmax.f32 %v4092, 0.0
      %v4109 = vmax.f32 %v4093, 0.0
      %v4110 = vmax.f32 %v4094, 0.0
      %v4111 = vmax.f32 %v4095, 0.0
      %v4112 = vmax.f32 %v4096, 0.0
      %v4113 = vmax.f32 %v4097, 0.0
      %v4114 = vmax.f32 %v4098, 0.0
      %v4115 = vmax.f32 %v4099, 0.0
      %v4116 = vmax.f32 %v4100, 0.0
      %v4117 = vpack.c.bf16 %v4102, %v4101
      %v4118 = vpack.c.bf16 %v4104, %v4103
      %v4119 = vpack.c.bf16 %v4106, %v4105
      %v4120 = vpack.c.bf16 %v4108, %v4107
      %v4121 = vpack.c.bf16 %v4110, %v4109
      %v4122 = vpack.c.bf16 %v4112, %v4111
      %v4123 = vpack.c.bf16 %v4114, %v4113
      %v4124 = vpack.c.bf16 %v4116, %v4115
      %v4133 = vunpack.c.l.b16 %v4117
      %v4134 = vunpack.c.h.b16 %v4117
      %v4135 = vunpack.c.l.b16 %v4118
      %v4136 = vunpack.c.h.b16 %v4118
      %v4137 = vunpack.c.l.b16 %v4119
      %v4138 = vunpack.c.h.b16 %v4119
      %v4139 = vunpack.c.l.b16 %v4120
      %v4140 = vunpack.c.h.b16 %v4120
      %v4141 = vunpack.c.l.b16 %v4121
      %v4142 = vunpack.c.h.b16 %v4121
      %v4143 = vunpack.c.l.b16 %v4122
      %v4144 = vunpack.c.h.b16 %v4122
      %v4145 = vunpack.c.l.b16 %v4123
      %v4146 = vunpack.c.h.b16 %v4123
      %v4147 = vunpack.c.l.b16 %v4124
      %v4148 = vunpack.c.h.b16 %v4124
      %v4149 = vpack.c.b16 %v4133, %v4133
      %v4150 = vpack.c.b16 %v4134, %v4134
      %v4151 = vpack.c.b16 %v4135, %v4135
      %v4152 = vpack.c.b16 %v4136, %v4136
      %v4153 = vpack.c.b16 %v4137, %v4137
      %v4154 = vpack.c.b16 %v4138, %v4138
      %v4155 = vpack.c.b16 %v4139, %v4139
      %v4156 = vpack.c.b16 %v4140, %v4140
      %v4157 = vpack.c.b16 %v4141, %v4141
      %v4158 = vpack.c.b16 %v4142, %v4142
      %v4159 = vpack.c.b16 %v4143, %v4143
      %v4160 = vpack.c.b16 %v4144, %v4144
      %v4161 = vpack.c.b16 %v4145, %v4145
      %v4162 = vpack.c.b16 %v4146, %v4146
      %v4163 = vpack.c.b16 %v4147, %v4147
      %v4164 = vpack.c.b16 %v4148, %v4148
      %4181 = vst [vmem:[%s170] sm:$0xf] %v4149
      %4182 = vst [vmem:[%s170 + $0x4] sm:$0xf] %v4150
      %4183 = vst [vmem:[%s170 + $0x8] sm:$0xf] %v4151
      %4184 = vst [vmem:[%s170 + $0xc] sm:$0xf] %v4152
      %4185 = vst [vmem:[%s170 + $0x10] sm:$0xf] %v4153
      %4186 = vst [vmem:[%s170 + $0x14] sm:$0xf] %v4154
      %4187 = vst [vmem:[%s170 + $0x18] sm:$0xf] %v4155
      %4188 = vst [vmem:[%s170 + $0x1c] sm:$0xf] %v4156
      %4189 = vst [vmem:[%s170 + $0x20] sm:$0xf] %v4157
      %4190 = vst [vmem:[%s170 + $0x24] sm:$0xf] %v4158
      %4191 = vst [vmem:[%s170 + $0x28] sm:$0xf] %v4159
      %4192 = vst [vmem:[%s170 + $0x2c] sm:$0xf] %v4160
      %4193 = vst [vmem:[%s170 + $0x30] sm:$0xf] %v4161
      %4194 = vst [vmem:[%s170 + $0x34] sm:$0xf] %v4162
      %4195 = vst [vmem:[%s170 + $0x38] sm:$0xf] %v4163
      %4196 = vst [vmem:[%s170 + $0x3c] sm:$0xf] %v4164
      %p4197 = scmp.lt.s32.totalorder %s14, 1
      %s4198 = scalar_select %p4197, %s14, 1
      %s4199 = smul.addr %s4198, 16
      %s4200 = smul.addr %s4199, 4
      %s4201 = scalar_lea.vmem %s3, %s4200
      // Predicated region
      $region33: #{convnext_encoder_forward.13} parent=31 // pred_check
        %p4202 = pneg %p100
      $region34: #{convnext_encoder_forward.13} parent=31 // pred_check_branch
        %4204 = sbr.rel (%p4202) target = $region36
      $region35: #{convnext_encoder_forward.13} parent=31 // pred_region
        _
      $region36: #{convnext_encoder_forward.13} parent=31 // pred_fallthru
        _
    $region32: #{convnext_encoder_forward.13} parent=5 // pred_fallthru
      _
    %p4205 = scmp.le.s32.totalorder 2, %s9
    // Predicated region
    $region37: #{convnext_encoder_forward.13} parent=5 // pred_check
      %p4206 = pneg %p4205
    $region38: #{convnext_encoder_forward.13} parent=5 // pred_check_branch
      %4208 = sbr.rel (%p4206) target = $region40
    $region39: #{convnext_encoder_forward.13} parent=5 // pred_region
      %s4209 = ssub.s32 %s9, 2
      // Predicated region
      $region41: #{convnext_encoder_forward.13} parent=39 // pred_check
        %p4210 = pneg %p106
      $region42: #{convnext_encoder_forward.13} parent=39 // pred_check_branch
        %4212 = sbr.rel (%p4210) target = $region44
      $region43: #{convnext_encoder_forward.13} parent=39 // pred_region
        %p4213 = scmp.lt.s32.totalorder %s15, 1
        %s4214 = scalar_select %p4213, %s15, 1
        %s4215 = smul.addr %s4214, 16
        %s4216 = smul.addr %s4215, 4
        %s4217 = scalar_lea.vmem %s3, %s4216
      $region44: #{convnext_encoder_forward.13} parent=39 // pred_fallthru
        _
    $region40: #{convnext_encoder_forward.13} parent=5 // pred_fallthru
      _
  $region6: #{convnext_encoder_forward.13} parent=0 // loop_footer
    %s13 = sadd.s32 1, %s9
  $region7: #{convnext_encoder_forward.13} parent=0 // loop_footer_branch
    %8 = sbr.rel target = $region3
  $region8: #{convnext_encoder_forward.13} parent=0 // loop_exit
    _

// kernel: convnext_encoder_forward.23
$region0: #{convnext_encoder_forward.23}
  #allocation0 [shape = 'u32[]', space=smem, size = 0x4, offset = 0x4, fixed_abs, tag = 'smem constant byte address 0x4 - core index']
  #allocation1 [shape = 'u32[144,128]{1,0:T(1,128)}', space=vmem, size = 0x12000, scoped, tag = 'internal scratch']
  %s0 = inlined_call_operand.vmem [shape: bf16[2,40,128], index: 0, kind: input, shape index: {}]
  %s1 = inlined_call_operand.vmem [shape: bf16[9,128,128], index: 1, kind: input, shape index: {}]
  %s2 = inlined_call_operand.vmem [shape: f32[1,128], index: 2, kind: input, shape index: {}]
  %s3 = inlined_call_operand.vmem [shape: bf16[2,16,128], index: 3, kind: output, shape index: {}]
  %s4 = sld [smem:[#allocation0]]
  $region45: #{convnext_encoder_forward.23} parent=0
    _
  %s6 = ssub.s32 1, %s4
  %s7 = scalar_select 0, %s6, %s4
  loop: start=0, step=1, limit=4
  $region2: #{convnext_encoder_forward.23} parent=0 // loop_pre_header
    _
  $region3: #{convnext_encoder_forward.23} parent=0 // loop_header
    %s9 = sphi 0, %s13
    %p10 = scmp.ge.s32.totalorder %s9, 4
    %s19 = sphi 0, %s21
    %s22 = sphi 0, %s19
    %s23 = sphi 0, %s22
    %s39 = sphi 0, %s23
    %s43 = sphi 0, %s43
    %s45 = sphi 0, %s43
    %s46 = sphi 0, %s45
    %s60 = sphi 0, %s46
    %s64 = sphi 0, %s64
    %s66 = sphi 0, %s64
    %s67 = sphi 0, %s66
    %s81 = sphi 0, %s67
    %s87 = sphi 0, %s89
    %s90 = sphi 0, %s87
    %s91 = sphi 0, %s90
    %s107 = sphi 0, %s91
  $region4: #{convnext_encoder_forward.23} parent=0 // loop_header_branch
    %12 = sbr.rel (%p10) target = $region8
  $region5: #{convnext_encoder_forward.23} parent=0 // loop_body
    %s14 = ssub.s32 %s9, 1
    %s15 = ssub.s32 %s9, 2
    %s16 = sadd.s32 %s9, 1
    %s17 = ssub.s32 %s9, %s16
    %p18 = scmp.eq.s32.totalorder %s17, 0
    %s20 = sadd.s32 %s19, 1
    %s21 = scalar_select %p18, %s19, %s20
    %p24 = pneg %p18
    %p25 = scmp.eq.s32.totalorder %s9, 1
    %p26 = por %p24, %p25
    %p27 = scmp.ne.s32.totalorder %s19, %s22
    %p28 = scmp.eq.s32.totalorder %s9, 0
    %p29 = por %p27, %p28
    %p30 = scmp.ne.s32.totalorder %s19, %s22
    %p31 = scmp.eq.s32.totalorder %s14, 1
    %p32 = por %p30, %p31
    %p33 = scmp.ne.s32.totalorder %s22, %s23
    %p34 = scmp.eq.s32.totalorder %s14, 0
    %p35 = por %p33, %p34
    %p36 = scmp.ne.s32.totalorder %s22, %s23
    %p37 = scmp.eq.s32.totalorder %s15, 1
    %p38 = por %p36, %p37
    %p40 = scmp.ne.s32.totalorder %s23, %s39
    %p41 = scmp.eq.s32.totalorder %s15, 0
    %p42 = por %p40, %p41
    %s44 = sadd.s32 %s43, 1
    %p47 = scmp.eq.s32.totalorder %s9, 1
    %p48 = scmp.ne.s32.totalorder %s43, %s45
    %p49 = scmp.eq.s32.totalorder %s9, 0
    %p50 = por %p48, %p49
    %p51 = scmp.ne.s32.totalorder %s43, %s45
    %p52 = scmp.eq.s32.totalorder %s14, 1
    %p53 = por %p51, %p52
    %p54 = scmp.ne.s32.totalorder %s45, %s46
    %p55 = scmp.eq.s32.totalorder %s14, 0
    %p56 = por %p54, %p55
    %p57 = scmp.ne.s32.totalorder %s45, %s46
    %p58 = scmp.eq.s32.totalorder %s15, 1
    %p59 = por %p57, %p58
    %p61 = scmp.ne.s32.totalorder %s46, %s60
    %p62 = scmp.eq.s32.totalorder %s15, 0
    %p63 = por %p61, %p62
    %s65 = sadd.s32 %s64, 1
    %p68 = scmp.eq.s32.totalorder %s9, 1
    %p69 = scmp.ne.s32.totalorder %s64, %s66
    %p70 = scmp.eq.s32.totalorder %s9, 0
    %p71 = por %p69, %p70
    %p72 = scmp.ne.s32.totalorder %s64, %s66
    %p73 = scmp.eq.s32.totalorder %s14, 1
    %p74 = por %p72, %p73
    %p75 = scmp.ne.s32.totalorder %s66, %s67
    %p76 = scmp.eq.s32.totalorder %s14, 0
    %p77 = por %p75, %p76
    %p78 = scmp.ne.s32.totalorder %s66, %s67
    %p79 = scmp.eq.s32.totalorder %s15, 1
    %p80 = por %p78, %p79
    %p82 = scmp.ne.s32.totalorder %s67, %s81
    %p83 = scmp.eq.s32.totalorder %s15, 0
    %p84 = por %p82, %p83
    %s85 = ssub.s32 %s9, %s16
    %p86 = scmp.eq.s32.totalorder %s85, 0
    %s88 = sadd.s32 %s87, 1
    %s89 = scalar_select %p86, %s87, %s88
    %p92 = pneg %p86
    %p93 = scmp.eq.s32.totalorder %s9, 1
    %p94 = por %p92, %p93
    %p95 = scmp.ne.s32.totalorder %s87, %s90
    %p96 = scmp.eq.s32.totalorder %s9, 0
    %p97 = por %p95, %p96
    %p98 = scmp.ne.s32.totalorder %s87, %s90
    %p99 = scmp.eq.s32.totalorder %s14, 1
    %p100 = por %p98, %p99
    %p101 = scmp.ne.s32.totalorder %s90, %s91
    %p102 = scmp.eq.s32.totalorder %s14, 0
    %p103 = por %p101, %p102
    %p104 = scmp.ne.s32.totalorder %s90, %s91
    %p105 = scmp.eq.s32.totalorder %s15, 1
    %p106 = por %p104, %p105
    %p108 = scmp.ne.s32.totalorder %s91, %s107
    %p109 = scmp.eq.s32.totalorder %s15, 0
    %p110 = por %p108, %p109
    %p111 = scmp.le.s32.totalorder 1, %s9
    %p112 = scmp.lt.s32.totalorder %s9, 3
    %p113 = pnand %p111, %p112
    %p114 = pneg %p113
    // Predicated region
    $region9: #{convnext_encoder_forward.23} parent=5 // pred_check
      _
    $region10: #{convnext_encoder_forward.23} parent=5 // pred_check_branch
      %116 = sbr.rel (%p113) target = $region12
    $region11: #{convnext_encoder_forward.23} parent=5 // pred_region
      %s117 = ssub.s32 %s9, 1
      // Predicated region
      $region13: #{convnext_encoder_forward.23} parent=11 // pred_check
        %p118 = pneg %p56
      $region14: #{convnext_encoder_forward.23} parent=11 // pred_check_branch
        %120 = sbr.rel (%p118) target = $region16
      $region15: #{convnext_encoder_forward.23} parent=11 // pred_region
        _
      $region16: #{convnext_encoder_forward.23} parent=11 // pred_fallthru
        _
      // Predicated region
      $region17: #{convnext_encoder_forward.23} parent=11 // pred_check
        %p121 = pneg %p77
      $region18: #{convnext_encoder_forward.23} parent=11 // pred_check_branch
        %123 = sbr.rel (%p121) target = $region20
      $region19: #{convnext_encoder_forward.23} parent=11 // pred_region
        _
      $region20: #{convnext_encoder_forward.23} parent=11 // pred_fallthru
        _
    $region12: #{convnext_encoder_forward.23} parent=5 // pred_fallthru
      _
    %p124 = scmp.lt.s32.totalorder %s9, 2
    // Predicated region
    $region21: #{convnext_encoder_forward.23} parent=5 // pred_check
      %p125 = pneg %p124
    $region22: #{convnext_encoder_forward.23} parent=5 // pred_check_branch
      %127 = sbr.rel (%p125) target = $region24
    $region23: #{convnext_encoder_forward.23} parent=5 // pred_region
      // Predicated region
      $region25: #{convnext_encoder_forward.23} parent=23 // pred_check
        %p128 = pneg %p29
      $region26: #{convnext_encoder_forward.23} parent=23 // pred_check_branch
        %130 = sbr.rel (%p128) target = $region28
      $region27: #{convnext_encoder_forward.23} parent=23 // pred_region
        %p131 = scmp.lt.s32.totalorder %s9, 1
        %s132 = scalar_select %p131, %s9, 1
        %s133 = smul.addr %s132, 5
        %s134 = smul.addr %s133, 4
        %s135 = scalar_lea.vmem %s0, %s134
      $region28: #{convnext_encoder_forward.23} parent=23 // pred_fallthru
        _
    $region24: #{convnext_encoder_forward.23} parent=5 // pred_fallthru
      _
    %p136 = scmp.le.s32.totalorder 1, %s9
    %p137 = scmp.lt.s32.totalorder %s9, 3
    %p138 = pnand %p136, %p137
    %p139 = pneg %p138
    // Predicated region
    $region29: #{convnext_encoder_forward.23} parent=5 // pred_check
      _
    $region30: #{convnext_encoder_forward.23} parent=5 // pred_check_branch
      %141 = sbr.rel (%p138) target = $region32
    $region31: #{convnext_encoder_forward.23} parent=5 // pred_region
      %s142 = ssub.s32 %s9, 1
      %p143 = scmp.lt.s32.totalorder %s14, 1
      %s144 = scalar_select %p143, %s14, 1
      %s145 = smul.addr %s144, 5
      %s146 = smul.addr %s145, 4
      %s147 = scalar_lea.vmem %s0, %s146
      %p148 = pneg %p35
      %p149 = pneg %p32
      %p150 = pneg %p56
      %p151 = pneg %p53
      %p152 = pneg %p77
      %p153 = pneg %p74
      %p154 = pneg %p103
      %p155 = pneg %p100
      %p156 = scmp.lt.s32.totalorder %s14, 1
      %s157 = scalar_select %p156, %s14, 1
      %s158 = smul.addr %s157, 2
      %s159 = smul.addr %s158, 4
      %s160 = scalar_lea.vmem %s3, %s159
      %p161 = scmp.lt.s32.totalorder %s14, 1
      %s162 = scalar_select %p161, %s14, 1
      %s163 = smul.addr %s162, 5
      %s164 = smul.addr %s163, 4
      %s165 = scalar_lea.vmem %s0, %s164
      %p166 = scmp.lt.s32.totalorder %s14, 1
      %s167 = scalar_select %p166, %s14, 1
      %s168 = smul.addr %s167, 2
      %s169 = smul.addr %s168, 4
      %s170 = scalar_lea.vmem %s3, %s169
      %v172 = vld [vmem:[%s165] sm:$0xf]
      %v173 = vld [vmem:[%s165 + $0x4] sm:$0xf]
      %v174 = vld [vmem:[%s1] sm:$0xf]
      %v175 = vld [vmem:[%s1 + $0x4] sm:$0xf]
      %v176 = vld [vmem:[%s1 + $0x8] sm:$0xf]
      %v177 = vld [vmem:[%s1 + $0xc] sm:$0xf]
      %v178 = vld [vmem:[%s1 + $0x10] sm:$0xf]
      %v179 = vld [vmem:[%s1 + $0x14] sm:$0xf]
      %v180 = vld [vmem:[%s1 + $0x18] sm:$0xf]
      %v181 = vld [vmem:[%s1 + $0x1c] sm:$0xf]
      %v182 = vld [vmem:[%s1 + $0x20] sm:$0xf]
      %v183 = vld [vmem:[%s1 + $0x24] sm:$0xf]
      %v184 = vld [vmem:[%s1 + $0x28] sm:$0xf]
      %v185 = vld [vmem:[%s1 + $0x2c] sm:$0xf]
      %v186 = vld [vmem:[%s1 + $0x30] sm:$0xf]
      %v187 = vld [vmem:[%s1 + $0x34] sm:$0xf]
      %v188 = vld [vmem:[%s1 + $0x38] sm:$0xf]
      %v189 = vld [vmem:[%s1 + $0x3c] sm:$0xf]
      %v190 = vld [vmem:[%s165 + $0x8] sm:$0x1]
      %s191 = scalar_lea.vmem %s1, 64
      %v192 = vld [vmem:[%s191] sm:$0xf]
      %v193 = vld [vmem:[%s191 + $0x4] sm:$0xf]
      %v194 = vld [vmem:[%s191 + $0x8] sm:$0xf]
      %v195 = vld [vmem:[%s191 + $0xc] sm:$0xf]
      %v196 = vld [vmem:[%s191 + $0x10] sm:$0xf]
      %v197 = vld [vmem:[%s191 + $0x14] sm:$0xf]
      %v198 = vld [vmem:[%s191 + $0x18] sm:$0xf]
      %v199 = vld [vmem:[%s191 + $0x1c] sm:$0xf]
      %v200 = vld [vmem:[%s191 + $0x20] sm:$0xf]
      %v201 = vld [vmem:[%s191 + $0x24] sm:$0xf]
      %v202 = vld [vmem:[%s191 + $0x28] sm:$0xf]
      %v203 = vld [vmem:[%s191 + $0x2c] sm:$0xf]
      %v204 = vld [vmem:[%s191 + $0x30] sm:$0xf]
      %v205 = vld [vmem:[%s191 + $0x34] sm:$0xf]
      %v206 = vld [vmem:[%s191 + $0x38] sm:$0xf]
      %v207 = vld [vmem:[%s191 + $0x3c] sm:$0xf]
      %v211 = vunpack.c.l.b16 %v172
      %v212 = vunpack.c.l.b16 %v173
      %v213 = vunpack.c.l.b16 %v190
      %v214 = vpack.c.b16 %v212, %v211
      %v215 = vpack.c.b16 %v213, %v213
      %vm216 = vsmask.f32 7424
      %v218 = vshrl.u32 %v214, 16
      %v220 = vshll.u32 %v214, 16
      %v222 = vrot.slane %v220, 1
      %v223 = vor.u32 %v218, %v222
      %v225 = vshll.u32 %v215, 16
      %v227 = vrot.slane %v225, 1
      %v228 = vsel %vm216, %v223, %v227
      %v246 = vunpack.c.l.b16 %v192
      %v247 = vunpack.c.l.b16 %v193
      %v248 = vunpack.c.l.b16 %v194
      %v249 = vunpack.c.l.b16 %v195
      %v250 = vunpack.c.l.b16 %v196
      %v251 = vunpack.c.l.b16 %v197
      %v252 = vunpack.c.l.b16 %v198
      %v253 = vunpack.c.l.b16 %v199
      %v254 = vunpack.c.l.b16 %v200
      %v255 = vunpack.c.l.b16 %v201
      %v256 = vunpack.c.l.b16 %v202
      %v257 = vunpack.c.l.b16 %v203
      %v258 = vunpack.c.l.b16 %v204
      %v259 = vunpack.c.l.b16 %v205
      %v260 = vunpack.c.l.b16 %v206
      %v261 = vunpack.c.l.b16 %v207
      %v262 = vpack.c.b16 %v247, %v246
      %v263 = vpack.c.b16 %v249, %v248
      %v264 = vpack.c.b16 %v251, %v250
      %v265 = vpack.c.b16 %v253, %v252
      %v266 = vpack.c.b16 %v255, %v254
      %v267 = vpack.c.b16 %v257, %v256
      %v268 = vpack.c.b16 %v259, %v258
      %v269 = vpack.c.b16 %v261, %v260
      %278 = vmatprep.subr.bf16.mxu0 0
      %279 = vmatpush1.bf16.msra.mxu0 %v262
      %280 = vmatprep.subr.bf16.mxu0 0
      %281 = vmatpush1.bf16.msra.mxu0 %v263
      %282 = vmatprep.subr.bf16.mxu0 0
      %283 = vmatpush1.bf16.msra.mxu0 %v264
      %284 = vmatprep.subr.bf16.mxu0 0
      %285 = vmatpush1.bf16.msra.mxu0 %v265
      %286 = vmatprep.subr.bf16.mxu0 0
      %287 = vmatpush1.bf16.msra.mxu0 %v266
      %288 = vmatprep.subr.bf16.mxu0 0
      %289 = vmatpush1.bf16.msra.mxu0 %v267
      %290 = vmatprep.subr.bf16.mxu0 0
      %291 = vmatpush1.bf16.msra.mxu0 %v268
      %292 = vmatprep.subr.bf16.mxu0 0
      %293 = vmatpush1.bf16.msra.mxu0 %v269
      %294 = vmatprep.subr.bf16.mxu0 0
      %295 = vmatpush1.bf16.msra.mxu0 0
      %296 = vmatprep.subr.bf16.mxu0 0
      %297 = vmatpush1.bf16.msra.mxu0 0
      %298 = vmatprep.subr.bf16.mxu0 0
      %299 = vmatpush1.bf16.msra.mxu0 0
      %300 = vmatprep.subr.bf16.mxu0 0
      %301 = vmatpush1.bf16.msra.mxu0 0
      %302 = vmatprep.subr.bf16.mxu0 0
      %303 = vmatpush1.bf16.msra.mxu0 0
      %304 = vmatprep.subr.bf16.mxu0 0
      %305 = vmatpush1.bf16.msra.mxu0 0
      %306 = vmatprep.subr.bf16.mxu0 0
      %307 = vmatpush1.bf16.msra.mxu0 0
      %308 = vmatprep.subr.bf16.mxu0 0
      %309 = vmatpush1.bf16.msra.mxu0 0
      %310 = vmatprep.mubr.bf16.mxu0 0
      %311 = vmatmul.mubr.bf16.gmra.mrb[0].mxu0 %v228
      %v312 = vpop.f32.mrb[0].mxu0
      %v313 = vadd.f32 0.0, %v312
      %v314 = vpop.f32.mrb[0].mxu0
      %v315 = vpop.f32.mrb[0].mxu0
      %v316 = vadd.f32 0.0, %v315
      %v317 = vpop.f32.mrb[0].mxu0
      %318 = vdwg.mxu0
      %v336 = vunpack.c.l.b16 %v174
      %v337 = vunpack.c.l.b16 %v175
      %v338 = vunpack.c.l.b16 %v176
      %v339 = vunpack.c.l.b16 %v177
      %v340 = vunpack.c.l.b16 %v178
      %v341 = vunpack.c.l.b16 %v179
      %v342 = vunpack.c.l.b16 %v180
      %v343 = vunpack.c.l.b16 %v181
      %v344 = vunpack.c.l.b16 %v182
      %v345 = vunpack.c.l.b16 %v183
      %v346 = vunpack.c.l.b16 %v184
      %v347 = vunpack.c.l.b16 %v185
      %v348 = vunpack.c.l.b16 %v186
      %v349 = vunpack.c.l.b16 %v187
      %v350 = vunpack.c.l.b16 %v188
      %v351 = vunpack.c.l.b16 %v189
      %v352 = vpack.c.b16 %v337, %v336
      %v353 = vpack.c.b16 %v339, %v338
      %v354 = vpack.c.b16 %v341, %v340
      %v355 = vpack.c.b16 %v343, %v342
      %v356 = vpack.c.b16 %v345, %v344
      %v357 = vpack.c.b16 %v347, %v346
      %v358 = vpack.c.b16 %v349, %v348
      %v359 = vpack.c.b16 %v351, %v350
      %368 = vmatprep.subr.bf16.mxu0 0
      %369 = vmatpush1.bf16.msra.mxu0 %v352
      %370 = vmatprep.subr.bf16.mxu0 0
      %371 = vmatpush1.bf16.msra.mxu0 %v353
      %372 = vmatprep.subr.bf16.mxu0 0
      %373 = vmatpush1.bf16.msra.mxu0 %v354
      %374 = vmatprep.subr.bf16.mxu0 0
      %375 = vmatpush1.bf16.msra.mxu0 %v355
      %376 = vmatprep.subr.bf16.mxu0 0
      %377 = vmatpush1.bf16.msra.mxu0 %v356
      %378 = vmatprep.subr.bf16.mxu0 0
      %379 = vmatpush1.bf16.msra.mxu0 %v357
      %380 = vmatprep.subr.bf16.mxu0 0
      %381 = vmatpush1.bf16.msra.mxu0 %v358
      %382 = vmatprep.subr.bf16.mxu0 0
      %383 = vmatpush1.bf16.msra.mxu0 %v359
      %384 = vmatprep.subr.bf16.mxu0 0
      %385 = vmatpush1.bf16.msra.mxu0 0
      %386 = vmatprep.subr.bf16.mxu0 0
      %387 = vmatpush1.bf16.msra.mxu0 0
      %388 = vmatprep.subr.bf16.mxu0 0
      %389 = vmatpush1.bf16.msra.mxu0 0
      %390 = vmatprep.subr.bf16.mxu0 0
      %391 = vmatpush1.bf16.msra.mxu0 0
      %392 = vmatprep.subr.bf16.mxu0 0
      %393 = vmatpush1.bf16.msra.mxu0 0
      %394 = vmatprep.subr.bf16.mxu0 0
      %395 = vmatpush1.bf16.msra.mxu0 0
      %396 = vmatprep.subr.bf16.mxu0 0
      %397 = vmatpush1.bf16.msra.mxu0 0
      %398 = vmatprep.subr.bf16.mxu0 0
      %399 = vmatpush1.bf16.msra.mxu0 0
      %400 = vmatprep.mubr.bf16.mxu0 0
      %401 = vmatmul.mubr.bf16.gmra.mrb[0].mxu0 %v214
      %v402 = vpop.f32.mrb[0].mxu0
      %v403 = vadd.f32 %v313, %v402
      %v404 = vpop.f32.mrb[0].mxu0
      %v405 = vpop.f32.mrb[0].mxu0
      %v406 = vadd.f32 %v316, %v405
      %v407 = vpop.f32.mrb[0].mxu0
      %408 = vdwg.mxu0
      %v409 = vld [vmem:[%s165] sm:$0xe]
      %s410 = scalar_lea.vmem %s1, 128
      %v411 = vld [vmem:[%s410] sm:$0xf]
      %v412 = vld [vmem:[%s410 + $0x4] sm:$0xf]
      %v413 = vld [vmem:[%s410 + $0x8] sm:$0xf]
      %v414 = vld [vmem:[%s410 + $0xc] sm:$0xf]
      %v415 = vld [vmem:[%s410 + $0x10] sm:$0xf]
      %v416 = vld [vmem:[%s410 + $0x14] sm:$0xf]
      %v417 = vld [vmem:[%s410 + $0x18] sm:$0xf]
      %v418 = vld [vmem:[%s410 + $0x1c] sm:$0xf]
      %v419 = vld [vmem:[%s410 + $0x20] sm:$0xf]
      %v420 = vld [vmem:[%s410 + $0x24] sm:$0xf]
      %v421 = vld [vmem:[%s410 + $0x28] sm:$0xf]
      %v422 = vld [vmem:[%s410 + $0x2c] sm:$0xf]
      %v423 = vld [vmem:[%s410 + $0x30] sm:$0xf]
      %v424 = vld [vmem:[%s410 + $0x34] sm:$0xf]
      %v425 = vld [vmem:[%s410 + $0x38] sm:$0xf]
      %v426 = vld [vmem:[%s410 + $0x3c] sm:$0xf]
      %v428 = vunpack.c.l.b16 %v409
      %v429 = vpack.c.b16 %v212, %v428
      %vm430 = vcmask 1046528
      %v431 = vrot.slane %v429, 1
      %v432 = vrot.slane %v215, 1
      %v433 = vsel %vm430, %v431, %v432
      %v451 = vunpack.c.l.b16 %v411
      %v452 = vunpack.c.l.b16 %v412
      %v453 = vunpack.c.l.b16 %v413
      %v454 = vunpack.c.l.b16 %v414
      %v455 = vunpack.c.l.b16 %v415
      %v456 = vunpack.c.l.b16 %v416
      %v457 = vunpack.c.l.b16 %v417
      %v458 = vunpack.c.l.b16 %v418
      %v459 = vunpack.c.l.b16 %v419
      %v460 = vunpack.c.l.b16 %v420
      %v461 = vunpack.c.l.b16 %v421
      %v462 = vunpack.c.l.b16 %v422
      %v463 = vunpack.c.l.b16 %v423
      %v464 = vunpack.c.l.b16 %v424
      %v465 = vunpack.c.l.b16 %v425
      %v466 = vunpack.c.l.b16 %v426
      %v467 = vpack.c.b16 %v452, %v451
      %v468 = vpack.c.b16 %v454, %v453
      %v469 = vpack.c.b16 %v456, %v455
      %v470 = vpack.c.b16 %v458, %v457
      %v471 = vpack.c.b16 %v460, %v459
      %v472 = vpack.c.b16 %v462, %v461
      %v473 = vpack.c.b16 %v464, %v463
      %v474 = vpack.c.b16 %v466, %v465
      %483 = vmatprep.subr.bf16.mxu0 0
      %484 = vmatpush1.bf16.msra.mxu0 %v467
      %485 = vmatprep.subr.bf16.mxu0 0
      %486 = vmatpush1.bf16.msra.mxu0 %v468
      %487 = vmatprep.subr.bf16.mxu0 0
      %488 = vmatpush1.bf16.msra.mxu0 %v469
      %489 = vmatprep.subr.bf16.mxu0 0
      %490 = vmatpush1.bf16.msra.mxu0 %v470
      %491 = vmatprep.subr.bf16.mxu0 0
      %492 = vmatpush1.bf16.msra.mxu0 %v471
      %493 = vmatprep.subr.bf16.mxu0 0
      %494 = vmatpush1.bf16.msra.mxu0 %v472
      %495 = vmatprep.subr.bf16.mxu0 0
      %496 = vmatpush1.bf16.msra.mxu0 %v473
      %497 = vmatprep.subr.bf16.mxu0 0
      %498 = vmatpush1.bf16.msra.mxu0 %v474
      %499 = vmatprep.subr.bf16.mxu0 0
      %500 = vmatpush1.bf16.msra.mxu0 0
      %501 = vmatprep.subr.bf16.mxu0 0
      %502 = vmatpush1.bf16.msra.mxu0 0
      %503 = vmatprep.subr.bf16.mxu0 0
      %504 = vmatpush1.bf16.msra.mxu0 0
      %505 = vmatprep.subr.bf16.mxu0 0
      %506 = vmatpush1.bf16.msra.mxu0 0
      %507 = vmatprep.subr.bf16.mxu0 0
      %508 = vmatpush1.bf16.msra.mxu0 0
      %509 = vmatprep.subr.bf16.mxu0 0
      %510 = vmatpush1.bf16.msra.mxu0 0
      %511 = vmatprep.subr.bf16.mxu0 0
      %512 = vmatpush1.bf16.msra.mxu0 0
      %513 = vmatprep.subr.bf16.mxu0 0
      %514 = vmatpush1.bf16.msra.mxu0 0
      %515 = vmatprep.mubr.bf16.mxu0 0
      %516 = vmatmul.mubr.bf16.gmra.mrb[0].mxu0 %v433
      %v517 = vpop.f32.mrb[0].mxu0
      %v518 = vadd.f32 0.0, %v517
      %v519 = vpop.f32.mrb[0].mxu0
      %v520 = vpop.f32.mrb[0].mxu0
      %v521 = vadd.f32 0.0, %v520
      %v522 = vpop.f32.mrb[0].mxu0
      %523 = vdwg.mxu0
      %v524 = vadd.f32 %v403, %v518
      %v525 = vadd.f32 %v406, %v521
      %v526 = vld [vmem:[%s165 + $0x8] sm:$0xf]
      %s527 = scalar_lea.vmem %s1, 192
      %v528 = vld [vmem:[%s527] sm:$0xf]
      %v529 = vld [vmem:[%s527 + $0x4] sm:$0xf]
      %v530 = vld [vmem:[%s527 + $0x8] sm:$0xf]
      %v531 = vld [vmem:[%s527 + $0xc] sm:$0xf]
      %v532 = vld [vmem:[%s527 + $0x10] sm:$0xf]
      %v533 = vld [vmem:[%s527 + $0x14] sm:$0xf]
      %v534 = vld [vmem:[%s527 + $0x18] sm:$0xf]
      %v535 = vld [vmem:[%s527 + $0x1c] sm:$0xf]
      %v536 = vld [vmem:[%s527 + $0x20] sm:$0xf]
      %v537 = vld [vmem:[%s527 + $0x24] sm:$0xf]
      %v538 = vld [vmem:[%s527 + $0x28] sm:$0xf]
      %v539 = vld [vmem:[%s527 + $0x2c] sm:$0xf]
      %v540 = vld [vmem:[%s527 + $0x30] sm:$0xf]
      %v541 = vld [vmem:[%s527 + $0x34] sm:$0xf]
      %v542 = vld [vmem:[%s527 + $0x38] sm:$0xf]
      %v543 = vld [vmem:[%s527 + $0x3c] sm:$0xf]
      %v545 = vunpack.c.l.b16 %v526
      %v546 = vpack.c.b16 %v545, %v212
      %v564 = vunpack.c.l.b16 %v528
      %v565 = vunpack.c.l.b16 %v529
      %v566 = vunpack.c.l.b16 %v530
      %v567 = vunpack.c.l.b16 %v531
      %v568 = vunpack.c.l.b16 %v532
      %v569 = vunpack.c.l.b16 %v533
      %v570 = vunpack.c.l.b16 %v534
      %v571 = vunpack.c.l.b16 %v535
      %v572 = vunpack.c.l.b16 %v536
      %v573 = vunpack.c.l.b16 %v537
      %v574 = vunpack.c.l.b16 %v538
      %v575 = vunpack.c.l.b16 %v539
      %v576 = vunpack.c.l.b16 %v540
      %v577 = vunpack.c.l.b16 %v541
      %v578 = vunpack.c.l.b16 %v542
      %v579 = vunpack.c.l.b16 %v543
      %v580 = vpack.c.b16 %v565, %v564
      %v581 = vpack.c.b16 %v567, %v566
      %v582 = vpack.c.b16 %v569, %v568
      %v583 = vpack.c.b16 %v571, %v570
      %v584 = vpack.c.b16 %v573, %v572
      %v585 = vpack.c.b16 %v575, %v574
      %v586 = vpack.c.b16 %v577, %v576
      %v587 = vpack.c.b16 %v579, %v578
      %596 = vmatprep.subr.bf16.mxu0 0
      %597 = vmatpush1.bf16.msra.mxu0 %v580
      %598 = vmatprep.subr.bf16.mxu0 0
      %599 = vmatpush1.bf16.msra.mxu0 %v581
      %600 = vmatprep.subr.bf16.mxu0 0
      %601 = vmatpush1.bf16.msra.mxu0 %v582
      %602 = vmatprep.subr.bf16.mxu0 0
      %603 = vmatpush1.bf16.msra.mxu0 %v583
      %604 = vmatprep.subr.bf16.mxu0 0
      %605 = vmatpush1.bf16.msra.mxu0 %v584
      %606 = vmatprep.subr.bf16.mxu0 0
      %607 = vmatpush1.bf16.msra.mxu0 %v585
      %608 = vmatprep.subr.bf16.mxu0 0
      %609 = vmatpush1.bf16.msra.mxu0 %v586
      %610 = vmatprep.subr.bf16.mxu0 0
      %611 = vmatpush1.bf16.msra.mxu0 %v587
      %612 = vmatprep.subr.bf16.mxu0 0
      %613 = vmatpush1.bf16.msra.mxu0 0
      %614 = vmatprep.subr.bf16.mxu0 0
      %615 = vmatpush1.bf16.msra.mxu0 0
      %616 = vmatprep.subr.bf16.mxu0 0
      %617 = vmatpush1.bf16.msra.mxu0 0
      %618 = vmatprep.subr.bf16.mxu0 0
      %619 = vmatpush1.bf16.msra.mxu0 0
      %620 = vmatprep.subr.bf16.mxu0 0
      %621 = vmatpush1.bf16.msra.mxu0 0
      %622 = vmatprep.subr.bf16.mxu0 0
      %623 = vmatpush1.bf16.msra.mxu0 0
      %624 = vmatprep.subr.bf16.mxu0 0
      %625 = vmatpush1.bf16.msra.mxu0 0
      %626 = vmatprep.subr.bf16.mxu0 0
      %627 = vmatpush1.bf16.msra.mxu0 0
      %628 = vmatprep.mubr.bf16.mxu0 0
      %629 = vmatmul.mubr.bf16.gmra.mrb[0].mxu0 %v546
      %v630 = vpop.f32.mrb[0].mxu0
      %v631 = vadd.f32 0.0, %v630
      %v632 = vpop.f32.mrb[0].mxu0
      %v633 = vpop.f32.mrb[0].mxu0
      %v634 = vadd.f32 0.0, %v633
      %v635 = vpop.f32.mrb[0].mxu0
      %636 = vdwg.mxu0
      %v637 = vadd.f32 %v524, %v631
      %v638 = vadd.f32 %v525, %v634
      %v639 = vld [vmem:[%s165 + $0x4] sm:$0xf]
      %v640 = vld [vmem:[%s165 + $0x8] sm:$0xf]
      %v641 = vld [vmem:[%s165 + $0xc] sm:$0x1]
      %s642 = scalar_lea.vmem %s1, 256
      %v643 = vld [vmem:[%s642] sm:$0xf]
      %v644 = vld [vmem:[%s642 + $0x4] sm:$0xf]
      %v645 = vld [vmem:[%s642 + $0x8] sm:$0xf]
      %v646 = vld [vmem:[%s642 + $0xc] sm:$0xf]
      %v647 = vld [vmem:[%s642 + $0x10] sm:$0xf]
      %v648 = vld [vmem:[%s642 + $0x14] sm:$0xf]
      %v649 = vld [vmem:[%s642 + $0x18] sm:$0xf]
      %v650 = vld [vmem:[%s642 + $0x1c] sm:$0xf]
      %v651 = vld [vmem:[%s642 + $0x20] sm:$0xf]
      %v652 = vld [vmem:[%s642 + $0x24] sm:$0xf]
      %v653 = vld [vmem:[%s642 + $0x28] sm:$0xf]
      %v654 = vld [vmem:[%s642 + $0x2c] sm:$0xf]
      %v655 = vld [vmem:[%s642 + $0x30] sm:$0xf]
      %v656 = vld [vmem:[%s642 + $0x34] sm:$0xf]
      %v657 = vld [vmem:[%s642 + $0x38] sm:$0xf]
      %v658 = vld [vmem:[%s642 + $0x3c] sm:$0xf]
      %v662 = vunpack.c.l.b16 %v639
      %v663 = vunpack.c.l.b16 %v640
      %v664 = vunpack.c.l.b16 %v641
      %v665 = vpack.c.b16 %v663, %v662
      %v666 = vpack.c.b16 %v664, %v664
      %v668 = vshrl.u32 %v665, 16
      %v670 = vshll.u32 %v665, 16
      %v672 = vrot.slane %v670, 1
      %v673 = vor.u32 %v668, %v672
      %v675 = vshll.u32 %v666, 16
      %v677 = vrot.slane %v675, 1
      %v678 = vsel %vm216, %v673, %v677
      %v696 = vunpack.c.l.b16 %v643
      %v697 = vunpack.c.l.b16 %v644
      %v698 = vunpack.c.l.b16 %v645
      %v699 = vunpack.c.l.b16 %v646
      %v700 = vunpack.c.l.b16 %v647
      %v701 = vunpack.c.l.b16 %v648
      %v702 = vunpack.c.l.b16 %v649
      %v703 = vunpack.c.l.b16 %v650
      %v704 = vunpack.c.l.b16 %v651
      %v705 = vunpack.c.l.b16 %v652
      %v706 = vunpack.c.l.b16 %v653
      %v707 = vunpack.c.l.b16 %v654
      %v708 = vunpack.c.l.b16 %v655
      %v709 = vunpack.c.l.b16 %v656
      %v710 = vunpack.c.l.b16 %v657
      %v711 = vunpack.c.l.b16 %v658
      %v712 = vpack.c.b16 %v697, %v696
      %v713 = vpack.c.b16 %v699, %v698
      %v714 = vpack.c.b16 %v701, %v700
      %v715 = vpack.c.b16 %v703, %v702
      %v716 = vpack.c.b16 %v705, %v704
      %v717 = vpack.c.b16 %v707, %v706
      %v718 = vpack.c.b16 %v709, %v708
      %v719 = vpack.c.b16 %v711, %v710
      %728 = vmatprep.subr.bf16.mxu0 0
      %729 = vmatpush1.bf16.msra.mxu0 %v712
      %730 = vmatprep.subr.bf16.mxu0 0
      %731 = vmatpush1.bf16.msra.mxu0 %v713
      %732 = vmatprep.subr.bf16.mxu0 0
      %733 = vmatpush1.bf16.msra.mxu0 %v714
      %734 = vmatprep.subr.bf16.mxu0 0
      %735 = vmatpush1.bf16.msra.mxu0 %v715
      %736 = vmatprep.subr.bf16.mxu0 0
      %737 = vmatpush1.bf16.msra.mxu0 %v716
      %738 = vmatprep.subr.bf16.mxu0 0
      %739 = vmatpush1.bf16.msra.mxu0 %v717
      %740 = vmatprep.subr.bf16.mxu0 0
      %741 = vmatpush1.bf16.msra.mxu0 %v718
      %742 = vmatprep.subr.bf16.mxu0 0
      %743 = vmatpush1.bf16.msra.mxu0 %v719
      %744 = vmatprep.subr.bf16.mxu0 0
      %745 = vmatpush1.bf16.msra.mxu0 0
      %746 = vmatprep.subr.bf16.mxu0 0
      %747 = vmatpush1.bf16.msra.mxu0 0
      %748 = vmatprep.subr.bf16.mxu0 0
      %749 = vmatpush1.bf16.msra.mxu0 0
      %750 = vmatprep.subr.bf16.mxu0 0
      %751 = vmatpush1.bf16.msra.mxu0 0
      %752 = vmatprep.subr.bf16.mxu0 0
      %753 = vmatpush1.bf16.msra.mxu0 0
      %754 = vmatprep.subr.bf16.mxu0 0
      %755 = vmatpush1.bf16.msra.mxu0 0
      %756 = vmatprep.subr.bf16.mxu0 0
      %757 = vmatpush1.bf16.msra.mxu0 0
      %758 = vmatprep.subr.bf16.mxu0 0
      %759 = vmatpush1.bf16.msra.mxu0 0
      %760 = vmatprep.mubr.bf16.mxu0 0
      %761 = vmatmul.mubr.bf16.gmra.mrb[0].mxu0 %v678
      %v762 = vpop.f32.mrb[0].mxu0
      %v763 = vadd.f32 0.0, %v762
      %v764 = vpop.f32.mrb[0].mxu0
      %v765 = vpop.f32.mrb[0].mxu0
      %v766 = vadd.f32 0.0, %v765
      %v767 = vpop.f32.mrb[0].mxu0
      %768 = vdwg.mxu0
      %v769 = vadd.f32 %v637, %v763
      %v770 = vadd.f32 %v638, %v766
      %v771 = vld [vmem:[%s165 + $0x4] sm:$0xe]
      %s772 = scalar_lea.vmem %s1, 320
      %v773 = vld [vmem:[%s772] sm:$0xf]
      %v774 = vld [vmem:[%s772 + $0x4] sm:$0xf]
      %v775 = vld [vmem:[%s772 + $0x8] sm:$0xf]
      %v776 = vld [vmem:[%s772 + $0xc] sm:$0xf]
      %v777 = vld [vmem:[%s772 + $0x10] sm:$0xf]
      %v778 = vld [vmem:[%s772 + $0x14] sm:$0xf]
      %v779 = vld [vmem:[%s772 + $0x18] sm:$0xf]
      %v780 = vld [vmem:[%s772 + $0x1c] sm:$0xf]
      %v781 = vld [vmem:[%s772 + $0x20] sm:$0xf]
      %v782 = vld [vmem:[%s772 + $0x24] sm:$0xf]
      %v783 = vld [vmem:[%s772 + $0x28] sm:$0xf]
      %v784 = vld [vmem:[%s772 + $0x2c] sm:$0xf]
      %v785 = vld [vmem:[%s772 + $0x30] sm:$0xf]
      %v786 = vld [vmem:[%s772 + $0x34] sm:$0xf]
      %v787 = vld [vmem:[%s772 + $0x38] sm:$0xf]
      %v788 = vld [vmem:[%s772 + $0x3c] sm:$0xf]
      %v790 = vunpack.c.l.b16 %v771
      %v791 = vpack.c.b16 %v663, %v790
      %v792 = vrot.slane %v791, 1
      %v793 = vrot.slane %v666, 1
      %v794 = vsel %vm430, %v792, %v793
      %v812 = vunpack.c.l.b16 %v773
      %v813 = vunpack.c.l.b16 %v774
      %v814 = vunpack.c.l.b16 %v775
      %v815 = vunpack.c.l.b16 %v776
      %v816 = vunpack.c.l.b16 %v777
      %v817 = vunpack.c.l.b16 %v778
      %v818 = vunpack.c.l.b16 %v779
      %v819 = vunpack.c.l.b16 %v780
      %v820 = vunpack.c.l.b16 %v781
      %v821 = vunpack.c.l.b16 %v782
      %v822 = vunpack.c.l.b16 %v783
      %v823 = vunpack.c.l.b16 %v784
      %v824 = vunpack.c.l.b16 %v785
      %v825 = vunpack.c.l.b16 %v786
      %v826 = vunpack.c.l.b16 %v787
      %v827 = vunpack.c.l.b16 %v788
      %v828 = vpack.c.b16 %v813, %v812
      %v829 = vpack.c.b16 %v815, %v814
      %v830 = vpack.c.b16 %v817, %v816
      %v831 = vpack.c.b16 %v819, %v818
      %v832 = vpack.c.b16 %v821, %v820
      %v833 = vpack.c.b16 %v823, %v822
      %v834 = vpack.c.b16 %v825, %v824
      %v835 = vpack.c.b16 %v827, %v826
      %844 = vmatprep.subr.bf16.mxu0 0
      %845 = vmatpush1.bf16.msra.mxu0 %v828
      %846 = vmatprep.subr.bf16.mxu0 0
      %847 = vmatpush1.bf16.msra.mxu0 %v829
      %848 = vmatprep.subr.bf16.mxu0 0
      %849 = vmatpush1.bf16.msra.mxu0 %v830
      %850 = vmatprep.subr.bf16.mxu0 0
      %851 = vmatpush1.bf16.msra.mxu0 %v831
      %852 = vmatprep.subr.bf16.mxu0 0
      %853 = vmatpush1.bf16.msra.mxu0 %v832
      %854 = vmatprep.subr.bf16.mxu0 0
      %855 = vmatpush1.bf16.msra.mxu0 %v833
      %856 = vmatprep.subr.bf16.mxu0 0
      %857 = vmatpush1.bf16.msra.mxu0 %v834
      %858 = vmatprep.subr.bf16.mxu0 0
      %859 = vmatpush1.bf16.msra.mxu0 %v835
      %860 = vmatprep.subr.bf16.mxu0 0
      %861 = vmatpush1.bf16.msra.mxu0 0
      %862 = vmatprep.subr.bf16.mxu0 0
      %863 = vmatpush1.bf16.msra.mxu0 0
      %864 = vmatprep.subr.bf16.mxu0 0
      %865 = vmatpush1.bf16.msra.mxu0 0
      %866 = vmatprep.subr.bf16.mxu0 0
      %867 = vmatpush1.bf16.msra.mxu0 0
      %868 = vmatprep.subr.bf16.mxu0 0
      %869 = vmatpush1.bf16.msra.mxu0 0
      %870 = vmatprep.subr.bf16.mxu0 0
      %871 = vmatpush1.bf16.msra.mxu0 0
      %872 = vmatprep.subr.bf16.mxu0 0
      %873 = vmatpush1.bf16.msra.mxu0 0
      %874 = vmatprep.subr.bf16.mxu0 0
      %875 = vmatpush1.bf16.msra.mxu0 0
      %876 = vmatprep.mubr.bf16.mxu0 0
      %877 = vmatmul.mubr.bf16.gmra.mrb[0].mxu0 %v794
      %v878 = vpop.f32.mrb[0].mxu0
      %v879 = vadd.f32 0.0, %v878
      %v880 = vpop.f32.mrb[0].mxu0
      %v881 = vpop.f32.mrb[0].mxu0
      %v882 = vadd.f32 0.0, %v881
      %v883 = vpop.f32.mrb[0].mxu0
      %884 = vdwg.mxu0
      %v885 = vadd.f32 %v769, %v879
      %v886 = vadd.f32 %v770, %v882
      %v887 = vld [vmem:[%s165 + $0xc] sm:$0xf]
      %s888 = scalar_lea.vmem %s1, 384
      %v889 = vld [vmem:[%s888] sm:$0xf]
      %v890 = vld [vmem:[%s888 + $0x4] sm:$0xf]
      %v891 = vld [vmem:[%s888 + $0x8] sm:$0xf]
      %v892 = vld [vmem:[%s888 + $0xc] sm:$0xf]
      %v893 = vld [vmem:[%s888 + $0x10] sm:$0xf]
      %v894 = vld [vmem:[%s888 + $0x14] sm:$0xf]
      %v895 = vld [vmem:[%s888 + $0x18] sm:$0xf]
      %v896 = vld [vmem:[%s888 + $0x1c] sm:$0xf]
      %v897 = vld [vmem:[%s888 + $0x20] sm:$0xf]
      %v898 = vld [vmem:[%s888 + $0x24] sm:$0xf]
      %v899 = vld [vmem:[%s888 + $0x28] sm:$0xf]
      %v900 = vld [vmem:[%s888 + $0x2c] sm:$0xf]
      %v901 = vld [vmem:[%s888 + $0x30] sm:$0xf]
      %v902 = vld [vmem:[%s888 + $0x34] sm:$0xf]
      %v903 = vld [vmem:[%s888 + $0x38] sm:$0xf]
      %v904 = vld [vmem:[%s888 + $0x3c] sm:$0xf]
      %v906 = vunpack.c.l.b16 %v887
      %v907 = vpack.c.b16 %v906, %v663
      %v925 = vunpack.c.l.b16 %v889
      %v926 = vunpack.c.l.b16 %v890
      %v927 = vunpack.c.l.b16 %v891
      %v928 = vunpack.c.l.b16 %v892
      %v929 = vunpack.c.l.b16 %v893
      %v930 = vunpack.c.l.b16 %v894
      %v931 = vunpack.c.l.b16 %v895
      %v932 = vunpack.c.l.b16 %v896
      %v933 = vunpack.c.l.b16 %v897
      %v934 = vunpack.c.l.b16 %v898
      %v935 = vunpack.c.l.b16 %v899
      %v936 = vunpack.c.l.b16 %v900
      %v937 = vunpack.c.l.b16 %v901
      %v938 = vunpack.c.l.b16 %v902
      %v939 = vunpack.c.l.b16 %v903
      %v940 = vunpack.c.l.b16 %v904
      %v941 = vpack.c.b16 %v926, %v925
      %v942 = vpack.c.b16 %v928, %v927
      %v943 = vpack.c.b16 %v930, %v929
      %v944 = vpack.c.b16 %v932, %v931
      %v945 = vpack.c.b16 %v934, %v933
      %v946 = vpack.c.b16 %v936, %v935
      %v947 = vpack.c.b16 %v938, %v937
      %v948 = vpack.c.b16 %v940, %v939
      %957 = vmatprep.subr.bf16.mxu0 0
      %958 = vmatpush1.bf16.msra.mxu0 %v941
      %959 = vmatprep.subr.bf16.mxu0 0
      %960 = vmatpush1.bf16.msra.mxu0 %v942
      %961 = vmatprep.subr.bf16.mxu0 0
      %962 = vmatpush1.bf16.msra.mxu0 %v943
      %963 = vmatprep.subr.bf16.mxu0 0
      %964 = vmatpush1.bf16.msra.mxu0 %v944
      %965 = vmatprep.subr.bf16.mxu0 0
      %966 = vmatpush1.bf16.msra.mxu0 %v945
      %967 = vmatprep.subr.bf16.mxu0 0
      %968 = vmatpush1.bf16.msra.mxu0 %v946
      %969 = vmatprep.subr.bf16.mxu0 0
      %970 = vmatpush1.bf16.msra.mxu0 %v947
      %971 = vmatprep.subr.bf16.mxu0 0
      %972 = vmatpush1.bf16.msra.mxu0 %v948
      %973 = vmatprep.subr.bf16.mxu0 0
      %974 = vmatpush1.bf16.msra.mxu0 0
      %975 = vmatprep.subr.bf16.mxu0 0
      %976 = vmatpush1.bf16.msra.mxu0 0
      %977 = vmatprep.subr.bf16.mxu0 0
      %978 = vmatpush1.bf16.msra.mxu0 0
      %979 = vmatprep.subr.bf16.mxu0 0
      %980 = vmatpush1.bf16.msra.mxu0 0
      %981 = vmatprep.subr.bf16.mxu0 0
      %982 = vmatpush1.bf16.msra.mxu0 0
      %983 = vmatprep.subr.bf16.mxu0 0
      %984 = vmatpush1.bf16.msra.mxu0 0
      %985 = vmatprep.subr.bf16.mxu0 0
      %986 = vmatpush1.bf16.msra.mxu0 0
      %987 = vmatprep.subr.bf16.mxu0 0
      %988 = vmatpush1.bf16.msra.mxu0 0
      %989 = vmatprep.mubr.bf16.mxu0 0
      %990 = vmatmul.mubr.bf16.gmra.mrb[0].mxu0 %v907
      %v991 = vpop.f32.mrb[0].mxu0
      %v992 = vadd.f32 0.0, %v991
      %v993 = vpop.f32.mrb[0].mxu0
      %v994 = vpop.f32.mrb[0].mxu0
      %v995 = vadd.f32 0.0, %v994
      %v996 = vpop.f32.mrb[0].mxu0
      %997 = vdwg.mxu0
      %v998 = vadd.f32 %v885, %v992
      %v999 = vadd.f32 %v886, %v995
      %v1000 = vld [vmem:[%s165 + $0x8] sm:$0xf]
      %v1001 = vld [vmem:[%s165 + $0xc] sm:$0xf]
      %v1002 = vld [vmem:[%s165 + $0x10] sm:$0x1]
      %s1003 = scalar_lea.vmem %s1, 448
      %v1004 = vld [vmem:[%s1003] sm:$0xf]
      %v1005 = vld [vmem:[%s1003 + $0x4] sm:$0xf]
      %v1006 = vld [vmem:[%s1003 + $0x8] sm:$0xf]
      %v1007 = vld [vmem:[%s1003 + $0xc] sm:$0xf]
      %v1008 = vld [vmem:[%s1003 + $0x10] sm:$0xf]
      %v1009 = vld [vmem:[%s1003 + $0x14] sm:$0xf]
      %v1010 = vld [vmem:[%s1003 + $0x18] sm:$0xf]
      %v1011 = vld [vmem:[%s1003 + $0x1c] sm:$0xf]
      %v1012 = vld [vmem:[%s1003 + $0x20] sm:$0xf]
      %v1013 = vld [vmem:[%s1003 + $0x24] sm:$0xf]
      %v1014 = vld [vmem:[%s1003 + $0x28] sm:$0xf]
      %v1015 = vld [vmem:[%s1003 + $0x2c] sm:$0xf]
      %v1016 = vld [vmem:[%s1003 + $0x30] sm:$0xf]
      %v1017 = vld [vmem:[%s1003 + $0x34] sm:$0xf]
      %v1018 = vld [vmem:[%s1003 + $0x38] sm:$0xf]
      %v1019 = vld [vmem:[%s1003 + $0x3c] sm:$0xf]
      %v1023 = vunpack.c.l.b16 %v1000
      %v1024 = vunpack.c.l.b16 %v1001
      %v1025 = vunpack.c.l.b16 %v1002
      %v1026 = vpack.c.b16 %v1024, %v1023
      %v1027 = vpack.c.b16 %v1025, %v1025
      %v1029 = vshrl.u32 %v1026, 16
      %v1031 = vshll.u32 %v1026, 16
      %v1033 = vrot.slane %v1031, 1
      %v1034 = vor.u32 %v1029, %v1033
      %v1036 = vshll.u32 %v1027, 16
      %v1038 = vrot.slane %v1036, 1
      %v1039 = vsel %vm216, %v1034, %v1038
      %v1057 = vunpack.c.l.b16 %v1004
      %v1058 = vunpack.c.l.b16 %v1005
      %v1059 = vunpack.c.l.b16 %v1006
      %v1060 = vunpack.c.l.b16 %v1007
      %v1061 = vunpack.c.l.b16 %v1008
      %v1062 = vunpack.c.l.b16 %v1009
      %v1063 = vunpack.c.l.b16 %v1010
      %v1064 = vunpack.c.l.b16 %v1011
      %v1065 = vunpack.c.l.b16 %v1012
      %v1066 = vunpack.c.l.b16 %v1013
      %v1067 = vunpack.c.l.b16 %v1014
      %v1068 = vunpack.c.l.b16 %v1015
      %v1069 = vunpack.c.l.b16 %v1016
      %v1070 = vunpack.c.l.b16 %v1017
      %v1071 = vunpack.c.l.b16 %v1018
      %v1072 = vunpack.c.l.b16 %v1019
      %v1073 = vpack.c.b16 %v1058, %v1057
      %v1074 = vpack.c.b16 %v1060, %v1059
      %v1075 = vpack.c.b16 %v1062, %v1061
      %v1076 = vpack.c.b16 %v1064, %v1063
      %v1077 = vpack.c.b16 %v1066, %v1065
      %v1078 = vpack.c.b16 %v1068, %v1067
      %v1079 = vpack.c.b16 %v1070, %v1069
      %v1080 = vpack.c.b16 %v1072, %v1071
      %1089 = vmatprep.subr.bf16.mxu0 0
      %1090 = vmatpush1.bf16.msra.mxu0 %v1073
      %1091 = vmatprep.subr.bf16.mxu0 0
      %1092 = vmatpush1.bf16.msra.mxu0 %v1074
      %1093 = vmatprep.subr.bf16.mxu0 0
      %1094 = vmatpush1.bf16.msra.mxu0 %v1075
      %1095 = vmatprep.subr.bf16.mxu0 0
      %1096 = vmatpush1.bf16.msra.mxu0 %v1076
      %1097 = vmatprep.subr.bf16.mxu0 0
      %1098 = vmatpush1.bf16.msra.mxu0 %v1077
      %1099 = vmatprep.subr.bf16.mxu0 0
      %1100 = vmatpush1.bf16.msra.mxu0 %v1078
      %1101 = vmatprep.subr.bf16.mxu0 0
      %1102 = vmatpush1.bf16.msra.mxu0 %v1079
      %1103 = vmatprep.subr.bf16.mxu0 0
      %1104 = vmatpush1.bf16.msra.mxu0 %v1080
      %1105 = vmatprep.subr.bf16.mxu0 0
      %1106 = vmatpush1.bf16.msra.mxu0 0
      %1107 = vmatprep.subr.bf16.mxu0 0
      %1108 = vmatpush1.bf16.msra.mxu0 0
      %1109 = vmatprep.subr.bf16.mxu0 0
      %1110 = vmatpush1.bf16.msra.mxu0 0
      %1111 = vmatprep.subr.bf16.mxu0 0
      %1112 = vmatpush1.bf16.msra.mxu0 0
      %1113 = vmatprep.subr.bf16.mxu0 0
      %1114 = vmatpush1.bf16.msra.mxu0 0
      %1115 = vmatprep.subr.bf16.mxu0 0
      %1116 = vmatpush1.bf16.msra.mxu0 0
      %1117 = vmatprep.subr.bf16.mxu0 0
      %1118 = vmatpush1.bf16.msra.mxu0 0
      %1119 = vmatprep.subr.bf16.mxu0 0
      %1120 = vmatpush1.bf16.msra.mxu0 0
      %1121 = vmatprep.mubr.bf16.mxu0 0
      %1122 = vmatmul.mubr.bf16.gmra.mrb[0].mxu0 %v1039
      %v1123 = vpop.f32.mrb[0].mxu0
      %v1124 = vadd.f32 0.0, %v1123
      %v1125 = vpop.f32.mrb[0].mxu0
      %v1126 = vpop.f32.mrb[0].mxu0
      %v1127 = vadd.f32 0.0, %v1126
      %v1128 = vpop.f32.mrb[0].mxu0
      %1129 = vdwg.mxu0
      %v1130 = vadd.f32 %v998, %v1124
      %v1131 = vadd.f32 %v999, %v1127
      %v1132 = vld [vmem:[%s165 + $0x8] sm:$0xe]
      %s1133 = scalar_lea.vmem %s1, 512
      %v1134 = vld [vmem:[%s1133] sm:$0xf]
      %v1135 = vld [vmem:[%s1133 + $0x4] sm:$0xf]
      %v1136 = vld [vmem:[%s1133 + $0x8] sm:$0xf]
      %v1137 = vld [vmem:[%s1133 + $0xc] sm:$0xf]
      %v1138 = vld [vmem:[%s1133 + $0x10] sm:$0xf]
      %v1139 = vld [vmem:[%s1133 + $0x14] sm:$0xf]
      %v1140 = vld [vmem:[%s1133 + $0x18] sm:$0xf]
      %v1141 = vld [vmem:[%s1133 + $0x1c] sm:$0xf]
      %v1142 = vld [vmem:[%s1133 + $0x20] sm:$0xf]
      %v1143 = vld [vmem:[%s1133 + $0x24] sm:$0xf]
      %v1144 = vld [vmem:[%s1133 + $0x28] sm:$0xf]
      %v1145 = vld [vmem:[%s1133 + $0x2c] sm:$0xf]
      %v1146 = vld [vmem:[%s1133 + $0x30] sm:$0xf]
      %v1147 = vld [vmem:[%s1133 + $0x34] sm:$0xf]
      %v1148 = vld [vmem:[%s1133 + $0x38] sm:$0xf]
      %v1149 = vld [vmem:[%s1133 + $0x3c] sm:$0xf]
      %v1151 = vunpack.c.l.b16 %v1132
      %v1152 = vpack.c.b16 %v1024, %v1151
      %v1153 = vrot.slane %v1152, 1
      %v1154 = vrot.slane %v1027, 1
      %v1155 = vsel %vm430, %v1153, %v1154
      %v1173 = vunpack.c.l.b16 %v1134
      %v1174 = vunpack.c.l.b16 %v1135
      %v1175 = vunpack.c.l.b16 %v1136
      %v1176 = vunpack.c.l.b16 %v1137
      %v1177 = vunpack.c.l.b16 %v1138
      %v1178 = vunpack.c.l.b16 %v1139
      %v1179 = vunpack.c.l.b16 %v1140
      %v1180 = vunpack.c.l.b16 %v1141
      %v1181 = vunpack.c.l.b16 %v1142
      %v1182 = vunpack.c.l.b16 %v1143
      %v1183 = vunpack.c.l.b16 %v1144
      %v1184 = vunpack.c.l.b16 %v1145
      %v1185 = vunpack.c.l.b16 %v1146
      %v1186 = vunpack.c.l.b16 %v1147
      %v1187 = vunpack.c.l.b16 %v1148
      %v1188 = vunpack.c.l.b16 %v1149
      %v1189 = vpack.c.b16 %v1174, %v1173
      %v1190 = vpack.c.b16 %v1176, %v1175
      %v1191 = vpack.c.b16 %v1178, %v1177
      %v1192 = vpack.c.b16 %v1180, %v1179
      %v1193 = vpack.c.b16 %v1182, %v1181
      %v1194 = vpack.c.b16 %v1184, %v1183
      %v1195 = vpack.c.b16 %v1186, %v1185
      %v1196 = vpack.c.b16 %v1188, %v1187
      %1205 = vmatprep.subr.bf16.mxu0 0
      %1206 = vmatpush1.bf16.msra.mxu0 %v1189
      %1207 = vmatprep.subr.bf16.mxu0 0
      %1208 = vmatpush1.bf16.msra.mxu0 %v1190
      %1209 = vmatprep.subr.bf16.mxu0 0
      %1210 = vmatpush1.bf16.msra.mxu0 %v1191
      %1211 = vmatprep.subr.bf16.mxu0 0
      %1212 = vmatpush1.bf16.msra.mxu0 %v1192
      %1213 = vmatprep.subr.bf16.mxu0 0
      %1214 = vmatpush1.bf16.msra.mxu0 %v1193
      %1215 = vmatprep.subr.bf16.mxu0 0
      %1216 = vmatpush1.bf16.msra.mxu0 %v1194
      %1217 = vmatprep.subr.bf16.mxu0 0
      %1218 = vmatpush1.bf16.msra.mxu0 %v1195
      %1219 = vmatprep.subr.bf16.mxu0 0
      %1220 = vmatpush1.bf16.msra.mxu0 %v1196
      %1221 = vmatprep.subr.bf16.mxu0 0
      %1222 = vmatpush1.bf16.msra.mxu0 0
      %1223 = vmatprep.subr.bf16.mxu0 0
      %1224 = vmatpush1.bf16.msra.mxu0 0
      %1225 = vmatprep.subr.bf16.mxu0 0
      %1226 = vmatpush1.bf16.msra.mxu0 0
      %1227 = vmatprep.subr.bf16.mxu0 0
      %1228 = vmatpush1.bf16.msra.mxu0 0
      %1229 = vmatprep.subr.bf16.mxu0 0
      %1230 = vmatpush1.bf16.msra.mxu0 0
      %1231 = vmatprep.subr.bf16.mxu0 0
      %1232 = vmatpush1.bf16.msra.mxu0 0
      %1233 = vmatprep.subr.bf16.mxu0 0
      %1234 = vmatpush1.bf16.msra.mxu0 0
      %1235 = vmatprep.subr.bf16.mxu0 0
      %1236 = vmatpush1.bf16.msra.mxu0 0
      %1237 = vmatprep.mubr.bf16.mxu0 0
      %1238 = vmatmul.mubr.bf16.gmra.mrb[0].mxu0 %v1155
      %v1239 = vpop.f32.mrb[0].mxu0
      %v1240 = vadd.f32 0.0, %v1239
      %v1241 = vpop.f32.mrb[0].mxu0
      %v1242 = vpop.f32.mrb[0].mxu0
      %v1243 = vadd.f32 0.0, %v1242
      %v1244 = vpop.f32.mrb[0].mxu0
      %1245 = vdwg.mxu0
      %v1246 = vadd.f32 %v1130, %v1240
      %v1247 = vadd.f32 %v1131, %v1243
      %v1248 = vld [vmem:[%s2] sm:$0x1]
      %v1250 = vlaneseq
      %v1251 = vshrl.u32 %v1250, 7
      %v1252 = vsub.s32 0, %v1251
      %v1253 = vrot.slane %v1248, %v1252
      %v1255 = vadd.f32 %v1246, %v1253
      %v1256 = vadd.f32 %v1247, %v1253
      %v1257 = vmax.f32 %v1255, 0.0
      %v1258 = vmax.f32 %v1256, 0.0
      %v1259 = vpack.c.bf16 %v1258, %v1257
      %v1261 = vunpack.c.l.b16 %v1259
      %v1262 = vunpack.c.h.b16 %v1259
      %v1263 = vpack.c.b16 %v1261, %v1261
      %v1264 = vpack.c.b16 %v1262, %v1262
      %1267 = vst [vmem:[%s170] sm:$0xf] %v1263
      %1268 = vst [vmem:[%s170 + $0x4] sm:$0xf] %v1264
      %p1269 = scmp.lt.s32.totalorder %s14, 1
      %s1270 = scalar_select %p1269, %s14, 1
      %s1271 = smul.addr %s1270, 2
      %s1272 = smul.addr %s1271, 4
      %s1273 = scalar_lea.vmem %s3, %s1272
      // Predicated region
      $region33: #{convnext_encoder_forward.23} parent=31 // pred_check
        %p1274 = pneg %p100
      $region34: #{convnext_encoder_forward.23} parent=31 // pred_check_branch
        %1276 = sbr.rel (%p1274) target = $region36
      $region35: #{convnext_encoder_forward.23} parent=31 // pred_region
        _
      $region36: #{convnext_encoder_forward.23} parent=31 // pred_fallthru
        _
    $region32: #{convnext_encoder_forward.23} parent=5 // pred_fallthru
      _
    %p1277 = scmp.le.s32.totalorder 2, %s9
    // Predicated region
    $region37: #{convnext_encoder_forward.23} parent=5 // pred_check
      %p1278 = pneg %p1277
    $region38: #{convnext_encoder_forward.23} parent=5 // pred_check_branch
      %1280 = sbr.rel (%p1278) target = $region40
    $region39: #{convnext_encoder_forward.23} parent=5 // pred_region
      %s1281 = ssub.s32 %s9, 2
      // Predicated region
      $region41: #{convnext_encoder_forward.23} parent=39 // pred_check
        %p1282 = pneg %p106
      $region42: #{convnext_encoder_forward.23} parent=39 // pred_check_branch
        %1284 = sbr.rel (%p1282) target = $region44
      $region43: #{convnext_encoder_forward.23} parent=39 // pred_region
        %p1285 = scmp.lt.s32.totalorder %s15, 1
        %s1286 = scalar_select %p1285, %s15, 1
        %s1287 = smul.addr %s1286, 2
        %s1288 = smul.addr %s1287, 4
        %s1289 = scalar_lea.vmem %s3, %s1288
      $region44: #{convnext_encoder_forward.23} parent=39 // pred_fallthru
        _
    $region40: #{convnext_encoder_forward.23} parent=5 // pred_fallthru
      _
  $region6: #{convnext_encoder_forward.23} parent=0 // loop_footer
    %s13 = sadd.s32 1, %s9
  $region7: #{convnext_encoder_forward.23} parent=0 // loop_footer_branch
    %8 = sbr.rel target = $region3
  $region8: #{convnext_encoder_forward.23} parent=0 // loop_exit
    _

// kernel: convnext_encoder_forward.25
$region0: #{convnext_encoder_forward.25}
  #allocation0 [shape = 'u32[]', space=smem, size = 0x4, offset = 0x4, fixed_abs, tag = 'smem constant byte address 0x4 - core index']
  #allocation1 [shape = 'u32[144,128]{1,0:T(1,128)}', space=vmem, size = 0x12000, scoped, tag = 'internal scratch']
  %s0 = inlined_call_operand.vmem [shape: bf16[8,128], index: 0, kind: input, shape index: {}]
  %s1 = inlined_call_operand.vmem [shape: bf16[128,128], index: 1, kind: input, shape index: {}]
  %s2 = inlined_call_operand.vmem [shape: f32[1,128], index: 2, kind: input, shape index: {}]
  %s3 = inlined_call_operand.vmem [shape: bf16[8,128], index: 3, kind: input, shape index: {}]
  %s4 = inlined_call_operand.vmem [shape: bf16[8,128], index: 4, kind: output, shape index: {}]
  %s5 = sld [smem:[#allocation0]]
  $region26: #{convnext_encoder_forward.25} parent=0
    _
  %s7 = ssub.s32 1, %s5
  %s8 = scalar_select 0, %s7, %s5
  // Predicated region
  $region2: #{convnext_encoder_forward.25} parent=0 // pred_check
    _
  $region3: #{convnext_encoder_forward.25} parent=0 // pred_check_branch
    %10 = sbr.rel (0) target = $region5
  $region4: #{convnext_encoder_forward.25} parent=0 // pred_region
    _
  $region5: #{convnext_encoder_forward.25} parent=0 // pred_fallthru
    _
  // Predicated region
  $region6: #{convnext_encoder_forward.25} parent=0 // pred_check
    _
  $region7: #{convnext_encoder_forward.25} parent=0 // pred_check_branch
    %12 = sbr.rel (0) target = $region9
  $region8: #{convnext_encoder_forward.25} parent=0 // pred_region
    _
  $region9: #{convnext_encoder_forward.25} parent=0 // pred_fallthru
    _
  // Predicated region
  $region10: #{convnext_encoder_forward.25} parent=0 // pred_check
    _
  $region11: #{convnext_encoder_forward.25} parent=0 // pred_check_branch
    %14 = sbr.rel (0) target = $region13
  $region12: #{convnext_encoder_forward.25} parent=0 // pred_region
    _
  $region13: #{convnext_encoder_forward.25} parent=0 // pred_fallthru
    _
  // Predicated region
  $region14: #{convnext_encoder_forward.25} parent=0 // pred_check
    _
  $region15: #{convnext_encoder_forward.25} parent=0 // pred_check_branch
    %16 = sbr.rel (0) target = $region17
  $region16: #{convnext_encoder_forward.25} parent=0 // pred_region
    _
  $region17: #{convnext_encoder_forward.25} parent=0 // pred_fallthru
    _
  %v18 = vld [vmem:[%s0] sm:$0xf]
  %v19 = vld [vmem:[%s1] sm:$0xf]
  %v20 = vld [vmem:[%s1 + $0x4] sm:$0xf]
  %v21 = vld [vmem:[%s1 + $0x8] sm:$0xf]
  %v22 = vld [vmem:[%s1 + $0xc] sm:$0xf]
  %v23 = vld [vmem:[%s1 + $0x10] sm:$0xf]
  %v24 = vld [vmem:[%s1 + $0x14] sm:$0xf]
  %v25 = vld [vmem:[%s1 + $0x18] sm:$0xf]
  %v26 = vld [vmem:[%s1 + $0x1c] sm:$0xf]
  %v27 = vld [vmem:[%s1 + $0x20] sm:$0xf]
  %v28 = vld [vmem:[%s1 + $0x24] sm:$0xf]
  %v29 = vld [vmem:[%s1 + $0x28] sm:$0xf]
  %v30 = vld [vmem:[%s1 + $0x2c] sm:$0xf]
  %v31 = vld [vmem:[%s1 + $0x30] sm:$0xf]
  %v32 = vld [vmem:[%s1 + $0x34] sm:$0xf]
  %v33 = vld [vmem:[%s1 + $0x38] sm:$0xf]
  %v34 = vld [vmem:[%s1 + $0x3c] sm:$0xf]
  %v35 = vld [vmem:[%s2] sm:$0x1]
  %v37 = vlaneseq
  %v38 = vshrl.u32 %v37, 7
  %v39 = vsub.s32 0, %v38
  %v40 = vrot.slane %v35, %v39
  %v58 = vunpack.c.l.b16 %v19
  %v59 = vunpack.c.l.b16 %v20
  %v60 = vunpack.c.l.b16 %v21
  %v61 = vunpack.c.l.b16 %v22
  %v62 = vunpack.c.l.b16 %v23
  %v63 = vunpack.c.l.b16 %v24
  %v64 = vunpack.c.l.b16 %v25
  %v65 = vunpack.c.l.b16 %v26
  %v66 = vunpack.c.l.b16 %v27
  %v67 = vunpack.c.l.b16 %v28
  %v68 = vunpack.c.l.b16 %v29
  %v69 = vunpack.c.l.b16 %v30
  %v70 = vunpack.c.l.b16 %v31
  %v71 = vunpack.c.l.b16 %v32
  %v72 = vunpack.c.l.b16 %v33
  %v73 = vunpack.c.l.b16 %v34
  %v74 = vpack.c.b16 %v59, %v58
  %v75 = vpack.c.b16 %v61, %v60
  %v76 = vpack.c.b16 %v63, %v62
  %v77 = vpack.c.b16 %v65, %v64
  %v78 = vpack.c.b16 %v67, %v66
  %v79 = vpack.c.b16 %v69, %v68
  %v80 = vpack.c.b16 %v71, %v70
  %v81 = vpack.c.b16 %v73, %v72
  %90 = vmatprep.subr.bf16.mxu0 0
  %91 = vmatpush1.bf16.msra.mxu0 %v74
  %92 = vmatprep.subr.bf16.mxu0 0
  %93 = vmatpush1.bf16.msra.mxu0 %v75
  %94 = vmatprep.subr.bf16.mxu0 0
  %95 = vmatpush1.bf16.msra.mxu0 %v76
  %96 = vmatprep.subr.bf16.mxu0 0
  %97 = vmatpush1.bf16.msra.mxu0 %v77
  %98 = vmatprep.subr.bf16.mxu0 0
  %99 = vmatpush1.bf16.msra.mxu0 %v78
  %100 = vmatprep.subr.bf16.mxu0 0
  %101 = vmatpush1.bf16.msra.mxu0 %v79
  %102 = vmatprep.subr.bf16.mxu0 0
  %103 = vmatpush1.bf16.msra.mxu0 %v80
  %104 = vmatprep.subr.bf16.mxu0 0
  %105 = vmatpush1.bf16.msra.mxu0 %v81
  %106 = vmatprep.subr.bf16.mxu0 0
  %107 = vmatpush1.bf16.msra.mxu0 0
  %108 = vmatprep.subr.bf16.mxu0 0
  %109 = vmatpush1.bf16.msra.mxu0 0
  %110 = vmatprep.subr.bf16.mxu0 0
  %111 = vmatpush1.bf16.msra.mxu0 0
  %112 = vmatprep.subr.bf16.mxu0 0
  %113 = vmatpush1.bf16.msra.mxu0 0
  %114 = vmatprep.subr.bf16.mxu0 0
  %115 = vmatpush1.bf16.msra.mxu0 0
  %116 = vmatprep.subr.bf16.mxu0 0
  %117 = vmatpush1.bf16.msra.mxu0 0
  %118 = vmatprep.subr.bf16.mxu0 0
  %119 = vmatpush1.bf16.msra.mxu0 0
  %120 = vmatprep.subr.bf16.mxu0 0
  %121 = vmatpush1.bf16.msra.mxu0 0
  %122 = vmatprep.mubr.bf16.mxu0 0
  %123 = vmatmul.mubr.bf16.gmra.mrb[0].mxu0 %v18
  %v124 = vpop.f32.mrb[0].mxu0
  %v125 = vadd.f32 %v40, %v124
  %v126 = vpop.f32.mrb[0].mxu0
  %v127 = vpop.f32.mrb[0].mxu0
  %v128 = vpop.f32.mrb[0].mxu0
  %129 = vdwg.mxu0
  %v130 = vld [vmem:[%s3] sm:$0xf]
  %v131 = vunpack.c.l.bf16 %v130
  %v132 = vadd.f32 %v125, %v131
  %v133 = vmax.f32 %v132, 0.0
  %v134 = vpack.c.bf16 %v133, %v133
  %135 = vst [vmem:[%s4] sm:$0xf] %v134
  // Predicated region
  $region18: #{convnext_encoder_forward.25} parent=0 // pred_check
    _
  $region19: #{convnext_encoder_forward.25} parent=0 // pred_check_branch
    %137 = sbr.rel (0) target = $region21
  $region20: #{convnext_encoder_forward.25} parent=0 // pred_region
    _
  $region21: #{convnext_encoder_forward.25} parent=0 // pred_fallthru
    _
  // Predicated region
  $region22: #{convnext_encoder_forward.25} parent=0 // pred_check
    _
  $region23: #{convnext_encoder_forward.25} parent=0 // pred_check_branch
    %139 = sbr.rel (0) target = $region25
  $region24: #{convnext_encoder_forward.25} parent=0 // pred_region
    _
  $region25: #{convnext_encoder_forward.25} parent=0 // pred_fallthru
    _

</llo_original>
